<compile_context>
chip_gen: v7x
topology: tpu7x:2x2x1
jax: 0.10.0
libtpu: 0.0.40
codegen_flags: <defaults>
</compile_context>

<pallas_src>
import functools
import numpy as np
import jax
import jax.numpy as jnp
from jax import lax
from jax.experimental import pallas as pl
from jax.experimental.pallas import tpu as pltpu

N_OUT_PAD = 128  # lane-dense padded output width


def _window_max_2x2(x, W):
    """Rows of x ordered (b, h, w): m[i] = max(x[i], x[i+1], x[i+W], x[i+W+1]).
    Roll wraparound only touches rows that are never among the kept (even h, even w) rows."""
    M = x.shape[0]
    a = jnp.maximum(x, pltpu.roll(x, shift=M - 1, axis=0))       # pair along w
    return jnp.maximum(a, pltpu.roll(a, shift=M - W, axis=0))    # pair along h


def _cnn_kernel(xp_ref, w1_ref, w2_ref, wfc_ref, bfc_ref, o_ref,
                m1_ref, pat2_ref, m2_ref, *, bblk, H, W, C1, C2):
    H1, W1 = H // 2, W // 2
    Hf, Wf = H1 // 2, W1 // 2
    M1 = bblk * H * W
    M2 = bblk * H1 * W1

    # ---- conv1 (+ReLU): input already im2col'ed in the wrapper -> one MXU dot ----
    y1 = jnp.dot(xp_ref[...], w1_ref[...], preferred_element_type=jnp.float32)
    y1 = jnp.maximum(y1, 0.0)                                    # (M1, C1)

    # ---- pool1: window max, then keep (even h, even w) rows via strided/sliced gathers ----
    m1_ref[...] = _window_max_2x2(y1, W)
    wsel = m1_ref[pl.ds(0, M1 // 2, stride=2), :]                # even w -> rows (b, h, w1)
    # even h: rows arrive in chunks of 2*W1 (one h pair); keep the first W1 rows of each chunk.
    p1 = wsel.reshape(bblk * H1, 2 * W1, C1)[:, :W1, :].reshape(M2, C1)   # rows (b, h1, w1)

    # ---- conv2 (+ReLU): stage 9 rolled+masked taps into a bf16 scratch, one MXU dot ----
    ri = lax.broadcasted_iota(jnp.int32, (M2, 1), 0)             # (M,1) masks, broadcast along lanes
    w_pos = jnp.bitwise_and(ri, W1 - 1)                          # W1, H1 are powers of two
    h_pos = jnp.bitwise_and(jnp.right_shift(ri, W1.bit_length() - 1), H1 - 1)
    ok_u, ok_d = h_pos >= 1, h_pos <= H1 - 2
    ok_l, ok_r = w_pos >= 1, w_pos <= W1 - 2
    for ky in range(3):
        dy = ky - 1
        for kx in range(3):
            dx = kx - 1
            off = dy * W1 + dx
            tap = p1 if off == 0 else pltpu.roll(p1, shift=(-off) % M2, axis=0)
            mask = None
            if dy == -1:
                mask = ok_u
            elif dy == 1:
                mask = ok_d
            if dx == -1:
                mask = ok_l if mask is None else jnp.logical_and(mask, ok_l)
            elif dx == 1:
                mask = ok_r if mask is None else jnp.logical_and(mask, ok_r)
            if mask is not None:
                tap = jnp.where(mask, tap, 0.0)
            k = ky * 3 + kx
            pat2_ref[:, k * C1:(k + 1) * C1] = tap.astype(pat2_ref.dtype)
    y2 = jnp.dot(pat2_ref[...], w2_ref[...], preferred_element_type=jnp.float32)
    y2 = jnp.maximum(y2, 0.0)                                    # (M2, C2)

    # ---- pool2 + flatten + FC ----
    m2_ref[...] = _window_max_2x2(y2, W1)
    # kept row of sample b at site (hf, wf) sits at b*(H1*W1) + 2*hf*W1 + 2*wf: one stride-(H1*W1)
    # sublane gather per site; lane-concat -> (bblk, Sf*C2) FC operand with lanes ordered (s, c).
    parts = [m2_ref[pl.ds(2 * hf * W1 + 2 * wf, bblk, stride=H1 * W1), :]
             for hf in range(Hf) for wf in range(Wf)]
    fc_lhs = jnp.concatenate(parts, axis=1).astype(jnp.bfloat16)          # (bblk, Sf*C2)
    out = jnp.dot(fc_lhs, wfc_ref[...], preferred_element_type=jnp.float32) + bfc_ref[...]
    o_ref[...] = out                                             # (bblk, N_OUT_PAD), unmasked store


def cnn_m_2_forward(x_nchw, w1, w2, wfc, bfc, *, bblk=8):
    """x_nchw: (B, Cin, H, W) (or (B, H, W) -> unsqueezed, like the PyTorch forward).
    Weights in PyTorch conventions: conv (Cout, Cin, 3, 3), linear (n_out, fin)."""
    if x_nchw.ndim == 3:
        x_nchw = x_nchw[:, None]
    B, Cin, H, W = x_nchw.shape
    C1, C2, n_out = w1.shape[0], w2.shape[0], wfc.shape[0]
    assert (H & (H - 1)) == 0 and (W & (W - 1)) == 0 and H % 4 == 0 and W % 4 == 0
    H1, W1, Hf, Wf = H // 2, W // 2, H // 4, W // 4
    Sf = Hf * Wf
    assert wfc.shape[1] == C2 * Sf and n_out <= N_OUT_PAD

    bblk = max(8, ((int(bblk) + 7) // 8) * 8)        # sublane-aligned batch block (v5e: keep <= 8)
    nb = pl.cdiv(B, bblk)                            # v7x: choose bblk so nb >= 2 to use both TCs
    Bp = nb * bblk

    # ---- conv1 im2col in XLA (lane-packs the thin Cin input; removes in-kernel rolls) ----
    xk = jnp.transpose(x_nchw.astype(jnp.float32), (0, 2, 3, 1))          # (B, H, W, Cin)
    if Bp != B:
        xk = jnp.pad(xk, ((0, Bp - B), (0, 0), (0, 0), (0, 0)))
    xpad = jnp.pad(xk, ((0, 0), (1, 1), (1, 1), (0, 0)))
    taps = [xpad[:, ky:ky + H, kx:kx + W, :] for ky in range(3) for kx in range(3)]
    x_im2col = jnp.concatenate(taps, axis=-1).reshape(Bp * H * W, 9 * Cin).astype(jnp.bfloat16)

    # ---- weights: im2col-ordered, bf16; FC weight permuted to rows (s*C2 + c) and lane-padded ----
    w1m = jnp.transpose(w1.astype(jnp.float32), (2, 3, 1, 0)).reshape(9 * Cin, C1).astype(jnp.bfloat16)
    w2m = jnp.transpose(w2.astype(jnp.float32), (2, 3, 1, 0)).reshape(9 * C1, C2).astype(jnp.bfloat16)
    # PyTorch flatten is channel-major (c*Sf + s); kernel lanes are (s*C2 + c) -> permute FC weight.
    wfcm = jnp.transpose(wfc.astype(jnp.float32).reshape(n_out, C2, Sf), (2, 1, 0))
    wfcm = jnp.pad(wfcm.reshape(Sf * C2, n_out), ((0, 0), (0, N_OUT_PAD - n_out))).astype(jnp.bfloat16)
    bfm = jnp.pad(bfc.astype(jnp.float32).reshape(1, n_out), ((0, 0), (0, N_OUT_PAD - n_out)))

    Mx, M2 = bblk * H * W, bblk * H1 * W1
    # Explicit VMEM budget: double-buffered activation/output blocks + single-buffered weights +
    # scratches, with ~3x slack for in-kernel temporaries (y1/y2/window-max values).
    vmem_bytes = (2 * Mx * 9 * Cin * 2 + 2 * bblk * N_OUT_PAD * 4
                  + (9 * Cin * C1 + 9 * C1 * C2 + Sf * C2 * N_OUT_PAD) * 2 + N_OUT_PAD * 4
                  + Mx * C1 * 4 + M2 * 9 * C1 * 2 + M2 * C2 * 4)
    vmem_limit = int(min(100 * 1024 * 1024, max(3 * vmem_bytes, 16 * 1024 * 1024)))

    kern = functools.partial(_cnn_kernel, bblk=bblk, H=H, W=W, C1=C1, C2=C2)
    inv = pl.Buffered(1)  # grid-invariant operands: single-buffered
    out = pl.pallas_call(
        kern,
        out_shape=jax.ShapeDtypeStruct((Bp, N_OUT_PAD), jnp.float32),
        grid=(nb,),
        in_specs=[
            pl.BlockSpec((Mx, 9 * Cin), lambda i: (i, 0)),                          # conv1 patches
            pl.BlockSpec((9 * Cin, C1), lambda i: (0, 0), pipeline_mode=inv),       # conv1 weight
            pl.BlockSpec((9 * C1, C2), lambda i: (0, 0), pipeline_mode=inv),        # conv2 weight
            pl.BlockSpec((Sf * C2, N_OUT_PAD), lambda i: (0, 0), pipeline_mode=inv),  # FC weight
            pl.BlockSpec((1, N_OUT_PAD), lambda i: (0, 0), pipeline_mode=inv),      # FC bias
        ],
        out_specs=pl.BlockSpec((bblk, N_OUT_PAD), lambda i: (i, 0)),
        scratch_shapes=[
            pltpu.VMEM((Mx, C1), jnp.float32),         # pool1 window-max
            pltpu.VMEM((M2, 9 * C1), jnp.bfloat16),    # conv2 im2col patch staging
            pltpu.VMEM((M2, C2), jnp.float32),         # pool2 window-max
        ],
        compiler_params=pltpu.CompilerParams(
            dimension_semantics=("parallel",),
            vmem_limit_bytes=vmem_limit,
        ),
    )(x_im2col, w1m, w2m, wfcm, bfm)
    return out[:B, :n_out]


def ref_forward(x_nchw, w1, w2, wfc, bfc):
    """Pure-JAX f32 reference mirroring the PyTorch module (NCHW, channel-major flatten)."""
    if x_nchw.ndim == 3:
        x_nchw = x_nchw[:, None]
    x = x_nchw.astype(jnp.float32)
    dn = ('NCHW', 'OIHW', 'NCHW')

    def conv(h, w):
        return lax.conv_general_dilated(h, w.astype(jnp.float32), (1, 1), ((1, 1), (1, 1)),
                                        dimension_numbers=dn, precision=lax.Precision.HIGHEST)

    def pool(h):
        Bq, C, Hh, Ww = h.shape
        return h.reshape(Bq, C, Hh // 2, 2, Ww // 2, 2).max(axis=(3, 5))

    h = pool(jax.nn.relu(conv(x, w1)))
    h = pool(jax.nn.relu(conv(h, w2)))
    flat = h.reshape(h.shape[0], -1)
    return jnp.dot(flat, wfc.T.astype(jnp.float32), precision=lax.Precision.HIGHEST) + bfc


if __name__ == "__main__":
    # cnn_m_2('CNN1', input=4, fin=128*(16//4)*(16//4)=2048, output=10), x of shape (2, 4, 16, 16)
    B, Cin, H, W = 2, 4, 16, 16
    C1, C2, n_out = 64, 128, 10
    fin = C2 * (H // 4) * (W // 4)

    key = jax.random.PRNGKey(0)
    k0, k1, k2, k3, k4 = jax.random.split(key, 5)
    x = jax.random.normal(k0, (B, Cin, H, W), jnp.float32)
    w1 = jax.random.normal(k1, (C1, Cin, 3, 3), jnp.float32) * 0.10     # Conv2d weight (Co,Ci,3,3)
    w2 = jax.random.normal(k2, (C2, C1, 3, 3), jnp.float32) * 0.05
    wfc = jax.random.normal(k3, (n_out, fin), jnp.float32) * 0.02       # Linear weight (out, fin)
    bfc = jax.random.normal(k4, (n_out,), jnp.float32) * 0.10

    out = jax.block_until_ready(cnn_m_2_forward(x, w1, w2, wfc, bfc))
    ref = ref_forward(x, w1, w2, wfc, bfc)
    # bf16 MXU operands vs. an f32/HIGHEST reference -> tolerance set for bf16 rounding.
    np.testing.assert_allclose(np.asarray(out), np.asarray(ref), rtol=2e-2, atol=2e-2)
    print("KERNEL_OK")
</pallas_src>

<mosaic_0001>
module attributes {stable_mosaic.version = 11 : i64} {
  func.func @_cnn_kernel(%arg0: i32, %arg1: memref<2048x36xbf16, #tpu.memory_space<vmem>>, %arg2: memref<36x64xbf16, #tpu.memory_space<vmem>>, %arg3: memref<576x128xbf16, #tpu.memory_space<vmem>>, %arg4: memref<2048x128xbf16, #tpu.memory_space<vmem>>, %arg5: memref<1x128xf32, #tpu.memory_space<vmem>>, %arg6: memref<8x128xf32, #tpu.memory_space<vmem>>, %arg7: memref<2048x64xf32, #tpu.memory_space<vmem>>, %arg8: memref<512x576xbf16, #tpu.memory_space<vmem>>, %arg9: memref<512x128xf32, #tpu.memory_space<vmem>>) attributes {dimension_semantics = [#tpu.dimension_semantics<parallel>], iteration_bounds = array<i64: 1>, scalar_prefetch = 0 : i64, scratch_operands = 3 : i64, tpu.core_type = #tpu.core_type<tc>, window_params = [{transform_indices = @transform_0, window_bounds = array<i64: 2048, 36>}, {pipeline_mode = #tpu.pipeline_mode<synchronous>, transform_indices = @transform_1, window_bounds = array<i64: 36, 64>}, {pipeline_mode = #tpu.pipeline_mode<synchronous>, transform_indices = @transform_2, window_bounds = array<i64: 576, 128>}, {pipeline_mode = #tpu.pipeline_mode<synchronous>, transform_indices = @transform_3, window_bounds = array<i64: 2048, 128>}, {pipeline_mode = #tpu.pipeline_mode<synchronous>, transform_indices = @transform_4, window_bounds = array<i64: 1, 128>}, {transform_indices = @transform_5, window_bounds = array<i64: 8, 128>}]} {
    %c0 = arith.constant 0 : index
    %c0_0 = arith.constant 0 : index
    %0 = vector.load %arg1[%c0, %c0_0] : memref<2048x36xbf16, #tpu.memory_space<vmem>>, vector<2048x36xbf16>
    %c0_1 = arith.constant 0 : index
    %c0_2 = arith.constant 0 : index
    %1 = vector.load %arg2[%c0_1, %c0_2] : memref<36x64xbf16, #tpu.memory_space<vmem>>, vector<36x64xbf16>
    %cst = arith.constant dense<0.000000e+00> : vector<2048x64xf32>
    %2 = tpu.matmul %0, %1, %cst {dimension_numbers = #tpu.dot_dimension_numbers<[1], [0], [0], [1], [0, 0, 1, 1], [], []>} : vector<2048x36xbf16>, vector<36x64xbf16>, vector<2048x64xf32> -> vector<2048x64xf32>
    %cst_3 = arith.constant 0.000000e+00 : f32
    %3 = vector.broadcast %cst_3 : f32 to vector<2048x64xf32>
    %4 = arith.maximumf %2, %3 : vector<2048x64xf32>
    %c2047_i32 = arith.constant 2047 : i32
    %5 = tpu.dynamic_rotate %4 by %c2047_i32 dim 0 : vector<2048x64xf32>, i32 -> vector<2048x64xf32>
    %6 = arith.maximumf %4, %5 : vector<2048x64xf32>
    %c2032_i32 = arith.constant 2032 : i32
    %7 = tpu.dynamic_rotate %6 by %c2032_i32 dim 0 : vector<2048x64xf32>, i32 -> vector<2048x64xf32>
    %8 = arith.maximumf %6, %7 : vector<2048x64xf32>
    %c0_4 = arith.constant 0 : index
    %c0_5 = arith.constant 0 : index
    %9 = vector.load %arg7[%c0_4, %c0_5] : memref<2048x64xf32, #tpu.memory_space<vmem>>, vector<2048x64xf32>
    tpu.vector_store %arg7[%c0_4, %c0_5], %8 {strides = array<i32>} : memref<2048x64xf32, #tpu.memory_space<vmem>>, vector<2048x64xf32>,
    %c0_6 = arith.constant 0 : index
    %c0_7 = arith.constant 0 : index
    %10 = tpu.strided_load %arg7[%c0_6, %c0_7] {strides = array<i32: 2, 1>} : memref<2048x64xf32, #tpu.memory_space<vmem>>, vector<1024x64xf32>
    %11 = vector.shape_cast %10 : vector<1024x64xf32> to vector<64x16x64xf32>
    %12 = vector.extract_strided_slice %11 {offsets = [0, 0, 0], sizes = [64, 8, 64], strides = [1, 1, 1]} : vector<64x16x64xf32> to vector<64x8x64xf32>
    %13 = vector.shape_cast %12 : vector<64x8x64xf32> to vector<512x64xf32>
    %14 = tpu.iota {dimensions = array<i32: 0>} : vector<512x1xi32>
    %c7_i32 = arith.constant 7 : i32
    %15 = vector.broadcast %c7_i32 : i32 to vector<512x1xi32>
    %16 = arith.andi %14, %15 : vector<512x1xi32>
    %c3_i32 = arith.constant 3 : i32
    %17 = vector.broadcast %c3_i32 : i32 to vector<512x1xi32>
    %18 = arith.shrsi %14, %17 : vector<512x1xi32>
    %c7_i32_8 = arith.constant 7 : i32
    %19 = vector.broadcast %c7_i32_8 : i32 to vector<512x1xi32>
    %20 = arith.andi %18, %19 : vector<512x1xi32>
    %c1_i32 = arith.constant 1 : i32
    %21 = vector.broadcast %c1_i32 : i32 to vector<512x1xi32>
    %22 = arith.cmpi sge, %20, %21 : vector<512x1xi32>
    %c6_i32 = arith.constant 6 : i32
    %23 = vector.broadcast %c6_i32 : i32 to vector<512x1xi32>
    %24 = arith.cmpi sle, %20, %23 : vector<512x1xi32>
    %c1_i32_9 = arith.constant 1 : i32
    %25 = vector.broadcast %c1_i32_9 : i32 to vector<512x1xi32>
    %26 = arith.cmpi sge, %16, %25 : vector<512x1xi32>
    %c6_i32_10 = arith.constant 6 : i32
    %27 = vector.broadcast %c6_i32_10 : i32 to vector<512x1xi32>
    %28 = arith.cmpi sle, %16, %27 : vector<512x1xi32>
    %c9_i32 = arith.constant 9 : i32
    %29 = tpu.dynamic_rotate %13 by %c9_i32 dim 0 : vector<512x64xf32>, i32 -> vector<512x64xf32>
    %30 = arith.andi %22, %26 : vector<512x1xi1>
    %cst_11 = arith.constant 0.000000e+00 : f32
    %31 = vector.shape_cast %30 : vector<512x1xi1> to vector<512x1xi1>
    %32 = vector.broadcast %31 : vector<512x1xi1> to vector<512x64xi1>
    %33 = vector.broadcast %cst_11 : f32 to vector<512x64xf32>
    %34 = arith.select %32, %29, %33 : vector<512x64xi1>, vector<512x64xf32>
    %35 = arith.truncf %34 : vector<512x64xf32> to vector<512x64xbf16>
    %c0_12 = arith.constant 0 : index
    %c0_13 = arith.constant 0 : index
    %36 = vector.load %arg8[%c0_12, %c0_13] : memref<512x576xbf16, #tpu.memory_space<vmem>>, vector<512x64xbf16>
    tpu.vector_store %arg8[%c0_12, %c0_13], %35 {strides = array<i32>} : memref<512x576xbf16, #tpu.memory_space<vmem>>, vector<512x64xbf16>,
    %c8_i32 = arith.constant 8 : i32
    %37 = tpu.dynamic_rotate %13 by %c8_i32 dim 0 : vector<512x64xf32>, i32 -> vector<512x64xf32>
    %cst_14 = arith.constant 0.000000e+00 : f32
    %38 = vector.shape_cast %22 : vector<512x1xi1> to vector<512x1xi1>
    %39 = vector.broadcast %38 : vector<512x1xi1> to vector<512x64xi1>
    %40 = vector.broadcast %cst_14 : f32 to vector<512x64xf32>
    %41 = arith.select %39, %37, %40 : vector<512x64xi1>, vector<512x64xf32>
    %42 = arith.truncf %41 : vector<512x64xf32> to vector<512x64xbf16>
    %c0_15 = arith.constant 0 : index
    %c64 = arith.constant 64 : index
    %43 = vector.load %arg8[%c0_15, %c64] : memref<512x576xbf16, #tpu.memory_space<vmem>>, vector<512x64xbf16>
    tpu.vector_store %arg8[%c0_15, %c64], %42 {strides = array<i32>} : memref<512x576xbf16, #tpu.memory_space<vmem>>, vector<512x64xbf16>,
    %c7_i32_16 = arith.constant 7 : i32
    %44 = tpu.dynamic_rotate %13 by %c7_i32_16 dim 0 : vector<512x64xf32>, i32 -> vector<512x64xf32>
    %45 = arith.andi %22, %28 : vector<512x1xi1>
    %cst_17 = arith.constant 0.000000e+00 : f32
    %46 = vector.shape_cast %45 : vector<512x1xi1> to vector<512x1xi1>
    %47 = vector.broadcast %46 : vector<512x1xi1> to vector<512x64xi1>
    %48 = vector.broadcast %cst_17 : f32 to vector<512x64xf32>
    %49 = arith.select %47, %44, %48 : vector<512x64xi1>, vector<512x64xf32>
    %50 = arith.truncf %49 : vector<512x64xf32> to vector<512x64xbf16>
    %c0_18 = arith.constant 0 : index
    %c128 = arith.constant 128 : index
    %51 = vector.load %arg8[%c0_18, %c128] : memref<512x576xbf16, #tpu.memory_space<vmem>>, vector<512x64xbf16>
    tpu.vector_store %arg8[%c0_18, %c128], %50 {strides = array<i32>} : memref<512x576xbf16, #tpu.memory_space<vmem>>, vector<512x64xbf16>,
    %c1_i32_19 = arith.constant 1 : i32
    %52 = tpu.dynamic_rotate %13 by %c1_i32_19 dim 0 : vector<512x64xf32>, i32 -> vector<512x64xf32>
    %cst_20 = arith.constant 0.000000e+00 : f32
    %53 = vector.shape_cast %26 : vector<512x1xi1> to vector<512x1xi1>
    %54 = vector.broadcast %53 : vector<512x1xi1> to vector<512x64xi1>
    %55 = vector.broadcast %cst_20 : f32 to vector<512x64xf32>
    %56 = arith.select %54, %52, %55 : vector<512x64xi1>, vector<512x64xf32>
    %57 = arith.truncf %56 : vector<512x64xf32> to vector<512x64xbf16>
    %c0_21 = arith.constant 0 : index
    %c192 = arith.constant 192 : index
    %58 = vector.load %arg8[%c0_21, %c192] : memref<512x576xbf16, #tpu.memory_space<vmem>>, vector<512x64xbf16>
    tpu.vector_store %arg8[%c0_21, %c192], %57 {strides = array<i32>} : memref<512x576xbf16, #tpu.memory_space<vmem>>, vector<512x64xbf16>,
    %59 = arith.truncf %13 : vector<512x64xf32> to vector<512x64xbf16>
    %c0_22 = arith.constant 0 : index
    %c256 = arith.constant 256 : index
    %60 = vector.load %arg8[%c0_22, %c256] : memref<512x576xbf16, #tpu.memory_space<vmem>>, vector<512x64xbf16>
    tpu.vector_store %arg8[%c0_22, %c256], %59 {strides = array<i32>} : memref<512x576xbf16, #tpu.memory_space<vmem>>, vector<512x64xbf16>,
    %c511_i32 = arith.constant 511 : i32
    %61 = tpu.dynamic_rotate %13 by %c511_i32 dim 0 : vector<512x64xf32>, i32 -> vector<512x64xf32>
    %cst_23 = arith.constant 0.000000e+00 : f32
    %62 = vector.shape_cast %28 : vector<512x1xi1> to vector<512x1xi1>
    %63 = vector.broadcast %62 : vector<512x1xi1> to vector<512x64xi1>
    %64 = vector.broadcast %cst_23 : f32 to vector<512x64xf32>
    %65 = arith.select %63, %61, %64 : vector<512x64xi1>, vector<512x64xf32>
    %66 = arith.truncf %65 : vector<512x64xf32> to vector<512x64xbf16>
    %c0_24 = arith.constant 0 : index
    %c320 = arith.constant 320 : index
    %67 = vector.load %arg8[%c0_24, %c320] : memref<512x576xbf16, #tpu.memory_space<vmem>>, vector<512x64xbf16>
    tpu.vector_store %arg8[%c0_24, %c320], %66 {strides = array<i32>} : memref<512x576xbf16, #tpu.memory_space<vmem>>, vector<512x64xbf16>,
    %c505_i32 = arith.constant 505 : i32
    %68 = tpu.dynamic_rotate %13 by %c505_i32 dim 0 : vector<512x64xf32>, i32 -> vector<512x64xf32>
    %69 = arith.andi %24, %26 : vector<512x1xi1>
    %cst_25 = arith.constant 0.000000e+00 : f32
    %70 = vector.shape_cast %69 : vector<512x1xi1> to vector<512x1xi1>
    %71 = vector.broadcast %70 : vector<512x1xi1> to vector<512x64xi1>
    %72 = vector.broadcast %cst_25 : f32 to vector<512x64xf32>
    %73 = arith.select %71, %68, %72 : vector<512x64xi1>, vector<512x64xf32>
    %74 = arith.truncf %73 : vector<512x64xf32> to vector<512x64xbf16>
    %c0_26 = arith.constant 0 : index
    %c384 = arith.constant 384 : index
    %75 = vector.load %arg8[%c0_26, %c384] : memref<512x576xbf16, #tpu.memory_space<vmem>>, vector<512x64xbf16>
    tpu.vector_store %arg8[%c0_26, %c384], %74 {strides = array<i32>} : memref<512x576xbf16, #tpu.memory_space<vmem>>, vector<512x64xbf16>,
    %c504_i32 = arith.constant 504 : i32
    %76 = tpu.dynamic_rotate %13 by %c504_i32 dim 0 : vector<512x64xf32>, i32 -> vector<512x64xf32>
    %cst_27 = arith.constant 0.000000e+00 : f32
    %77 = vector.shape_cast %24 : vector<512x1xi1> to vector<512x1xi1>
    %78 = vector.broadcast %77 : vector<512x1xi1> to vector<512x64xi1>
    %79 = vector.broadcast %cst_27 : f32 to vector<512x64xf32>
    %80 = arith.select %78, %76, %79 : vector<512x64xi1>, vector<512x64xf32>
    %81 = arith.truncf %80 : vector<512x64xf32> to vector<512x64xbf16>
    %c0_28 = arith.constant 0 : index
    %c448 = arith.constant 448 : index
    %82 = vector.load %arg8[%c0_28, %c448] : memref<512x576xbf16, #tpu.memory_space<vmem>>, vector<512x64xbf16>
    tpu.vector_store %arg8[%c0_28, %c448], %81 {strides = array<i32>} : memref<512x576xbf16, #tpu.memory_space<vmem>>, vector<512x64xbf16>,
    %c503_i32 = arith.constant 503 : i32
    %83 = tpu.dynamic_rotate %13 by %c503_i32 dim 0 : vector<512x64xf32>, i32 -> vector<512x64xf32>
    %84 = arith.andi %24, %28 : vector<512x1xi1>
    %cst_29 = arith.constant 0.000000e+00 : f32
    %85 = vector.shape_cast %84 : vector<512x1xi1> to vector<512x1xi1>
    %86 = vector.broadcast %85 : vector<512x1xi1> to vector<512x64xi1>
    %87 = vector.broadcast %cst_29 : f32 to vector<512x64xf32>
    %88 = arith.select %86, %83, %87 : vector<512x64xi1>, vector<512x64xf32>
    %89 = arith.truncf %88 : vector<512x64xf32> to vector<512x64xbf16>
    %c0_30 = arith.constant 0 : index
    %c512 = arith.constant 512 : index
    %90 = vector.load %arg8[%c0_30, %c512] : memref<512x576xbf16, #tpu.memory_space<vmem>>, vector<512x64xbf16>
    tpu.vector_store %arg8[%c0_30, %c512], %89 {strides = array<i32>} : memref<512x576xbf16, #tpu.memory_space<vmem>>, vector<512x64xbf16>,
    %c0_31 = arith.constant 0 : index
    %c0_32 = arith.constant 0 : index
    %91 = vector.load %arg8[%c0_31, %c0_32] : memref<512x576xbf16, #tpu.memory_space<vmem>>, vector<512x576xbf16>
    %c0_33 = arith.constant 0 : index
    %c0_34 = arith.constant 0 : index
    %92 = vector.load %arg3[%c0_33, %c0_34] : memref<576x128xbf16, #tpu.memory_space<vmem>>, vector<576x128xbf16>
    %cst_35 = arith.constant dense<0.000000e+00> : vector<512x128xf32>
    %93 = tpu.matmul %91, %92, %cst_35 {dimension_numbers = #tpu.dot_dimension_numbers<[1], [0], [0], [1], [0, 0, 1, 1], [], []>} : vector<512x576xbf16>, vector<576x128xbf16>, vector<512x128xf32> -> vector<512x128xf32>
    %cst_36 = arith.constant 0.000000e+00 : f32
    %94 = vector.broadcast %cst_36 : f32 to vector<512x128xf32>
    %95 = arith.maximumf %93, %94 : vector<512x128xf32>
    %c511_i32_37 = arith.constant 511 : i32
    %96 = tpu.dynamic_rotate %95 by %c511_i32_37 dim 0 : vector<512x128xf32>, i32 -> vector<512x128xf32>
    %97 = arith.maximumf %95, %96 : vector<512x128xf32>
    %c504_i32_38 = arith.constant 504 : i32
    %98 = tpu.dynamic_rotate %97 by %c504_i32_38 dim 0 : vector<512x128xf32>, i32 -> vector<512x128xf32>
    %99 = arith.maximumf %97, %98 : vector<512x128xf32>
    %c0_39 = arith.constant 0 : index
    %c0_40 = arith.constant 0 : index
    %100 = vector.load %arg9[%c0_39, %c0_40] : memref<512x128xf32, #tpu.memory_space<vmem>>, vector<512x128xf32>
    tpu.vector_store %arg9[%c0_39, %c0_40], %99 {strides = array<i32>} : memref<512x128xf32, #tpu.memory_space<vmem>>, vector<512x128xf32>,
    %c0_41 = arith.constant 0 : index
    %c0_42 = arith.constant 0 : index
    %101 = tpu.strided_load %arg9[%c0_41, %c0_42] {strides = array<i32: 64, 1>} : memref<512x128xf32, #tpu.memory_space<vmem>>, vector<8x128xf32>
    %c2 = arith.constant 2 : index
    %c0_43 = arith.constant 0 : index
    %102 = tpu.strided_load %arg9[%c2, %c0_43] {strides = array<i32: 64, 1>} : memref<512x128xf32, #tpu.memory_space<vmem>>, vector<8x128xf32>
    %c4 = arith.constant 4 : index
    %c0_44 = arith.constant 0 : index
    %103 = tpu.strided_load %arg9[%c4, %c0_44] {strides = array<i32: 64, 1>} : memref<512x128xf32, #tpu.memory_space<vmem>>, vector<8x128xf32>
    %c6 = arith.constant 6 : index
    %c0_45 = arith.constant 0 : index
    %104 = tpu.strided_load %arg9[%c6, %c0_45] {strides = array<i32: 64, 1>} : memref<512x128xf32, #tpu.memory_space<vmem>>, vector<8x128xf32>
    %c16 = arith.constant 16 : index
    %c0_46 = arith.constant 0 : index
    %105 = tpu.strided_load %arg9[%c16, %c0_46] {strides = array<i32: 64, 1>} : memref<512x128xf32, #tpu.memory_space<vmem>>, vector<8x128xf32>
    %c18 = arith.constant 18 : index
    %c0_47 = arith.constant 0 : index
    %106 = tpu.strided_load %arg9[%c18, %c0_47] {strides = array<i32: 64, 1>} : memref<512x128xf32, #tpu.memory_space<vmem>>, vector<8x128xf32>
    %c20 = arith.constant 20 : index
    %c0_48 = arith.constant 0 : index
    %107 = tpu.strided_load %arg9[%c20, %c0_48] {strides = array<i32: 64, 1>} : memref<512x128xf32, #tpu.memory_space<vmem>>, vector<8x128xf32>
    %c22 = arith.constant 22 : index
    %c0_49 = arith.constant 0 : index
    %108 = tpu.strided_load %arg9[%c22, %c0_49] {strides = array<i32: 64, 1>} : memref<512x128xf32, #tpu.memory_space<vmem>>, vector<8x128xf32>
    %c32 = arith.constant 32 : index
    %c0_50 = arith.constant 0 : index
    %109 = tpu.strided_load %arg9[%c32, %c0_50] {strides = array<i32: 64, 1>} : memref<512x128xf32, #tpu.memory_space<vmem>>, vector<8x128xf32>
    %c34 = arith.constant 34 : index
    %c0_51 = arith.constant 0 : index
    %110 = tpu.strided_load %arg9[%c34, %c0_51] {strides = array<i32: 64, 1>} : memref<512x128xf32, #tpu.memory_space<vmem>>, vector<8x128xf32>
    %c36 = arith.constant 36 : index
    %c0_52 = arith.constant 0 : index
    %111 = tpu.strided_load %arg9[%c36, %c0_52] {strides = array<i32: 64, 1>} : memref<512x128xf32, #tpu.memory_space<vmem>>, vector<8x128xf32>
    %c38 = arith.constant 38 : index
    %c0_53 = arith.constant 0 : index
    %112 = tpu.strided_load %arg9[%c38, %c0_53] {strides = array<i32: 64, 1>} : memref<512x128xf32, #tpu.memory_space<vmem>>, vector<8x128xf32>
    %c48 = arith.constant 48 : index
    %c0_54 = arith.constant 0 : index
    %113 = tpu.strided_load %arg9[%c48, %c0_54] {strides = array<i32: 64, 1>} : memref<512x128xf32, #tpu.memory_space<vmem>>, vector<8x128xf32>
    %c50 = arith.constant 50 : index
    %c0_55 = arith.constant 0 : index
    %114 = tpu.strided_load %arg9[%c50, %c0_55] {strides = array<i32: 64, 1>} : memref<512x128xf32, #tpu.memory_space<vmem>>, vector<8x128xf32>
    %c52 = arith.constant 52 : index
    %c0_56 = arith.constant 0 : index
    %115 = tpu.strided_load %arg9[%c52, %c0_56] {strides = array<i32: 64, 1>} : memref<512x128xf32, #tpu.memory_space<vmem>>, vector<8x128xf32>
    %c54 = arith.constant 54 : index
    %c0_57 = arith.constant 0 : index
    %116 = tpu.strided_load %arg9[%c54, %c0_57] {strides = array<i32: 64, 1>} : memref<512x128xf32, #tpu.memory_space<vmem>>, vector<8x128xf32>
    %117 = tpu.concatenate %101, %102, %103, %104, %105, %106, %107, %108, %109, %110, %111, %112, %113, %114, %115, %116 in 1 : vector<8x128xf32>, vector<8x128xf32>, vector<8x128xf32>, vector<8x128xf32>, vector<8x128xf32>, vector<8x128xf32>, vector<8x128xf32>, vector<8x128xf32>, vector<8x128xf32>, vector<8x128xf32>, vector<8x128xf32>, vector<8x128xf32>, vector<8x128xf32>, vector<8x128xf32>, vector<8x128xf32>, vector<8x128xf32> -> vector<8x2048xf32>
    %118 = arith.truncf %117 : vector<8x2048xf32> to vector<8x2048xbf16>
    %c0_58 = arith.constant 0 : index
    %c0_59 = arith.constant 0 : index
    %119 = vector.load %arg4[%c0_58, %c0_59] : memref<2048x128xbf16, #tpu.memory_space<vmem>>, vector<2048x128xbf16>
    %cst_60 = arith.constant dense<0.000000e+00> : vector<8x128xf32>
    %120 = tpu.matmul %118, %119, %cst_60 {dimension_numbers = #tpu.dot_dimension_numbers<[1], [0], [0], [1], [0, 0, 1, 1], [], []>} : vector<8x2048xbf16>, vector<2048x128xbf16>, vector<8x128xf32> -> vector<8x128xf32>
    %c0_61 = arith.constant 0 : index
    %c0_62 = arith.constant 0 : index
    %121 = vector.load %arg5[%c0_61, %c0_62] : memref<1x128xf32, #tpu.memory_space<vmem>>, vector<1x128xf32>
    %122 = vector.broadcast %121 : vector<1x128xf32> to vector<8x128xf32>
    %123 = arith.addf %120, %122 : vector<8x128xf32>
    %c0_63 = arith.constant 0 : index
    %c0_64 = arith.constant 0 : index
    %124 = vector.load %arg6[%c0_63, %c0_64] : memref<8x128xf32, #tpu.memory_space<vmem>>, vector<8x128xf32>
    tpu.vector_store %arg6[%c0_63, %c0_64], %123 {strides = array<i32>} : memref<8x128xf32, #tpu.memory_space<vmem>>, vector<8x128xf32>,
    return
  }
  func.func @transform_0(%arg0: i32) -> (i32, i32) {
    %c0_i32 = arith.constant 0 : i32
    %c0_i32_0 = arith.constant 0 : i32
    return %arg0, %c0_i32 : i32, i32
  }
  func.func @transform_1(%arg0: i32) -> (i32, i32) {
    %c0_i32 = arith.constant 0 : i32
    %c0_i32_0 = arith.constant 0 : i32
    %c0_i32_1 = arith.constant 0 : i32
    return %c0_i32, %c0_i32_0 : i32, i32
  }
  func.func @transform_2(%arg0: i32) -> (i32, i32) {
    %c0_i32 = arith.constant 0 : i32
    %c0_i32_0 = arith.constant 0 : i32
    %c0_i32_1 = arith.constant 0 : i32
    return %c0_i32, %c0_i32_0 : i32, i32
  }
  func.func @transform_3(%arg0: i32) -> (i32, i32) {
    %c0_i32 = arith.constant 0 : i32
    %c0_i32_0 = arith.constant 0 : i32
    %c0_i32_1 = arith.constant 0 : i32
    return %c0_i32, %c0_i32_0 : i32, i32
  }
  func.func @transform_4(%arg0: i32) -> (i32, i32) {
    %c0_i32 = arith.constant 0 : i32
    %c0_i32_0 = arith.constant 0 : i32
    %c0_i32_1 = arith.constant 0 : i32
    return %c0_i32, %c0_i32_0 : i32, i32
  }
  func.func @transform_5(%arg0: i32) -> (i32, i32) {
    %c0_i32 = arith.constant 0 : i32
    %c0_i32_0 = arith.constant 0 : i32
    return %arg0, %c0_i32 : i32, i32
  }
}

</mosaic_0001>

<llo_original>
// kernel: tpu_custom_call.1
$region0: #{tpu_custom_call.1}
  #allocation0 [shape = 'u32[]', space=smem, size = 0x4, offset = 0x4, fixed_abs, tag = 'smem constant byte address 0x4 - core index']
  #allocation1 [shape = 'u32[144,128]{1,0:T(1,128)}', space=vmem, size = 0x12000, scoped, tag = 'internal scratch']
  #allocation2 [shape = 'f32[2048,64]{1,0:T(8,128)}', space=vmem, size = 0x100000, scoped, tag = 'scratch operand']
  #allocation3 [shape = 'bf16[512,576]{1,0:T(16,128)(2,1)}', space=vmem, size = 0xa0000, scoped, tag = 'scratch operand']
  #allocation4 [shape = 'f32[512,128]{1,0:T(8,128)}', space=vmem, size = 0x40000, scoped, tag = 'scratch operand']
  %s0 = inlined_call_operand.vmem [shape: bf16[2048,36], index: 0, kind: input, shape index: {}]
  %s1 = inlined_call_operand.vmem [shape: bf16[36,64], index: 1, kind: input, shape index: {}]
  %s2 = inlined_call_operand.vmem [shape: bf16[576,128], index: 2, kind: input, shape index: {}]
  %s3 = inlined_call_operand.vmem [shape: bf16[2048,128], index: 3, kind: input, shape index: {}]
  %s4 = inlined_call_operand.vmem [shape: f32[1,128], index: 4, kind: input, shape index: {}]
  %s5 = inlined_call_operand.hbm [shape: f32[8,128], index: 5, kind: output, shape index: {}]
  %s6 = sld [smem:[#allocation0]]
  $region30: #{tpu_custom_call.1} parent=0
    _
  %s8 = ssub.s32 1, %s6
  %s9 = scalar_select 0, %s8, %s6
  $region1: #{tpu_custom_call.1} parent=0
    #allocation5 [shape = 'u8[4096]{0}', space=vmem, size = 0x1000, scoped, tag = 'output window, operand 0, single buffered']
    #allocation6 [shape = 's32[1]{0}', space=sflag, size = 0x4, scoped, tag = 'scoped memory for tpu_custom_call.1']
    %10 = vsyncpa [#allocation6], 0
    // Predicated region
    $region2: #{tpu_custom_call.1} parent=1 // pred_check
      _
    $region3: #{tpu_custom_call.1} parent=1 // pred_check_branch
      %12 = sbr.rel (0) target = $region5
    $region4: #{tpu_custom_call.1} parent=1 // pred_region
      _
    $region5: #{tpu_custom_call.1} parent=1 // pred_fallthru
      _
    // Predicated region
    $region6: #{tpu_custom_call.1} parent=1 // pred_check
      _
    $region7: #{tpu_custom_call.1} parent=1 // pred_check_branch
      %14 = sbr.rel (0) target = $region9
    $region8: #{tpu_custom_call.1} parent=1 // pred_region
      _
    $region9: #{tpu_custom_call.1} parent=1 // pred_fallthru
      _
    // Predicated region
    $region10: #{tpu_custom_call.1} parent=1 // pred_check
      _
    $region11: #{tpu_custom_call.1} parent=1 // pred_check_branch
      %16 = sbr.rel (0) target = $region13
    $region12: #{tpu_custom_call.1} parent=1 // pred_region
      _
    $region13: #{tpu_custom_call.1} parent=1 // pred_fallthru
      _
    // Predicated region
    $region14: #{tpu_custom_call.1} parent=1 // pred_check
      _
    $region15: #{tpu_custom_call.1} parent=1 // pred_check_branch
      %18 = sbr.rel (0) target = $region17
    $region16: #{tpu_custom_call.1} parent=1 // pred_region
      _
    $region17: #{tpu_custom_call.1} parent=1 // pred_fallthru
      _
    // Predicated region
    $region18: #{tpu_custom_call.1} parent=1 // pred_check
      _
    $region19: #{tpu_custom_call.1} parent=1 // pred_check_branch
      %20 = sbr.rel (0) target = $region21
    $region20: #{tpu_custom_call.1} parent=1 // pred_region
      _
    $region21: #{tpu_custom_call.1} parent=1 // pred_fallthru
      _
    %v22 = vld [vmem:[%s0] sm:$0xf]
    %v23 = vld [vmem:[%s0 + $0x4] sm:$0xf]
    %v24 = vld [vmem:[%s0 + $0x8] sm:$0xf]
    %v25 = vld [vmem:[%s0 + $0xc] sm:$0xf]
    %v26 = vld [vmem:[%s0 + $0x10] sm:$0xf]
    %v27 = vld [vmem:[%s0 + $0x14] sm:$0xf]
    %v28 = vld [vmem:[%s0 + $0x18] sm:$0xf]
    %v29 = vld [vmem:[%s0 + $0x1c] sm:$0xf]
    %v30 = vld [vmem:[%s0 + $0x20] sm:$0xf]
    %v31 = vld [vmem:[%s0 + $0x24] sm:$0xf]
    %v32 = vld [vmem:[%s0 + $0x28] sm:$0xf]
    %v33 = vld [vmem:[%s0 + $0x2c] sm:$0xf]
    %v34 = vld [vmem:[%s0 + $0x30] sm:$0xf]
    %v35 = vld [vmem:[%s0 + $0x34] sm:$0xf]
    %v36 = vld [vmem:[%s0 + $0x38] sm:$0xf]
    %v37 = vld [vmem:[%s0 + $0x3c] sm:$0xf]
    %v38 = vld [vmem:[%s0 + $0x40] sm:$0xf]
    %v39 = vld [vmem:[%s0 + $0x44] sm:$0xf]
    %v40 = vld [vmem:[%s0 + $0x48] sm:$0xf]
    %v41 = vld [vmem:[%s0 + $0x4c] sm:$0xf]
    %v42 = vld [vmem:[%s0 + $0x50] sm:$0xf]
    %v43 = vld [vmem:[%s0 + $0x54] sm:$0xf]
    %v44 = vld [vmem:[%s0 + $0x58] sm:$0xf]
    %v45 = vld [vmem:[%s0 + $0x5c] sm:$0xf]
    %v46 = vld [vmem:[%s0 + $0x60] sm:$0xf]
    %v47 = vld [vmem:[%s0 + $0x64] sm:$0xf]
    %v48 = vld [vmem:[%s0 + $0x68] sm:$0xf]
    %v49 = vld [vmem:[%s0 + $0x6c] sm:$0xf]
    %v50 = vld [vmem:[%s0 + $0x70] sm:$0xf]
    %v51 = vld [vmem:[%s0 + $0x74] sm:$0xf]
    %v52 = vld [vmem:[%s0 + $0x78] sm:$0xf]
    %v53 = vld [vmem:[%s0 + $0x7c] sm:$0xf]
    %v54 = vld [vmem:[%s0 + $0x80] sm:$0xf]
    %v55 = vld [vmem:[%s0 + $0x84] sm:$0xf]
    %v56 = vld [vmem:[%s0 + $0x88] sm:$0xf]
    %v57 = vld [vmem:[%s0 + $0x8c] sm:$0xf]
    %v58 = vld [vmem:[%s0 + $0x90] sm:$0xf]
    %v59 = vld [vmem:[%s0 + $0x94] sm:$0xf]
    %v60 = vld [vmem:[%s0 + $0x98] sm:$0xf]
    %v61 = vld [vmem:[%s0 + $0x9c] sm:$0xf]
    %v62 = vld [vmem:[%s0 + $0xa0] sm:$0xf]
    %v63 = vld [vmem:[%s0 + $0xa4] sm:$0xf]
    %v64 = vld [vmem:[%s0 + $0xa8] sm:$0xf]
    %v65 = vld [vmem:[%s0 + $0xac] sm:$0xf]
    %v66 = vld [vmem:[%s0 + $0xb0] sm:$0xf]
    %v67 = vld [vmem:[%s0 + $0xb4] sm:$0xf]
    %v68 = vld [vmem:[%s0 + $0xb8] sm:$0xf]
    %v69 = vld [vmem:[%s0 + $0xbc] sm:$0xf]
    %v70 = vld [vmem:[%s0 + $0xc0] sm:$0xf]
    %v71 = vld [vmem:[%s0 + $0xc4] sm:$0xf]
    %v72 = vld [vmem:[%s0 + $0xc8] sm:$0xf]
    %v73 = vld [vmem:[%s0 + $0xcc] sm:$0xf]
    %v74 = vld [vmem:[%s0 + $0xd0] sm:$0xf]
    %v75 = vld [vmem:[%s0 + $0xd4] sm:$0xf]
    %v76 = vld [vmem:[%s0 + $0xd8] sm:$0xf]
    %v77 = vld [vmem:[%s0 + $0xdc] sm:$0xf]
    %v78 = vld [vmem:[%s0 + $0xe0] sm:$0xf]
    %v79 = vld [vmem:[%s0 + $0xe4] sm:$0xf]
    %v80 = vld [vmem:[%s0 + $0xe8] sm:$0xf]
    %v81 = vld [vmem:[%s0 + $0xec] sm:$0xf]
    %v82 = vld [vmem:[%s0 + $0xf0] sm:$0xf]
    %v83 = vld [vmem:[%s0 + $0xf4] sm:$0xf]
    %v84 = vld [vmem:[%s0 + $0xf8] sm:$0xf]
    %v85 = vld [vmem:[%s0 + $0xfc] sm:$0xf]
    %v86 = vld [vmem:[%s0 + $0x100] sm:$0xf]
    %v87 = vld [vmem:[%s0 + $0x104] sm:$0xf]
    %v88 = vld [vmem:[%s0 + $0x108] sm:$0xf]
    %v89 = vld [vmem:[%s0 + $0x10c] sm:$0xf]
    %v90 = vld [vmem:[%s0 + $0x110] sm:$0xf]
    %v91 = vld [vmem:[%s0 + $0x114] sm:$0xf]
    %v92 = vld [vmem:[%s0 + $0x118] sm:$0xf]
    %v93 = vld [vmem:[%s0 + $0x11c] sm:$0xf]
    %v94 = vld [vmem:[%s0 + $0x120] sm:$0xf]
    %v95 = vld [vmem:[%s0 + $0x124] sm:$0xf]
    %v96 = vld [vmem:[%s0 + $0x128] sm:$0xf]
    %v97 = vld [vmem:[%s0 + $0x12c] sm:$0xf]
    %v98 = vld [vmem:[%s0 + $0x130] sm:$0xf]
    %v99 = vld [vmem:[%s0 + $0x134] sm:$0xf]
    %v100 = vld [vmem:[%s0 + $0x138] sm:$0xf]
    %v101 = vld [vmem:[%s0 + $0x13c] sm:$0xf]
    %v102 = vld [vmem:[%s0 + $0x140] sm:$0xf]
    %v103 = vld [vmem:[%s0 + $0x144] sm:$0xf]
    %v104 = vld [vmem:[%s0 + $0x148] sm:$0xf]
    %v105 = vld [vmem:[%s0 + $0x14c] sm:$0xf]
    %v106 = vld [vmem:[%s0 + $0x150] sm:$0xf]
    %v107 = vld [vmem:[%s0 + $0x154] sm:$0xf]
    %v108 = vld [vmem:[%s0 + $0x158] sm:$0xf]
    %v109 = vld [vmem:[%s0 + $0x15c] sm:$0xf]
    %v110 = vld [vmem:[%s0 + $0x160] sm:$0xf]
    %v111 = vld [vmem:[%s0 + $0x164] sm:$0xf]
    %v112 = vld [vmem:[%s0 + $0x168] sm:$0xf]
    %v113 = vld [vmem:[%s0 + $0x16c] sm:$0xf]
    %v114 = vld [vmem:[%s0 + $0x170] sm:$0xf]
    %v115 = vld [vmem:[%s0 + $0x174] sm:$0xf]
    %v116 = vld [vmem:[%s0 + $0x178] sm:$0xf]
    %v117 = vld [vmem:[%s0 + $0x17c] sm:$0xf]
    %v118 = vld [vmem:[%s0 + $0x180] sm:$0xf]
    %v119 = vld [vmem:[%s0 + $0x184] sm:$0xf]
    %v120 = vld [vmem:[%s0 + $0x188] sm:$0xf]
    %v121 = vld [vmem:[%s0 + $0x18c] sm:$0xf]
    %v122 = vld [vmem:[%s0 + $0x190] sm:$0xf]
    %v123 = vld [vmem:[%s0 + $0x194] sm:$0xf]
    %v124 = vld [vmem:[%s0 + $0x198] sm:$0xf]
    %v125 = vld [vmem:[%s0 + $0x19c] sm:$0xf]
    %v126 = vld [vmem:[%s0 + $0x1a0] sm:$0xf]
    %v127 = vld [vmem:[%s0 + $0x1a4] sm:$0xf]
    %v128 = vld [vmem:[%s0 + $0x1a8] sm:$0xf]
    %v129 = vld [vmem:[%s0 + $0x1ac] sm:$0xf]
    %v130 = vld [vmem:[%s0 + $0x1b0] sm:$0xf]
    %v131 = vld [vmem:[%s0 + $0x1b4] sm:$0xf]
    %v132 = vld [vmem:[%s0 + $0x1b8] sm:$0xf]
    %v133 = vld [vmem:[%s0 + $0x1bc] sm:$0xf]
    %v134 = vld [vmem:[%s0 + $0x1c0] sm:$0xf]
    %v135 = vld [vmem:[%s0 + $0x1c4] sm:$0xf]
    %v136 = vld [vmem:[%s0 + $0x1c8] sm:$0xf]
    %v137 = vld [vmem:[%s0 + $0x1cc] sm:$0xf]
    %v138 = vld [vmem:[%s0 + $0x1d0] sm:$0xf]
    %v139 = vld [vmem:[%s0 + $0x1d4] sm:$0xf]
    %v140 = vld [vmem:[%s0 + $0x1d8] sm:$0xf]
    %v141 = vld [vmem:[%s0 + $0x1dc] sm:$0xf]
    %v142 = vld [vmem:[%s0 + $0x1e0] sm:$0xf]
    %v143 = vld [vmem:[%s0 + $0x1e4] sm:$0xf]
    %v144 = vld [vmem:[%s0 + $0x1e8] sm:$0xf]
    %v145 = vld [vmem:[%s0 + $0x1ec] sm:$0xf]
    %v146 = vld [vmem:[%s0 + $0x1f0] sm:$0xf]
    %v147 = vld [vmem:[%s0 + $0x1f4] sm:$0xf]
    %v148 = vld [vmem:[%s0 + $0x1f8] sm:$0xf]
    %v149 = vld [vmem:[%s0 + $0x1fc] sm:$0xf]
    %v150 = vld [vmem:[%s0 + $0x200] sm:$0xf]
    %v151 = vld [vmem:[%s0 + $0x204] sm:$0xf]
    %v152 = vld [vmem:[%s0 + $0x208] sm:$0xf]
    %v153 = vld [vmem:[%s0 + $0x20c] sm:$0xf]
    %v154 = vld [vmem:[%s0 + $0x210] sm:$0xf]
    %v155 = vld [vmem:[%s0 + $0x214] sm:$0xf]
    %v156 = vld [vmem:[%s0 + $0x218] sm:$0xf]
    %v157 = vld [vmem:[%s0 + $0x21c] sm:$0xf]
    %v158 = vld [vmem:[%s0 + $0x220] sm:$0xf]
    %v159 = vld [vmem:[%s0 + $0x224] sm:$0xf]
    %v160 = vld [vmem:[%s0 + $0x228] sm:$0xf]
    %v161 = vld [vmem:[%s0 + $0x22c] sm:$0xf]
    %v162 = vld [vmem:[%s0 + $0x230] sm:$0xf]
    %v163 = vld [vmem:[%s0 + $0x234] sm:$0xf]
    %v164 = vld [vmem:[%s0 + $0x238] sm:$0xf]
    %v165 = vld [vmem:[%s0 + $0x23c] sm:$0xf]
    %v166 = vld [vmem:[%s0 + $0x240] sm:$0xf]
    %v167 = vld [vmem:[%s0 + $0x244] sm:$0xf]
    %v168 = vld [vmem:[%s0 + $0x248] sm:$0xf]
    %v169 = vld [vmem:[%s0 + $0x24c] sm:$0xf]
    %v170 = vld [vmem:[%s0 + $0x250] sm:$0xf]
    %v171 = vld [vmem:[%s0 + $0x254] sm:$0xf]
    %v172 = vld [vmem:[%s0 + $0x258] sm:$0xf]
    %v173 = vld [vmem:[%s0 + $0x25c] sm:$0xf]
    %v174 = vld [vmem:[%s0 + $0x260] sm:$0xf]
    %v175 = vld [vmem:[%s0 + $0x264] sm:$0xf]
    %v176 = vld [vmem:[%s0 + $0x268] sm:$0xf]
    %v177 = vld [vmem:[%s0 + $0x26c] sm:$0xf]
    %v178 = vld [vmem:[%s0 + $0x270] sm:$0xf]
    %v179 = vld [vmem:[%s0 + $0x274] sm:$0xf]
    %v180 = vld [vmem:[%s0 + $0x278] sm:$0xf]
    %v181 = vld [vmem:[%s0 + $0x27c] sm:$0xf]
    %v182 = vld [vmem:[%s0 + $0x280] sm:$0xf]
    %v183 = vld [vmem:[%s0 + $0x284] sm:$0xf]
    %v184 = vld [vmem:[%s0 + $0x288] sm:$0xf]
    %v185 = vld [vmem:[%s0 + $0x28c] sm:$0xf]
    %v186 = vld [vmem:[%s0 + $0x290] sm:$0xf]
    %v187 = vld [vmem:[%s0 + $0x294] sm:$0xf]
    %v188 = vld [vmem:[%s0 + $0x298] sm:$0xf]
    %v189 = vld [vmem:[%s0 + $0x29c] sm:$0xf]
    %v190 = vld [vmem:[%s0 + $0x2a0] sm:$0xf]
    %v191 = vld [vmem:[%s0 + $0x2a4] sm:$0xf]
    %v192 = vld [vmem:[%s0 + $0x2a8] sm:$0xf]
    %v193 = vld [vmem:[%s0 + $0x2ac] sm:$0xf]
    %v194 = vld [vmem:[%s0 + $0x2b0] sm:$0xf]
    %v195 = vld [vmem:[%s0 + $0x2b4] sm:$0xf]
    %v196 = vld [vmem:[%s0 + $0x2b8] sm:$0xf]
    %v197 = vld [vmem:[%s0 + $0x2bc] sm:$0xf]
    %v198 = vld [vmem:[%s0 + $0x2c0] sm:$0xf]
    %v199 = vld [vmem:[%s0 + $0x2c4] sm:$0xf]
    %v200 = vld [vmem:[%s0 + $0x2c8] sm:$0xf]
    %v201 = vld [vmem:[%s0 + $0x2cc] sm:$0xf]
    %v202 = vld [vmem:[%s0 + $0x2d0] sm:$0xf]
    %v203 = vld [vmem:[%s0 + $0x2d4] sm:$0xf]
    %v204 = vld [vmem:[%s0 + $0x2d8] sm:$0xf]
    %v205 = vld [vmem:[%s0 + $0x2dc] sm:$0xf]
    %v206 = vld [vmem:[%s0 + $0x2e0] sm:$0xf]
    %v207 = vld [vmem:[%s0 + $0x2e4] sm:$0xf]
    %v208 = vld [vmem:[%s0 + $0x2e8] sm:$0xf]
    %v209 = vld [vmem:[%s0 + $0x2ec] sm:$0xf]
    %v210 = vld [vmem:[%s0 + $0x2f0] sm:$0xf]
    %v211 = vld [vmem:[%s0 + $0x2f4] sm:$0xf]
    %v212 = vld [vmem:[%s0 + $0x2f8] sm:$0xf]
    %v213 = vld [vmem:[%s0 + $0x2fc] sm:$0xf]
    %v214 = vld [vmem:[%s0 + $0x300] sm:$0xf]
    %v215 = vld [vmem:[%s0 + $0x304] sm:$0xf]
    %v216 = vld [vmem:[%s0 + $0x308] sm:$0xf]
    %v217 = vld [vmem:[%s0 + $0x30c] sm:$0xf]
    %v218 = vld [vmem:[%s0 + $0x310] sm:$0xf]
    %v219 = vld [vmem:[%s0 + $0x314] sm:$0xf]
    %v220 = vld [vmem:[%s0 + $0x318] sm:$0xf]
    %v221 = vld [vmem:[%s0 + $0x31c] sm:$0xf]
    %v222 = vld [vmem:[%s0 + $0x320] sm:$0xf]
    %v223 = vld [vmem:[%s0 + $0x324] sm:$0xf]
    %v224 = vld [vmem:[%s0 + $0x328] sm:$0xf]
    %v225 = vld [vmem:[%s0 + $0x32c] sm:$0xf]
    %v226 = vld [vmem:[%s0 + $0x330] sm:$0xf]
    %v227 = vld [vmem:[%s0 + $0x334] sm:$0xf]
    %v228 = vld [vmem:[%s0 + $0x338] sm:$0xf]
    %v229 = vld [vmem:[%s0 + $0x33c] sm:$0xf]
    %v230 = vld [vmem:[%s0 + $0x340] sm:$0xf]
    %v231 = vld [vmem:[%s0 + $0x344] sm:$0xf]
    %v232 = vld [vmem:[%s0 + $0x348] sm:$0xf]
    %v233 = vld [vmem:[%s0 + $0x34c] sm:$0xf]
    %v234 = vld [vmem:[%s0 + $0x350] sm:$0xf]
    %v235 = vld [vmem:[%s0 + $0x354] sm:$0xf]
    %v236 = vld [vmem:[%s0 + $0x358] sm:$0xf]
    %v237 = vld [vmem:[%s0 + $0x35c] sm:$0xf]
    %v238 = vld [vmem:[%s0 + $0x360] sm:$0xf]
    %v239 = vld [vmem:[%s0 + $0x364] sm:$0xf]
    %v240 = vld [vmem:[%s0 + $0x368] sm:$0xf]
    %v241 = vld [vmem:[%s0 + $0x36c] sm:$0xf]
    %v242 = vld [vmem:[%s0 + $0x370] sm:$0xf]
    %v243 = vld [vmem:[%s0 + $0x374] sm:$0xf]
    %v244 = vld [vmem:[%s0 + $0x378] sm:$0xf]
    %v245 = vld [vmem:[%s0 + $0x37c] sm:$0xf]
    %v246 = vld [vmem:[%s0 + $0x380] sm:$0xf]
    %v247 = vld [vmem:[%s0 + $0x384] sm:$0xf]
    %v248 = vld [vmem:[%s0 + $0x388] sm:$0xf]
    %v249 = vld [vmem:[%s0 + $0x38c] sm:$0xf]
    %v250 = vld [vmem:[%s0 + $0x390] sm:$0xf]
    %v251 = vld [vmem:[%s0 + $0x394] sm:$0xf]
    %v252 = vld [vmem:[%s0 + $0x398] sm:$0xf]
    %v253 = vld [vmem:[%s0 + $0x39c] sm:$0xf]
    %v254 = vld [vmem:[%s0 + $0x3a0] sm:$0xf]
    %v255 = vld [vmem:[%s0 + $0x3a4] sm:$0xf]
    %v256 = vld [vmem:[%s0 + $0x3a8] sm:$0xf]
    %v257 = vld [vmem:[%s0 + $0x3ac] sm:$0xf]
    %v258 = vld [vmem:[%s0 + $0x3b0] sm:$0xf]
    %v259 = vld [vmem:[%s0 + $0x3b4] sm:$0xf]
    %v260 = vld [vmem:[%s0 + $0x3b8] sm:$0xf]
    %v261 = vld [vmem:[%s0 + $0x3bc] sm:$0xf]
    %v262 = vld [vmem:[%s0 + $0x3c0] sm:$0xf]
    %v263 = vld [vmem:[%s0 + $0x3c4] sm:$0xf]
    %v264 = vld [vmem:[%s0 + $0x3c8] sm:$0xf]
    %v265 = vld [vmem:[%s0 + $0x3cc] sm:$0xf]
    %v266 = vld [vmem:[%s0 + $0x3d0] sm:$0xf]
    %v267 = vld [vmem:[%s0 + $0x3d4] sm:$0xf]
    %v268 = vld [vmem:[%s0 + $0x3d8] sm:$0xf]
    %v269 = vld [vmem:[%s0 + $0x3dc] sm:$0xf]
    %v270 = vld [vmem:[%s0 + $0x3e0] sm:$0xf]
    %v271 = vld [vmem:[%s0 + $0x3e4] sm:$0xf]
    %v272 = vld [vmem:[%s0 + $0x3e8] sm:$0xf]
    %v273 = vld [vmem:[%s0 + $0x3ec] sm:$0xf]
    %v274 = vld [vmem:[%s0 + $0x3f0] sm:$0xf]
    %v275 = vld [vmem:[%s0 + $0x3f4] sm:$0xf]
    %v276 = vld [vmem:[%s0 + $0x3f8] sm:$0xf]
    %v277 = vld [vmem:[%s0 + $0x3fc] sm:$0xf]
    %v278 = vld [vmem:[%s1] sm:$0xf]
    %v279 = vld [vmem:[%s1 + $0x4] sm:$0xf]
    %v280 = vld [vmem:[%s1 + $0x8] sm:$0xf]
    %v281 = vld [vmem:[%s1 + $0xc] sm:$0xf]
    %v282 = vld [vmem:[%s1 + $0x10] sm:$0x3]
    %v539 = vunpack.c.l.b16 %v22
    %v540 = vunpack.c.l.b16 %v23
    %v541 = vunpack.c.l.b16 %v24
    %v542 = vunpack.c.l.b16 %v25
    %v543 = vunpack.c.l.b16 %v26
    %v544 = vunpack.c.l.b16 %v27
    %v545 = vunpack.c.l.b16 %v28
    %v546 = vunpack.c.l.b16 %v29
    %v547 = vunpack.c.l.b16 %v30
    %v548 = vunpack.c.l.b16 %v31
    %v549 = vunpack.c.l.b16 %v32
    %v550 = vunpack.c.l.b16 %v33
    %v551 = vunpack.c.l.b16 %v34
    %v552 = vunpack.c.l.b16 %v35
    %v553 = vunpack.c.l.b16 %v36
    %v554 = vunpack.c.l.b16 %v37
    %v555 = vunpack.c.l.b16 %v38
    %v556 = vunpack.c.l.b16 %v39
    %v557 = vunpack.c.l.b16 %v40
    %v558 = vunpack.c.l.b16 %v41
    %v559 = vunpack.c.l.b16 %v42
    %v560 = vunpack.c.l.b16 %v43
    %v561 = vunpack.c.l.b16 %v44
    %v562 = vunpack.c.l.b16 %v45
    %v563 = vunpack.c.l.b16 %v46
    %v564 = vunpack.c.l.b16 %v47
    %v565 = vunpack.c.l.b16 %v48
    %v566 = vunpack.c.l.b16 %v49
    %v567 = vunpack.c.l.b16 %v50
    %v568 = vunpack.c.l.b16 %v51
    %v569 = vunpack.c.l.b16 %v52
    %v570 = vunpack.c.l.b16 %v53
    %v571 = vunpack.c.l.b16 %v54
    %v572 = vunpack.c.l.b16 %v55
    %v573 = vunpack.c.l.b16 %v56
    %v574 = vunpack.c.l.b16 %v57
    %v575 = vunpack.c.l.b16 %v58
    %v576 = vunpack.c.l.b16 %v59
    %v577 = vunpack.c.l.b16 %v60
    %v578 = vunpack.c.l.b16 %v61
    %v579 = vunpack.c.l.b16 %v62
    %v580 = vunpack.c.l.b16 %v63
    %v581 = vunpack.c.l.b16 %v64
    %v582 = vunpack.c.l.b16 %v65
    %v583 = vunpack.c.l.b16 %v66
    %v584 = vunpack.c.l.b16 %v67
    %v585 = vunpack.c.l.b16 %v68
    %v586 = vunpack.c.l.b16 %v69
    %v587 = vunpack.c.l.b16 %v70
    %v588 = vunpack.c.l.b16 %v71
    %v589 = vunpack.c.l.b16 %v72
    %v590 = vunpack.c.l.b16 %v73
    %v591 = vunpack.c.l.b16 %v74
    %v592 = vunpack.c.l.b16 %v75
    %v593 = vunpack.c.l.b16 %v76
    %v594 = vunpack.c.l.b16 %v77
    %v595 = vunpack.c.l.b16 %v78
    %v596 = vunpack.c.l.b16 %v79
    %v597 = vunpack.c.l.b16 %v80
    %v598 = vunpack.c.l.b16 %v81
    %v599 = vunpack.c.l.b16 %v82
    %v600 = vunpack.c.l.b16 %v83
    %v601 = vunpack.c.l.b16 %v84
    %v602 = vunpack.c.l.b16 %v85
    %v603 = vunpack.c.l.b16 %v86
    %v604 = vunpack.c.l.b16 %v87
    %v605 = vunpack.c.l.b16 %v88
    %v606 = vunpack.c.l.b16 %v89
    %v607 = vunpack.c.l.b16 %v90
    %v608 = vunpack.c.l.b16 %v91
    %v609 = vunpack.c.l.b16 %v92
    %v610 = vunpack.c.l.b16 %v93
    %v611 = vunpack.c.l.b16 %v94
    %v612 = vunpack.c.l.b16 %v95
    %v613 = vunpack.c.l.b16 %v96
    %v614 = vunpack.c.l.b16 %v97
    %v615 = vunpack.c.l.b16 %v98
    %v616 = vunpack.c.l.b16 %v99
    %v617 = vunpack.c.l.b16 %v100
    %v618 = vunpack.c.l.b16 %v101
    %v619 = vunpack.c.l.b16 %v102
    %v620 = vunpack.c.l.b16 %v103
    %v621 = vunpack.c.l.b16 %v104
    %v622 = vunpack.c.l.b16 %v105
    %v623 = vunpack.c.l.b16 %v106
    %v624 = vunpack.c.l.b16 %v107
    %v625 = vunpack.c.l.b16 %v108
    %v626 = vunpack.c.l.b16 %v109
    %v627 = vunpack.c.l.b16 %v110
    %v628 = vunpack.c.l.b16 %v111
    %v629 = vunpack.c.l.b16 %v112
    %v630 = vunpack.c.l.b16 %v113
    %v631 = vunpack.c.l.b16 %v114
    %v632 = vunpack.c.l.b16 %v115
    %v633 = vunpack.c.l.b16 %v116
    %v634 = vunpack.c.l.b16 %v117
    %v635 = vunpack.c.l.b16 %v118
    %v636 = vunpack.c.l.b16 %v119
    %v637 = vunpack.c.l.b16 %v120
    %v638 = vunpack.c.l.b16 %v121
    %v639 = vunpack.c.l.b16 %v122
    %v640 = vunpack.c.l.b16 %v123
    %v641 = vunpack.c.l.b16 %v124
    %v642 = vunpack.c.l.b16 %v125
    %v643 = vunpack.c.l.b16 %v126
    %v644 = vunpack.c.l.b16 %v127
    %v645 = vunpack.c.l.b16 %v128
    %v646 = vunpack.c.l.b16 %v129
    %v647 = vunpack.c.l.b16 %v130
    %v648 = vunpack.c.l.b16 %v131
    %v649 = vunpack.c.l.b16 %v132
    %v650 = vunpack.c.l.b16 %v133
    %v651 = vunpack.c.l.b16 %v134
    %v652 = vunpack.c.l.b16 %v135
    %v653 = vunpack.c.l.b16 %v136
    %v654 = vunpack.c.l.b16 %v137
    %v655 = vunpack.c.l.b16 %v138
    %v656 = vunpack.c.l.b16 %v139
    %v657 = vunpack.c.l.b16 %v140
    %v658 = vunpack.c.l.b16 %v141
    %v659 = vunpack.c.l.b16 %v142
    %v660 = vunpack.c.l.b16 %v143
    %v661 = vunpack.c.l.b16 %v144
    %v662 = vunpack.c.l.b16 %v145
    %v663 = vunpack.c.l.b16 %v146
    %v664 = vunpack.c.l.b16 %v147
    %v665 = vunpack.c.l.b16 %v148
    %v666 = vunpack.c.l.b16 %v149
    %v667 = vunpack.c.l.b16 %v150
    %v668 = vunpack.c.l.b16 %v151
    %v669 = vunpack.c.l.b16 %v152
    %v670 = vunpack.c.l.b16 %v153
    %v671 = vunpack.c.l.b16 %v154
    %v672 = vunpack.c.l.b16 %v155
    %v673 = vunpack.c.l.b16 %v156
    %v674 = vunpack.c.l.b16 %v157
    %v675 = vunpack.c.l.b16 %v158
    %v676 = vunpack.c.l.b16 %v159
    %v677 = vunpack.c.l.b16 %v160
    %v678 = vunpack.c.l.b16 %v161
    %v679 = vunpack.c.l.b16 %v162
    %v680 = vunpack.c.l.b16 %v163
    %v681 = vunpack.c.l.b16 %v164
    %v682 = vunpack.c.l.b16 %v165
    %v683 = vunpack.c.l.b16 %v166
    %v684 = vunpack.c.l.b16 %v167
    %v685 = vunpack.c.l.b16 %v168
    %v686 = vunpack.c.l.b16 %v169
    %v687 = vunpack.c.l.b16 %v170
    %v688 = vunpack.c.l.b16 %v171
    %v689 = vunpack.c.l.b16 %v172
    %v690 = vunpack.c.l.b16 %v173
    %v691 = vunpack.c.l.b16 %v174
    %v692 = vunpack.c.l.b16 %v175
    %v693 = vunpack.c.l.b16 %v176
    %v694 = vunpack.c.l.b16 %v177
    %v695 = vunpack.c.l.b16 %v178
    %v696 = vunpack.c.l.b16 %v179
    %v697 = vunpack.c.l.b16 %v180
    %v698 = vunpack.c.l.b16 %v181
    %v699 = vunpack.c.l.b16 %v182
    %v700 = vunpack.c.l.b16 %v183
    %v701 = vunpack.c.l.b16 %v184
    %v702 = vunpack.c.l.b16 %v185
    %v703 = vunpack.c.l.b16 %v186
    %v704 = vunpack.c.l.b16 %v187
    %v705 = vunpack.c.l.b16 %v188
    %v706 = vunpack.c.l.b16 %v189
    %v707 = vunpack.c.l.b16 %v190
    %v708 = vunpack.c.l.b16 %v191
    %v709 = vunpack.c.l.b16 %v192
    %v710 = vunpack.c.l.b16 %v193
    %v711 = vunpack.c.l.b16 %v194
    %v712 = vunpack.c.l.b16 %v195
    %v713 = vunpack.c.l.b16 %v196
    %v714 = vunpack.c.l.b16 %v197
    %v715 = vunpack.c.l.b16 %v198
    %v716 = vunpack.c.l.b16 %v199
    %v717 = vunpack.c.l.b16 %v200
    %v718 = vunpack.c.l.b16 %v201
    %v719 = vunpack.c.l.b16 %v202
    %v720 = vunpack.c.l.b16 %v203
    %v721 = vunpack.c.l.b16 %v204
    %v722 = vunpack.c.l.b16 %v205
    %v723 = vunpack.c.l.b16 %v206
    %v724 = vunpack.c.l.b16 %v207
    %v725 = vunpack.c.l.b16 %v208
    %v726 = vunpack.c.l.b16 %v209
    %v727 = vunpack.c.l.b16 %v210
    %v728 = vunpack.c.l.b16 %v211
    %v729 = vunpack.c.l.b16 %v212
    %v730 = vunpack.c.l.b16 %v213
    %v731 = vunpack.c.l.b16 %v214
    %v732 = vunpack.c.l.b16 %v215
    %v733 = vunpack.c.l.b16 %v216
    %v734 = vunpack.c.l.b16 %v217
    %v735 = vunpack.c.l.b16 %v218
    %v736 = vunpack.c.l.b16 %v219
    %v737 = vunpack.c.l.b16 %v220
    %v738 = vunpack.c.l.b16 %v221
    %v739 = vunpack.c.l.b16 %v222
    %v740 = vunpack.c.l.b16 %v223
    %v741 = vunpack.c.l.b16 %v224
    %v742 = vunpack.c.l.b16 %v225
    %v743 = vunpack.c.l.b16 %v226
    %v744 = vunpack.c.l.b16 %v227
    %v745 = vunpack.c.l.b16 %v228
    %v746 = vunpack.c.l.b16 %v229
    %v747 = vunpack.c.l.b16 %v230
    %v748 = vunpack.c.l.b16 %v231
    %v749 = vunpack.c.l.b16 %v232
    %v750 = vunpack.c.l.b16 %v233
    %v751 = vunpack.c.l.b16 %v234
    %v752 = vunpack.c.l.b16 %v235
    %v753 = vunpack.c.l.b16 %v236
    %v754 = vunpack.c.l.b16 %v237
    %v755 = vunpack.c.l.b16 %v238
    %v756 = vunpack.c.l.b16 %v239
    %v757 = vunpack.c.l.b16 %v240
    %v758 = vunpack.c.l.b16 %v241
    %v759 = vunpack.c.l.b16 %v242
    %v760 = vunpack.c.l.b16 %v243
    %v761 = vunpack.c.l.b16 %v244
    %v762 = vunpack.c.l.b16 %v245
    %v763 = vunpack.c.l.b16 %v246
    %v764 = vunpack.c.l.b16 %v247
    %v765 = vunpack.c.l.b16 %v248
    %v766 = vunpack.c.l.b16 %v249
    %v767 = vunpack.c.l.b16 %v250
    %v768 = vunpack.c.l.b16 %v251
    %v769 = vunpack.c.l.b16 %v252
    %v770 = vunpack.c.l.b16 %v253
    %v771 = vunpack.c.l.b16 %v254
    %v772 = vunpack.c.l.b16 %v255
    %v773 = vunpack.c.l.b16 %v256
    %v774 = vunpack.c.l.b16 %v257
    %v775 = vunpack.c.l.b16 %v258
    %v776 = vunpack.c.l.b16 %v259
    %v777 = vunpack.c.l.b16 %v260
    %v778 = vunpack.c.l.b16 %v261
    %v779 = vunpack.c.l.b16 %v262
    %v780 = vunpack.c.l.b16 %v263
    %v781 = vunpack.c.l.b16 %v264
    %v782 = vunpack.c.l.b16 %v265
    %v783 = vunpack.c.l.b16 %v266
    %v784 = vunpack.c.l.b16 %v267
    %v785 = vunpack.c.l.b16 %v268
    %v786 = vunpack.c.l.b16 %v269
    %v787 = vunpack.c.l.b16 %v270
    %v788 = vunpack.c.l.b16 %v271
    %v789 = vunpack.c.l.b16 %v272
    %v790 = vunpack.c.l.b16 %v273
    %v791 = vunpack.c.l.b16 %v274
    %v792 = vunpack.c.l.b16 %v275
    %v793 = vunpack.c.l.b16 %v276
    %v794 = vunpack.c.l.b16 %v277
    %v795 = vpack.c.b16 %v540, %v539
    %v796 = vpack.c.b16 %v542, %v541
    %v797 = vpack.c.b16 %v544, %v543
    %v798 = vpack.c.b16 %v546, %v545
    %v799 = vpack.c.b16 %v548, %v547
    %v800 = vpack.c.b16 %v550, %v549
    %v801 = vpack.c.b16 %v552, %v551
    %v802 = vpack.c.b16 %v554, %v553
    %v803 = vpack.c.b16 %v556, %v555
    %v804 = vpack.c.b16 %v558, %v557
    %v805 = vpack.c.b16 %v560, %v559
    %v806 = vpack.c.b16 %v562, %v561
    %v807 = vpack.c.b16 %v564, %v563
    %v808 = vpack.c.b16 %v566, %v565
    %v809 = vpack.c.b16 %v568, %v567
    %v810 = vpack.c.b16 %v570, %v569
    %v811 = vpack.c.b16 %v572, %v571
    %v812 = vpack.c.b16 %v574, %v573
    %v813 = vpack.c.b16 %v576, %v575
    %v814 = vpack.c.b16 %v578, %v577
    %v815 = vpack.c.b16 %v580, %v579
    %v816 = vpack.c.b16 %v582, %v581
    %v817 = vpack.c.b16 %v584, %v583
    %v818 = vpack.c.b16 %v586, %v585
    %v819 = vpack.c.b16 %v588, %v587
    %v820 = vpack.c.b16 %v590, %v589
    %v821 = vpack.c.b16 %v592, %v591
    %v822 = vpack.c.b16 %v594, %v593
    %v823 = vpack.c.b16 %v596, %v595
    %v824 = vpack.c.b16 %v598, %v597
    %v825 = vpack.c.b16 %v600, %v599
    %v826 = vpack.c.b16 %v602, %v601
    %v827 = vpack.c.b16 %v604, %v603
    %v828 = vpack.c.b16 %v606, %v605
    %v829 = vpack.c.b16 %v608, %v607
    %v830 = vpack.c.b16 %v610, %v609
    %v831 = vpack.c.b16 %v612, %v611
    %v832 = vpack.c.b16 %v614, %v613
    %v833 = vpack.c.b16 %v616, %v615
    %v834 = vpack.c.b16 %v618, %v617
    %v835 = vpack.c.b16 %v620, %v619
    %v836 = vpack.c.b16 %v622, %v621
    %v837 = vpack.c.b16 %v624, %v623
    %v838 = vpack.c.b16 %v626, %v625
    %v839 = vpack.c.b16 %v628, %v627
    %v840 = vpack.c.b16 %v630, %v629
    %v841 = vpack.c.b16 %v632, %v631
    %v842 = vpack.c.b16 %v634, %v633
    %v843 = vpack.c.b16 %v636, %v635
    %v844 = vpack.c.b16 %v638, %v637
    %v845 = vpack.c.b16 %v640, %v639
    %v846 = vpack.c.b16 %v642, %v641
    %v847 = vpack.c.b16 %v644, %v643
    %v848 = vpack.c.b16 %v646, %v645
    %v849 = vpack.c.b16 %v648, %v647
    %v850 = vpack.c.b16 %v650, %v649
    %v851 = vpack.c.b16 %v652, %v651
    %v852 = vpack.c.b16 %v654, %v653
    %v853 = vpack.c.b16 %v656, %v655
    %v854 = vpack.c.b16 %v658, %v657
    %v855 = vpack.c.b16 %v660, %v659
    %v856 = vpack.c.b16 %v662, %v661
    %v857 = vpack.c.b16 %v664, %v663
    %v858 = vpack.c.b16 %v666, %v665
    %v859 = vpack.c.b16 %v668, %v667
    %v860 = vpack.c.b16 %v670, %v669
    %v861 = vpack.c.b16 %v672, %v671
    %v862 = vpack.c.b16 %v674, %v673
    %v863 = vpack.c.b16 %v676, %v675
    %v864 = vpack.c.b16 %v678, %v677
    %v865 = vpack.c.b16 %v680, %v679
    %v866 = vpack.c.b16 %v682, %v681
    %v867 = vpack.c.b16 %v684, %v683
    %v868 = vpack.c.b16 %v686, %v685
    %v869 = vpack.c.b16 %v688, %v687
    %v870 = vpack.c.b16 %v690, %v689
    %v871 = vpack.c.b16 %v692, %v691
    %v872 = vpack.c.b16 %v694, %v693
    %v873 = vpack.c.b16 %v696, %v695
    %v874 = vpack.c.b16 %v698, %v697
    %v875 = vpack.c.b16 %v700, %v699
    %v876 = vpack.c.b16 %v702, %v701
    %v877 = vpack.c.b16 %v704, %v703
    %v878 = vpack.c.b16 %v706, %v705
    %v879 = vpack.c.b16 %v708, %v707
    %v880 = vpack.c.b16 %v710, %v709
    %v881 = vpack.c.b16 %v712, %v711
    %v882 = vpack.c.b16 %v714, %v713
    %v883 = vpack.c.b16 %v716, %v715
    %v884 = vpack.c.b16 %v718, %v717
    %v885 = vpack.c.b16 %v720, %v719
    %v886 = vpack.c.b16 %v722, %v721
    %v887 = vpack.c.b16 %v724, %v723
    %v888 = vpack.c.b16 %v726, %v725
    %v889 = vpack.c.b16 %v728, %v727
    %v890 = vpack.c.b16 %v730, %v729
    %v891 = vpack.c.b16 %v732, %v731
    %v892 = vpack.c.b16 %v734, %v733
    %v893 = vpack.c.b16 %v736, %v735
    %v894 = vpack.c.b16 %v738, %v737
    %v895 = vpack.c.b16 %v740, %v739
    %v896 = vpack.c.b16 %v742, %v741
    %v897 = vpack.c.b16 %v744, %v743
    %v898 = vpack.c.b16 %v746, %v745
    %v899 = vpack.c.b16 %v748, %v747
    %v900 = vpack.c.b16 %v750, %v749
    %v901 = vpack.c.b16 %v752, %v751
    %v902 = vpack.c.b16 %v754, %v753
    %v903 = vpack.c.b16 %v756, %v755
    %v904 = vpack.c.b16 %v758, %v757
    %v905 = vpack.c.b16 %v760, %v759
    %v906 = vpack.c.b16 %v762, %v761
    %v907 = vpack.c.b16 %v764, %v763
    %v908 = vpack.c.b16 %v766, %v765
    %v909 = vpack.c.b16 %v768, %v767
    %v910 = vpack.c.b16 %v770, %v769
    %v911 = vpack.c.b16 %v772, %v771
    %v912 = vpack.c.b16 %v774, %v773
    %v913 = vpack.c.b16 %v776, %v775
    %v914 = vpack.c.b16 %v778, %v777
    %v915 = vpack.c.b16 %v780, %v779
    %v916 = vpack.c.b16 %v782, %v781
    %v917 = vpack.c.b16 %v784, %v783
    %v918 = vpack.c.b16 %v786, %v785
    %v919 = vpack.c.b16 %v788, %v787
    %v920 = vpack.c.b16 %v790, %v789
    %v921 = vpack.c.b16 %v792, %v791
    %v922 = vpack.c.b16 %v794, %v793
    %v928 = vunpack.c.l.b16 %v278
    %v929 = vunpack.c.l.b16 %v279
    %v930 = vunpack.c.l.b16 %v280
    %v931 = vunpack.c.l.b16 %v281
    %v932 = vunpack.c.l.b16 %v282
    %v933 = vpack.c.b16 %v929, %v928
    %v934 = vpack.c.b16 %v931, %v930
    %v935 = vpack.c.b16 %v932, %v932
    %vm938 = vcmask 293888
    %v940 = vsel %vm938, %v795, 0
    %v943 = vsel %vm938, %v796, 0
    %v946 = vsel %vm938, %v797, 0
    %v949 = vsel %vm938, %v798, 0
    %v952 = vsel %vm938, %v799, 0
    %v955 = vsel %vm938, %v800, 0
    %v958 = vsel %vm938, %v801, 0
    %v961 = vsel %vm938, %v802, 0
    %v964 = vsel %vm938, %v803, 0
    %v967 = vsel %vm938, %v804, 0
    %v970 = vsel %vm938, %v805, 0
    %v973 = vsel %vm938, %v806, 0
    %v976 = vsel %vm938, %v807, 0
    %v979 = vsel %vm938, %v808, 0
    %v982 = vsel %vm938, %v809, 0
    %v985 = vsel %vm938, %v810, 0
    %v988 = vsel %vm938, %v811, 0
    %v991 = vsel %vm938, %v812, 0
    %v994 = vsel %vm938, %v813, 0
    %v997 = vsel %vm938, %v814, 0
    %v1000 = vsel %vm938, %v815, 0
    %v1003 = vsel %vm938, %v816, 0
    %v1006 = vsel %vm938, %v817, 0
    %v1009 = vsel %vm938, %v818, 0
    %v1012 = vsel %vm938, %v819, 0
    %v1015 = vsel %vm938, %v820, 0
    %v1018 = vsel %vm938, %v821, 0
    %v1021 = vsel %vm938, %v822, 0
    %v1024 = vsel %vm938, %v823, 0
    %v1027 = vsel %vm938, %v824, 0
    %v1030 = vsel %vm938, %v825, 0
    %v1033 = vsel %vm938, %v826, 0
    %v1036 = vsel %vm938, %v827, 0
    %v1039 = vsel %vm938, %v828, 0
    %v1042 = vsel %vm938, %v829, 0
    %v1045 = vsel %vm938, %v830, 0
    %v1048 = vsel %vm938, %v831, 0
    %v1051 = vsel %vm938, %v832, 0
    %v1054 = vsel %vm938, %v833, 0
    %v1057 = vsel %vm938, %v834, 0
    %v1060 = vsel %vm938, %v835, 0
    %v1063 = vsel %vm938, %v836, 0
    %v1066 = vsel %vm938, %v837, 0
    %v1069 = vsel %vm938, %v838, 0
    %v1072 = vsel %vm938, %v839, 0
    %v1075 = vsel %vm938, %v840, 0
    %v1078 = vsel %vm938, %v841, 0
    %v1081 = vsel %vm938, %v842, 0
    %v1084 = vsel %vm938, %v843, 0
    %v1087 = vsel %vm938, %v844, 0
    %v1090 = vsel %vm938, %v845, 0
    %v1093 = vsel %vm938, %v846, 0
    %v1096 = vsel %vm938, %v847, 0
    %v1099 = vsel %vm938, %v848, 0
    %v1102 = vsel %vm938, %v849, 0
    %v1105 = vsel %vm938, %v850, 0
    %v1108 = vsel %vm938, %v851, 0
    %v1111 = vsel %vm938, %v852, 0
    %v1114 = vsel %vm938, %v853, 0
    %v1117 = vsel %vm938, %v854, 0
    %v1120 = vsel %vm938, %v855, 0
    %v1123 = vsel %vm938, %v856, 0
    %v1126 = vsel %vm938, %v857, 0
    %v1129 = vsel %vm938, %v858, 0
    %v1132 = vsel %vm938, %v859, 0
    %v1135 = vsel %vm938, %v860, 0
    %v1138 = vsel %vm938, %v861, 0
    %v1141 = vsel %vm938, %v862, 0
    %v1144 = vsel %vm938, %v863, 0
    %v1147 = vsel %vm938, %v864, 0
    %v1150 = vsel %vm938, %v865, 0
    %v1153 = vsel %vm938, %v866, 0
    %v1156 = vsel %vm938, %v867, 0
    %v1159 = vsel %vm938, %v868, 0
    %v1162 = vsel %vm938, %v869, 0
    %v1165 = vsel %vm938, %v870, 0
    %v1168 = vsel %vm938, %v871, 0
    %v1171 = vsel %vm938, %v872, 0
    %v1174 = vsel %vm938, %v873, 0
    %v1177 = vsel %vm938, %v874, 0
    %v1180 = vsel %vm938, %v875, 0
    %v1183 = vsel %vm938, %v876, 0
    %v1186 = vsel %vm938, %v877, 0
    %v1189 = vsel %vm938, %v878, 0
    %v1192 = vsel %vm938, %v879, 0
    %v1195 = vsel %vm938, %v880, 0
    %v1198 = vsel %vm938, %v881, 0
    %v1201 = vsel %vm938, %v882, 0
    %v1204 = vsel %vm938, %v883, 0
    %v1207 = vsel %vm938, %v884, 0
    %v1210 = vsel %vm938, %v885, 0
    %v1213 = vsel %vm938, %v886, 0
    %v1216 = vsel %vm938, %v887, 0
    %v1219 = vsel %vm938, %v888, 0
    %v1222 = vsel %vm938, %v889, 0
    %v1225 = vsel %vm938, %v890, 0
    %v1228 = vsel %vm938, %v891, 0
    %v1231 = vsel %vm938, %v892, 0
    %v1234 = vsel %vm938, %v893, 0
    %v1237 = vsel %vm938, %v894, 0
    %v1240 = vsel %vm938, %v895, 0
    %v1243 = vsel %vm938, %v896, 0
    %v1246 = vsel %vm938, %v897, 0
    %v1249 = vsel %vm938, %v898, 0
    %v1252 = vsel %vm938, %v899, 0
    %v1255 = vsel %vm938, %v900, 0
    %v1258 = vsel %vm938, %v901, 0
    %v1261 = vsel %vm938, %v902, 0
    %v1264 = vsel %vm938, %v903, 0
    %v1267 = vsel %vm938, %v904, 0
    %v1270 = vsel %vm938, %v905, 0
    %v1273 = vsel %vm938, %v906, 0
    %v1276 = vsel %vm938, %v907, 0
    %v1279 = vsel %vm938, %v908, 0
    %v1282 = vsel %vm938, %v909, 0
    %v1285 = vsel %vm938, %v910, 0
    %v1288 = vsel %vm938, %v911, 0
    %v1291 = vsel %vm938, %v912, 0
    %v1294 = vsel %vm938, %v913, 0
    %v1297 = vsel %vm938, %v914, 0
    %v1300 = vsel %vm938, %v915, 0
    %v1303 = vsel %vm938, %v916, 0
    %v1306 = vsel %vm938, %v917, 0
    %v1309 = vsel %vm938, %v918, 0
    %v1312 = vsel %vm938, %v919, 0
    %v1315 = vsel %vm938, %v920, 0
    %v1318 = vsel %vm938, %v921, 0
    %v1321 = vsel %vm938, %v922, 0
    %vm1323 = vcmask 1041408
    %v1325 = vsel %vm1323, %v935, 0
    %1327 = vmatprep.subr.bf16.mxu0 0
    %1328 = vmatpush1.bf16.msra.mxu0 %v933
    %1329 = vmatprep.subr.bf16.mxu0 0
    %1330 = vmatpush1.bf16.msra.mxu0 %v934
    %1331 = vmatprep.subr.bf16.mxu0 0
    %1332 = vmatpush1.bf16.msra.mxu0 %v1325
    %1333 = vmatprep.subr.bf16.mxu0 0
    %1334 = vmatpush1.bf16.msra.mxu0 0
    %1335 = vmatprep.subr.bf16.mxu0 0
    %1336 = vmatpush1.bf16.msra.mxu0 0
    %1337 = vmatprep.subr.bf16.mxu0 0
    %1338 = vmatpush1.bf16.msra.mxu0 0
    %1339 = vmatprep.subr.bf16.mxu0 0
    %1340 = vmatpush1.bf16.msra.mxu0 0
    %1341 = vmatprep.subr.bf16.mxu0 0
    %1342 = vmatpush1.bf16.msra.mxu0 0
    %1343 = vmatprep.subr.bf16.mxu0 0
    %1344 = vmatpush1.bf16.msra.mxu0 0
    %1345 = vmatprep.subr.bf16.mxu0 0
    %1346 = vmatpush1.bf16.msra.mxu0 0
    %1347 = vmatprep.subr.bf16.mxu0 0
    %1348 = vmatpush1.bf16.msra.mxu0 0
    %1349 = vmatprep.subr.bf16.mxu0 0
    %1350 = vmatpush1.bf16.msra.mxu0 0
    %1351 = vmatprep.subr.bf16.mxu0 0
    %1352 = vmatpush1.bf16.msra.mxu0 0
    %1353 = vmatprep.subr.bf16.mxu0 0
    %1354 = vmatpush1.bf16.msra.mxu0 0
    %1355 = vmatprep.subr.bf16.mxu0 0
    %1356 = vmatpush1.bf16.msra.mxu0 0
    %1357 = vmatprep.subr.bf16.mxu0 0
    %1358 = vmatpush1.bf16.msra.mxu0 0
    %1359 = vmatprep.mubr.bf16.mxu0 0
    %1360 = vmatmul.mubr.bf16.gmra.mrb[0].mxu0 %v940
    %v1361 = vpop.f32.mrb[0].mxu0
    %v1362 = vadd.f32 0.0, %v1361
    %v1363 = vpop.f32.mrb[0].mxu0
    %v1364 = vpop.f32.mrb[0].mxu0
    %v1365 = vadd.f32 0.0, %v1364
    %v1366 = vpop.f32.mrb[0].mxu0
    %1367 = vmatprep.mubr.bf16.mxu0 0
    %1368 = vmatmul.mubr.bf16.gmra.mrb[0].mxu0 %v943
    %v1369 = vpop.f32.mrb[0].mxu0
    %v1370 = vadd.f32 0.0, %v1369
    %v1371 = vpop.f32.mrb[0].mxu0
    %v1372 = vpop.f32.mrb[0].mxu0
    %v1373 = vadd.f32 0.0, %v1372
    %v1374 = vpop.f32.mrb[0].mxu0
    %1375 = vmatprep.mubr.bf16.mxu0 0
    %1376 = vmatmul.mubr.bf16.gmra.mrb[0].mxu0 %v946
    %v1377 = vpop.f32.mrb[0].mxu0
    %v1378 = vadd.f32 0.0, %v1377
    %v1379 = vpop.f32.mrb[0].mxu0
    %v1380 = vpop.f32.mrb[0].mxu0
    %v1381 = vadd.f32 0.0, %v1380
    %v1382 = vpop.f32.mrb[0].mxu0
    %1383 = vmatprep.mubr.bf16.mxu0 0
    %1384 = vmatmul.mubr.bf16.gmra.mrb[0].mxu0 %v949
    %v1385 = vpop.f32.mrb[0].mxu0
    %v1386 = vadd.f32 0.0, %v1385
    %v1387 = vpop.f32.mrb[0].mxu0
    %v1388 = vpop.f32.mrb[0].mxu0
    %v1389 = vadd.f32 0.0, %v1388
    %v1390 = vpop.f32.mrb[0].mxu0
    %1391 = vmatprep.mubr.bf16.mxu0 0
    %1392 = vmatmul.mubr.bf16.gmra.mrb[0].mxu0 %v952
    %v1393 = vpop.f32.mrb[0].mxu0
    %v1394 = vadd.f32 0.0, %v1393
    %v1395 = vpop.f32.mrb[0].mxu0
    %v1396 = vpop.f32.mrb[0].mxu0
    %v1397 = vadd.f32 0.0, %v1396
    %v1398 = vpop.f32.mrb[0].mxu0
    %1399 = vmatprep.mubr.bf16.mxu0 0
    %1400 = vmatmul.mubr.bf16.gmra.mrb[0].mxu0 %v955
    %v1401 = vpop.f32.mrb[0].mxu0
    %v1402 = vadd.f32 0.0, %v1401
    %v1403 = vpop.f32.mrb[0].mxu0
    %v1404 = vpop.f32.mrb[0].mxu0
    %v1405 = vadd.f32 0.0, %v1404
    %v1406 = vpop.f32.mrb[0].mxu0
    %1407 = vmatprep.mubr.bf16.mxu0 0
    %1408 = vmatmul.mubr.bf16.gmra.mrb[0].mxu0 %v958
    %v1409 = vpop.f32.mrb[0].mxu0
    %v1410 = vadd.f32 0.0, %v1409
    %v1411 = vpop.f32.mrb[0].mxu0
    %v1412 = vpop.f32.mrb[0].mxu0
    %v1413 = vadd.f32 0.0, %v1412
    %v1414 = vpop.f32.mrb[0].mxu0
    %1415 = vmatprep.mubr.bf16.mxu0 0
    %1416 = vmatmul.mubr.bf16.gmra.mrb[0].mxu0 %v961
    %v1417 = vpop.f32.mrb[0].mxu0
    %v1418 = vadd.f32 0.0, %v1417
    %v1419 = vpop.f32.mrb[0].mxu0
    %v1420 = vpop.f32.mrb[0].mxu0
    %v1421 = vadd.f32 0.0, %v1420
    %v1422 = vpop.f32.mrb[0].mxu0
    %1423 = vmatprep.mubr.bf16.mxu0 0
    %1424 = vmatmul.mubr.bf16.gmra.mrb[0].mxu0 %v964
    %v1425 = vpop.f32.mrb[0].mxu0
    %v1426 = vadd.f32 0.0, %v1425
    %v1427 = vpop.f32.mrb[0].mxu0
    %v1428 = vpop.f32.mrb[0].mxu0
    %v1429 = vadd.f32 0.0, %v1428
    %v1430 = vpop.f32.mrb[0].mxu0
    %1431 = vmatprep.mubr.bf16.mxu0 0
    %1432 = vmatmul.mubr.bf16.gmra.mrb[0].mxu0 %v967
    %v1433 = vpop.f32.mrb[0].mxu0
    %v1434 = vadd.f32 0.0, %v1433
    %v1435 = vpop.f32.mrb[0].mxu0
    %v1436 = vpop.f32.mrb[0].mxu0
    %v1437 = vadd.f32 0.0, %v1436
    %v1438 = vpop.f32.mrb[0].mxu0
    %1439 = vmatprep.mubr.bf16.mxu0 0
    %1440 = vmatmul.mubr.bf16.gmra.mrb[0].mxu0 %v970
    %v1441 = vpop.f32.mrb[0].mxu0
    %v1442 = vadd.f32 0.0, %v1441
    %v1443 = vpop.f32.mrb[0].mxu0
    %v1444 = vpop.f32.mrb[0].mxu0
    %v1445 = vadd.f32 0.0, %v1444
    %v1446 = vpop.f32.mrb[0].mxu0
    %1447 = vmatprep.mubr.bf16.mxu0 0
    %1448 = vmatmul.mubr.bf16.gmra.mrb[0].mxu0 %v973
    %v1449 = vpop.f32.mrb[0].mxu0
    %v1450 = vadd.f32 0.0, %v1449
    %v1451 = vpop.f32.mrb[0].mxu0
    %v1452 = vpop.f32.mrb[0].mxu0
    %v1453 = vadd.f32 0.0, %v1452
    %v1454 = vpop.f32.mrb[0].mxu0
    %1455 = vmatprep.mubr.bf16.mxu0 0
    %1456 = vmatmul.mubr.bf16.gmra.mrb[0].mxu0 %v976
    %v1457 = vpop.f32.mrb[0].mxu0
    %v1458 = vadd.f32 0.0, %v1457
    %v1459 = vpop.f32.mrb[0].mxu0
    %v1460 = vpop.f32.mrb[0].mxu0
    %v1461 = vadd.f32 0.0, %v1460
    %v1462 = vpop.f32.mrb[0].mxu0
    %1463 = vmatprep.mubr.bf16.mxu0 0
    %1464 = vmatmul.mubr.bf16.gmra.mrb[0].mxu0 %v979
    %v1465 = vpop.f32.mrb[0].mxu0
    %v1466 = vadd.f32 0.0, %v1465
    %v1467 = vpop.f32.mrb[0].mxu0
    %v1468 = vpop.f32.mrb[0].mxu0
    %v1469 = vadd.f32 0.0, %v1468
    %v1470 = vpop.f32.mrb[0].mxu0
    %1471 = vmatprep.mubr.bf16.mxu0 0
    %1472 = vmatmul.mubr.bf16.gmra.mrb[0].mxu0 %v982
    %v1473 = vpop.f32.mrb[0].mxu0
    %v1474 = vadd.f32 0.0, %v1473
    %v1475 = vpop.f32.mrb[0].mxu0
    %v1476 = vpop.f32.mrb[0].mxu0
    %v1477 = vadd.f32 0.0, %v1476
    %v1478 = vpop.f32.mrb[0].mxu0
    %1479 = vmatprep.mubr.bf16.mxu0 0
    %1480 = vmatmul.mubr.bf16.gmra.mrb[0].mxu0 %v985
    %v1481 = vpop.f32.mrb[0].mxu0
    %v1482 = vadd.f32 0.0, %v1481
    %v1483 = vpop.f32.mrb[0].mxu0
    %v1484 = vpop.f32.mrb[0].mxu0
    %v1485 = vadd.f32 0.0, %v1484
    %v1486 = vpop.f32.mrb[0].mxu0
    %1487 = vmatprep.mubr.bf16.mxu0 0
    %1488 = vmatmul.mubr.bf16.gmra.mrb[0].mxu0 %v988
    %v1489 = vpop.f32.mrb[0].mxu0
    %v1490 = vadd.f32 0.0, %v1489
    %v1491 = vpop.f32.mrb[0].mxu0
    %v1492 = vpop.f32.mrb[0].mxu0
    %v1493 = vadd.f32 0.0, %v1492
    %v1494 = vpop.f32.mrb[0].mxu0
    %1495 = vmatprep.mubr.bf16.mxu0 0
    %1496 = vmatmul.mubr.bf16.gmra.mrb[0].mxu0 %v991
    %v1497 = vpop.f32.mrb[0].mxu0
    %v1498 = vadd.f32 0.0, %v1497
    %v1499 = vpop.f32.mrb[0].mxu0
    %v1500 = vpop.f32.mrb[0].mxu0
    %v1501 = vadd.f32 0.0, %v1500
    %v1502 = vpop.f32.mrb[0].mxu0
    %1503 = vmatprep.mubr.bf16.mxu0 0
    %1504 = vmatmul.mubr.bf16.gmra.mrb[0].mxu0 %v994
    %v1505 = vpop.f32.mrb[0].mxu0
    %v1506 = vadd.f32 0.0, %v1505
    %v1507 = vpop.f32.mrb[0].mxu0
    %v1508 = vpop.f32.mrb[0].mxu0
    %v1509 = vadd.f32 0.0, %v1508
    %v1510 = vpop.f32.mrb[0].mxu0
    %1511 = vmatprep.mubr.bf16.mxu0 0
    %1512 = vmatmul.mubr.bf16.gmra.mrb[0].mxu0 %v997
    %v1513 = vpop.f32.mrb[0].mxu0
    %v1514 = vadd.f32 0.0, %v1513
    %v1515 = vpop.f32.mrb[0].mxu0
    %v1516 = vpop.f32.mrb[0].mxu0
    %v1517 = vadd.f32 0.0, %v1516
    %v1518 = vpop.f32.mrb[0].mxu0
    %1519 = vmatprep.mubr.bf16.mxu0 0
    %1520 = vmatmul.mubr.bf16.gmra.mrb[0].mxu0 %v1000
    %v1521 = vpop.f32.mrb[0].mxu0
    %v1522 = vadd.f32 0.0, %v1521
    %v1523 = vpop.f32.mrb[0].mxu0
    %v1524 = vpop.f32.mrb[0].mxu0
    %v1525 = vadd.f32 0.0, %v1524
    %v1526 = vpop.f32.mrb[0].mxu0
    %1527 = vmatprep.mubr.bf16.mxu0 0
    %1528 = vmatmul.mubr.bf16.gmra.mrb[0].mxu0 %v1003
    %v1529 = vpop.f32.mrb[0].mxu0
    %v1530 = vadd.f32 0.0, %v1529
    %v1531 = vpop.f32.mrb[0].mxu0
    %v1532 = vpop.f32.mrb[0].mxu0
    %v1533 = vadd.f32 0.0, %v1532
    %v1534 = vpop.f32.mrb[0].mxu0
    %1535 = vmatprep.mubr.bf16.mxu0 0
    %1536 = vmatmul.mubr.bf16.gmra.mrb[0].mxu0 %v1006
    %v1537 = vpop.f32.mrb[0].mxu0
    %v1538 = vadd.f32 0.0, %v1537
    %v1539 = vpop.f32.mrb[0].mxu0
    %v1540 = vpop.f32.mrb[0].mxu0
    %v1541 = vadd.f32 0.0, %v1540
    %v1542 = vpop.f32.mrb[0].mxu0
    %1543 = vmatprep.mubr.bf16.mxu0 0
    %1544 = vmatmul.mubr.bf16.gmra.mrb[0].mxu0 %v1009
    %v1545 = vpop.f32.mrb[0].mxu0
    %v1546 = vadd.f32 0.0, %v1545
    %v1547 = vpop.f32.mrb[0].mxu0
    %v1548 = vpop.f32.mrb[0].mxu0
    %v1549 = vadd.f32 0.0, %v1548
    %v1550 = vpop.f32.mrb[0].mxu0
    %1551 = vmatprep.mubr.bf16.mxu0 0
    %1552 = vmatmul.mubr.bf16.gmra.mrb[0].mxu0 %v1012
    %v1553 = vpop.f32.mrb[0].mxu0
    %v1554 = vadd.f32 0.0, %v1553
    %v1555 = vpop.f32.mrb[0].mxu0
    %v1556 = vpop.f32.mrb[0].mxu0
    %v1557 = vadd.f32 0.0, %v1556
    %v1558 = vpop.f32.mrb[0].mxu0
    %1559 = vmatprep.mubr.bf16.mxu0 0
    %1560 = vmatmul.mubr.bf16.gmra.mrb[0].mxu0 %v1015
    %v1561 = vpop.f32.mrb[0].mxu0
    %v1562 = vadd.f32 0.0, %v1561
    %v1563 = vpop.f32.mrb[0].mxu0
    %v1564 = vpop.f32.mrb[0].mxu0
    %v1565 = vadd.f32 0.0, %v1564
    %v1566 = vpop.f32.mrb[0].mxu0
    %1567 = vmatprep.mubr.bf16.mxu0 0
    %1568 = vmatmul.mubr.bf16.gmra.mrb[0].mxu0 %v1018
    %v1569 = vpop.f32.mrb[0].mxu0
    %v1570 = vadd.f32 0.0, %v1569
    %v1571 = vpop.f32.mrb[0].mxu0
    %v1572 = vpop.f32.mrb[0].mxu0
    %v1573 = vadd.f32 0.0, %v1572
    %v1574 = vpop.f32.mrb[0].mxu0
    %1575 = vmatprep.mubr.bf16.mxu0 0
    %1576 = vmatmul.mubr.bf16.gmra.mrb[0].mxu0 %v1021
    %v1577 = vpop.f32.mrb[0].mxu0
    %v1578 = vadd.f32 0.0, %v1577
    %v1579 = vpop.f32.mrb[0].mxu0
    %v1580 = vpop.f32.mrb[0].mxu0
    %v1581 = vadd.f32 0.0, %v1580
    %v1582 = vpop.f32.mrb[0].mxu0
    %1583 = vmatprep.mubr.bf16.mxu0 0
    %1584 = vmatmul.mubr.bf16.gmra.mrb[0].mxu0 %v1024
    %v1585 = vpop.f32.mrb[0].mxu0
    %v1586 = vadd.f32 0.0, %v1585
    %v1587 = vpop.f32.mrb[0].mxu0
    %v1588 = vpop.f32.mrb[0].mxu0
    %v1589 = vadd.f32 0.0, %v1588
    %v1590 = vpop.f32.mrb[0].mxu0
    %1591 = vmatprep.mubr.bf16.mxu0 0
    %1592 = vmatmul.mubr.bf16.gmra.mrb[0].mxu0 %v1027
    %v1593 = vpop.f32.mrb[0].mxu0
    %v1594 = vadd.f32 0.0, %v1593
    %v1595 = vpop.f32.mrb[0].mxu0
    %v1596 = vpop.f32.mrb[0].mxu0
    %v1597 = vadd.f32 0.0, %v1596
    %v1598 = vpop.f32.mrb[0].mxu0
    %1599 = vmatprep.mubr.bf16.mxu0 0
    %1600 = vmatmul.mubr.bf16.gmra.mrb[0].mxu0 %v1030
    %v1601 = vpop.f32.mrb[0].mxu0
    %v1602 = vadd.f32 0.0, %v1601
    %v1603 = vpop.f32.mrb[0].mxu0
    %v1604 = vpop.f32.mrb[0].mxu0
    %v1605 = vadd.f32 0.0, %v1604
    %v1606 = vpop.f32.mrb[0].mxu0
    %1607 = vmatprep.mubr.bf16.mxu0 0
    %1608 = vmatmul.mubr.bf16.gmra.mrb[0].mxu0 %v1033
    %v1609 = vpop.f32.mrb[0].mxu0
    %v1610 = vadd.f32 0.0, %v1609
    %v1611 = vpop.f32.mrb[0].mxu0
    %v1612 = vpop.f32.mrb[0].mxu0
    %v1613 = vadd.f32 0.0, %v1612
    %v1614 = vpop.f32.mrb[0].mxu0
    %1615 = vmatprep.mubr.bf16.mxu0 0
    %1616 = vmatmul.mubr.bf16.gmra.mrb[0].mxu0 %v1036
    %v1617 = vpop.f32.mrb[0].mxu0
    %v1618 = vadd.f32 0.0, %v1617
    %v1619 = vpop.f32.mrb[0].mxu0
    %v1620 = vpop.f32.mrb[0].mxu0
    %v1621 = vadd.f32 0.0, %v1620
    %v1622 = vpop.f32.mrb[0].mxu0
    %1623 = vmatprep.mubr.bf16.mxu0 0
    %1624 = vmatmul.mubr.bf16.gmra.mrb[0].mxu0 %v1039
    %v1625 = vpop.f32.mrb[0].mxu0
    %v1626 = vadd.f32 0.0, %v1625
    %v1627 = vpop.f32.mrb[0].mxu0
    %v1628 = vpop.f32.mrb[0].mxu0
    %v1629 = vadd.f32 0.0, %v1628
    %v1630 = vpop.f32.mrb[0].mxu0
    %1631 = vmatprep.mubr.bf16.mxu0 0
    %1632 = vmatmul.mubr.bf16.gmra.mrb[0].mxu0 %v1042
    %v1633 = vpop.f32.mrb[0].mxu0
    %v1634 = vadd.f32 0.0, %v1633
    %v1635 = vpop.f32.mrb[0].mxu0
    %v1636 = vpop.f32.mrb[0].mxu0
    %v1637 = vadd.f32 0.0, %v1636
    %v1638 = vpop.f32.mrb[0].mxu0
    %1639 = vmatprep.mubr.bf16.mxu0 0
    %1640 = vmatmul.mubr.bf16.gmra.mrb[0].mxu0 %v1045
    %v1641 = vpop.f32.mrb[0].mxu0
    %v1642 = vadd.f32 0.0, %v1641
    %v1643 = vpop.f32.mrb[0].mxu0
    %v1644 = vpop.f32.mrb[0].mxu0
    %v1645 = vadd.f32 0.0, %v1644
    %v1646 = vpop.f32.mrb[0].mxu0
    %1647 = vmatprep.mubr.bf16.mxu0 0
    %1648 = vmatmul.mubr.bf16.gmra.mrb[0].mxu0 %v1048
    %v1649 = vpop.f32.mrb[0].mxu0
    %v1650 = vadd.f32 0.0, %v1649
    %v1651 = vpop.f32.mrb[0].mxu0
    %v1652 = vpop.f32.mrb[0].mxu0
    %v1653 = vadd.f32 0.0, %v1652
    %v1654 = vpop.f32.mrb[0].mxu0
    %1655 = vmatprep.mubr.bf16.mxu0 0
    %1656 = vmatmul.mubr.bf16.gmra.mrb[0].mxu0 %v1051
    %v1657 = vpop.f32.mrb[0].mxu0
    %v1658 = vadd.f32 0.0, %v1657
    %v1659 = vpop.f32.mrb[0].mxu0
    %v1660 = vpop.f32.mrb[0].mxu0
    %v1661 = vadd.f32 0.0, %v1660
    %v1662 = vpop.f32.mrb[0].mxu0
    %1663 = vmatprep.mubr.bf16.mxu0 0
    %1664 = vmatmul.mubr.bf16.gmra.mrb[0].mxu0 %v1054
    %v1665 = vpop.f32.mrb[0].mxu0
    %v1666 = vadd.f32 0.0, %v1665
    %v1667 = vpop.f32.mrb[0].mxu0
    %v1668 = vpop.f32.mrb[0].mxu0
    %v1669 = vadd.f32 0.0, %v1668
    %v1670 = vpop.f32.mrb[0].mxu0
    %1671 = vmatprep.mubr.bf16.mxu0 0
    %1672 = vmatmul.mubr.bf16.gmra.mrb[0].mxu0 %v1057
    %v1673 = vpop.f32.mrb[0].mxu0
    %v1674 = vadd.f32 0.0, %v1673
    %v1675 = vpop.f32.mrb[0].mxu0
    %v1676 = vpop.f32.mrb[0].mxu0
    %v1677 = vadd.f32 0.0, %v1676
    %v1678 = vpop.f32.mrb[0].mxu0
    %1679 = vmatprep.mubr.bf16.mxu0 0
    %1680 = vmatmul.mubr.bf16.gmra.mrb[0].mxu0 %v1060
    %v1681 = vpop.f32.mrb[0].mxu0
    %v1682 = vadd.f32 0.0, %v1681
    %v1683 = vpop.f32.mrb[0].mxu0
    %v1684 = vpop.f32.mrb[0].mxu0
    %v1685 = vadd.f32 0.0, %v1684
    %v1686 = vpop.f32.mrb[0].mxu0
    %1687 = vmatprep.mubr.bf16.mxu0 0
    %1688 = vmatmul.mubr.bf16.gmra.mrb[0].mxu0 %v1063
    %v1689 = vpop.f32.mrb[0].mxu0
    %v1690 = vadd.f32 0.0, %v1689
    %v1691 = vpop.f32.mrb[0].mxu0
    %v1692 = vpop.f32.mrb[0].mxu0
    %v1693 = vadd.f32 0.0, %v1692
    %v1694 = vpop.f32.mrb[0].mxu0
    %1695 = vmatprep.mubr.bf16.mxu0 0
    %1696 = vmatmul.mubr.bf16.gmra.mrb[0].mxu0 %v1066
    %v1697 = vpop.f32.mrb[0].mxu0
    %v1698 = vadd.f32 0.0, %v1697
    %v1699 = vpop.f32.mrb[0].mxu0
    %v1700 = vpop.f32.mrb[0].mxu0
    %v1701 = vadd.f32 0.0, %v1700
    %v1702 = vpop.f32.mrb[0].mxu0
    %1703 = vmatprep.mubr.bf16.mxu0 0
    %1704 = vmatmul.mubr.bf16.gmra.mrb[0].mxu0 %v1069
    %v1705 = vpop.f32.mrb[0].mxu0
    %v1706 = vadd.f32 0.0, %v1705
    %v1707 = vpop.f32.mrb[0].mxu0
    %v1708 = vpop.f32.mrb[0].mxu0
    %v1709 = vadd.f32 0.0, %v1708
    %v1710 = vpop.f32.mrb[0].mxu0
    %1711 = vmatprep.mubr.bf16.mxu0 0
    %1712 = vmatmul.mubr.bf16.gmra.mrb[0].mxu0 %v1072
    %v1713 = vpop.f32.mrb[0].mxu0
    %v1714 = vadd.f32 0.0, %v1713
    %v1715 = vpop.f32.mrb[0].mxu0
    %v1716 = vpop.f32.mrb[0].mxu0
    %v1717 = vadd.f32 0.0, %v1716
    %v1718 = vpop.f32.mrb[0].mxu0
    %1719 = vmatprep.mubr.bf16.mxu0 0
    %1720 = vmatmul.mubr.bf16.gmra.mrb[0].mxu0 %v1075
    %v1721 = vpop.f32.mrb[0].mxu0
    %v1722 = vadd.f32 0.0, %v1721
    %v1723 = vpop.f32.mrb[0].mxu0
    %v1724 = vpop.f32.mrb[0].mxu0
    %v1725 = vadd.f32 0.0, %v1724
    %v1726 = vpop.f32.mrb[0].mxu0
    %1727 = vmatprep.mubr.bf16.mxu0 0
    %1728 = vmatmul.mubr.bf16.gmra.mrb[0].mxu0 %v1078
    %v1729 = vpop.f32.mrb[0].mxu0
    %v1730 = vadd.f32 0.0, %v1729
    %v1731 = vpop.f32.mrb[0].mxu0
    %v1732 = vpop.f32.mrb[0].mxu0
    %v1733 = vadd.f32 0.0, %v1732
    %v1734 = vpop.f32.mrb[0].mxu0
    %1735 = vmatprep.mubr.bf16.mxu0 0
    %1736 = vmatmul.mubr.bf16.gmra.mrb[0].mxu0 %v1081
    %v1737 = vpop.f32.mrb[0].mxu0
    %v1738 = vadd.f32 0.0, %v1737
    %v1739 = vpop.f32.mrb[0].mxu0
    %v1740 = vpop.f32.mrb[0].mxu0
    %v1741 = vadd.f32 0.0, %v1740
    %v1742 = vpop.f32.mrb[0].mxu0
    %1743 = vmatprep.mubr.bf16.mxu0 0
    %1744 = vmatmul.mubr.bf16.gmra.mrb[0].mxu0 %v1084
    %v1745 = vpop.f32.mrb[0].mxu0
    %v1746 = vadd.f32 0.0, %v1745
    %v1747 = vpop.f32.mrb[0].mxu0
    %v1748 = vpop.f32.mrb[0].mxu0
    %v1749 = vadd.f32 0.0, %v1748
    %v1750 = vpop.f32.mrb[0].mxu0
    %1751 = vmatprep.mubr.bf16.mxu0 0
    %1752 = vmatmul.mubr.bf16.gmra.mrb[0].mxu0 %v1087
    %v1753 = vpop.f32.mrb[0].mxu0
    %v1754 = vadd.f32 0.0, %v1753
    %v1755 = vpop.f32.mrb[0].mxu0
    %v1756 = vpop.f32.mrb[0].mxu0
    %v1757 = vadd.f32 0.0, %v1756
    %v1758 = vpop.f32.mrb[0].mxu0
    %1759 = vmatprep.mubr.bf16.mxu0 0
    %1760 = vmatmul.mubr.bf16.gmra.mrb[0].mxu0 %v1090
    %v1761 = vpop.f32.mrb[0].mxu0
    %v1762 = vadd.f32 0.0, %v1761
    %v1763 = vpop.f32.mrb[0].mxu0
    %v1764 = vpop.f32.mrb[0].mxu0
    %v1765 = vadd.f32 0.0, %v1764
    %v1766 = vpop.f32.mrb[0].mxu0
    %1767 = vmatprep.mubr.bf16.mxu0 0
    %1768 = vmatmul.mubr.bf16.gmra.mrb[0].mxu0 %v1093
    %v1769 = vpop.f32.mrb[0].mxu0
    %v1770 = vadd.f32 0.0, %v1769
    %v1771 = vpop.f32.mrb[0].mxu0
    %v1772 = vpop.f32.mrb[0].mxu0
    %v1773 = vadd.f32 0.0, %v1772
    %v1774 = vpop.f32.mrb[0].mxu0
    %1775 = vmatprep.mubr.bf16.mxu0 0
    %1776 = vmatmul.mubr.bf16.gmra.mrb[0].mxu0 %v1096
    %v1777 = vpop.f32.mrb[0].mxu0
    %v1778 = vadd.f32 0.0, %v1777
    %v1779 = vpop.f32.mrb[0].mxu0
    %v1780 = vpop.f32.mrb[0].mxu0
    %v1781 = vadd.f32 0.0, %v1780
    %v1782 = vpop.f32.mrb[0].mxu0
    %1783 = vmatprep.mubr.bf16.mxu0 0
    %1784 = vmatmul.mubr.bf16.gmra.mrb[0].mxu0 %v1099
    %v1785 = vpop.f32.mrb[0].mxu0
    %v1786 = vadd.f32 0.0, %v1785
    %v1787 = vpop.f32.mrb[0].mxu0
    %v1788 = vpop.f32.mrb[0].mxu0
    %v1789 = vadd.f32 0.0, %v1788
    %v1790 = vpop.f32.mrb[0].mxu0
    %1791 = vmatprep.mubr.bf16.mxu0 0
    %1792 = vmatmul.mubr.bf16.gmra.mrb[0].mxu0 %v1102
    %v1793 = vpop.f32.mrb[0].mxu0
    %v1794 = vadd.f32 0.0, %v1793
    %v1795 = vpop.f32.mrb[0].mxu0
    %v1796 = vpop.f32.mrb[0].mxu0
    %v1797 = vadd.f32 0.0, %v1796
    %v1798 = vpop.f32.mrb[0].mxu0
    %1799 = vmatprep.mubr.bf16.mxu0 0
    %1800 = vmatmul.mubr.bf16.gmra.mrb[0].mxu0 %v1105
    %v1801 = vpop.f32.mrb[0].mxu0
    %v1802 = vadd.f32 0.0, %v1801
    %v1803 = vpop.f32.mrb[0].mxu0
    %v1804 = vpop.f32.mrb[0].mxu0
    %v1805 = vadd.f32 0.0, %v1804
    %v1806 = vpop.f32.mrb[0].mxu0
    %1807 = vmatprep.mubr.bf16.mxu0 0
    %1808 = vmatmul.mubr.bf16.gmra.mrb[0].mxu0 %v1108
    %v1809 = vpop.f32.mrb[0].mxu0
    %v1810 = vadd.f32 0.0, %v1809
    %v1811 = vpop.f32.mrb[0].mxu0
    %v1812 = vpop.f32.mrb[0].mxu0
    %v1813 = vadd.f32 0.0, %v1812
    %v1814 = vpop.f32.mrb[0].mxu0
    %1815 = vmatprep.mubr.bf16.mxu0 0
    %1816 = vmatmul.mubr.bf16.gmra.mrb[0].mxu0 %v1111
    %v1817 = vpop.f32.mrb[0].mxu0
    %v1818 = vadd.f32 0.0, %v1817
    %v1819 = vpop.f32.mrb[0].mxu0
    %v1820 = vpop.f32.mrb[0].mxu0
    %v1821 = vadd.f32 0.0, %v1820
    %v1822 = vpop.f32.mrb[0].mxu0
    %1823 = vmatprep.mubr.bf16.mxu0 0
    %1824 = vmatmul.mubr.bf16.gmra.mrb[0].mxu0 %v1114
    %v1825 = vpop.f32.mrb[0].mxu0
    %v1826 = vadd.f32 0.0, %v1825
    %v1827 = vpop.f32.mrb[0].mxu0
    %v1828 = vpop.f32.mrb[0].mxu0
    %v1829 = vadd.f32 0.0, %v1828
    %v1830 = vpop.f32.mrb[0].mxu0
    %1831 = vmatprep.mubr.bf16.mxu0 0
    %1832 = vmatmul.mubr.bf16.gmra.mrb[0].mxu0 %v1117
    %v1833 = vpop.f32.mrb[0].mxu0
    %v1834 = vadd.f32 0.0, %v1833
    %v1835 = vpop.f32.mrb[0].mxu0
    %v1836 = vpop.f32.mrb[0].mxu0
    %v1837 = vadd.f32 0.0, %v1836
    %v1838 = vpop.f32.mrb[0].mxu0
    %1839 = vmatprep.mubr.bf16.mxu0 0
    %1840 = vmatmul.mubr.bf16.gmra.mrb[0].mxu0 %v1120
    %v1841 = vpop.f32.mrb[0].mxu0
    %v1842 = vadd.f32 0.0, %v1841
    %v1843 = vpop.f32.mrb[0].mxu0
    %v1844 = vpop.f32.mrb[0].mxu0
    %v1845 = vadd.f32 0.0, %v1844
    %v1846 = vpop.f32.mrb[0].mxu0
    %1847 = vmatprep.mubr.bf16.mxu0 0
    %1848 = vmatmul.mubr.bf16.gmra.mrb[0].mxu0 %v1123
    %v1849 = vpop.f32.mrb[0].mxu0
    %v1850 = vadd.f32 0.0, %v1849
    %v1851 = vpop.f32.mrb[0].mxu0
    %v1852 = vpop.f32.mrb[0].mxu0
    %v1853 = vadd.f32 0.0, %v1852
    %v1854 = vpop.f32.mrb[0].mxu0
    %1855 = vmatprep.mubr.bf16.mxu0 0
    %1856 = vmatmul.mubr.bf16.gmra.mrb[0].mxu0 %v1126
    %v1857 = vpop.f32.mrb[0].mxu0
    %v1858 = vadd.f32 0.0, %v1857
    %v1859 = vpop.f32.mrb[0].mxu0
    %v1860 = vpop.f32.mrb[0].mxu0
    %v1861 = vadd.f32 0.0, %v1860
    %v1862 = vpop.f32.mrb[0].mxu0
    %1863 = vmatprep.mubr.bf16.mxu0 0
    %1864 = vmatmul.mubr.bf16.gmra.mrb[0].mxu0 %v1129
    %v1865 = vpop.f32.mrb[0].mxu0
    %v1866 = vadd.f32 0.0, %v1865
    %v1867 = vpop.f32.mrb[0].mxu0
    %v1868 = vpop.f32.mrb[0].mxu0
    %v1869 = vadd.f32 0.0, %v1868
    %v1870 = vpop.f32.mrb[0].mxu0
    %1871 = vmatprep.mubr.bf16.mxu0 0
    %1872 = vmatmul.mubr.bf16.gmra.mrb[0].mxu0 %v1132
    %v1873 = vpop.f32.mrb[0].mxu0
    %v1874 = vadd.f32 0.0, %v1873
    %v1875 = vpop.f32.mrb[0].mxu0
    %v1876 = vpop.f32.mrb[0].mxu0
    %v1877 = vadd.f32 0.0, %v1876
    %v1878 = vpop.f32.mrb[0].mxu0
    %1879 = vmatprep.mubr.bf16.mxu0 0
    %1880 = vmatmul.mubr.bf16.gmra.mrb[0].mxu0 %v1135
    %v1881 = vpop.f32.mrb[0].mxu0
    %v1882 = vadd.f32 0.0, %v1881
    %v1883 = vpop.f32.mrb[0].mxu0
    %v1884 = vpop.f32.mrb[0].mxu0
    %v1885 = vadd.f32 0.0, %v1884
    %v1886 = vpop.f32.mrb[0].mxu0
    %1887 = vmatprep.mubr.bf16.mxu0 0
    %1888 = vmatmul.mubr.bf16.gmra.mrb[0].mxu0 %v1138
    %v1889 = vpop.f32.mrb[0].mxu0
    %v1890 = vadd.f32 0.0, %v1889
    %v1891 = vpop.f32.mrb[0].mxu0
    %v1892 = vpop.f32.mrb[0].mxu0
    %v1893 = vadd.f32 0.0, %v1892
    %v1894 = vpop.f32.mrb[0].mxu0
    %1895 = vmatprep.mubr.bf16.mxu0 0
    %1896 = vmatmul.mubr.bf16.gmra.mrb[0].mxu0 %v1141
    %v1897 = vpop.f32.mrb[0].mxu0
    %v1898 = vadd.f32 0.0, %v1897
    %v1899 = vpop.f32.mrb[0].mxu0
    %v1900 = vpop.f32.mrb[0].mxu0
    %v1901 = vadd.f32 0.0, %v1900
    %v1902 = vpop.f32.mrb[0].mxu0
    %1903 = vmatprep.mubr.bf16.mxu0 0
    %1904 = vmatmul.mubr.bf16.gmra.mrb[0].mxu0 %v1144
    %v1905 = vpop.f32.mrb[0].mxu0
    %v1906 = vadd.f32 0.0, %v1905
    %v1907 = vpop.f32.mrb[0].mxu0
    %v1908 = vpop.f32.mrb[0].mxu0
    %v1909 = vadd.f32 0.0, %v1908
    %v1910 = vpop.f32.mrb[0].mxu0
    %1911 = vmatprep.mubr.bf16.mxu0 0
    %1912 = vmatmul.mubr.bf16.gmra.mrb[0].mxu0 %v1147
    %v1913 = vpop.f32.mrb[0].mxu0
    %v1914 = vadd.f32 0.0, %v1913
    %v1915 = vpop.f32.mrb[0].mxu0
    %v1916 = vpop.f32.mrb[0].mxu0
    %v1917 = vadd.f32 0.0, %v1916
    %v1918 = vpop.f32.mrb[0].mxu0
    %1919 = vmatprep.mubr.bf16.mxu0 0
    %1920 = vmatmul.mubr.bf16.gmra.mrb[0].mxu0 %v1150
    %v1921 = vpop.f32.mrb[0].mxu0
    %v1922 = vadd.f32 0.0, %v1921
    %v1923 = vpop.f32.mrb[0].mxu0
    %v1924 = vpop.f32.mrb[0].mxu0
    %v1925 = vadd.f32 0.0, %v1924
    %v1926 = vpop.f32.mrb[0].mxu0
    %1927 = vmatprep.mubr.bf16.mxu0 0
    %1928 = vmatmul.mubr.bf16.gmra.mrb[0].mxu0 %v1153
    %v1929 = vpop.f32.mrb[0].mxu0
    %v1930 = vadd.f32 0.0, %v1929
    %v1931 = vpop.f32.mrb[0].mxu0
    %v1932 = vpop.f32.mrb[0].mxu0
    %v1933 = vadd.f32 0.0, %v1932
    %v1934 = vpop.f32.mrb[0].mxu0
    %1935 = vmatprep.mubr.bf16.mxu0 0
    %1936 = vmatmul.mubr.bf16.gmra.mrb[0].mxu0 %v1156
    %v1937 = vpop.f32.mrb[0].mxu0
    %v1938 = vadd.f32 0.0, %v1937
    %v1939 = vpop.f32.mrb[0].mxu0
    %v1940 = vpop.f32.mrb[0].mxu0
    %v1941 = vadd.f32 0.0, %v1940
    %v1942 = vpop.f32.mrb[0].mxu0
    %1943 = vmatprep.mubr.bf16.mxu0 0
    %1944 = vmatmul.mubr.bf16.gmra.mrb[0].mxu0 %v1159
    %v1945 = vpop.f32.mrb[0].mxu0
    %v1946 = vadd.f32 0.0, %v1945
    %v1947 = vpop.f32.mrb[0].mxu0
    %v1948 = vpop.f32.mrb[0].mxu0
    %v1949 = vadd.f32 0.0, %v1948
    %v1950 = vpop.f32.mrb[0].mxu0
    %1951 = vmatprep.mubr.bf16.mxu0 0
    %1952 = vmatmul.mubr.bf16.gmra.mrb[0].mxu0 %v1162
    %v1953 = vpop.f32.mrb[0].mxu0
    %v1954 = vadd.f32 0.0, %v1953
    %v1955 = vpop.f32.mrb[0].mxu0
    %v1956 = vpop.f32.mrb[0].mxu0
    %v1957 = vadd.f32 0.0, %v1956
    %v1958 = vpop.f32.mrb[0].mxu0
    %1959 = vmatprep.mubr.bf16.mxu0 0
    %1960 = vmatmul.mubr.bf16.gmra.mrb[0].mxu0 %v1165
    %v1961 = vpop.f32.mrb[0].mxu0
    %v1962 = vadd.f32 0.0, %v1961
    %v1963 = vpop.f32.mrb[0].mxu0
    %v1964 = vpop.f32.mrb[0].mxu0
    %v1965 = vadd.f32 0.0, %v1964
    %v1966 = vpop.f32.mrb[0].mxu0
    %1967 = vmatprep.mubr.bf16.mxu0 0
    %1968 = vmatmul.mubr.bf16.gmra.mrb[0].mxu0 %v1168
    %v1969 = vpop.f32.mrb[0].mxu0
    %v1970 = vadd.f32 0.0, %v1969
    %v1971 = vpop.f32.mrb[0].mxu0
    %v1972 = vpop.f32.mrb[0].mxu0
    %v1973 = vadd.f32 0.0, %v1972
    %v1974 = vpop.f32.mrb[0].mxu0
    %1975 = vmatprep.mubr.bf16.mxu0 0
    %1976 = vmatmul.mubr.bf16.gmra.mrb[0].mxu0 %v1171
    %v1977 = vpop.f32.mrb[0].mxu0
    %v1978 = vadd.f32 0.0, %v1977
    %v1979 = vpop.f32.mrb[0].mxu0
    %v1980 = vpop.f32.mrb[0].mxu0
    %v1981 = vadd.f32 0.0, %v1980
    %v1982 = vpop.f32.mrb[0].mxu0
    %1983 = vmatprep.mubr.bf16.mxu0 0
    %1984 = vmatmul.mubr.bf16.gmra.mrb[0].mxu0 %v1174
    %v1985 = vpop.f32.mrb[0].mxu0
    %v1986 = vadd.f32 0.0, %v1985
    %v1987 = vpop.f32.mrb[0].mxu0
    %v1988 = vpop.f32.mrb[0].mxu0
    %v1989 = vadd.f32 0.0, %v1988
    %v1990 = vpop.f32.mrb[0].mxu0
    %1991 = vmatprep.mubr.bf16.mxu0 0
    %1992 = vmatmul.mubr.bf16.gmra.mrb[0].mxu0 %v1177
    %v1993 = vpop.f32.mrb[0].mxu0
    %v1994 = vadd.f32 0.0, %v1993
    %v1995 = vpop.f32.mrb[0].mxu0
    %v1996 = vpop.f32.mrb[0].mxu0
    %v1997 = vadd.f32 0.0, %v1996
    %v1998 = vpop.f32.mrb[0].mxu0
    %1999 = vmatprep.mubr.bf16.mxu0 0
    %2000 = vmatmul.mubr.bf16.gmra.mrb[0].mxu0 %v1180
    %v2001 = vpop.f32.mrb[0].mxu0
    %v2002 = vadd.f32 0.0, %v2001
    %v2003 = vpop.f32.mrb[0].mxu0
    %v2004 = vpop.f32.mrb[0].mxu0
    %v2005 = vadd.f32 0.0, %v2004
    %v2006 = vpop.f32.mrb[0].mxu0
    %2007 = vmatprep.mubr.bf16.mxu0 0
    %2008 = vmatmul.mubr.bf16.gmra.mrb[0].mxu0 %v1183
    %v2009 = vpop.f32.mrb[0].mxu0
    %v2010 = vadd.f32 0.0, %v2009
    %v2011 = vpop.f32.mrb[0].mxu0
    %v2012 = vpop.f32.mrb[0].mxu0
    %v2013 = vadd.f32 0.0, %v2012
    %v2014 = vpop.f32.mrb[0].mxu0
    %2015 = vmatprep.mubr.bf16.mxu0 0
    %2016 = vmatmul.mubr.bf16.gmra.mrb[0].mxu0 %v1186
    %v2017 = vpop.f32.mrb[0].mxu0
    %v2018 = vadd.f32 0.0, %v2017
    %v2019 = vpop.f32.mrb[0].mxu0
    %v2020 = vpop.f32.mrb[0].mxu0
    %v2021 = vadd.f32 0.0, %v2020
    %v2022 = vpop.f32.mrb[0].mxu0
    %2023 = vmatprep.mubr.bf16.mxu0 0
    %2024 = vmatmul.mubr.bf16.gmra.mrb[0].mxu0 %v1189
    %v2025 = vpop.f32.mrb[0].mxu0
    %v2026 = vadd.f32 0.0, %v2025
    %v2027 = vpop.f32.mrb[0].mxu0
    %v2028 = vpop.f32.mrb[0].mxu0
    %v2029 = vadd.f32 0.0, %v2028
    %v2030 = vpop.f32.mrb[0].mxu0
    %2031 = vmatprep.mubr.bf16.mxu0 0
    %2032 = vmatmul.mubr.bf16.gmra.mrb[0].mxu0 %v1192
    %v2033 = vpop.f32.mrb[0].mxu0
    %v2034 = vadd.f32 0.0, %v2033
    %v2035 = vpop.f32.mrb[0].mxu0
    %v2036 = vpop.f32.mrb[0].mxu0
    %v2037 = vadd.f32 0.0, %v2036
    %v2038 = vpop.f32.mrb[0].mxu0
    %2039 = vmatprep.mubr.bf16.mxu0 0
    %2040 = vmatmul.mubr.bf16.gmra.mrb[0].mxu0 %v1195
    %v2041 = vpop.f32.mrb[0].mxu0
    %v2042 = vadd.f32 0.0, %v2041
    %v2043 = vpop.f32.mrb[0].mxu0
    %v2044 = vpop.f32.mrb[0].mxu0
    %v2045 = vadd.f32 0.0, %v2044
    %v2046 = vpop.f32.mrb[0].mxu0
    %2047 = vmatprep.mubr.bf16.mxu0 0
    %2048 = vmatmul.mubr.bf16.gmra.mrb[0].mxu0 %v1198
    %v2049 = vpop.f32.mrb[0].mxu0
    %v2050 = vadd.f32 0.0, %v2049
    %v2051 = vpop.f32.mrb[0].mxu0
    %v2052 = vpop.f32.mrb[0].mxu0
    %v2053 = vadd.f32 0.0, %v2052
    %v2054 = vpop.f32.mrb[0].mxu0
    %2055 = vmatprep.mubr.bf16.mxu0 0
    %2056 = vmatmul.mubr.bf16.gmra.mrb[0].mxu0 %v1201
    %v2057 = vpop.f32.mrb[0].mxu0
    %v2058 = vadd.f32 0.0, %v2057
    %v2059 = vpop.f32.mrb[0].mxu0
    %v2060 = vpop.f32.mrb[0].mxu0
    %v2061 = vadd.f32 0.0, %v2060
    %v2062 = vpop.f32.mrb[0].mxu0
    %2063 = vmatprep.mubr.bf16.mxu0 0
    %2064 = vmatmul.mubr.bf16.gmra.mrb[0].mxu0 %v1204
    %v2065 = vpop.f32.mrb[0].mxu0
    %v2066 = vadd.f32 0.0, %v2065
    %v2067 = vpop.f32.mrb[0].mxu0
    %v2068 = vpop.f32.mrb[0].mxu0
    %v2069 = vadd.f32 0.0, %v2068
    %v2070 = vpop.f32.mrb[0].mxu0
    %2071 = vmatprep.mubr.bf16.mxu0 0
    %2072 = vmatmul.mubr.bf16.gmra.mrb[0].mxu0 %v1207
    %v2073 = vpop.f32.mrb[0].mxu0
    %v2074 = vadd.f32 0.0, %v2073
    %v2075 = vpop.f32.mrb[0].mxu0
    %v2076 = vpop.f32.mrb[0].mxu0
    %v2077 = vadd.f32 0.0, %v2076
    %v2078 = vpop.f32.mrb[0].mxu0
    %2079 = vmatprep.mubr.bf16.mxu0 0
    %2080 = vmatmul.mubr.bf16.gmra.mrb[0].mxu0 %v1210
    %v2081 = vpop.f32.mrb[0].mxu0
    %v2082 = vadd.f32 0.0, %v2081
    %v2083 = vpop.f32.mrb[0].mxu0
    %v2084 = vpop.f32.mrb[0].mxu0
    %v2085 = vadd.f32 0.0, %v2084
    %v2086 = vpop.f32.mrb[0].mxu0
    %2087 = vmatprep.mubr.bf16.mxu0 0
    %2088 = vmatmul.mubr.bf16.gmra.mrb[0].mxu0 %v1213
    %v2089 = vpop.f32.mrb[0].mxu0
    %v2090 = vadd.f32 0.0, %v2089
    %v2091 = vpop.f32.mrb[0].mxu0
    %v2092 = vpop.f32.mrb[0].mxu0
    %v2093 = vadd.f32 0.0, %v2092
    %v2094 = vpop.f32.mrb[0].mxu0
    %2095 = vmatprep.mubr.bf16.mxu0 0
    %2096 = vmatmul.mubr.bf16.gmra.mrb[0].mxu0 %v1216
    %v2097 = vpop.f32.mrb[0].mxu0
    %v2098 = vadd.f32 0.0, %v2097
    %v2099 = vpop.f32.mrb[0].mxu0
    %v2100 = vpop.f32.mrb[0].mxu0
    %v2101 = vadd.f32 0.0, %v2100
    %v2102 = vpop.f32.mrb[0].mxu0
    %2103 = vmatprep.mubr.bf16.mxu0 0
    %2104 = vmatmul.mubr.bf16.gmra.mrb[0].mxu0 %v1219
    %v2105 = vpop.f32.mrb[0].mxu0
    %v2106 = vadd.f32 0.0, %v2105
    %v2107 = vpop.f32.mrb[0].mxu0
    %v2108 = vpop.f32.mrb[0].mxu0
    %v2109 = vadd.f32 0.0, %v2108
    %v2110 = vpop.f32.mrb[0].mxu0
    %2111 = vmatprep.mubr.bf16.mxu0 0
    %2112 = vmatmul.mubr.bf16.gmra.mrb[0].mxu0 %v1222
    %v2113 = vpop.f32.mrb[0].mxu0
    %v2114 = vadd.f32 0.0, %v2113
    %v2115 = vpop.f32.mrb[0].mxu0
    %v2116 = vpop.f32.mrb[0].mxu0
    %v2117 = vadd.f32 0.0, %v2116
    %v2118 = vpop.f32.mrb[0].mxu0
    %2119 = vmatprep.mubr.bf16.mxu0 0
    %2120 = vmatmul.mubr.bf16.gmra.mrb[0].mxu0 %v1225
    %v2121 = vpop.f32.mrb[0].mxu0
    %v2122 = vadd.f32 0.0, %v2121
    %v2123 = vpop.f32.mrb[0].mxu0
    %v2124 = vpop.f32.mrb[0].mxu0
    %v2125 = vadd.f32 0.0, %v2124
    %v2126 = vpop.f32.mrb[0].mxu0
    %2127 = vmatprep.mubr.bf16.mxu0 0
    %2128 = vmatmul.mubr.bf16.gmra.mrb[0].mxu0 %v1228
    %v2129 = vpop.f32.mrb[0].mxu0
    %v2130 = vadd.f32 0.0, %v2129
    %v2131 = vpop.f32.mrb[0].mxu0
    %v2132 = vpop.f32.mrb[0].mxu0
    %v2133 = vadd.f32 0.0, %v2132
    %v2134 = vpop.f32.mrb[0].mxu0
    %2135 = vmatprep.mubr.bf16.mxu0 0
    %2136 = vmatmul.mubr.bf16.gmra.mrb[0].mxu0 %v1231
    %v2137 = vpop.f32.mrb[0].mxu0
    %v2138 = vadd.f32 0.0, %v2137
    %v2139 = vpop.f32.mrb[0].mxu0
    %v2140 = vpop.f32.mrb[0].mxu0
    %v2141 = vadd.f32 0.0, %v2140
    %v2142 = vpop.f32.mrb[0].mxu0
    %2143 = vmatprep.mubr.bf16.mxu0 0
    %2144 = vmatmul.mubr.bf16.gmra.mrb[0].mxu0 %v1234
    %v2145 = vpop.f32.mrb[0].mxu0
    %v2146 = vadd.f32 0.0, %v2145
    %v2147 = vpop.f32.mrb[0].mxu0
    %v2148 = vpop.f32.mrb[0].mxu0
    %v2149 = vadd.f32 0.0, %v2148
    %v2150 = vpop.f32.mrb[0].mxu0
    %2151 = vmatprep.mubr.bf16.mxu0 0
    %2152 = vmatmul.mubr.bf16.gmra.mrb[0].mxu0 %v1237
    %v2153 = vpop.f32.mrb[0].mxu0
    %v2154 = vadd.f32 0.0, %v2153
    %v2155 = vpop.f32.mrb[0].mxu0
    %v2156 = vpop.f32.mrb[0].mxu0
    %v2157 = vadd.f32 0.0, %v2156
    %v2158 = vpop.f32.mrb[0].mxu0
    %2159 = vmatprep.mubr.bf16.mxu0 0
    %2160 = vmatmul.mubr.bf16.gmra.mrb[0].mxu0 %v1240
    %v2161 = vpop.f32.mrb[0].mxu0
    %v2162 = vadd.f32 0.0, %v2161
    %v2163 = vpop.f32.mrb[0].mxu0
    %v2164 = vpop.f32.mrb[0].mxu0
    %v2165 = vadd.f32 0.0, %v2164
    %v2166 = vpop.f32.mrb[0].mxu0
    %2167 = vmatprep.mubr.bf16.mxu0 0
    %2168 = vmatmul.mubr.bf16.gmra.mrb[0].mxu0 %v1243
    %v2169 = vpop.f32.mrb[0].mxu0
    %v2170 = vadd.f32 0.0, %v2169
    %v2171 = vpop.f32.mrb[0].mxu0
    %v2172 = vpop.f32.mrb[0].mxu0
    %v2173 = vadd.f32 0.0, %v2172
    %v2174 = vpop.f32.mrb[0].mxu0
    %2175 = vmatprep.mubr.bf16.mxu0 0
    %2176 = vmatmul.mubr.bf16.gmra.mrb[0].mxu0 %v1246
    %v2177 = vpop.f32.mrb[0].mxu0
    %v2178 = vadd.f32 0.0, %v2177
    %v2179 = vpop.f32.mrb[0].mxu0
    %v2180 = vpop.f32.mrb[0].mxu0
    %v2181 = vadd.f32 0.0, %v2180
    %v2182 = vpop.f32.mrb[0].mxu0
    %2183 = vmatprep.mubr.bf16.mxu0 0
    %2184 = vmatmul.mubr.bf16.gmra.mrb[0].mxu0 %v1249
    %v2185 = vpop.f32.mrb[0].mxu0
    %v2186 = vadd.f32 0.0, %v2185
    %v2187 = vpop.f32.mrb[0].mxu0
    %v2188 = vpop.f32.mrb[0].mxu0
    %v2189 = vadd.f32 0.0, %v2188
    %v2190 = vpop.f32.mrb[0].mxu0
    %2191 = vmatprep.mubr.bf16.mxu0 0
    %2192 = vmatmul.mubr.bf16.gmra.mrb[0].mxu0 %v1252
    %v2193 = vpop.f32.mrb[0].mxu0
    %v2194 = vadd.f32 0.0, %v2193
    %v2195 = vpop.f32.mrb[0].mxu0
    %v2196 = vpop.f32.mrb[0].mxu0
    %v2197 = vadd.f32 0.0, %v2196
    %v2198 = vpop.f32.mrb[0].mxu0
    %2199 = vmatprep.mubr.bf16.mxu0 0
    %2200 = vmatmul.mubr.bf16.gmra.mrb[0].mxu0 %v1255
    %v2201 = vpop.f32.mrb[0].mxu0
    %v2202 = vadd.f32 0.0, %v2201
    %v2203 = vpop.f32.mrb[0].mxu0
    %v2204 = vpop.f32.mrb[0].mxu0
    %v2205 = vadd.f32 0.0, %v2204
    %v2206 = vpop.f32.mrb[0].mxu0
    %2207 = vmatprep.mubr.bf16.mxu0 0
    %2208 = vmatmul.mubr.bf16.gmra.mrb[0].mxu0 %v1258
    %v2209 = vpop.f32.mrb[0].mxu0
    %v2210 = vadd.f32 0.0, %v2209
    %v2211 = vpop.f32.mrb[0].mxu0
    %v2212 = vpop.f32.mrb[0].mxu0
    %v2213 = vadd.f32 0.0, %v2212
    %v2214 = vpop.f32.mrb[0].mxu0
    %2215 = vmatprep.mubr.bf16.mxu0 0
    %2216 = vmatmul.mubr.bf16.gmra.mrb[0].mxu0 %v1261
    %v2217 = vpop.f32.mrb[0].mxu0
    %v2218 = vadd.f32 0.0, %v2217
    %v2219 = vpop.f32.mrb[0].mxu0
    %v2220 = vpop.f32.mrb[0].mxu0
    %v2221 = vadd.f32 0.0, %v2220
    %v2222 = vpop.f32.mrb[0].mxu0
    %2223 = vmatprep.mubr.bf16.mxu0 0
    %2224 = vmatmul.mubr.bf16.gmra.mrb[0].mxu0 %v1264
    %v2225 = vpop.f32.mrb[0].mxu0
    %v2226 = vadd.f32 0.0, %v2225
    %v2227 = vpop.f32.mrb[0].mxu0
    %v2228 = vpop.f32.mrb[0].mxu0
    %v2229 = vadd.f32 0.0, %v2228
    %v2230 = vpop.f32.mrb[0].mxu0
    %2231 = vmatprep.mubr.bf16.mxu0 0
    %2232 = vmatmul.mubr.bf16.gmra.mrb[0].mxu0 %v1267
    %v2233 = vpop.f32.mrb[0].mxu0
    %v2234 = vadd.f32 0.0, %v2233
    %v2235 = vpop.f32.mrb[0].mxu0
    %v2236 = vpop.f32.mrb[0].mxu0
    %v2237 = vadd.f32 0.0, %v2236
    %v2238 = vpop.f32.mrb[0].mxu0
    %2239 = vmatprep.mubr.bf16.mxu0 0
    %2240 = vmatmul.mubr.bf16.gmra.mrb[0].mxu0 %v1270
    %v2241 = vpop.f32.mrb[0].mxu0
    %v2242 = vadd.f32 0.0, %v2241
    %v2243 = vpop.f32.mrb[0].mxu0
    %v2244 = vpop.f32.mrb[0].mxu0
    %v2245 = vadd.f32 0.0, %v2244
    %v2246 = vpop.f32.mrb[0].mxu0
    %2247 = vmatprep.mubr.bf16.mxu0 0
    %2248 = vmatmul.mubr.bf16.gmra.mrb[0].mxu0 %v1273
    %v2249 = vpop.f32.mrb[0].mxu0
    %v2250 = vadd.f32 0.0, %v2249
    %v2251 = vpop.f32.mrb[0].mxu0
    %v2252 = vpop.f32.mrb[0].mxu0
    %v2253 = vadd.f32 0.0, %v2252
    %v2254 = vpop.f32.mrb[0].mxu0
    %2255 = vmatprep.mubr.bf16.mxu0 0
    %2256 = vmatmul.mubr.bf16.gmra.mrb[0].mxu0 %v1276
    %v2257 = vpop.f32.mrb[0].mxu0
    %v2258 = vadd.f32 0.0, %v2257
    %v2259 = vpop.f32.mrb[0].mxu0
    %v2260 = vpop.f32.mrb[0].mxu0
    %v2261 = vadd.f32 0.0, %v2260
    %v2262 = vpop.f32.mrb[0].mxu0
    %2263 = vmatprep.mubr.bf16.mxu0 0
    %2264 = vmatmul.mubr.bf16.gmra.mrb[0].mxu0 %v1279
    %v2265 = vpop.f32.mrb[0].mxu0
    %v2266 = vadd.f32 0.0, %v2265
    %v2267 = vpop.f32.mrb[0].mxu0
    %v2268 = vpop.f32.mrb[0].mxu0
    %v2269 = vadd.f32 0.0, %v2268
    %v2270 = vpop.f32.mrb[0].mxu0
    %2271 = vmatprep.mubr.bf16.mxu0 0
    %2272 = vmatmul.mubr.bf16.gmra.mrb[0].mxu0 %v1282
    %v2273 = vpop.f32.mrb[0].mxu0
    %v2274 = vadd.f32 0.0, %v2273
    %v2275 = vpop.f32.mrb[0].mxu0
    %v2276 = vpop.f32.mrb[0].mxu0
    %v2277 = vadd.f32 0.0, %v2276
    %v2278 = vpop.f32.mrb[0].mxu0
    %2279 = vmatprep.mubr.bf16.mxu0 0
    %2280 = vmatmul.mubr.bf16.gmra.mrb[0].mxu0 %v1285
    %v2281 = vpop.f32.mrb[0].mxu0
    %v2282 = vadd.f32 0.0, %v2281
    %v2283 = vpop.f32.mrb[0].mxu0
    %v2284 = vpop.f32.mrb[0].mxu0
    %v2285 = vadd.f32 0.0, %v2284
    %v2286 = vpop.f32.mrb[0].mxu0
    %2287 = vmatprep.mubr.bf16.mxu0 0
    %2288 = vmatmul.mubr.bf16.gmra.mrb[0].mxu0 %v1288
    %v2289 = vpop.f32.mrb[0].mxu0
    %v2290 = vadd.f32 0.0, %v2289
    %v2291 = vpop.f32.mrb[0].mxu0
    %v2292 = vpop.f32.mrb[0].mxu0
    %v2293 = vadd.f32 0.0, %v2292
    %v2294 = vpop.f32.mrb[0].mxu0
    %2295 = vmatprep.mubr.bf16.mxu0 0
    %2296 = vmatmul.mubr.bf16.gmra.mrb[0].mxu0 %v1291
    %v2297 = vpop.f32.mrb[0].mxu0
    %v2298 = vadd.f32 0.0, %v2297
    %v2299 = vpop.f32.mrb[0].mxu0
    %v2300 = vpop.f32.mrb[0].mxu0
    %v2301 = vadd.f32 0.0, %v2300
    %v2302 = vpop.f32.mrb[0].mxu0
    %2303 = vmatprep.mubr.bf16.mxu0 0
    %2304 = vmatmul.mubr.bf16.gmra.mrb[0].mxu0 %v1294
    %v2305 = vpop.f32.mrb[0].mxu0
    %v2306 = vadd.f32 0.0, %v2305
    %v2307 = vpop.f32.mrb[0].mxu0
    %v2308 = vpop.f32.mrb[0].mxu0
    %v2309 = vadd.f32 0.0, %v2308
    %v2310 = vpop.f32.mrb[0].mxu0
    %2311 = vmatprep.mubr.bf16.mxu0 0
    %2312 = vmatmul.mubr.bf16.gmra.mrb[0].mxu0 %v1297
    %v2313 = vpop.f32.mrb[0].mxu0
    %v2314 = vadd.f32 0.0, %v2313
    %v2315 = vpop.f32.mrb[0].mxu0
    %v2316 = vpop.f32.mrb[0].mxu0
    %v2317 = vadd.f32 0.0, %v2316
    %v2318 = vpop.f32.mrb[0].mxu0
    %2319 = vmatprep.mubr.bf16.mxu0 0
    %2320 = vmatmul.mubr.bf16.gmra.mrb[0].mxu0 %v1300
    %v2321 = vpop.f32.mrb[0].mxu0
    %v2322 = vadd.f32 0.0, %v2321
    %v2323 = vpop.f32.mrb[0].mxu0
    %v2324 = vpop.f32.mrb[0].mxu0
    %v2325 = vadd.f32 0.0, %v2324
    %v2326 = vpop.f32.mrb[0].mxu0
    %2327 = vmatprep.mubr.bf16.mxu0 0
    %2328 = vmatmul.mubr.bf16.gmra.mrb[0].mxu0 %v1303
    %v2329 = vpop.f32.mrb[0].mxu0
    %v2330 = vadd.f32 0.0, %v2329
    %v2331 = vpop.f32.mrb[0].mxu0
    %v2332 = vpop.f32.mrb[0].mxu0
    %v2333 = vadd.f32 0.0, %v2332
    %v2334 = vpop.f32.mrb[0].mxu0
    %2335 = vmatprep.mubr.bf16.mxu0 0
    %2336 = vmatmul.mubr.bf16.gmra.mrb[0].mxu0 %v1306
    %v2337 = vpop.f32.mrb[0].mxu0
    %v2338 = vadd.f32 0.0, %v2337
    %v2339 = vpop.f32.mrb[0].mxu0
    %v2340 = vpop.f32.mrb[0].mxu0
    %v2341 = vadd.f32 0.0, %v2340
    %v2342 = vpop.f32.mrb[0].mxu0
    %2343 = vmatprep.mubr.bf16.mxu0 0
    %2344 = vmatmul.mubr.bf16.gmra.mrb[0].mxu0 %v1309
    %v2345 = vpop.f32.mrb[0].mxu0
    %v2346 = vadd.f32 0.0, %v2345
    %v2347 = vpop.f32.mrb[0].mxu0
    %v2348 = vpop.f32.mrb[0].mxu0
    %v2349 = vadd.f32 0.0, %v2348
    %v2350 = vpop.f32.mrb[0].mxu0
    %2351 = vmatprep.mubr.bf16.mxu0 0
    %2352 = vmatmul.mubr.bf16.gmra.mrb[0].mxu0 %v1312
    %v2353 = vpop.f32.mrb[0].mxu0
    %v2354 = vadd.f32 0.0, %v2353
    %v2355 = vpop.f32.mrb[0].mxu0
    %v2356 = vpop.f32.mrb[0].mxu0
    %v2357 = vadd.f32 0.0, %v2356
    %v2358 = vpop.f32.mrb[0].mxu0
    %2359 = vmatprep.mubr.bf16.mxu0 0
    %2360 = vmatmul.mubr.bf16.gmra.mrb[0].mxu0 %v1315
    %v2361 = vpop.f32.mrb[0].mxu0
    %v2362 = vadd.f32 0.0, %v2361
    %v2363 = vpop.f32.mrb[0].mxu0
    %v2364 = vpop.f32.mrb[0].mxu0
    %v2365 = vadd.f32 0.0, %v2364
    %v2366 = vpop.f32.mrb[0].mxu0
    %2367 = vmatprep.mubr.bf16.mxu0 0
    %2368 = vmatmul.mubr.bf16.gmra.mrb[0].mxu0 %v1318
    %v2369 = vpop.f32.mrb[0].mxu0
    %v2370 = vadd.f32 0.0, %v2369
    %v2371 = vpop.f32.mrb[0].mxu0
    %v2372 = vpop.f32.mrb[0].mxu0
    %v2373 = vadd.f32 0.0, %v2372
    %v2374 = vpop.f32.mrb[0].mxu0
    %2375 = vmatprep.mubr.bf16.mxu0 0
    %2376 = vmatmul.mubr.bf16.gmra.mrb[0].mxu0 %v1321
    %v2377 = vpop.f32.mrb[0].mxu0
    %v2378 = vadd.f32 0.0, %v2377
    %v2379 = vpop.f32.mrb[0].mxu0
    %v2380 = vpop.f32.mrb[0].mxu0
    %v2381 = vadd.f32 0.0, %v2380
    %v2382 = vpop.f32.mrb[0].mxu0
    %2383 = vdwg.mxu0
    %v2384 = vmax.f32 %v1362, 0.0
    %v2385 = vmax.f32 %v1365, 0.0
    %v2386 = vmax.f32 %v1370, 0.0
    %v2387 = vmax.f32 %v1373, 0.0
    %v2388 = vmax.f32 %v1378, 0.0
    %v2389 = vmax.f32 %v1381, 0.0
    %v2390 = vmax.f32 %v1386, 0.0
    %v2391 = vmax.f32 %v1389, 0.0
    %v2392 = vmax.f32 %v1394, 0.0
    %v2393 = vmax.f32 %v1397, 0.0
    %v2394 = vmax.f32 %v1402, 0.0
    %v2395 = vmax.f32 %v1405, 0.0
    %v2396 = vmax.f32 %v1410, 0.0
    %v2397 = vmax.f32 %v1413, 0.0
    %v2398 = vmax.f32 %v1418, 0.0
    %v2399 = vmax.f32 %v1421, 0.0
    %v2400 = vmax.f32 %v1426, 0.0
    %v2401 = vmax.f32 %v1429, 0.0
    %v2402 = vmax.f32 %v1434, 0.0
    %v2403 = vmax.f32 %v1437, 0.0
    %v2404 = vmax.f32 %v1442, 0.0
    %v2405 = vmax.f32 %v1445, 0.0
    %v2406 = vmax.f32 %v1450, 0.0
    %v2407 = vmax.f32 %v1453, 0.0
    %v2408 = vmax.f32 %v1458, 0.0
    %v2409 = vmax.f32 %v1461, 0.0
    %v2410 = vmax.f32 %v1466, 0.0
    %v2411 = vmax.f32 %v1469, 0.0
    %v2412 = vmax.f32 %v1474, 0.0
    %v2413 = vmax.f32 %v1477, 0.0
    %v2414 = vmax.f32 %v1482, 0.0
    %v2415 = vmax.f32 %v1485, 0.0
    %v2416 = vmax.f32 %v1490, 0.0
    %v2417 = vmax.f32 %v1493, 0.0
    %v2418 = vmax.f32 %v1498, 0.0
    %v2419 = vmax.f32 %v1501, 0.0
    %v2420 = vmax.f32 %v1506, 0.0
    %v2421 = vmax.f32 %v1509, 0.0
    %v2422 = vmax.f32 %v1514, 0.0
    %v2423 = vmax.f32 %v1517, 0.0
    %v2424 = vmax.f32 %v1522, 0.0
    %v2425 = vmax.f32 %v1525, 0.0
    %v2426 = vmax.f32 %v1530, 0.0
    %v2427 = vmax.f32 %v1533, 0.0
    %v2428 = vmax.f32 %v1538, 0.0
    %v2429 = vmax.f32 %v1541, 0.0
    %v2430 = vmax.f32 %v1546, 0.0
    %v2431 = vmax.f32 %v1549, 0.0
    %v2432 = vmax.f32 %v1554, 0.0
    %v2433 = vmax.f32 %v1557, 0.0
    %v2434 = vmax.f32 %v1562, 0.0
    %v2435 = vmax.f32 %v1565, 0.0
    %v2436 = vmax.f32 %v1570, 0.0
    %v2437 = vmax.f32 %v1573, 0.0
    %v2438 = vmax.f32 %v1578, 0.0
    %v2439 = vmax.f32 %v1581, 0.0
    %v2440 = vmax.f32 %v1586, 0.0
    %v2441 = vmax.f32 %v1589, 0.0
    %v2442 = vmax.f32 %v1594, 0.0
    %v2443 = vmax.f32 %v1597, 0.0
    %v2444 = vmax.f32 %v1602, 0.0
    %v2445 = vmax.f32 %v1605, 0.0
    %v2446 = vmax.f32 %v1610, 0.0
    %v2447 = vmax.f32 %v1613, 0.0
    %v2448 = vmax.f32 %v1618, 0.0
    %v2449 = vmax.f32 %v1621, 0.0
    %v2450 = vmax.f32 %v1626, 0.0
    %v2451 = vmax.f32 %v1629, 0.0
    %v2452 = vmax.f32 %v1634, 0.0
    %v2453 = vmax.f32 %v1637, 0.0
    %v2454 = vmax.f32 %v1642, 0.0
    %v2455 = vmax.f32 %v1645, 0.0
    %v2456 = vmax.f32 %v1650, 0.0
    %v2457 = vmax.f32 %v1653, 0.0
    %v2458 = vmax.f32 %v1658, 0.0
    %v2459 = vmax.f32 %v1661, 0.0
    %v2460 = vmax.f32 %v1666, 0.0
    %v2461 = vmax.f32 %v1669, 0.0
    %v2462 = vmax.f32 %v1674, 0.0
    %v2463 = vmax.f32 %v1677, 0.0
    %v2464 = vmax.f32 %v1682, 0.0
    %v2465 = vmax.f32 %v1685, 0.0
    %v2466 = vmax.f32 %v1690, 0.0
    %v2467 = vmax.f32 %v1693, 0.0
    %v2468 = vmax.f32 %v1698, 0.0
    %v2469 = vmax.f32 %v1701, 0.0
    %v2470 = vmax.f32 %v1706, 0.0
    %v2471 = vmax.f32 %v1709, 0.0
    %v2472 = vmax.f32 %v1714, 0.0
    %v2473 = vmax.f32 %v1717, 0.0
    %v2474 = vmax.f32 %v1722, 0.0
    %v2475 = vmax.f32 %v1725, 0.0
    %v2476 = vmax.f32 %v1730, 0.0
    %v2477 = vmax.f32 %v1733, 0.0
    %v2478 = vmax.f32 %v1738, 0.0
    %v2479 = vmax.f32 %v1741, 0.0
    %v2480 = vmax.f32 %v1746, 0.0
    %v2481 = vmax.f32 %v1749, 0.0
    %v2482 = vmax.f32 %v1754, 0.0
    %v2483 = vmax.f32 %v1757, 0.0
    %v2484 = vmax.f32 %v1762, 0.0
    %v2485 = vmax.f32 %v1765, 0.0
    %v2486 = vmax.f32 %v1770, 0.0
    %v2487 = vmax.f32 %v1773, 0.0
    %v2488 = vmax.f32 %v1778, 0.0
    %v2489 = vmax.f32 %v1781, 0.0
    %v2490 = vmax.f32 %v1786, 0.0
    %v2491 = vmax.f32 %v1789, 0.0
    %v2492 = vmax.f32 %v1794, 0.0
    %v2493 = vmax.f32 %v1797, 0.0
    %v2494 = vmax.f32 %v1802, 0.0
    %v2495 = vmax.f32 %v1805, 0.0
    %v2496 = vmax.f32 %v1810, 0.0
    %v2497 = vmax.f32 %v1813, 0.0
    %v2498 = vmax.f32 %v1818, 0.0
    %v2499 = vmax.f32 %v1821, 0.0
    %v2500 = vmax.f32 %v1826, 0.0
    %v2501 = vmax.f32 %v1829, 0.0
    %v2502 = vmax.f32 %v1834, 0.0
    %v2503 = vmax.f32 %v1837, 0.0
    %v2504 = vmax.f32 %v1842, 0.0
    %v2505 = vmax.f32 %v1845, 0.0
    %v2506 = vmax.f32 %v1850, 0.0
    %v2507 = vmax.f32 %v1853, 0.0
    %v2508 = vmax.f32 %v1858, 0.0
    %v2509 = vmax.f32 %v1861, 0.0
    %v2510 = vmax.f32 %v1866, 0.0
    %v2511 = vmax.f32 %v1869, 0.0
    %v2512 = vmax.f32 %v1874, 0.0
    %v2513 = vmax.f32 %v1877, 0.0
    %v2514 = vmax.f32 %v1882, 0.0
    %v2515 = vmax.f32 %v1885, 0.0
    %v2516 = vmax.f32 %v1890, 0.0
    %v2517 = vmax.f32 %v1893, 0.0
    %v2518 = vmax.f32 %v1898, 0.0
    %v2519 = vmax.f32 %v1901, 0.0
    %v2520 = vmax.f32 %v1906, 0.0
    %v2521 = vmax.f32 %v1909, 0.0
    %v2522 = vmax.f32 %v1914, 0.0
    %v2523 = vmax.f32 %v1917, 0.0
    %v2524 = vmax.f32 %v1922, 0.0
    %v2525 = vmax.f32 %v1925, 0.0
    %v2526 = vmax.f32 %v1930, 0.0
    %v2527 = vmax.f32 %v1933, 0.0
    %v2528 = vmax.f32 %v1938, 0.0
    %v2529 = vmax.f32 %v1941, 0.0
    %v2530 = vmax.f32 %v1946, 0.0
    %v2531 = vmax.f32 %v1949, 0.0
    %v2532 = vmax.f32 %v1954, 0.0
    %v2533 = vmax.f32 %v1957, 0.0
    %v2534 = vmax.f32 %v1962, 0.0
    %v2535 = vmax.f32 %v1965, 0.0
    %v2536 = vmax.f32 %v1970, 0.0
    %v2537 = vmax.f32 %v1973, 0.0
    %v2538 = vmax.f32 %v1978, 0.0
    %v2539 = vmax.f32 %v1981, 0.0
    %v2540 = vmax.f32 %v1986, 0.0
    %v2541 = vmax.f32 %v1989, 0.0
    %v2542 = vmax.f32 %v1994, 0.0
    %v2543 = vmax.f32 %v1997, 0.0
    %v2544 = vmax.f32 %v2002, 0.0
    %v2545 = vmax.f32 %v2005, 0.0
    %v2546 = vmax.f32 %v2010, 0.0
    %v2547 = vmax.f32 %v2013, 0.0
    %v2548 = vmax.f32 %v2018, 0.0
    %v2549 = vmax.f32 %v2021, 0.0
    %v2550 = vmax.f32 %v2026, 0.0
    %v2551 = vmax.f32 %v2029, 0.0
    %v2552 = vmax.f32 %v2034, 0.0
    %v2553 = vmax.f32 %v2037, 0.0
    %v2554 = vmax.f32 %v2042, 0.0
    %v2555 = vmax.f32 %v2045, 0.0
    %v2556 = vmax.f32 %v2050, 0.0
    %v2557 = vmax.f32 %v2053, 0.0
    %v2558 = vmax.f32 %v2058, 0.0
    %v2559 = vmax.f32 %v2061, 0.0
    %v2560 = vmax.f32 %v2066, 0.0
    %v2561 = vmax.f32 %v2069, 0.0
    %v2562 = vmax.f32 %v2074, 0.0
    %v2563 = vmax.f32 %v2077, 0.0
    %v2564 = vmax.f32 %v2082, 0.0
    %v2565 = vmax.f32 %v2085, 0.0
    %v2566 = vmax.f32 %v2090, 0.0
    %v2567 = vmax.f32 %v2093, 0.0
    %v2568 = vmax.f32 %v2098, 0.0
    %v2569 = vmax.f32 %v2101, 0.0
    %v2570 = vmax.f32 %v2106, 0.0
    %v2571 = vmax.f32 %v2109, 0.0
    %v2572 = vmax.f32 %v2114, 0.0
    %v2573 = vmax.f32 %v2117, 0.0
    %v2574 = vmax.f32 %v2122, 0.0
    %v2575 = vmax.f32 %v2125, 0.0
    %v2576 = vmax.f32 %v2130, 0.0
    %v2577 = vmax.f32 %v2133, 0.0
    %v2578 = vmax.f32 %v2138, 0.0
    %v2579 = vmax.f32 %v2141, 0.0
    %v2580 = vmax.f32 %v2146, 0.0
    %v2581 = vmax.f32 %v2149, 0.0
    %v2582 = vmax.f32 %v2154, 0.0
    %v2583 = vmax.f32 %v2157, 0.0
    %v2584 = vmax.f32 %v2162, 0.0
    %v2585 = vmax.f32 %v2165, 0.0
    %v2586 = vmax.f32 %v2170, 0.0
    %v2587 = vmax.f32 %v2173, 0.0
    %v2588 = vmax.f32 %v2178, 0.0
    %v2589 = vmax.f32 %v2181, 0.0
    %v2590 = vmax.f32 %v2186, 0.0
    %v2591 = vmax.f32 %v2189, 0.0
    %v2592 = vmax.f32 %v2194, 0.0
    %v2593 = vmax.f32 %v2197, 0.0
    %v2594 = vmax.f32 %v2202, 0.0
    %v2595 = vmax.f32 %v2205, 0.0
    %v2596 = vmax.f32 %v2210, 0.0
    %v2597 = vmax.f32 %v2213, 0.0
    %v2598 = vmax.f32 %v2218, 0.0
    %v2599 = vmax.f32 %v2221, 0.0
    %v2600 = vmax.f32 %v2226, 0.0
    %v2601 = vmax.f32 %v2229, 0.0
    %v2602 = vmax.f32 %v2234, 0.0
    %v2603 = vmax.f32 %v2237, 0.0
    %v2604 = vmax.f32 %v2242, 0.0
    %v2605 = vmax.f32 %v2245, 0.0
    %v2606 = vmax.f32 %v2250, 0.0
    %v2607 = vmax.f32 %v2253, 0.0
    %v2608 = vmax.f32 %v2258, 0.0
    %v2609 = vmax.f32 %v2261, 0.0
    %v2610 = vmax.f32 %v2266, 0.0
    %v2611 = vmax.f32 %v2269, 0.0
    %v2612 = vmax.f32 %v2274, 0.0
    %v2613 = vmax.f32 %v2277, 0.0
    %v2614 = vmax.f32 %v2282, 0.0
    %v2615 = vmax.f32 %v2285, 0.0
    %v2616 = vmax.f32 %v2290, 0.0
    %v2617 = vmax.f32 %v2293, 0.0
    %v2618 = vmax.f32 %v2298, 0.0
    %v2619 = vmax.f32 %v2301, 0.0
    %v2620 = vmax.f32 %v2306, 0.0
    %v2621 = vmax.f32 %v2309, 0.0
    %v2622 = vmax.f32 %v2314, 0.0
    %v2623 = vmax.f32 %v2317, 0.0
    %v2624 = vmax.f32 %v2322, 0.0
    %v2625 = vmax.f32 %v2325, 0.0
    %v2626 = vmax.f32 %v2330, 0.0
    %v2627 = vmax.f32 %v2333, 0.0
    %v2628 = vmax.f32 %v2338, 0.0
    %v2629 = vmax.f32 %v2341, 0.0
    %v2630 = vmax.f32 %v2346, 0.0
    %v2631 = vmax.f32 %v2349, 0.0
    %v2632 = vmax.f32 %v2354, 0.0
    %v2633 = vmax.f32 %v2357, 0.0
    %v2634 = vmax.f32 %v2362, 0.0
    %v2635 = vmax.f32 %v2365, 0.0
    %v2636 = vmax.f32 %v2370, 0.0
    %v2637 = vmax.f32 %v2373, 0.0
    %v2638 = vmax.f32 %v2378, 0.0
    %v2639 = vmax.f32 %v2381, 0.0
    %v2640 = vrot.slane %v2384, 1
    %v2641 = vrot.slane %v2385, 1
    %v2642 = vrot.slane %v2386, 1
    %v2643 = vrot.slane %v2387, 1
    %v2644 = vrot.slane %v2388, 1
    %v2645 = vrot.slane %v2389, 1
    %v2646 = vrot.slane %v2390, 1
    %v2647 = vrot.slane %v2391, 1
    %v2648 = vrot.slane %v2392, 1
    %v2649 = vrot.slane %v2393, 1
    %v2650 = vrot.slane %v2394, 1
    %v2651 = vrot.slane %v2395, 1
    %v2652 = vrot.slane %v2396, 1
    %v2653 = vrot.slane %v2397, 1
    %v2654 = vrot.slane %v2398, 1
    %v2655 = vrot.slane %v2399, 1
    %v2656 = vrot.slane %v2400, 1
    %v2657 = vrot.slane %v2401, 1
    %v2658 = vrot.slane %v2402, 1
    %v2659 = vrot.slane %v2403, 1
    %v2660 = vrot.slane %v2404, 1
    %v2661 = vrot.slane %v2405, 1
    %v2662 = vrot.slane %v2406, 1
    %v2663 = vrot.slane %v2407, 1
    %v2664 = vrot.slane %v2408, 1
    %v2665 = vrot.slane %v2409, 1
    %v2666 = vrot.slane %v2410, 1
    %v2667 = vrot.slane %v2411, 1
    %v2668 = vrot.slane %v2412, 1
    %v2669 = vrot.slane %v2413, 1
    %v2670 = vrot.slane %v2414, 1
    %v2671 = vrot.slane %v2415, 1
    %v2672 = vrot.slane %v2416, 1
    %v2673 = vrot.slane %v2417, 1
    %v2674 = vrot.slane %v2418, 1
    %v2675 = vrot.slane %v2419, 1
    %v2676 = vrot.slane %v2420, 1
    %v2677 = vrot.slane %v2421, 1
    %v2678 = vrot.slane %v2422, 1
    %v2679 = vrot.slane %v2423, 1
    %v2680 = vrot.slane %v2424, 1
    %v2681 = vrot.slane %v2425, 1
    %v2682 = vrot.slane %v2426, 1
    %v2683 = vrot.slane %v2427, 1
    %v2684 = vrot.slane %v2428, 1
    %v2685 = vrot.slane %v2429, 1
    %v2686 = vrot.slane %v2430, 1
    %v2687 = vrot.slane %v2431, 1
    %v2688 = vrot.slane %v2432, 1
    %v2689 = vrot.slane %v2433, 1
    %v2690 = vrot.slane %v2434, 1
    %v2691 = vrot.slane %v2435, 1
    %v2692 = vrot.slane %v2436, 1
    %v2693 = vrot.slane %v2437, 1
    %v2694 = vrot.slane %v2438, 1
    %v2695 = vrot.slane %v2439, 1
    %v2696 = vrot.slane %v2440, 1
    %v2697 = vrot.slane %v2441, 1
    %v2698 = vrot.slane %v2442, 1
    %v2699 = vrot.slane %v2443, 1
    %v2700 = vrot.slane %v2444, 1
    %v2701 = vrot.slane %v2445, 1
    %v2702 = vrot.slane %v2446, 1
    %v2703 = vrot.slane %v2447, 1
    %v2704 = vrot.slane %v2448, 1
    %v2705 = vrot.slane %v2449, 1
    %v2706 = vrot.slane %v2450, 1
    %v2707 = vrot.slane %v2451, 1
    %v2708 = vrot.slane %v2452, 1
    %v2709 = vrot.slane %v2453, 1
    %v2710 = vrot.slane %v2454, 1
    %v2711 = vrot.slane %v2455, 1
    %v2712 = vrot.slane %v2456, 1
    %v2713 = vrot.slane %v2457, 1
    %v2714 = vrot.slane %v2458, 1
    %v2715 = vrot.slane %v2459, 1
    %v2716 = vrot.slane %v2460, 1
    %v2717 = vrot.slane %v2461, 1
    %v2718 = vrot.slane %v2462, 1
    %v2719 = vrot.slane %v2463, 1
    %v2720 = vrot.slane %v2464, 1
    %v2721 = vrot.slane %v2465, 1
    %v2722 = vrot.slane %v2466, 1
    %v2723 = vrot.slane %v2467, 1
    %v2724 = vrot.slane %v2468, 1
    %v2725 = vrot.slane %v2469, 1
    %v2726 = vrot.slane %v2470, 1
    %v2727 = vrot.slane %v2471, 1
    %v2728 = vrot.slane %v2472, 1
    %v2729 = vrot.slane %v2473, 1
    %v2730 = vrot.slane %v2474, 1
    %v2731 = vrot.slane %v2475, 1
    %v2732 = vrot.slane %v2476, 1
    %v2733 = vrot.slane %v2477, 1
    %v2734 = vrot.slane %v2478, 1
    %v2735 = vrot.slane %v2479, 1
    %v2736 = vrot.slane %v2480, 1
    %v2737 = vrot.slane %v2481, 1
    %v2738 = vrot.slane %v2482, 1
    %v2739 = vrot.slane %v2483, 1
    %v2740 = vrot.slane %v2484, 1
    %v2741 = vrot.slane %v2485, 1
    %v2742 = vrot.slane %v2486, 1
    %v2743 = vrot.slane %v2487, 1
    %v2744 = vrot.slane %v2488, 1
    %v2745 = vrot.slane %v2489, 1
    %v2746 = vrot.slane %v2490, 1
    %v2747 = vrot.slane %v2491, 1
    %v2748 = vrot.slane %v2492, 1
    %v2749 = vrot.slane %v2493, 1
    %v2750 = vrot.slane %v2494, 1
    %v2751 = vrot.slane %v2495, 1
    %v2752 = vrot.slane %v2496, 1
    %v2753 = vrot.slane %v2497, 1
    %v2754 = vrot.slane %v2498, 1
    %v2755 = vrot.slane %v2499, 1
    %v2756 = vrot.slane %v2500, 1
    %v2757 = vrot.slane %v2501, 1
    %v2758 = vrot.slane %v2502, 1
    %v2759 = vrot.slane %v2503, 1
    %v2760 = vrot.slane %v2504, 1
    %v2761 = vrot.slane %v2505, 1
    %v2762 = vrot.slane %v2506, 1
    %v2763 = vrot.slane %v2507, 1
    %v2764 = vrot.slane %v2508, 1
    %v2765 = vrot.slane %v2509, 1
    %v2766 = vrot.slane %v2510, 1
    %v2767 = vrot.slane %v2511, 1
    %v2768 = vrot.slane %v2512, 1
    %v2769 = vrot.slane %v2513, 1
    %v2770 = vrot.slane %v2514, 1
    %v2771 = vrot.slane %v2515, 1
    %v2772 = vrot.slane %v2516, 1
    %v2773 = vrot.slane %v2517, 1
    %v2774 = vrot.slane %v2518, 1
    %v2775 = vrot.slane %v2519, 1
    %v2776 = vrot.slane %v2520, 1
    %v2777 = vrot.slane %v2521, 1
    %v2778 = vrot.slane %v2522, 1
    %v2779 = vrot.slane %v2523, 1
    %v2780 = vrot.slane %v2524, 1
    %v2781 = vrot.slane %v2525, 1
    %v2782 = vrot.slane %v2526, 1
    %v2783 = vrot.slane %v2527, 1
    %v2784 = vrot.slane %v2528, 1
    %v2785 = vrot.slane %v2529, 1
    %v2786 = vrot.slane %v2530, 1
    %v2787 = vrot.slane %v2531, 1
    %v2788 = vrot.slane %v2532, 1
    %v2789 = vrot.slane %v2533, 1
    %v2790 = vrot.slane %v2534, 1
    %v2791 = vrot.slane %v2535, 1
    %v2792 = vrot.slane %v2536, 1
    %v2793 = vrot.slane %v2537, 1
    %v2794 = vrot.slane %v2538, 1
    %v2795 = vrot.slane %v2539, 1
    %v2796 = vrot.slane %v2540, 1
    %v2797 = vrot.slane %v2541, 1
    %v2798 = vrot.slane %v2542, 1
    %v2799 = vrot.slane %v2543, 1
    %v2800 = vrot.slane %v2544, 1
    %v2801 = vrot.slane %v2545, 1
    %v2802 = vrot.slane %v2546, 1
    %v2803 = vrot.slane %v2547, 1
    %v2804 = vrot.slane %v2548, 1
    %v2805 = vrot.slane %v2549, 1
    %v2806 = vrot.slane %v2550, 1
    %v2807 = vrot.slane %v2551, 1
    %v2808 = vrot.slane %v2552, 1
    %v2809 = vrot.slane %v2553, 1
    %v2810 = vrot.slane %v2554, 1
    %v2811 = vrot.slane %v2555, 1
    %v2812 = vrot.slane %v2556, 1
    %v2813 = vrot.slane %v2557, 1
    %v2814 = vrot.slane %v2558, 1
    %v2815 = vrot.slane %v2559, 1
    %v2816 = vrot.slane %v2560, 1
    %v2817 = vrot.slane %v2561, 1
    %v2818 = vrot.slane %v2562, 1
    %v2819 = vrot.slane %v2563, 1
    %v2820 = vrot.slane %v2564, 1
    %v2821 = vrot.slane %v2565, 1
    %v2822 = vrot.slane %v2566, 1
    %v2823 = vrot.slane %v2567, 1
    %v2824 = vrot.slane %v2568, 1
    %v2825 = vrot.slane %v2569, 1
    %v2826 = vrot.slane %v2570, 1
    %v2827 = vrot.slane %v2571, 1
    %v2828 = vrot.slane %v2572, 1
    %v2829 = vrot.slane %v2573, 1
    %v2830 = vrot.slane %v2574, 1
    %v2831 = vrot.slane %v2575, 1
    %v2832 = vrot.slane %v2576, 1
    %v2833 = vrot.slane %v2577, 1
    %v2834 = vrot.slane %v2578, 1
    %v2835 = vrot.slane %v2579, 1
    %v2836 = vrot.slane %v2580, 1
    %v2837 = vrot.slane %v2581, 1
    %v2838 = vrot.slane %v2582, 1
    %v2839 = vrot.slane %v2583, 1
    %v2840 = vrot.slane %v2584, 1
    %v2841 = vrot.slane %v2585, 1
    %v2842 = vrot.slane %v2586, 1
    %v2843 = vrot.slane %v2587, 1
    %v2844 = vrot.slane %v2588, 1
    %v2845 = vrot.slane %v2589, 1
    %v2846 = vrot.slane %v2590, 1
    %v2847 = vrot.slane %v2591, 1
    %v2848 = vrot.slane %v2592, 1
    %v2849 = vrot.slane %v2593, 1
    %v2850 = vrot.slane %v2594, 1
    %v2851 = vrot.slane %v2595, 1
    %v2852 = vrot.slane %v2596, 1
    %v2853 = vrot.slane %v2597, 1
    %v2854 = vrot.slane %v2598, 1
    %v2855 = vrot.slane %v2599, 1
    %v2856 = vrot.slane %v2600, 1
    %v2857 = vrot.slane %v2601, 1
    %v2858 = vrot.slane %v2602, 1
    %v2859 = vrot.slane %v2603, 1
    %v2860 = vrot.slane %v2604, 1
    %v2861 = vrot.slane %v2605, 1
    %v2862 = vrot.slane %v2606, 1
    %v2863 = vrot.slane %v2607, 1
    %v2864 = vrot.slane %v2608, 1
    %v2865 = vrot.slane %v2609, 1
    %v2866 = vrot.slane %v2610, 1
    %v2867 = vrot.slane %v2611, 1
    %v2868 = vrot.slane %v2612, 1
    %v2869 = vrot.slane %v2613, 1
    %v2870 = vrot.slane %v2614, 1
    %v2871 = vrot.slane %v2615, 1
    %v2872 = vrot.slane %v2616, 1
    %v2873 = vrot.slane %v2617, 1
    %v2874 = vrot.slane %v2618, 1
    %v2875 = vrot.slane %v2619, 1
    %v2876 = vrot.slane %v2620, 1
    %v2877 = vrot.slane %v2621, 1
    %v2878 = vrot.slane %v2622, 1
    %v2879 = vrot.slane %v2623, 1
    %v2880 = vrot.slane %v2624, 1
    %v2881 = vrot.slane %v2625, 1
    %v2882 = vrot.slane %v2626, 1
    %v2883 = vrot.slane %v2627, 1
    %v2884 = vrot.slane %v2628, 1
    %v2885 = vrot.slane %v2629, 1
    %v2886 = vrot.slane %v2630, 1
    %v2887 = vrot.slane %v2631, 1
    %v2888 = vrot.slane %v2632, 1
    %v2889 = vrot.slane %v2633, 1
    %v2890 = vrot.slane %v2634, 1
    %v2891 = vrot.slane %v2635, 1
    %v2892 = vrot.slane %v2636, 1
    %v2893 = vrot.slane %v2637, 1
    %v2894 = vrot.slane %v2638, 1
    %v2895 = vrot.slane %v2639, 1
    %v2896 = vlaneseq
    %v2897 = vshrl.u32 %v2896, 7
    %vm2898 = vcmp.lt.s32.totalorder %v2897, 7
    %v2899 = vsel %vm2898, %v2894, %v2895
    %v2900 = vsel %vm2898, %v2893, %v2894
    %v2901 = vsel %vm2898, %v2892, %v2893
    %v2902 = vsel %vm2898, %v2891, %v2892
    %v2903 = vsel %vm2898, %v2890, %v2891
    %v2904 = vsel %vm2898, %v2889, %v2890
    %v2905 = vsel %vm2898, %v2888, %v2889
    %v2906 = vsel %vm2898, %v2887, %v2888
    %v2907 = vsel %vm2898, %v2886, %v2887
    %v2908 = vsel %vm2898, %v2885, %v2886
    %v2909 = vsel %vm2898, %v2884, %v2885
    %v2910 = vsel %vm2898, %v2883, %v2884
    %v2911 = vsel %vm2898, %v2882, %v2883
    %v2912 = vsel %vm2898, %v2881, %v2882
    %v2913 = vsel %vm2898, %v2880, %v2881
    %v2914 = vsel %vm2898, %v2879, %v2880
    %v2915 = vsel %vm2898, %v2878, %v2879
    %v2916 = vsel %vm2898, %v2877, %v2878
    %v2917 = vsel %vm2898, %v2876, %v2877
    %v2918 = vsel %vm2898, %v2875, %v2876
    %v2919 = vsel %vm2898, %v2874, %v2875
    %v2920 = vsel %vm2898, %v2873, %v2874
    %v2921 = vsel %vm2898, %v2872, %v2873
    %v2922 = vsel %vm2898, %v2871, %v2872
    %v2923 = vsel %vm2898, %v2870, %v2871
    %v2924 = vsel %vm2898, %v2869, %v2870
    %v2925 = vsel %vm2898, %v2868, %v2869
    %v2926 = vsel %vm2898, %v2867, %v2868
    %v2927 = vsel %vm2898, %v2866, %v2867
    %v2928 = vsel %vm2898, %v2865, %v2866
    %v2929 = vsel %vm2898, %v2864, %v2865
    %v2930 = vsel %vm2898, %v2863, %v2864
    %v2931 = vsel %vm2898, %v2862, %v2863
    %v2932 = vsel %vm2898, %v2861, %v2862
    %v2933 = vsel %vm2898, %v2860, %v2861
    %v2934 = vsel %vm2898, %v2859, %v2860
    %v2935 = vsel %vm2898, %v2858, %v2859
    %v2936 = vsel %vm2898, %v2857, %v2858
    %v2937 = vsel %vm2898, %v2856, %v2857
    %v2938 = vsel %vm2898, %v2855, %v2856
    %v2939 = vsel %vm2898, %v2854, %v2855
    %v2940 = vsel %vm2898, %v2853, %v2854
    %v2941 = vsel %vm2898, %v2852, %v2853
    %v2942 = vsel %vm2898, %v2851, %v2852
    %v2943 = vsel %vm2898, %v2850, %v2851
    %v2944 = vsel %vm2898, %v2849, %v2850
    %v2945 = vsel %vm2898, %v2848, %v2849
    %v2946 = vsel %vm2898, %v2847, %v2848
    %v2947 = vsel %vm2898, %v2846, %v2847
    %v2948 = vsel %vm2898, %v2845, %v2846
    %v2949 = vsel %vm2898, %v2844, %v2845
    %v2950 = vsel %vm2898, %v2843, %v2844
    %v2951 = vsel %vm2898, %v2842, %v2843
    %v2952 = vsel %vm2898, %v2841, %v2842
    %v2953 = vsel %vm2898, %v2840, %v2841
    %v2954 = vsel %vm2898, %v2839, %v2840
    %v2955 = vsel %vm2898, %v2838, %v2839
    %v2956 = vsel %vm2898, %v2837, %v2838
    %v2957 = vsel %vm2898, %v2836, %v2837
    %v2958 = vsel %vm2898, %v2835, %v2836
    %v2959 = vsel %vm2898, %v2834, %v2835
    %v2960 = vsel %vm2898, %v2833, %v2834
    %v2961 = vsel %vm2898, %v2832, %v2833
    %v2962 = vsel %vm2898, %v2831, %v2832
    %v2963 = vsel %vm2898, %v2830, %v2831
    %v2964 = vsel %vm2898, %v2829, %v2830
    %v2965 = vsel %vm2898, %v2828, %v2829
    %v2966 = vsel %vm2898, %v2827, %v2828
    %v2967 = vsel %vm2898, %v2826, %v2827
    %v2968 = vsel %vm2898, %v2825, %v2826
    %v2969 = vsel %vm2898, %v2824, %v2825
    %v2970 = vsel %vm2898, %v2823, %v2824
    %v2971 = vsel %vm2898, %v2822, %v2823
    %v2972 = vsel %vm2898, %v2821, %v2822
    %v2973 = vsel %vm2898, %v2820, %v2821
    %v2974 = vsel %vm2898, %v2819, %v2820
    %v2975 = vsel %vm2898, %v2818, %v2819
    %v2976 = vsel %vm2898, %v2817, %v2818
    %v2977 = vsel %vm2898, %v2816, %v2817
    %v2978 = vsel %vm2898, %v2815, %v2816
    %v2979 = vsel %vm2898, %v2814, %v2815
    %v2980 = vsel %vm2898, %v2813, %v2814
    %v2981 = vsel %vm2898, %v2812, %v2813
    %v2982 = vsel %vm2898, %v2811, %v2812
    %v2983 = vsel %vm2898, %v2810, %v2811
    %v2984 = vsel %vm2898, %v2809, %v2810
    %v2985 = vsel %vm2898, %v2808, %v2809
    %v2986 = vsel %vm2898, %v2807, %v2808
    %v2987 = vsel %vm2898, %v2806, %v2807
    %v2988 = vsel %vm2898, %v2805, %v2806
    %v2989 = vsel %vm2898, %v2804, %v2805
    %v2990 = vsel %vm2898, %v2803, %v2804
    %v2991 = vsel %vm2898, %v2802, %v2803
    %v2992 = vsel %vm2898, %v2801, %v2802
    %v2993 = vsel %vm2898, %v2800, %v2801
    %v2994 = vsel %vm2898, %v2799, %v2800
    %v2995 = vsel %vm2898, %v2798, %v2799
    %v2996 = vsel %vm2898, %v2797, %v2798
    %v2997 = vsel %vm2898, %v2796, %v2797
    %v2998 = vsel %vm2898, %v2795, %v2796
    %v2999 = vsel %vm2898, %v2794, %v2795
    %v3000 = vsel %vm2898, %v2793, %v2794
    %v3001 = vsel %vm2898, %v2792, %v2793
    %v3002 = vsel %vm2898, %v2791, %v2792
    %v3003 = vsel %vm2898, %v2790, %v2791
    %v3004 = vsel %vm2898, %v2789, %v2790
    %v3005 = vsel %vm2898, %v2788, %v2789
    %v3006 = vsel %vm2898, %v2787, %v2788
    %v3007 = vsel %vm2898, %v2786, %v2787
    %v3008 = vsel %vm2898, %v2785, %v2786
    %v3009 = vsel %vm2898, %v2784, %v2785
    %v3010 = vsel %vm2898, %v2783, %v2784
    %v3011 = vsel %vm2898, %v2782, %v2783
    %v3012 = vsel %vm2898, %v2781, %v2782
    %v3013 = vsel %vm2898, %v2780, %v2781
    %v3014 = vsel %vm2898, %v2779, %v2780
    %v3015 = vsel %vm2898, %v2778, %v2779
    %v3016 = vsel %vm2898, %v2777, %v2778
    %v3017 = vsel %vm2898, %v2776, %v2777
    %v3018 = vsel %vm2898, %v2775, %v2776
    %v3019 = vsel %vm2898, %v2774, %v2775
    %v3020 = vsel %vm2898, %v2773, %v2774
    %v3021 = vsel %vm2898, %v2772, %v2773
    %v3022 = vsel %vm2898, %v2771, %v2772
    %v3023 = vsel %vm2898, %v2770, %v2771
    %v3024 = vsel %vm2898, %v2769, %v2770
    %v3025 = vsel %vm2898, %v2768, %v2769
    %v3026 = vsel %vm2898, %v2767, %v2768
    %v3027 = vsel %vm2898, %v2766, %v2767
    %v3028 = vsel %vm2898, %v2765, %v2766
    %v3029 = vsel %vm2898, %v2764, %v2765
    %v3030 = vsel %vm2898, %v2763, %v2764
    %v3031 = vsel %vm2898, %v2762, %v2763
    %v3032 = vsel %vm2898, %v2761, %v2762
    %v3033 = vsel %vm2898, %v2760, %v2761
    %v3034 = vsel %vm2898, %v2759, %v2760
    %v3035 = vsel %vm2898, %v2758, %v2759
    %v3036 = vsel %vm2898, %v2757, %v2758
    %v3037 = vsel %vm2898, %v2756, %v2757
    %v3038 = vsel %vm2898, %v2755, %v2756
    %v3039 = vsel %vm2898, %v2754, %v2755
    %v3040 = vsel %vm2898, %v2753, %v2754
    %v3041 = vsel %vm2898, %v2752, %v2753
    %v3042 = vsel %vm2898, %v2751, %v2752
    %v3043 = vsel %vm2898, %v2750, %v2751
    %v3044 = vsel %vm2898, %v2749, %v2750
    %v3045 = vsel %vm2898, %v2748, %v2749
    %v3046 = vsel %vm2898, %v2747, %v2748
    %v3047 = vsel %vm2898, %v2746, %v2747
    %v3048 = vsel %vm2898, %v2745, %v2746
    %v3049 = vsel %vm2898, %v2744, %v2745
    %v3050 = vsel %vm2898, %v2743, %v2744
    %v3051 = vsel %vm2898, %v2742, %v2743
    %v3052 = vsel %vm2898, %v2741, %v2742
    %v3053 = vsel %vm2898, %v2740, %v2741
    %v3054 = vsel %vm2898, %v2739, %v2740
    %v3055 = vsel %vm2898, %v2738, %v2739
    %v3056 = vsel %vm2898, %v2737, %v2738
    %v3057 = vsel %vm2898, %v2736, %v2737
    %v3058 = vsel %vm2898, %v2735, %v2736
    %v3059 = vsel %vm2898, %v2734, %v2735
    %v3060 = vsel %vm2898, %v2733, %v2734
    %v3061 = vsel %vm2898, %v2732, %v2733
    %v3062 = vsel %vm2898, %v2731, %v2732
    %v3063 = vsel %vm2898, %v2730, %v2731
    %v3064 = vsel %vm2898, %v2729, %v2730
    %v3065 = vsel %vm2898, %v2728, %v2729
    %v3066 = vsel %vm2898, %v2727, %v2728
    %v3067 = vsel %vm2898, %v2726, %v2727
    %v3068 = vsel %vm2898, %v2725, %v2726
    %v3069 = vsel %vm2898, %v2724, %v2725
    %v3070 = vsel %vm2898, %v2723, %v2724
    %v3071 = vsel %vm2898, %v2722, %v2723
    %v3072 = vsel %vm2898, %v2721, %v2722
    %v3073 = vsel %vm2898, %v2720, %v2721
    %v3074 = vsel %vm2898, %v2719, %v2720
    %v3075 = vsel %vm2898, %v2718, %v2719
    %v3076 = vsel %vm2898, %v2717, %v2718
    %v3077 = vsel %vm2898, %v2716, %v2717
    %v3078 = vsel %vm2898, %v2715, %v2716
    %v3079 = vsel %vm2898, %v2714, %v2715
    %v3080 = vsel %vm2898, %v2713, %v2714
    %v3081 = vsel %vm2898, %v2712, %v2713
    %v3082 = vsel %vm2898, %v2711, %v2712
    %v3083 = vsel %vm2898, %v2710, %v2711
    %v3084 = vsel %vm2898, %v2709, %v2710
    %v3085 = vsel %vm2898, %v2708, %v2709
    %v3086 = vsel %vm2898, %v2707, %v2708
    %v3087 = vsel %vm2898, %v2706, %v2707
    %v3088 = vsel %vm2898, %v2705, %v2706
    %v3089 = vsel %vm2898, %v2704, %v2705
    %v3090 = vsel %vm2898, %v2703, %v2704
    %v3091 = vsel %vm2898, %v2702, %v2703
    %v3092 = vsel %vm2898, %v2701, %v2702
    %v3093 = vsel %vm2898, %v2700, %v2701
    %v3094 = vsel %vm2898, %v2699, %v2700
    %v3095 = vsel %vm2898, %v2698, %v2699
    %v3096 = vsel %vm2898, %v2697, %v2698
    %v3097 = vsel %vm2898, %v2696, %v2697
    %v3098 = vsel %vm2898, %v2695, %v2696
    %v3099 = vsel %vm2898, %v2694, %v2695
    %v3100 = vsel %vm2898, %v2693, %v2694
    %v3101 = vsel %vm2898, %v2692, %v2693
    %v3102 = vsel %vm2898, %v2691, %v2692
    %v3103 = vsel %vm2898, %v2690, %v2691
    %v3104 = vsel %vm2898, %v2689, %v2690
    %v3105 = vsel %vm2898, %v2688, %v2689
    %v3106 = vsel %vm2898, %v2687, %v2688
    %v3107 = vsel %vm2898, %v2686, %v2687
    %v3108 = vsel %vm2898, %v2685, %v2686
    %v3109 = vsel %vm2898, %v2684, %v2685
    %v3110 = vsel %vm2898, %v2683, %v2684
    %v3111 = vsel %vm2898, %v2682, %v2683
    %v3112 = vsel %vm2898, %v2681, %v2682
    %v3113 = vsel %vm2898, %v2680, %v2681
    %v3114 = vsel %vm2898, %v2679, %v2680
    %v3115 = vsel %vm2898, %v2678, %v2679
    %v3116 = vsel %vm2898, %v2677, %v2678
    %v3117 = vsel %vm2898, %v2676, %v2677
    %v3118 = vsel %vm2898, %v2675, %v2676
    %v3119 = vsel %vm2898, %v2674, %v2675
    %v3120 = vsel %vm2898, %v2673, %v2674
    %v3121 = vsel %vm2898, %v2672, %v2673
    %v3122 = vsel %vm2898, %v2671, %v2672
    %v3123 = vsel %vm2898, %v2670, %v2671
    %v3124 = vsel %vm2898, %v2669, %v2670
    %v3125 = vsel %vm2898, %v2668, %v2669
    %v3126 = vsel %vm2898, %v2667, %v2668
    %v3127 = vsel %vm2898, %v2666, %v2667
    %v3128 = vsel %vm2898, %v2665, %v2666
    %v3129 = vsel %vm2898, %v2664, %v2665
    %v3130 = vsel %vm2898, %v2663, %v2664
    %v3131 = vsel %vm2898, %v2662, %v2663
    %v3132 = vsel %vm2898, %v2661, %v2662
    %v3133 = vsel %vm2898, %v2660, %v2661
    %v3134 = vsel %vm2898, %v2659, %v2660
    %v3135 = vsel %vm2898, %v2658, %v2659
    %v3136 = vsel %vm2898, %v2657, %v2658
    %v3137 = vsel %vm2898, %v2656, %v2657
    %v3138 = vsel %vm2898, %v2655, %v2656
    %v3139 = vsel %vm2898, %v2654, %v2655
    %v3140 = vsel %vm2898, %v2653, %v2654
    %v3141 = vsel %vm2898, %v2652, %v2653
    %v3142 = vsel %vm2898, %v2651, %v2652
    %v3143 = vsel %vm2898, %v2650, %v2651
    %v3144 = vsel %vm2898, %v2649, %v2650
    %v3145 = vsel %vm2898, %v2648, %v2649
    %v3146 = vsel %vm2898, %v2647, %v2648
    %v3147 = vsel %vm2898, %v2646, %v2647
    %v3148 = vsel %vm2898, %v2645, %v2646
    %v3149 = vsel %vm2898, %v2644, %v2645
    %v3150 = vsel %vm2898, %v2643, %v2644
    %v3151 = vsel %vm2898, %v2642, %v2643
    %v3152 = vsel %vm2898, %v2641, %v2642
    %v3153 = vsel %vm2898, %v2640, %v2641
    %v3154 = vsel %vm2898, %v2895, %v2640
    %v3155 = vmax.f32 %v2384, %v3153
    %v3156 = vmax.f32 %v2385, %v3152
    %v3157 = vmax.f32 %v2386, %v3151
    %v3158 = vmax.f32 %v2387, %v3150
    %v3159 = vmax.f32 %v2388, %v3149
    %v3160 = vmax.f32 %v2389, %v3148
    %v3161 = vmax.f32 %v2390, %v3147
    %v3162 = vmax.f32 %v2391, %v3146
    %v3163 = vmax.f32 %v2392, %v3145
    %v3164 = vmax.f32 %v2393, %v3144
    %v3165 = vmax.f32 %v2394, %v3143
    %v3166 = vmax.f32 %v2395, %v3142
    %v3167 = vmax.f32 %v2396, %v3141
    %v3168 = vmax.f32 %v2397, %v3140
    %v3169 = vmax.f32 %v2398, %v3139
    %v3170 = vmax.f32 %v2399, %v3138
    %v3171 = vmax.f32 %v2400, %v3137
    %v3172 = vmax.f32 %v2401, %v3136
    %v3173 = vmax.f32 %v2402, %v3135
    %v3174 = vmax.f32 %v2403, %v3134
    %v3175 = vmax.f32 %v2404, %v3133
    %v3176 = vmax.f32 %v2405, %v3132
    %v3177 = vmax.f32 %v2406, %v3131
    %v3178 = vmax.f32 %v2407, %v3130
    %v3179 = vmax.f32 %v2408, %v3129
    %v3180 = vmax.f32 %v2409, %v3128
    %v3181 = vmax.f32 %v2410, %v3127
    %v3182 = vmax.f32 %v2411, %v3126
    %v3183 = vmax.f32 %v2412, %v3125
    %v3184 = vmax.f32 %v2413, %v3124
    %v3185 = vmax.f32 %v2414, %v3123
    %v3186 = vmax.f32 %v2415, %v3122
    %v3187 = vmax.f32 %v2416, %v3121
    %v3188 = vmax.f32 %v2417, %v3120
    %v3189 = vmax.f32 %v2418, %v3119
    %v3190 = vmax.f32 %v2419, %v3118
    %v3191 = vmax.f32 %v2420, %v3117
    %v3192 = vmax.f32 %v2421, %v3116
    %v3193 = vmax.f32 %v2422, %v3115
    %v3194 = vmax.f32 %v2423, %v3114
    %v3195 = vmax.f32 %v2424, %v3113
    %v3196 = vmax.f32 %v2425, %v3112
    %v3197 = vmax.f32 %v2426, %v3111
    %v3198 = vmax.f32 %v2427, %v3110
    %v3199 = vmax.f32 %v2428, %v3109
    %v3200 = vmax.f32 %v2429, %v3108
    %v3201 = vmax.f32 %v2430, %v3107
    %v3202 = vmax.f32 %v2431, %v3106
    %v3203 = vmax.f32 %v2432, %v3105
    %v3204 = vmax.f32 %v2433, %v3104
    %v3205 = vmax.f32 %v2434, %v3103
    %v3206 = vmax.f32 %v2435, %v3102
    %v3207 = vmax.f32 %v2436, %v3101
    %v3208 = vmax.f32 %v2437, %v3100
    %v3209 = vmax.f32 %v2438, %v3099
    %v3210 = vmax.f32 %v2439, %v3098
    %v3211 = vmax.f32 %v2440, %v3097
    %v3212 = vmax.f32 %v2441, %v3096
    %v3213 = vmax.f32 %v2442, %v3095
    %v3214 = vmax.f32 %v2443, %v3094
    %v3215 = vmax.f32 %v2444, %v3093
    %v3216 = vmax.f32 %v2445, %v3092
    %v3217 = vmax.f32 %v2446, %v3091
    %v3218 = vmax.f32 %v2447, %v3090
    %v3219 = vmax.f32 %v2448, %v3089
    %v3220 = vmax.f32 %v2449, %v3088
    %v3221 = vmax.f32 %v2450, %v3087
    %v3222 = vmax.f32 %v2451, %v3086
    %v3223 = vmax.f32 %v2452, %v3085
    %v3224 = vmax.f32 %v2453, %v3084
    %v3225 = vmax.f32 %v2454, %v3083
    %v3226 = vmax.f32 %v2455, %v3082
    %v3227 = vmax.f32 %v2456, %v3081
    %v3228 = vmax.f32 %v2457, %v3080
    %v3229 = vmax.f32 %v2458, %v3079
    %v3230 = vmax.f32 %v2459, %v3078
    %v3231 = vmax.f32 %v2460, %v3077
    %v3232 = vmax.f32 %v2461, %v3076
    %v3233 = vmax.f32 %v2462, %v3075
    %v3234 = vmax.f32 %v2463, %v3074
    %v3235 = vmax.f32 %v2464, %v3073
    %v3236 = vmax.f32 %v2465, %v3072
    %v3237 = vmax.f32 %v2466, %v3071
    %v3238 = vmax.f32 %v2467, %v3070
    %v3239 = vmax.f32 %v2468, %v3069
    %v3240 = vmax.f32 %v2469, %v3068
    %v3241 = vmax.f32 %v2470, %v3067
    %v3242 = vmax.f32 %v2471, %v3066
    %v3243 = vmax.f32 %v2472, %v3065
    %v3244 = vmax.f32 %v2473, %v3064
    %v3245 = vmax.f32 %v2474, %v3063
    %v3246 = vmax.f32 %v2475, %v3062
    %v3247 = vmax.f32 %v2476, %v3061
    %v3248 = vmax.f32 %v2477, %v3060
    %v3249 = vmax.f32 %v2478, %v3059
    %v3250 = vmax.f32 %v2479, %v3058
    %v3251 = vmax.f32 %v2480, %v3057
    %v3252 = vmax.f32 %v2481, %v3056
    %v3253 = vmax.f32 %v2482, %v3055
    %v3254 = vmax.f32 %v2483, %v3054
    %v3255 = vmax.f32 %v2484, %v3053
    %v3256 = vmax.f32 %v2485, %v3052
    %v3257 = vmax.f32 %v2486, %v3051
    %v3258 = vmax.f32 %v2487, %v3050
    %v3259 = vmax.f32 %v2488, %v3049
    %v3260 = vmax.f32 %v2489, %v3048
    %v3261 = vmax.f32 %v2490, %v3047
    %v3262 = vmax.f32 %v2491, %v3046
    %v3263 = vmax.f32 %v2492, %v3045
    %v3264 = vmax.f32 %v2493, %v3044
    %v3265 = vmax.f32 %v2494, %v3043
    %v3266 = vmax.f32 %v2495, %v3042
    %v3267 = vmax.f32 %v2496, %v3041
    %v3268 = vmax.f32 %v2497, %v3040
    %v3269 = vmax.f32 %v2498, %v3039
    %v3270 = vmax.f32 %v2499, %v3038
    %v3271 = vmax.f32 %v2500, %v3037
    %v3272 = vmax.f32 %v2501, %v3036
    %v3273 = vmax.f32 %v2502, %v3035
    %v3274 = vmax.f32 %v2503, %v3034
    %v3275 = vmax.f32 %v2504, %v3033
    %v3276 = vmax.f32 %v2505, %v3032
    %v3277 = vmax.f32 %v2506, %v3031
    %v3278 = vmax.f32 %v2507, %v3030
    %v3279 = vmax.f32 %v2508, %v3029
    %v3280 = vmax.f32 %v2509, %v3028
    %v3281 = vmax.f32 %v2510, %v3027
    %v3282 = vmax.f32 %v2511, %v3026
    %v3283 = vmax.f32 %v2512, %v3025
    %v3284 = vmax.f32 %v2513, %v3024
    %v3285 = vmax.f32 %v2514, %v3023
    %v3286 = vmax.f32 %v2515, %v3022
    %v3287 = vmax.f32 %v2516, %v3021
    %v3288 = vmax.f32 %v2517, %v3020
    %v3289 = vmax.f32 %v2518, %v3019
    %v3290 = vmax.f32 %v2519, %v3018
    %v3291 = vmax.f32 %v2520, %v3017
    %v3292 = vmax.f32 %v2521, %v3016
    %v3293 = vmax.f32 %v2522, %v3015
    %v3294 = vmax.f32 %v2523, %v3014
    %v3295 = vmax.f32 %v2524, %v3013
    %v3296 = vmax.f32 %v2525, %v3012
    %v3297 = vmax.f32 %v2526, %v3011
    %v3298 = vmax.f32 %v2527, %v3010
    %v3299 = vmax.f32 %v2528, %v3009
    %v3300 = vmax.f32 %v2529, %v3008
    %v3301 = vmax.f32 %v2530, %v3007
    %v3302 = vmax.f32 %v2531, %v3006
    %v3303 = vmax.f32 %v2532, %v3005
    %v3304 = vmax.f32 %v2533, %v3004
    %v3305 = vmax.f32 %v2534, %v3003
    %v3306 = vmax.f32 %v2535, %v3002
    %v3307 = vmax.f32 %v2536, %v3001
    %v3308 = vmax.f32 %v2537, %v3000
    %v3309 = vmax.f32 %v2538, %v2999
    %v3310 = vmax.f32 %v2539, %v2998
    %v3311 = vmax.f32 %v2540, %v2997
    %v3312 = vmax.f32 %v2541, %v2996
    %v3313 = vmax.f32 %v2542, %v2995
    %v3314 = vmax.f32 %v2543, %v2994
    %v3315 = vmax.f32 %v2544, %v2993
    %v3316 = vmax.f32 %v2545, %v2992
    %v3317 = vmax.f32 %v2546, %v2991
    %v3318 = vmax.f32 %v2547, %v2990
    %v3319 = vmax.f32 %v2548, %v2989
    %v3320 = vmax.f32 %v2549, %v2988
    %v3321 = vmax.f32 %v2550, %v2987
    %v3322 = vmax.f32 %v2551, %v2986
    %v3323 = vmax.f32 %v2552, %v2985
    %v3324 = vmax.f32 %v2553, %v2984
    %v3325 = vmax.f32 %v2554, %v2983
    %v3326 = vmax.f32 %v2555, %v2982
    %v3327 = vmax.f32 %v2556, %v2981
    %v3328 = vmax.f32 %v2557, %v2980
    %v3329 = vmax.f32 %v2558, %v2979
    %v3330 = vmax.f32 %v2559, %v2978
    %v3331 = vmax.f32 %v2560, %v2977
    %v3332 = vmax.f32 %v2561, %v2976
    %v3333 = vmax.f32 %v2562, %v2975
    %v3334 = vmax.f32 %v2563, %v2974
    %v3335 = vmax.f32 %v2564, %v2973
    %v3336 = vmax.f32 %v2565, %v2972
    %v3337 = vmax.f32 %v2566, %v2971
    %v3338 = vmax.f32 %v2567, %v2970
    %v3339 = vmax.f32 %v2568, %v2969
    %v3340 = vmax.f32 %v2569, %v2968
    %v3341 = vmax.f32 %v2570, %v2967
    %v3342 = vmax.f32 %v2571, %v2966
    %v3343 = vmax.f32 %v2572, %v2965
    %v3344 = vmax.f32 %v2573, %v2964
    %v3345 = vmax.f32 %v2574, %v2963
    %v3346 = vmax.f32 %v2575, %v2962
    %v3347 = vmax.f32 %v2576, %v2961
    %v3348 = vmax.f32 %v2577, %v2960
    %v3349 = vmax.f32 %v2578, %v2959
    %v3350 = vmax.f32 %v2579, %v2958
    %v3351 = vmax.f32 %v2580, %v2957
    %v3352 = vmax.f32 %v2581, %v2956
    %v3353 = vmax.f32 %v2582, %v2955
    %v3354 = vmax.f32 %v2583, %v2954
    %v3355 = vmax.f32 %v2584, %v2953
    %v3356 = vmax.f32 %v2585, %v2952
    %v3357 = vmax.f32 %v2586, %v2951
    %v3358 = vmax.f32 %v2587, %v2950
    %v3359 = vmax.f32 %v2588, %v2949
    %v3360 = vmax.f32 %v2589, %v2948
    %v3361 = vmax.f32 %v2590, %v2947
    %v3362 = vmax.f32 %v2591, %v2946
    %v3363 = vmax.f32 %v2592, %v2945
    %v3364 = vmax.f32 %v2593, %v2944
    %v3365 = vmax.f32 %v2594, %v2943
    %v3366 = vmax.f32 %v2595, %v2942
    %v3367 = vmax.f32 %v2596, %v2941
    %v3368 = vmax.f32 %v2597, %v2940
    %v3369 = vmax.f32 %v2598, %v2939
    %v3370 = vmax.f32 %v2599, %v2938
    %v3371 = vmax.f32 %v2600, %v2937
    %v3372 = vmax.f32 %v2601, %v2936
    %v3373 = vmax.f32 %v2602, %v2935
    %v3374 = vmax.f32 %v2603, %v2934
    %v3375 = vmax.f32 %v2604, %v2933
    %v3376 = vmax.f32 %v2605, %v2932
    %v3377 = vmax.f32 %v2606, %v2931
    %v3378 = vmax.f32 %v2607, %v2930
    %v3379 = vmax.f32 %v2608, %v2929
    %v3380 = vmax.f32 %v2609, %v2928
    %v3381 = vmax.f32 %v2610, %v2927
    %v3382 = vmax.f32 %v2611, %v2926
    %v3383 = vmax.f32 %v2612, %v2925
    %v3384 = vmax.f32 %v2613, %v2924
    %v3385 = vmax.f32 %v2614, %v2923
    %v3386 = vmax.f32 %v2615, %v2922
    %v3387 = vmax.f32 %v2616, %v2921
    %v3388 = vmax.f32 %v2617, %v2920
    %v3389 = vmax.f32 %v2618, %v2919
    %v3390 = vmax.f32 %v2619, %v2918
    %v3391 = vmax.f32 %v2620, %v2917
    %v3392 = vmax.f32 %v2621, %v2916
    %v3393 = vmax.f32 %v2622, %v2915
    %v3394 = vmax.f32 %v2623, %v2914
    %v3395 = vmax.f32 %v2624, %v2913
    %v3396 = vmax.f32 %v2625, %v2912
    %v3397 = vmax.f32 %v2626, %v2911
    %v3398 = vmax.f32 %v2627, %v2910
    %v3399 = vmax.f32 %v2628, %v2909
    %v3400 = vmax.f32 %v2629, %v2908
    %v3401 = vmax.f32 %v2630, %v2907
    %v3402 = vmax.f32 %v2631, %v2906
    %v3403 = vmax.f32 %v2632, %v2905
    %v3404 = vmax.f32 %v2633, %v2904
    %v3405 = vmax.f32 %v2634, %v2903
    %v3406 = vmax.f32 %v2635, %v2902
    %v3407 = vmax.f32 %v2636, %v2901
    %v3408 = vmax.f32 %v2637, %v2900
    %v3409 = vmax.f32 %v2638, %v2899
    %v3410 = vmax.f32 %v2639, %v3154
    %v3411 = vmax.f32 %v3155, %v3157
    %v3412 = vmax.f32 %v3156, %v3158
    %v3413 = vmax.f32 %v3157, %v3159
    %v3414 = vmax.f32 %v3158, %v3160
    %v3415 = vmax.f32 %v3159, %v3161
    %v3416 = vmax.f32 %v3160, %v3162
    %v3417 = vmax.f32 %v3161, %v3163
    %v3418 = vmax.f32 %v3162, %v3164
    %v3419 = vmax.f32 %v3163, %v3165
    %v3420 = vmax.f32 %v3164, %v3166
    %v3421 = vmax.f32 %v3165, %v3167
    %v3422 = vmax.f32 %v3166, %v3168
    %v3423 = vmax.f32 %v3167, %v3169
    %v3424 = vmax.f32 %v3168, %v3170
    %v3425 = vmax.f32 %v3169, %v3171
    %v3426 = vmax.f32 %v3170, %v3172
    %v3427 = vmax.f32 %v3171, %v3173
    %v3428 = vmax.f32 %v3172, %v3174
    %v3429 = vmax.f32 %v3173, %v3175
    %v3430 = vmax.f32 %v3174, %v3176
    %v3431 = vmax.f32 %v3175, %v3177
    %v3432 = vmax.f32 %v3176, %v3178
    %v3433 = vmax.f32 %v3177, %v3179
    %v3434 = vmax.f32 %v3178, %v3180
    %v3435 = vmax.f32 %v3179, %v3181
    %v3436 = vmax.f32 %v3180, %v3182
    %v3437 = vmax.f32 %v3181, %v3183
    %v3438 = vmax.f32 %v3182, %v3184
    %v3439 = vmax.f32 %v3183, %v3185
    %v3440 = vmax.f32 %v3184, %v3186
    %v3441 = vmax.f32 %v3185, %v3187
    %v3442 = vmax.f32 %v3186, %v3188
    %v3443 = vmax.f32 %v3187, %v3189
    %v3444 = vmax.f32 %v3188, %v3190
    %v3445 = vmax.f32 %v3189, %v3191
    %v3446 = vmax.f32 %v3190, %v3192
    %v3447 = vmax.f32 %v3191, %v3193
    %v3448 = vmax.f32 %v3192, %v3194
    %v3449 = vmax.f32 %v3193, %v3195
    %v3450 = vmax.f32 %v3194, %v3196
    %v3451 = vmax.f32 %v3195, %v3197
    %v3452 = vmax.f32 %v3196, %v3198
    %v3453 = vmax.f32 %v3197, %v3199
    %v3454 = vmax.f32 %v3198, %v3200
    %v3455 = vmax.f32 %v3199, %v3201
    %v3456 = vmax.f32 %v3200, %v3202
    %v3457 = vmax.f32 %v3201, %v3203
    %v3458 = vmax.f32 %v3202, %v3204
    %v3459 = vmax.f32 %v3203, %v3205
    %v3460 = vmax.f32 %v3204, %v3206
    %v3461 = vmax.f32 %v3205, %v3207
    %v3462 = vmax.f32 %v3206, %v3208
    %v3463 = vmax.f32 %v3207, %v3209
    %v3464 = vmax.f32 %v3208, %v3210
    %v3465 = vmax.f32 %v3209, %v3211
    %v3466 = vmax.f32 %v3210, %v3212
    %v3467 = vmax.f32 %v3211, %v3213
    %v3468 = vmax.f32 %v3212, %v3214
    %v3469 = vmax.f32 %v3213, %v3215
    %v3470 = vmax.f32 %v3214, %v3216
    %v3471 = vmax.f32 %v3215, %v3217
    %v3472 = vmax.f32 %v3216, %v3218
    %v3473 = vmax.f32 %v3217, %v3219
    %v3474 = vmax.f32 %v3218, %v3220
    %v3475 = vmax.f32 %v3219, %v3221
    %v3476 = vmax.f32 %v3220, %v3222
    %v3477 = vmax.f32 %v3221, %v3223
    %v3478 = vmax.f32 %v3222, %v3224
    %v3479 = vmax.f32 %v3223, %v3225
    %v3480 = vmax.f32 %v3224, %v3226
    %v3481 = vmax.f32 %v3225, %v3227
    %v3482 = vmax.f32 %v3226, %v3228
    %v3483 = vmax.f32 %v3227, %v3229
    %v3484 = vmax.f32 %v3228, %v3230
    %v3485 = vmax.f32 %v3229, %v3231
    %v3486 = vmax.f32 %v3230, %v3232
    %v3487 = vmax.f32 %v3231, %v3233
    %v3488 = vmax.f32 %v3232, %v3234
    %v3489 = vmax.f32 %v3233, %v3235
    %v3490 = vmax.f32 %v3234, %v3236
    %v3491 = vmax.f32 %v3235, %v3237
    %v3492 = vmax.f32 %v3236, %v3238
    %v3493 = vmax.f32 %v3237, %v3239
    %v3494 = vmax.f32 %v3238, %v3240
    %v3495 = vmax.f32 %v3239, %v3241
    %v3496 = vmax.f32 %v3240, %v3242
    %v3497 = vmax.f32 %v3241, %v3243
    %v3498 = vmax.f32 %v3242, %v3244
    %v3499 = vmax.f32 %v3243, %v3245
    %v3500 = vmax.f32 %v3244, %v3246
    %v3501 = vmax.f32 %v3245, %v3247
    %v3502 = vmax.f32 %v3246, %v3248
    %v3503 = vmax.f32 %v3247, %v3249
    %v3504 = vmax.f32 %v3248, %v3250
    %v3505 = vmax.f32 %v3249, %v3251
    %v3506 = vmax.f32 %v3250, %v3252
    %v3507 = vmax.f32 %v3251, %v3253
    %v3508 = vmax.f32 %v3252, %v3254
    %v3509 = vmax.f32 %v3253, %v3255
    %v3510 = vmax.f32 %v3254, %v3256
    %v3511 = vmax.f32 %v3255, %v3257
    %v3512 = vmax.f32 %v3256, %v3258
    %v3513 = vmax.f32 %v3257, %v3259
    %v3514 = vmax.f32 %v3258, %v3260
    %v3515 = vmax.f32 %v3259, %v3261
    %v3516 = vmax.f32 %v3260, %v3262
    %v3517 = vmax.f32 %v3261, %v3263
    %v3518 = vmax.f32 %v3262, %v3264
    %v3519 = vmax.f32 %v3263, %v3265
    %v3520 = vmax.f32 %v3264, %v3266
    %v3521 = vmax.f32 %v3265, %v3267
    %v3522 = vmax.f32 %v3266, %v3268
    %v3523 = vmax.f32 %v3267, %v3269
    %v3524 = vmax.f32 %v3268, %v3270
    %v3525 = vmax.f32 %v3269, %v3271
    %v3526 = vmax.f32 %v3270, %v3272
    %v3527 = vmax.f32 %v3271, %v3273
    %v3528 = vmax.f32 %v3272, %v3274
    %v3529 = vmax.f32 %v3273, %v3275
    %v3530 = vmax.f32 %v3274, %v3276
    %v3531 = vmax.f32 %v3275, %v3277
    %v3532 = vmax.f32 %v3276, %v3278
    %v3533 = vmax.f32 %v3277, %v3279
    %v3534 = vmax.f32 %v3278, %v3280
    %v3535 = vmax.f32 %v3279, %v3281
    %v3536 = vmax.f32 %v3280, %v3282
    %v3537 = vmax.f32 %v3281, %v3283
    %v3538 = vmax.f32 %v3282, %v3284
    %v3539 = vmax.f32 %v3283, %v3285
    %v3540 = vmax.f32 %v3284, %v3286
    %v3541 = vmax.f32 %v3285, %v3287
    %v3542 = vmax.f32 %v3286, %v3288
    %v3543 = vmax.f32 %v3287, %v3289
    %v3544 = vmax.f32 %v3288, %v3290
    %v3545 = vmax.f32 %v3289, %v3291
    %v3546 = vmax.f32 %v3290, %v3292
    %v3547 = vmax.f32 %v3291, %v3293
    %v3548 = vmax.f32 %v3292, %v3294
    %v3549 = vmax.f32 %v3293, %v3295
    %v3550 = vmax.f32 %v3294, %v3296
    %v3551 = vmax.f32 %v3295, %v3297
    %v3552 = vmax.f32 %v3296, %v3298
    %v3553 = vmax.f32 %v3297, %v3299
    %v3554 = vmax.f32 %v3298, %v3300
    %v3555 = vmax.f32 %v3299, %v3301
    %v3556 = vmax.f32 %v3300, %v3302
    %v3557 = vmax.f32 %v3301, %v3303
    %v3558 = vmax.f32 %v3302, %v3304
    %v3559 = vmax.f32 %v3303, %v3305
    %v3560 = vmax.f32 %v3304, %v3306
    %v3561 = vmax.f32 %v3305, %v3307
    %v3562 = vmax.f32 %v3306, %v3308
    %v3563 = vmax.f32 %v3307, %v3309
    %v3564 = vmax.f32 %v3308, %v3310
    %v3565 = vmax.f32 %v3309, %v3311
    %v3566 = vmax.f32 %v3310, %v3312
    %v3567 = vmax.f32 %v3311, %v3313
    %v3568 = vmax.f32 %v3312, %v3314
    %v3569 = vmax.f32 %v3313, %v3315
    %v3570 = vmax.f32 %v3314, %v3316
    %v3571 = vmax.f32 %v3315, %v3317
    %v3572 = vmax.f32 %v3316, %v3318
    %v3573 = vmax.f32 %v3317, %v3319
    %v3574 = vmax.f32 %v3318, %v3320
    %v3575 = vmax.f32 %v3319, %v3321
    %v3576 = vmax.f32 %v3320, %v3322
    %v3577 = vmax.f32 %v3321, %v3323
    %v3578 = vmax.f32 %v3322, %v3324
    %v3579 = vmax.f32 %v3323, %v3325
    %v3580 = vmax.f32 %v3324, %v3326
    %v3581 = vmax.f32 %v3325, %v3327
    %v3582 = vmax.f32 %v3326, %v3328
    %v3583 = vmax.f32 %v3327, %v3329
    %v3584 = vmax.f32 %v3328, %v3330
    %v3585 = vmax.f32 %v3329, %v3331
    %v3586 = vmax.f32 %v3330, %v3332
    %v3587 = vmax.f32 %v3331, %v3333
    %v3588 = vmax.f32 %v3332, %v3334
    %v3589 = vmax.f32 %v3333, %v3335
    %v3590 = vmax.f32 %v3334, %v3336
    %v3591 = vmax.f32 %v3335, %v3337
    %v3592 = vmax.f32 %v3336, %v3338
    %v3593 = vmax.f32 %v3337, %v3339
    %v3594 = vmax.f32 %v3338, %v3340
    %v3595 = vmax.f32 %v3339, %v3341
    %v3596 = vmax.f32 %v3340, %v3342
    %v3597 = vmax.f32 %v3341, %v3343
    %v3598 = vmax.f32 %v3342, %v3344
    %v3599 = vmax.f32 %v3343, %v3345
    %v3600 = vmax.f32 %v3344, %v3346
    %v3601 = vmax.f32 %v3345, %v3347
    %v3602 = vmax.f32 %v3346, %v3348
    %v3603 = vmax.f32 %v3347, %v3349
    %v3604 = vmax.f32 %v3348, %v3350
    %v3605 = vmax.f32 %v3349, %v3351
    %v3606 = vmax.f32 %v3350, %v3352
    %v3607 = vmax.f32 %v3351, %v3353
    %v3608 = vmax.f32 %v3352, %v3354
    %v3609 = vmax.f32 %v3353, %v3355
    %v3610 = vmax.f32 %v3354, %v3356
    %v3611 = vmax.f32 %v3355, %v3357
    %v3612 = vmax.f32 %v3356, %v3358
    %v3613 = vmax.f32 %v3357, %v3359
    %v3614 = vmax.f32 %v3358, %v3360
    %v3615 = vmax.f32 %v3359, %v3361
    %v3616 = vmax.f32 %v3360, %v3362
    %v3617 = vmax.f32 %v3361, %v3363
    %v3618 = vmax.f32 %v3362, %v3364
    %v3619 = vmax.f32 %v3363, %v3365
    %v3620 = vmax.f32 %v3364, %v3366
    %v3621 = vmax.f32 %v3365, %v3367
    %v3622 = vmax.f32 %v3366, %v3368
    %v3623 = vmax.f32 %v3367, %v3369
    %v3624 = vmax.f32 %v3368, %v3370
    %v3625 = vmax.f32 %v3369, %v3371
    %v3626 = vmax.f32 %v3370, %v3372
    %v3627 = vmax.f32 %v3371, %v3373
    %v3628 = vmax.f32 %v3372, %v3374
    %v3629 = vmax.f32 %v3373, %v3375
    %v3630 = vmax.f32 %v3374, %v3376
    %v3631 = vmax.f32 %v3375, %v3377
    %v3632 = vmax.f32 %v3376, %v3378
    %v3633 = vmax.f32 %v3377, %v3379
    %v3634 = vmax.f32 %v3378, %v3380
    %v3635 = vmax.f32 %v3379, %v3381
    %v3636 = vmax.f32 %v3380, %v3382
    %v3637 = vmax.f32 %v3381, %v3383
    %v3638 = vmax.f32 %v3382, %v3384
    %v3639 = vmax.f32 %v3383, %v3385
    %v3640 = vmax.f32 %v3384, %v3386
    %v3641 = vmax.f32 %v3385, %v3387
    %v3642 = vmax.f32 %v3386, %v3388
    %v3643 = vmax.f32 %v3387, %v3389
    %v3644 = vmax.f32 %v3388, %v3390
    %v3645 = vmax.f32 %v3389, %v3391
    %v3646 = vmax.f32 %v3390, %v3392
    %v3647 = vmax.f32 %v3391, %v3393
    %v3648 = vmax.f32 %v3392, %v3394
    %v3649 = vmax.f32 %v3393, %v3395
    %v3650 = vmax.f32 %v3394, %v3396
    %v3651 = vmax.f32 %v3395, %v3397
    %v3652 = vmax.f32 %v3396, %v3398
    %v3653 = vmax.f32 %v3397, %v3399
    %v3654 = vmax.f32 %v3398, %v3400
    %v3655 = vmax.f32 %v3399, %v3401
    %v3656 = vmax.f32 %v3400, %v3402
    %v3657 = vmax.f32 %v3401, %v3403
    %v3658 = vmax.f32 %v3402, %v3404
    %v3659 = vmax.f32 %v3403, %v3405
    %v3660 = vmax.f32 %v3404, %v3406
    %v3661 = vmax.f32 %v3405, %v3407
    %v3662 = vmax.f32 %v3406, %v3408
    %v3663 = vmax.f32 %v3407, %v3409
    %v3664 = vmax.f32 %v3408, %v3410
    %v3665 = vmax.f32 %v3409, %v3155
    %v3666 = vmax.f32 %v3410, %v3156
    %vm3667 = vcmask 523264
    %3668 = vst.msk [vmem:[#allocation2] sm:$0xff] %vm3667, %v3411
    %3669 = vst.msk [vmem:[#allocation2 + $0x8] sm:$0xff] %vm3667, %v3412
    %3670 = vst.msk [vmem:[#allocation2 + $0x10] sm:$0xff] %vm3667, %v3413
    %3671 = vst.msk [vmem:[#allocation2 + $0x18] sm:$0xff] %vm3667, %v3414
    %3672 = vst.msk [vmem:[#allocation2 + $0x20] sm:$0xff] %vm3667, %v3415
    %3673 = vst.msk [vmem:[#allocation2 + $0x28] sm:$0xff] %vm3667, %v3416
    %3674 = vst.msk [vmem:[#allocation2 + $0x30] sm:$0xff] %vm3667, %v3417
    %3675 = vst.msk [vmem:[#allocation2 + $0x38] sm:$0xff] %vm3667, %v3418
    %3676 = vst.msk [vmem:[#allocation2 + $0x40] sm:$0xff] %vm3667, %v3419
    %3677 = vst.msk [vmem:[#allocation2 + $0x48] sm:$0xff] %vm3667, %v3420
    %3678 = vst.msk [vmem:[#allocation2 + $0x50] sm:$0xff] %vm3667, %v3421
    %3679 = vst.msk [vmem:[#allocation2 + $0x58] sm:$0xff] %vm3667, %v3422
    %3680 = vst.msk [vmem:[#allocation2 + $0x60] sm:$0xff] %vm3667, %v3423
    %3681 = vst.msk [vmem:[#allocation2 + $0x68] sm:$0xff] %vm3667, %v3424
    %3682 = vst.msk [vmem:[#allocation2 + $0x70] sm:$0xff] %vm3667, %v3425
    %3683 = vst.msk [vmem:[#allocation2 + $0x78] sm:$0xff] %vm3667, %v3426
    %3684 = vst.msk [vmem:[#allocation2 + $0x80] sm:$0xff] %vm3667, %v3427
    %3685 = vst.msk [vmem:[#allocation2 + $0x88] sm:$0xff] %vm3667, %v3428
    %3686 = vst.msk [vmem:[#allocation2 + $0x90] sm:$0xff] %vm3667, %v3429
    %3687 = vst.msk [vmem:[#allocation2 + $0x98] sm:$0xff] %vm3667, %v3430
    %3688 = vst.msk [vmem:[#allocation2 + $0xa0] sm:$0xff] %vm3667, %v3431
    %3689 = vst.msk [vmem:[#allocation2 + $0xa8] sm:$0xff] %vm3667, %v3432
    %3690 = vst.msk [vmem:[#allocation2 + $0xb0] sm:$0xff] %vm3667, %v3433
    %3691 = vst.msk [vmem:[#allocation2 + $0xb8] sm:$0xff] %vm3667, %v3434
    %3692 = vst.msk [vmem:[#allocation2 + $0xc0] sm:$0xff] %vm3667, %v3435
    %3693 = vst.msk [vmem:[#allocation2 + $0xc8] sm:$0xff] %vm3667, %v3436
    %3694 = vst.msk [vmem:[#allocation2 + $0xd0] sm:$0xff] %vm3667, %v3437
    %3695 = vst.msk [vmem:[#allocation2 + $0xd8] sm:$0xff] %vm3667, %v3438
    %3696 = vst.msk [vmem:[#allocation2 + $0xe0] sm:$0xff] %vm3667, %v3439
    %3697 = vst.msk [vmem:[#allocation2 + $0xe8] sm:$0xff] %vm3667, %v3440
    %3698 = vst.msk [vmem:[#allocation2 + $0xf0] sm:$0xff] %vm3667, %v3441
    %3699 = vst.msk [vmem:[#allocation2 + $0xf8] sm:$0xff] %vm3667, %v3442
    %3700 = vst.msk [vmem:[#allocation2 + $0x100] sm:$0xff] %vm3667, %v3443
    %3701 = vst.msk [vmem:[#allocation2 + $0x108] sm:$0xff] %vm3667, %v3444
    %3702 = vst.msk [vmem:[#allocation2 + $0x110] sm:$0xff] %vm3667, %v3445
    %3703 = vst.msk [vmem:[#allocation2 + $0x118] sm:$0xff] %vm3667, %v3446
    %3704 = vst.msk [vmem:[#allocation2 + $0x120] sm:$0xff] %vm3667, %v3447
    %3705 = vst.msk [vmem:[#allocation2 + $0x128] sm:$0xff] %vm3667, %v3448
    %3706 = vst.msk [vmem:[#allocation2 + $0x130] sm:$0xff] %vm3667, %v3449
    %3707 = vst.msk [vmem:[#allocation2 + $0x138] sm:$0xff] %vm3667, %v3450
    %3708 = vst.msk [vmem:[#allocation2 + $0x140] sm:$0xff] %vm3667, %v3451
    %3709 = vst.msk [vmem:[#allocation2 + $0x148] sm:$0xff] %vm3667, %v3452
    %3710 = vst.msk [vmem:[#allocation2 + $0x150] sm:$0xff] %vm3667, %v3453
    %3711 = vst.msk [vmem:[#allocation2 + $0x158] sm:$0xff] %vm3667, %v3454
    %3712 = vst.msk [vmem:[#allocation2 + $0x160] sm:$0xff] %vm3667, %v3455
    %3713 = vst.msk [vmem:[#allocation2 + $0x168] sm:$0xff] %vm3667, %v3456
    %3714 = vst.msk [vmem:[#allocation2 + $0x170] sm:$0xff] %vm3667, %v3457
    %3715 = vst.msk [vmem:[#allocation2 + $0x178] sm:$0xff] %vm3667, %v3458
    %3716 = vst.msk [vmem:[#allocation2 + $0x180] sm:$0xff] %vm3667, %v3459
    %3717 = vst.msk [vmem:[#allocation2 + $0x188] sm:$0xff] %vm3667, %v3460
    %3718 = vst.msk [vmem:[#allocation2 + $0x190] sm:$0xff] %vm3667, %v3461
    %3719 = vst.msk [vmem:[#allocation2 + $0x198] sm:$0xff] %vm3667, %v3462
    %3720 = vst.msk [vmem:[#allocation2 + $0x1a0] sm:$0xff] %vm3667, %v3463
    %3721 = vst.msk [vmem:[#allocation2 + $0x1a8] sm:$0xff] %vm3667, %v3464
    %3722 = vst.msk [vmem:[#allocation2 + $0x1b0] sm:$0xff] %vm3667, %v3465
    %3723 = vst.msk [vmem:[#allocation2 + $0x1b8] sm:$0xff] %vm3667, %v3466
    %3724 = vst.msk [vmem:[#allocation2 + $0x1c0] sm:$0xff] %vm3667, %v3467
    %3725 = vst.msk [vmem:[#allocation2 + $0x1c8] sm:$0xff] %vm3667, %v3468
    %3726 = vst.msk [vmem:[#allocation2 + $0x1d0] sm:$0xff] %vm3667, %v3469
    %3727 = vst.msk [vmem:[#allocation2 + $0x1d8] sm:$0xff] %vm3667, %v3470
    %3728 = vst.msk [vmem:[#allocation2 + $0x1e0] sm:$0xff] %vm3667, %v3471
    %3729 = vst.msk [vmem:[#allocation2 + $0x1e8] sm:$0xff] %vm3667, %v3472
    %3730 = vst.msk [vmem:[#allocation2 + $0x1f0] sm:$0xff] %vm3667, %v3473
    %3731 = vst.msk [vmem:[#allocation2 + $0x1f8] sm:$0xff] %vm3667, %v3474
    %3732 = vst.msk [vmem:[#allocation2 + $0x200] sm:$0xff] %vm3667, %v3475
    %3733 = vst.msk [vmem:[#allocation2 + $0x208] sm:$0xff] %vm3667, %v3476
    %3734 = vst.msk [vmem:[#allocation2 + $0x210] sm:$0xff] %vm3667, %v3477
    %3735 = vst.msk [vmem:[#allocation2 + $0x218] sm:$0xff] %vm3667, %v3478
    %3736 = vst.msk [vmem:[#allocation2 + $0x220] sm:$0xff] %vm3667, %v3479
    %3737 = vst.msk [vmem:[#allocation2 + $0x228] sm:$0xff] %vm3667, %v3480
    %3738 = vst.msk [vmem:[#allocation2 + $0x230] sm:$0xff] %vm3667, %v3481
    %3739 = vst.msk [vmem:[#allocation2 + $0x238] sm:$0xff] %vm3667, %v3482
    %3740 = vst.msk [vmem:[#allocation2 + $0x240] sm:$0xff] %vm3667, %v3483
    %3741 = vst.msk [vmem:[#allocation2 + $0x248] sm:$0xff] %vm3667, %v3484
    %3742 = vst.msk [vmem:[#allocation2 + $0x250] sm:$0xff] %vm3667, %v3485
    %3743 = vst.msk [vmem:[#allocation2 + $0x258] sm:$0xff] %vm3667, %v3486
    %3744 = vst.msk [vmem:[#allocation2 + $0x260] sm:$0xff] %vm3667, %v3487
    %3745 = vst.msk [vmem:[#allocation2 + $0x268] sm:$0xff] %vm3667, %v3488
    %3746 = vst.msk [vmem:[#allocation2 + $0x270] sm:$0xff] %vm3667, %v3489
    %3747 = vst.msk [vmem:[#allocation2 + $0x278] sm:$0xff] %vm3667, %v3490
    %3748 = vst.msk [vmem:[#allocation2 + $0x280] sm:$0xff] %vm3667, %v3491
    %3749 = vst.msk [vmem:[#allocation2 + $0x288] sm:$0xff] %vm3667, %v3492
    %3750 = vst.msk [vmem:[#allocation2 + $0x290] sm:$0xff] %vm3667, %v3493
    %3751 = vst.msk [vmem:[#allocation2 + $0x298] sm:$0xff] %vm3667, %v3494
    %3752 = vst.msk [vmem:[#allocation2 + $0x2a0] sm:$0xff] %vm3667, %v3495
    %3753 = vst.msk [vmem:[#allocation2 + $0x2a8] sm:$0xff] %vm3667, %v3496
    %3754 = vst.msk [vmem:[#allocation2 + $0x2b0] sm:$0xff] %vm3667, %v3497
    %3755 = vst.msk [vmem:[#allocation2 + $0x2b8] sm:$0xff] %vm3667, %v3498
    %3756 = vst.msk [vmem:[#allocation2 + $0x2c0] sm:$0xff] %vm3667, %v3499
    %3757 = vst.msk [vmem:[#allocation2 + $0x2c8] sm:$0xff] %vm3667, %v3500
    %3758 = vst.msk [vmem:[#allocation2 + $0x2d0] sm:$0xff] %vm3667, %v3501
    %3759 = vst.msk [vmem:[#allocation2 + $0x2d8] sm:$0xff] %vm3667, %v3502
    %3760 = vst.msk [vmem:[#allocation2 + $0x2e0] sm:$0xff] %vm3667, %v3503
    %3761 = vst.msk [vmem:[#allocation2 + $0x2e8] sm:$0xff] %vm3667, %v3504
    %3762 = vst.msk [vmem:[#allocation2 + $0x2f0] sm:$0xff] %vm3667, %v3505
    %3763 = vst.msk [vmem:[#allocation2 + $0x2f8] sm:$0xff] %vm3667, %v3506
    %3764 = vst.msk [vmem:[#allocation2 + $0x300] sm:$0xff] %vm3667, %v3507
    %3765 = vst.msk [vmem:[#allocation2 + $0x308] sm:$0xff] %vm3667, %v3508
    %3766 = vst.msk [vmem:[#allocation2 + $0x310] sm:$0xff] %vm3667, %v3509
    %3767 = vst.msk [vmem:[#allocation2 + $0x318] sm:$0xff] %vm3667, %v3510
    %3768 = vst.msk [vmem:[#allocation2 + $0x320] sm:$0xff] %vm3667, %v3511
    %3769 = vst.msk [vmem:[#allocation2 + $0x328] sm:$0xff] %vm3667, %v3512
    %3770 = vst.msk [vmem:[#allocation2 + $0x330] sm:$0xff] %vm3667, %v3513
    %3771 = vst.msk [vmem:[#allocation2 + $0x338] sm:$0xff] %vm3667, %v3514
    %3772 = vst.msk [vmem:[#allocation2 + $0x340] sm:$0xff] %vm3667, %v3515
    %3773 = vst.msk [vmem:[#allocation2 + $0x348] sm:$0xff] %vm3667, %v3516
    %3774 = vst.msk [vmem:[#allocation2 + $0x350] sm:$0xff] %vm3667, %v3517
    %3775 = vst.msk [vmem:[#allocation2 + $0x358] sm:$0xff] %vm3667, %v3518
    %3776 = vst.msk [vmem:[#allocation2 + $0x360] sm:$0xff] %vm3667, %v3519
    %3777 = vst.msk [vmem:[#allocation2 + $0x368] sm:$0xff] %vm3667, %v3520
    %3778 = vst.msk [vmem:[#allocation2 + $0x370] sm:$0xff] %vm3667, %v3521
    %3779 = vst.msk [vmem:[#allocation2 + $0x378] sm:$0xff] %vm3667, %v3522
    %3780 = vst.msk [vmem:[#allocation2 + $0x380] sm:$0xff] %vm3667, %v3523
    %3781 = vst.msk [vmem:[#allocation2 + $0x388] sm:$0xff] %vm3667, %v3524
    %3782 = vst.msk [vmem:[#allocation2 + $0x390] sm:$0xff] %vm3667, %v3525
    %3783 = vst.msk [vmem:[#allocation2 + $0x398] sm:$0xff] %vm3667, %v3526
    %3784 = vst.msk [vmem:[#allocation2 + $0x3a0] sm:$0xff] %vm3667, %v3527
    %3785 = vst.msk [vmem:[#allocation2 + $0x3a8] sm:$0xff] %vm3667, %v3528
    %3786 = vst.msk [vmem:[#allocation2 + $0x3b0] sm:$0xff] %vm3667, %v3529
    %3787 = vst.msk [vmem:[#allocation2 + $0x3b8] sm:$0xff] %vm3667, %v3530
    %3788 = vst.msk [vmem:[#allocation2 + $0x3c0] sm:$0xff] %vm3667, %v3531
    %3789 = vst.msk [vmem:[#allocation2 + $0x3c8] sm:$0xff] %vm3667, %v3532
    %3790 = vst.msk [vmem:[#allocation2 + $0x3d0] sm:$0xff] %vm3667, %v3533
    %3791 = vst.msk [vmem:[#allocation2 + $0x3d8] sm:$0xff] %vm3667, %v3534
    %3792 = vst.msk [vmem:[#allocation2 + $0x3e0] sm:$0xff] %vm3667, %v3535
    %3793 = vst.msk [vmem:[#allocation2 + $0x3e8] sm:$0xff] %vm3667, %v3536
    %3794 = vst.msk [vmem:[#allocation2 + $0x3f0] sm:$0xff] %vm3667, %v3537
    %3795 = vst.msk [vmem:[#allocation2 + $0x3f8] sm:$0xff] %vm3667, %v3538
    %3796 = vst.msk [vmem:[#allocation2 + $0x400] sm:$0xff] %vm3667, %v3539
    %3797 = vst.msk [vmem:[#allocation2 + $0x408] sm:$0xff] %vm3667, %v3540
    %3798 = vst.msk [vmem:[#allocation2 + $0x410] sm:$0xff] %vm3667, %v3541
    %3799 = vst.msk [vmem:[#allocation2 + $0x418] sm:$0xff] %vm3667, %v3542
    %3800 = vst.msk [vmem:[#allocation2 + $0x420] sm:$0xff] %vm3667, %v3543
    %3801 = vst.msk [vmem:[#allocation2 + $0x428] sm:$0xff] %vm3667, %v3544
    %3802 = vst.msk [vmem:[#allocation2 + $0x430] sm:$0xff] %vm3667, %v3545
    %3803 = vst.msk [vmem:[#allocation2 + $0x438] sm:$0xff] %vm3667, %v3546
    %3804 = vst.msk [vmem:[#allocation2 + $0x440] sm:$0xff] %vm3667, %v3547
    %3805 = vst.msk [vmem:[#allocation2 + $0x448] sm:$0xff] %vm3667, %v3548
    %3806 = vst.msk [vmem:[#allocation2 + $0x450] sm:$0xff] %vm3667, %v3549
    %3807 = vst.msk [vmem:[#allocation2 + $0x458] sm:$0xff] %vm3667, %v3550
    %3808 = vst.msk [vmem:[#allocation2 + $0x460] sm:$0xff] %vm3667, %v3551
    %3809 = vst.msk [vmem:[#allocation2 + $0x468] sm:$0xff] %vm3667, %v3552
    %3810 = vst.msk [vmem:[#allocation2 + $0x470] sm:$0xff] %vm3667, %v3553
    %3811 = vst.msk [vmem:[#allocation2 + $0x478] sm:$0xff] %vm3667, %v3554
    %3812 = vst.msk [vmem:[#allocation2 + $0x480] sm:$0xff] %vm3667, %v3555
    %3813 = vst.msk [vmem:[#allocation2 + $0x488] sm:$0xff] %vm3667, %v3556
    %3814 = vst.msk [vmem:[#allocation2 + $0x490] sm:$0xff] %vm3667, %v3557
    %3815 = vst.msk [vmem:[#allocation2 + $0x498] sm:$0xff] %vm3667, %v3558
    %3816 = vst.msk [vmem:[#allocation2 + $0x4a0] sm:$0xff] %vm3667, %v3559
    %3817 = vst.msk [vmem:[#allocation2 + $0x4a8] sm:$0xff] %vm3667, %v3560
    %3818 = vst.msk [vmem:[#allocation2 + $0x4b0] sm:$0xff] %vm3667, %v3561
    %3819 = vst.msk [vmem:[#allocation2 + $0x4b8] sm:$0xff] %vm3667, %v3562
    %3820 = vst.msk [vmem:[#allocation2 + $0x4c0] sm:$0xff] %vm3667, %v3563
    %3821 = vst.msk [vmem:[#allocation2 + $0x4c8] sm:$0xff] %vm3667, %v3564
    %3822 = vst.msk [vmem:[#allocation2 + $0x4d0] sm:$0xff] %vm3667, %v3565
    %3823 = vst.msk [vmem:[#allocation2 + $0x4d8] sm:$0xff] %vm3667, %v3566
    %3824 = vst.msk [vmem:[#allocation2 + $0x4e0] sm:$0xff] %vm3667, %v3567
    %3825 = vst.msk [vmem:[#allocation2 + $0x4e8] sm:$0xff] %vm3667, %v3568
    %3826 = vst.msk [vmem:[#allocation2 + $0x4f0] sm:$0xff] %vm3667, %v3569
    %3827 = vst.msk [vmem:[#allocation2 + $0x4f8] sm:$0xff] %vm3667, %v3570
    %3828 = vst.msk [vmem:[#allocation2 + $0x500] sm:$0xff] %vm3667, %v3571
    %3829 = vst.msk [vmem:[#allocation2 + $0x508] sm:$0xff] %vm3667, %v3572
    %3830 = vst.msk [vmem:[#allocation2 + $0x510] sm:$0xff] %vm3667, %v3573
    %3831 = vst.msk [vmem:[#allocation2 + $0x518] sm:$0xff] %vm3667, %v3574
    %3832 = vst.msk [vmem:[#allocation2 + $0x520] sm:$0xff] %vm3667, %v3575
    %3833 = vst.msk [vmem:[#allocation2 + $0x528] sm:$0xff] %vm3667, %v3576
    %3834 = vst.msk [vmem:[#allocation2 + $0x530] sm:$0xff] %vm3667, %v3577
    %3835 = vst.msk [vmem:[#allocation2 + $0x538] sm:$0xff] %vm3667, %v3578
    %3836 = vst.msk [vmem:[#allocation2 + $0x540] sm:$0xff] %vm3667, %v3579
    %3837 = vst.msk [vmem:[#allocation2 + $0x548] sm:$0xff] %vm3667, %v3580
    %3838 = vst.msk [vmem:[#allocation2 + $0x550] sm:$0xff] %vm3667, %v3581
    %3839 = vst.msk [vmem:[#allocation2 + $0x558] sm:$0xff] %vm3667, %v3582
    %3840 = vst.msk [vmem:[#allocation2 + $0x560] sm:$0xff] %vm3667, %v3583
    %3841 = vst.msk [vmem:[#allocation2 + $0x568] sm:$0xff] %vm3667, %v3584
    %3842 = vst.msk [vmem:[#allocation2 + $0x570] sm:$0xff] %vm3667, %v3585
    %3843 = vst.msk [vmem:[#allocation2 + $0x578] sm:$0xff] %vm3667, %v3586
    %3844 = vst.msk [vmem:[#allocation2 + $0x580] sm:$0xff] %vm3667, %v3587
    %3845 = vst.msk [vmem:[#allocation2 + $0x588] sm:$0xff] %vm3667, %v3588
    %3846 = vst.msk [vmem:[#allocation2 + $0x590] sm:$0xff] %vm3667, %v3589
    %3847 = vst.msk [vmem:[#allocation2 + $0x598] sm:$0xff] %vm3667, %v3590
    %3848 = vst.msk [vmem:[#allocation2 + $0x5a0] sm:$0xff] %vm3667, %v3591
    %3849 = vst.msk [vmem:[#allocation2 + $0x5a8] sm:$0xff] %vm3667, %v3592
    %3850 = vst.msk [vmem:[#allocation2 + $0x5b0] sm:$0xff] %vm3667, %v3593
    %3851 = vst.msk [vmem:[#allocation2 + $0x5b8] sm:$0xff] %vm3667, %v3594
    %3852 = vst.msk [vmem:[#allocation2 + $0x5c0] sm:$0xff] %vm3667, %v3595
    %3853 = vst.msk [vmem:[#allocation2 + $0x5c8] sm:$0xff] %vm3667, %v3596
    %3854 = vst.msk [vmem:[#allocation2 + $0x5d0] sm:$0xff] %vm3667, %v3597
    %3855 = vst.msk [vmem:[#allocation2 + $0x5d8] sm:$0xff] %vm3667, %v3598
    %3856 = vst.msk [vmem:[#allocation2 + $0x5e0] sm:$0xff] %vm3667, %v3599
    %3857 = vst.msk [vmem:[#allocation2 + $0x5e8] sm:$0xff] %vm3667, %v3600
    %3858 = vst.msk [vmem:[#allocation2 + $0x5f0] sm:$0xff] %vm3667, %v3601
    %3859 = vst.msk [vmem:[#allocation2 + $0x5f8] sm:$0xff] %vm3667, %v3602
    %3860 = vst.msk [vmem:[#allocation2 + $0x600] sm:$0xff] %vm3667, %v3603
    %3861 = vst.msk [vmem:[#allocation2 + $0x608] sm:$0xff] %vm3667, %v3604
    %3862 = vst.msk [vmem:[#allocation2 + $0x610] sm:$0xff] %vm3667, %v3605
    %3863 = vst.msk [vmem:[#allocation2 + $0x618] sm:$0xff] %vm3667, %v3606
    %3864 = vst.msk [vmem:[#allocation2 + $0x620] sm:$0xff] %vm3667, %v3607
    %3865 = vst.msk [vmem:[#allocation2 + $0x628] sm:$0xff] %vm3667, %v3608
    %3866 = vst.msk [vmem:[#allocation2 + $0x630] sm:$0xff] %vm3667, %v3609
    %3867 = vst.msk [vmem:[#allocation2 + $0x638] sm:$0xff] %vm3667, %v3610
    %3868 = vst.msk [vmem:[#allocation2 + $0x640] sm:$0xff] %vm3667, %v3611
    %3869 = vst.msk [vmem:[#allocation2 + $0x648] sm:$0xff] %vm3667, %v3612
    %3870 = vst.msk [vmem:[#allocation2 + $0x650] sm:$0xff] %vm3667, %v3613
    %3871 = vst.msk [vmem:[#allocation2 + $0x658] sm:$0xff] %vm3667, %v3614
    %3872 = vst.msk [vmem:[#allocation2 + $0x660] sm:$0xff] %vm3667, %v3615
    %3873 = vst.msk [vmem:[#allocation2 + $0x668] sm:$0xff] %vm3667, %v3616
    %3874 = vst.msk [vmem:[#allocation2 + $0x670] sm:$0xff] %vm3667, %v3617
    %3875 = vst.msk [vmem:[#allocation2 + $0x678] sm:$0xff] %vm3667, %v3618
    %3876 = vst.msk [vmem:[#allocation2 + $0x680] sm:$0xff] %vm3667, %v3619
    %3877 = vst.msk [vmem:[#allocation2 + $0x688] sm:$0xff] %vm3667, %v3620
    %3878 = vst.msk [vmem:[#allocation2 + $0x690] sm:$0xff] %vm3667, %v3621
    %3879 = vst.msk [vmem:[#allocation2 + $0x698] sm:$0xff] %vm3667, %v3622
    %3880 = vst.msk [vmem:[#allocation2 + $0x6a0] sm:$0xff] %vm3667, %v3623
    %3881 = vst.msk [vmem:[#allocation2 + $0x6a8] sm:$0xff] %vm3667, %v3624
    %3882 = vst.msk [vmem:[#allocation2 + $0x6b0] sm:$0xff] %vm3667, %v3625
    %3883 = vst.msk [vmem:[#allocation2 + $0x6b8] sm:$0xff] %vm3667, %v3626
    %3884 = vst.msk [vmem:[#allocation2 + $0x6c0] sm:$0xff] %vm3667, %v3627
    %3885 = vst.msk [vmem:[#allocation2 + $0x6c8] sm:$0xff] %vm3667, %v3628
    %3886 = vst.msk [vmem:[#allocation2 + $0x6d0] sm:$0xff] %vm3667, %v3629
    %3887 = vst.msk [vmem:[#allocation2 + $0x6d8] sm:$0xff] %vm3667, %v3630
    %3888 = vst.msk [vmem:[#allocation2 + $0x6e0] sm:$0xff] %vm3667, %v3631
    %3889 = vst.msk [vmem:[#allocation2 + $0x6e8] sm:$0xff] %vm3667, %v3632
    %3890 = vst.msk [vmem:[#allocation2 + $0x6f0] sm:$0xff] %vm3667, %v3633
    %3891 = vst.msk [vmem:[#allocation2 + $0x6f8] sm:$0xff] %vm3667, %v3634
    %3892 = vst.msk [vmem:[#allocation2 + $0x700] sm:$0xff] %vm3667, %v3635
    %3893 = vst.msk [vmem:[#allocation2 + $0x708] sm:$0xff] %vm3667, %v3636
    %3894 = vst.msk [vmem:[#allocation2 + $0x710] sm:$0xff] %vm3667, %v3637
    %3895 = vst.msk [vmem:[#allocation2 + $0x718] sm:$0xff] %vm3667, %v3638
    %3896 = vst.msk [vmem:[#allocation2 + $0x720] sm:$0xff] %vm3667, %v3639
    %3897 = vst.msk [vmem:[#allocation2 + $0x728] sm:$0xff] %vm3667, %v3640
    %3898 = vst.msk [vmem:[#allocation2 + $0x730] sm:$0xff] %vm3667, %v3641
    %3899 = vst.msk [vmem:[#allocation2 + $0x738] sm:$0xff] %vm3667, %v3642
    %3900 = vst.msk [vmem:[#allocation2 + $0x740] sm:$0xff] %vm3667, %v3643
    %3901 = vst.msk [vmem:[#allocation2 + $0x748] sm:$0xff] %vm3667, %v3644
    %3902 = vst.msk [vmem:[#allocation2 + $0x750] sm:$0xff] %vm3667, %v3645
    %3903 = vst.msk [vmem:[#allocation2 + $0x758] sm:$0xff] %vm3667, %v3646
    %3904 = vst.msk [vmem:[#allocation2 + $0x760] sm:$0xff] %vm3667, %v3647
    %3905 = vst.msk [vmem:[#allocation2 + $0x768] sm:$0xff] %vm3667, %v3648
    %3906 = vst.msk [vmem:[#allocation2 + $0x770] sm:$0xff] %vm3667, %v3649
    %3907 = vst.msk [vmem:[#allocation2 + $0x778] sm:$0xff] %vm3667, %v3650
    %3908 = vst.msk [vmem:[#allocation2 + $0x780] sm:$0xff] %vm3667, %v3651
    %3909 = vst.msk [vmem:[#allocation2 + $0x788] sm:$0xff] %vm3667, %v3652
    %3910 = vst.msk [vmem:[#allocation2 + $0x790] sm:$0xff] %vm3667, %v3653
    %3911 = vst.msk [vmem:[#allocation2 + $0x798] sm:$0xff] %vm3667, %v3654
    %3912 = vst.msk [vmem:[#allocation2 + $0x7a0] sm:$0xff] %vm3667, %v3655
    %3913 = vst.msk [vmem:[#allocation2 + $0x7a8] sm:$0xff] %vm3667, %v3656
    %3914 = vst.msk [vmem:[#allocation2 + $0x7b0] sm:$0xff] %vm3667, %v3657
    %3915 = vst.msk [vmem:[#allocation2 + $0x7b8] sm:$0xff] %vm3667, %v3658
    %3916 = vst.msk [vmem:[#allocation2 + $0x7c0] sm:$0xff] %vm3667, %v3659
    %3917 = vst.msk [vmem:[#allocation2 + $0x7c8] sm:$0xff] %vm3667, %v3660
    %3918 = vst.msk [vmem:[#allocation2 + $0x7d0] sm:$0xff] %vm3667, %v3661
    %3919 = vst.msk [vmem:[#allocation2 + $0x7d8] sm:$0xff] %vm3667, %v3662
    %3920 = vst.msk [vmem:[#allocation2 + $0x7e0] sm:$0xff] %vm3667, %v3663
    %3921 = vst.msk [vmem:[#allocation2 + $0x7e8] sm:$0xff] %vm3667, %v3664
    %3922 = vst.msk [vmem:[#allocation2 + $0x7f0] sm:$0xff] %vm3667, %v3665
    %3923 = vst.msk [vmem:[#allocation2 + $0x7f8] sm:$0xff] %vm3667, %v3666
    %v3924 = vld [vmem:[#allocation2] ss:$2 sm:$0xff]
    %s3925 = scalar_lea.vmem [#allocation2], 32
    %v3926 = vld [vmem:[%s3925] ss:$2 sm:$0xff]
    %s3927 = scalar_lea.vmem [#allocation2], 64
    %v3928 = vld [vmem:[%s3927] ss:$2 sm:$0xff]
    %s3929 = scalar_lea.vmem [#allocation2], 96
    %v3930 = vld [vmem:[%s3929] ss:$2 sm:$0xff]
    %s3931 = scalar_lea.vmem [#allocation2], 128
    %v3932 = vld [vmem:[%s3931] ss:$2 sm:$0xff]
    %s3933 = scalar_lea.vmem [#allocation2], 160
    %v3934 = vld [vmem:[%s3933] ss:$2 sm:$0xff]
    %s3935 = scalar_lea.vmem [#allocation2], 192
    %v3936 = vld [vmem:[%s3935] ss:$2 sm:$0xff]
    %s3937 = scalar_lea.vmem [#allocation2], 224
    %v3938 = vld [vmem:[%s3937] ss:$2 sm:$0xff]
    %s3939 = scalar_lea.vmem [#allocation2], 256
    %v3940 = vld [vmem:[%s3939] ss:$2 sm:$0xff]
    %s3941 = scalar_lea.vmem [#allocation2], 288
    %v3942 = vld [vmem:[%s3941] ss:$2 sm:$0xff]
    %s3943 = scalar_lea.vmem [#allocation2], 320
    %v3944 = vld [vmem:[%s3943] ss:$2 sm:$0xff]
    %s3945 = scalar_lea.vmem [#allocation2], 352
    %v3946 = vld [vmem:[%s3945] ss:$2 sm:$0xff]
    %s3947 = scalar_lea.vmem [#allocation2], 384
    %v3948 = vld [vmem:[%s3947] ss:$2 sm:$0xff]
    %s3949 = scalar_lea.vmem [#allocation2], 416
    %v3950 = vld [vmem:[%s3949] ss:$2 sm:$0xff]
    %s3951 = scalar_lea.vmem [#allocation2], 448
    %v3952 = vld [vmem:[%s3951] ss:$2 sm:$0xff]
    %s3953 = scalar_lea.vmem [#allocation2], 480
    %v3954 = vld [vmem:[%s3953] ss:$2 sm:$0xff]
    %s3955 = scalar_lea.vmem [#allocation2], 512
    %v3956 = vld [vmem:[%s3955] ss:$2 sm:$0xff]
    %s3957 = scalar_lea.vmem [#allocation2], 544
    %v3958 = vld [vmem:[%s3957] ss:$2 sm:$0xff]
    %s3959 = scalar_lea.vmem [#allocation2], 576
    %v3960 = vld [vmem:[%s3959] ss:$2 sm:$0xff]
    %s3961 = scalar_lea.vmem [#allocation2], 608
    %v3962 = vld [vmem:[%s3961] ss:$2 sm:$0xff]
    %s3963 = scalar_lea.vmem [#allocation2], 640
    %v3964 = vld [vmem:[%s3963] ss:$2 sm:$0xff]
    %s3965 = scalar_lea.vmem [#allocation2], 672
    %v3966 = vld [vmem:[%s3965] ss:$2 sm:$0xff]
    %s3967 = scalar_lea.vmem [#allocation2], 704
    %v3968 = vld [vmem:[%s3967] ss:$2 sm:$0xff]
    %s3969 = scalar_lea.vmem [#allocation2], 736
    %v3970 = vld [vmem:[%s3969] ss:$2 sm:$0xff]
    %s3971 = scalar_lea.vmem [#allocation2], 768
    %v3972 = vld [vmem:[%s3971] ss:$2 sm:$0xff]
    %s3973 = scalar_lea.vmem [#allocation2], 800
    %v3974 = vld [vmem:[%s3973] ss:$2 sm:$0xff]
    %s3975 = scalar_lea.vmem [#allocation2], 832
    %v3976 = vld [vmem:[%s3975] ss:$2 sm:$0xff]
    %s3977 = scalar_lea.vmem [#allocation2], 864
    %v3978 = vld [vmem:[%s3977] ss:$2 sm:$0xff]
    %s3979 = scalar_lea.vmem [#allocation2], 896
    %v3980 = vld [vmem:[%s3979] ss:$2 sm:$0xff]
    %s3981 = scalar_lea.vmem [#allocation2], 928
    %v3982 = vld [vmem:[%s3981] ss:$2 sm:$0xff]
    %s3983 = scalar_lea.vmem [#allocation2], 960
    %v3984 = vld [vmem:[%s3983] ss:$2 sm:$0xff]
    %s3985 = scalar_lea.vmem [#allocation2], 992
    %v3986 = vld [vmem:[%s3985] ss:$2 sm:$0xff]
    %s3987 = scalar_lea.vmem [#allocation2], 1024
    %v3988 = vld [vmem:[%s3987] ss:$2 sm:$0xff]
    %s3989 = scalar_lea.vmem [#allocation2], 1056
    %v3990 = vld [vmem:[%s3989] ss:$2 sm:$0xff]
    %s3991 = scalar_lea.vmem [#allocation2], 1088
    %v3992 = vld [vmem:[%s3991] ss:$2 sm:$0xff]
    %s3993 = scalar_lea.vmem [#allocation2], 1120
    %v3994 = vld [vmem:[%s3993] ss:$2 sm:$0xff]
    %s3995 = scalar_lea.vmem [#allocation2], 1152
    %v3996 = vld [vmem:[%s3995] ss:$2 sm:$0xff]
    %s3997 = scalar_lea.vmem [#allocation2], 1184
    %v3998 = vld [vmem:[%s3997] ss:$2 sm:$0xff]
    %s3999 = scalar_lea.vmem [#allocation2], 1216
    %v4000 = vld [vmem:[%s3999] ss:$2 sm:$0xff]
    %s4001 = scalar_lea.vmem [#allocation2], 1248
    %v4002 = vld [vmem:[%s4001] ss:$2 sm:$0xff]
    %s4003 = scalar_lea.vmem [#allocation2], 1280
    %v4004 = vld [vmem:[%s4003] ss:$2 sm:$0xff]
    %s4005 = scalar_lea.vmem [#allocation2], 1312
    %v4006 = vld [vmem:[%s4005] ss:$2 sm:$0xff]
    %s4007 = scalar_lea.vmem [#allocation2], 1344
    %v4008 = vld [vmem:[%s4007] ss:$2 sm:$0xff]
    %s4009 = scalar_lea.vmem [#allocation2], 1376
    %v4010 = vld [vmem:[%s4009] ss:$2 sm:$0xff]
    %s4011 = scalar_lea.vmem [#allocation2], 1408
    %v4012 = vld [vmem:[%s4011] ss:$2 sm:$0xff]
    %s4013 = scalar_lea.vmem [#allocation2], 1440
    %v4014 = vld [vmem:[%s4013] ss:$2 sm:$0xff]
    %s4015 = scalar_lea.vmem [#allocation2], 1472
    %v4016 = vld [vmem:[%s4015] ss:$2 sm:$0xff]
    %s4017 = scalar_lea.vmem [#allocation2], 1504
    %v4018 = vld [vmem:[%s4017] ss:$2 sm:$0xff]
    %s4019 = scalar_lea.vmem [#allocation2], 1536
    %v4020 = vld [vmem:[%s4019] ss:$2 sm:$0xff]
    %s4021 = scalar_lea.vmem [#allocation2], 1568
    %v4022 = vld [vmem:[%s4021] ss:$2 sm:$0xff]
    %s4023 = scalar_lea.vmem [#allocation2], 1600
    %v4024 = vld [vmem:[%s4023] ss:$2 sm:$0xff]
    %s4025 = scalar_lea.vmem [#allocation2], 1632
    %v4026 = vld [vmem:[%s4025] ss:$2 sm:$0xff]
    %s4027 = scalar_lea.vmem [#allocation2], 1664
    %v4028 = vld [vmem:[%s4027] ss:$2 sm:$0xff]
    %s4029 = scalar_lea.vmem [#allocation2], 1696
    %v4030 = vld [vmem:[%s4029] ss:$2 sm:$0xff]
    %s4031 = scalar_lea.vmem [#allocation2], 1728
    %v4032 = vld [vmem:[%s4031] ss:$2 sm:$0xff]
    %s4033 = scalar_lea.vmem [#allocation2], 1760
    %v4034 = vld [vmem:[%s4033] ss:$2 sm:$0xff]
    %s4035 = scalar_lea.vmem [#allocation2], 1792
    %v4036 = vld [vmem:[%s4035] ss:$2 sm:$0xff]
    %s4037 = scalar_lea.vmem [#allocation2], 1824
    %v4038 = vld [vmem:[%s4037] ss:$2 sm:$0xff]
    %s4039 = scalar_lea.vmem [#allocation2], 1856
    %v4040 = vld [vmem:[%s4039] ss:$2 sm:$0xff]
    %s4041 = scalar_lea.vmem [#allocation2], 1888
    %v4042 = vld [vmem:[%s4041] ss:$2 sm:$0xff]
    %s4043 = scalar_lea.vmem [#allocation2], 1920
    %v4044 = vld [vmem:[%s4043] ss:$2 sm:$0xff]
    %s4045 = scalar_lea.vmem [#allocation2], 1952
    %v4046 = vld [vmem:[%s4045] ss:$2 sm:$0xff]
    %s4047 = scalar_lea.vmem [#allocation2], 1984
    %v4048 = vld [vmem:[%s4047] ss:$2 sm:$0xff]
    %s4049 = scalar_lea.vmem [#allocation2], 2016
    %v4050 = vld [vmem:[%s4049] ss:$2 sm:$0xff]
    %v4051 = vadd.s32 %v2897, 8
    %v4052 = vadd.s32 %v2897, 16
    %v4053 = vadd.s32 %v2897, 24
    %v4054 = vadd.s32 %v2897, 32
    %v4055 = vadd.s32 %v2897, 40
    %v4056 = vadd.s32 %v2897, 48
    %v4057 = vadd.s32 %v2897, 56
    %v4058 = vadd.s32 %v2897, 64
    %v4059 = vadd.s32 %v2897, 72
    %v4060 = vadd.s32 %v2897, 80
    %v4061 = vadd.s32 %v2897, 88
    %v4062 = vadd.s32 %v2897, 96
    %v4063 = vadd.s32 %v2897, 104
    %v4064 = vadd.s32 %v2897, 112
    %v4065 = vadd.s32 %v2897, 120
    %v4066 = vadd.s32 %v2897, 128
    %v4067 = vadd.s32 %v2897, 136
    %v4068 = vadd.s32 %v2897, 144
    %v4069 = vadd.s32 %v2897, 152
    %v4070 = vadd.s32 %v2897, 160
    %v4071 = vadd.s32 %v2897, 168
    %v4072 = vadd.s32 %v2897, 176
    %v4073 = vadd.s32 %v2897, 184
    %v4074 = vadd.s32 %v2897, 192
    %v4075 = vadd.s32 %v2897, 200
    %v4076 = vadd.s32 %v2897, 208
    %v4077 = vadd.s32 %v2897, 216
    %v4078 = vadd.s32 %v2897, 224
    %v4079 = vadd.s32 %v2897, 232
    %v4080 = vadd.s32 %v2897, 240
    %v4081 = vadd.s32 %v2897, 248
    %v4082 = vadd.s32 %v2897, 256
    %v4083 = vadd.s32 %v2897, 264
    %v4084 = vadd.s32 %v2897, 272
    %v4085 = vadd.s32 %v2897, 280
    %v4086 = vadd.s32 %v2897, 288
    %v4087 = vadd.s32 %v2897, 296
    %v4088 = vadd.s32 %v2897, 304
    %v4089 = vadd.s32 %v2897, 312
    %v4090 = vadd.s32 %v2897, 320
    %v4091 = vadd.s32 %v2897, 328
    %v4092 = vadd.s32 %v2897, 336
    %v4093 = vadd.s32 %v2897, 344
    %v4094 = vadd.s32 %v2897, 352
    %v4095 = vadd.s32 %v2897, 360
    %v4096 = vadd.s32 %v2897, 368
    %v4097 = vadd.s32 %v2897, 376
    %v4098 = vadd.s32 %v2897, 384
    %v4099 = vadd.s32 %v2897, 392
    %v4100 = vadd.s32 %v2897, 400
    %v4101 = vadd.s32 %v2897, 408
    %v4102 = vadd.s32 %v2897, 416
    %v4103 = vadd.s32 %v2897, 424
    %v4104 = vadd.s32 %v2897, 432
    %v4105 = vadd.s32 %v2897, 440
    %v4106 = vadd.s32 %v2897, 448
    %v4107 = vadd.s32 %v2897, 456
    %v4108 = vadd.s32 %v2897, 464
    %v4109 = vadd.s32 %v2897, 472
    %v4110 = vadd.s32 %v2897, 480
    %v4111 = vadd.s32 %v2897, 488
    %v4112 = vadd.s32 %v2897, 496
    %v4113 = vadd.s32 %v2897, 504
    %v4114 = vand.u32 %v2897, 7
    %v4115 = vand.u32 %v4051, 7
    %v4116 = vand.u32 %v4052, 7
    %v4117 = vand.u32 %v4053, 7
    %v4118 = vand.u32 %v4054, 7
    %v4119 = vand.u32 %v4055, 7
    %v4120 = vand.u32 %v4056, 7
    %v4121 = vand.u32 %v4057, 7
    %v4122 = vand.u32 %v4058, 7
    %v4123 = vand.u32 %v4059, 7
    %v4124 = vand.u32 %v4060, 7
    %v4125 = vand.u32 %v4061, 7
    %v4126 = vand.u32 %v4062, 7
    %v4127 = vand.u32 %v4063, 7
    %v4128 = vand.u32 %v4064, 7
    %v4129 = vand.u32 %v4065, 7
    %v4130 = vand.u32 %v4066, 7
    %v4131 = vand.u32 %v4067, 7
    %v4132 = vand.u32 %v4068, 7
    %v4133 = vand.u32 %v4069, 7
    %v4134 = vand.u32 %v4070, 7
    %v4135 = vand.u32 %v4071, 7
    %v4136 = vand.u32 %v4072, 7
    %v4137 = vand.u32 %v4073, 7
    %v4138 = vand.u32 %v4074, 7
    %v4139 = vand.u32 %v4075, 7
    %v4140 = vand.u32 %v4076, 7
    %v4141 = vand.u32 %v4077, 7
    %v4142 = vand.u32 %v4078, 7
    %v4143 = vand.u32 %v4079, 7
    %v4144 = vand.u32 %v4080, 7
    %v4145 = vand.u32 %v4081, 7
    %v4146 = vand.u32 %v4082, 7
    %v4147 = vand.u32 %v4083, 7
    %v4148 = vand.u32 %v4084, 7
    %v4149 = vand.u32 %v4085, 7
    %v4150 = vand.u32 %v4086, 7
    %v4151 = vand.u32 %v4087, 7
    %v4152 = vand.u32 %v4088, 7
    %v4153 = vand.u32 %v4089, 7
    %v4154 = vand.u32 %v4090, 7
    %v4155 = vand.u32 %v4091, 7
    %v4156 = vand.u32 %v4092, 7
    %v4157 = vand.u32 %v4093, 7
    %v4158 = vand.u32 %v4094, 7
    %v4159 = vand.u32 %v4095, 7
    %v4160 = vand.u32 %v4096, 7
    %v4161 = vand.u32 %v4097, 7
    %v4162 = vand.u32 %v4098, 7
    %v4163 = vand.u32 %v4099, 7
    %v4164 = vand.u32 %v4100, 7
    %v4165 = vand.u32 %v4101, 7
    %v4166 = vand.u32 %v4102, 7
    %v4167 = vand.u32 %v4103, 7
    %v4168 = vand.u32 %v4104, 7
    %v4169 = vand.u32 %v4105, 7
    %v4170 = vand.u32 %v4106, 7
    %v4171 = vand.u32 %v4107, 7
    %v4172 = vand.u32 %v4108, 7
    %v4173 = vand.u32 %v4109, 7
    %v4174 = vand.u32 %v4110, 7
    %v4175 = vand.u32 %v4111, 7
    %v4176 = vand.u32 %v4112, 7
    %v4177 = vand.u32 %v4113, 7
    %v4178 = vshra.s32 %v2897, 3
    %v4179 = vshra.s32 %v4051, 3
    %v4180 = vshra.s32 %v4052, 3
    %v4181 = vshra.s32 %v4053, 3
    %v4182 = vshra.s32 %v4054, 3
    %v4183 = vshra.s32 %v4055, 3
    %v4184 = vshra.s32 %v4056, 3
    %v4185 = vshra.s32 %v4057, 3
    %v4186 = vshra.s32 %v4058, 3
    %v4187 = vshra.s32 %v4059, 3
    %v4188 = vshra.s32 %v4060, 3
    %v4189 = vshra.s32 %v4061, 3
    %v4190 = vshra.s32 %v4062, 3
    %v4191 = vshra.s32 %v4063, 3
    %v4192 = vshra.s32 %v4064, 3
    %v4193 = vshra.s32 %v4065, 3
    %v4194 = vshra.s32 %v4066, 3
    %v4195 = vshra.s32 %v4067, 3
    %v4196 = vshra.s32 %v4068, 3
    %v4197 = vshra.s32 %v4069, 3
    %v4198 = vshra.s32 %v4070, 3
    %v4199 = vshra.s32 %v4071, 3
    %v4200 = vshra.s32 %v4072, 3
    %v4201 = vshra.s32 %v4073, 3
    %v4202 = vshra.s32 %v4074, 3
    %v4203 = vshra.s32 %v4075, 3
    %v4204 = vshra.s32 %v4076, 3
    %v4205 = vshra.s32 %v4077, 3
    %v4206 = vshra.s32 %v4078, 3
    %v4207 = vshra.s32 %v4079, 3
    %v4208 = vshra.s32 %v4080, 3
    %v4209 = vshra.s32 %v4081, 3
    %v4210 = vshra.s32 %v4082, 3
    %v4211 = vshra.s32 %v4083, 3
    %v4212 = vshra.s32 %v4084, 3
    %v4213 = vshra.s32 %v4085, 3
    %v4214 = vshra.s32 %v4086, 3
    %v4215 = vshra.s32 %v4087, 3
    %v4216 = vshra.s32 %v4088, 3
    %v4217 = vshra.s32 %v4089, 3
    %v4218 = vshra.s32 %v4090, 3
    %v4219 = vshra.s32 %v4091, 3
    %v4220 = vshra.s32 %v4092, 3
    %v4221 = vshra.s32 %v4093, 3
    %v4222 = vshra.s32 %v4094, 3
    %v4223 = vshra.s32 %v4095, 3
    %v4224 = vshra.s32 %v4096, 3
    %v4225 = vshra.s32 %v4097, 3
    %v4226 = vshra.s32 %v4098, 3
    %v4227 = vshra.s32 %v4099, 3
    %v4228 = vshra.s32 %v4100, 3
    %v4229 = vshra.s32 %v4101, 3
    %v4230 = vshra.s32 %v4102, 3
    %v4231 = vshra.s32 %v4103, 3
    %v4232 = vshra.s32 %v4104, 3
    %v4233 = vshra.s32 %v4105, 3
    %v4234 = vshra.s32 %v4106, 3
    %v4235 = vshra.s32 %v4107, 3
    %v4236 = vshra.s32 %v4108, 3
    %v4237 = vshra.s32 %v4109, 3
    %v4238 = vshra.s32 %v4110, 3
    %v4239 = vshra.s32 %v4111, 3
    %v4240 = vshra.s32 %v4112, 3
    %v4241 = vshra.s32 %v4113, 3
    %v4242 = vand.u32 %v4178, 7
    %v4243 = vand.u32 %v4179, 7
    %v4244 = vand.u32 %v4180, 7
    %v4245 = vand.u32 %v4181, 7
    %v4246 = vand.u32 %v4182, 7
    %v4247 = vand.u32 %v4183, 7
    %v4248 = vand.u32 %v4184, 7
    %v4249 = vand.u32 %v4185, 7
    %v4250 = vand.u32 %v4186, 7
    %v4251 = vand.u32 %v4187, 7
    %v4252 = vand.u32 %v4188, 7
    %v4253 = vand.u32 %v4189, 7
    %v4254 = vand.u32 %v4190, 7
    %v4255 = vand.u32 %v4191, 7
    %v4256 = vand.u32 %v4192, 7
    %v4257 = vand.u32 %v4193, 7
    %v4258 = vand.u32 %v4194, 7
    %v4259 = vand.u32 %v4195, 7
    %v4260 = vand.u32 %v4196, 7
    %v4261 = vand.u32 %v4197, 7
    %v4262 = vand.u32 %v4198, 7
    %v4263 = vand.u32 %v4199, 7
    %v4264 = vand.u32 %v4200, 7
    %v4265 = vand.u32 %v4201, 7
    %v4266 = vand.u32 %v4202, 7
    %v4267 = vand.u32 %v4203, 7
    %v4268 = vand.u32 %v4204, 7
    %v4269 = vand.u32 %v4205, 7
    %v4270 = vand.u32 %v4206, 7
    %v4271 = vand.u32 %v4207, 7
    %v4272 = vand.u32 %v4208, 7
    %v4273 = vand.u32 %v4209, 7
    %v4274 = vand.u32 %v4210, 7
    %v4275 = vand.u32 %v4211, 7
    %v4276 = vand.u32 %v4212, 7
    %v4277 = vand.u32 %v4213, 7
    %v4278 = vand.u32 %v4214, 7
    %v4279 = vand.u32 %v4215, 7
    %v4280 = vand.u32 %v4216, 7
    %v4281 = vand.u32 %v4217, 7
    %v4282 = vand.u32 %v4218, 7
    %v4283 = vand.u32 %v4219, 7
    %v4284 = vand.u32 %v4220, 7
    %v4285 = vand.u32 %v4221, 7
    %v4286 = vand.u32 %v4222, 7
    %v4287 = vand.u32 %v4223, 7
    %v4288 = vand.u32 %v4224, 7
    %v4289 = vand.u32 %v4225, 7
    %v4290 = vand.u32 %v4226, 7
    %v4291 = vand.u32 %v4227, 7
    %v4292 = vand.u32 %v4228, 7
    %v4293 = vand.u32 %v4229, 7
    %v4294 = vand.u32 %v4230, 7
    %v4295 = vand.u32 %v4231, 7
    %v4296 = vand.u32 %v4232, 7
    %v4297 = vand.u32 %v4233, 7
    %v4298 = vand.u32 %v4234, 7
    %v4299 = vand.u32 %v4235, 7
    %v4300 = vand.u32 %v4236, 7
    %v4301 = vand.u32 %v4237, 7
    %v4302 = vand.u32 %v4238, 7
    %v4303 = vand.u32 %v4239, 7
    %v4304 = vand.u32 %v4240, 7
    %v4305 = vand.u32 %v4241, 7
    %vm4306 = vcmp.ge.s32.totalorder %v4242, 1
    %vm4307 = vcmp.ge.s32.totalorder %v4243, 1
    %vm4308 = vcmp.ge.s32.totalorder %v4244, 1
    %vm4309 = vcmp.ge.s32.totalorder %v4245, 1
    %vm4310 = vcmp.ge.s32.totalorder %v4246, 1
    %vm4311 = vcmp.ge.s32.totalorder %v4247, 1
    %vm4312 = vcmp.ge.s32.totalorder %v4248, 1
    %vm4313 = vcmp.ge.s32.totalorder %v4249, 1
    %vm4314 = vcmp.ge.s32.totalorder %v4250, 1
    %vm4315 = vcmp.ge.s32.totalorder %v4251, 1
    %vm4316 = vcmp.ge.s32.totalorder %v4252, 1
    %vm4317 = vcmp.ge.s32.totalorder %v4253, 1
    %vm4318 = vcmp.ge.s32.totalorder %v4254, 1
    %vm4319 = vcmp.ge.s32.totalorder %v4255, 1
    %vm4320 = vcmp.ge.s32.totalorder %v4256, 1
    %vm4321 = vcmp.ge.s32.totalorder %v4257, 1
    %vm4322 = vcmp.ge.s32.totalorder %v4258, 1
    %vm4323 = vcmp.ge.s32.totalorder %v4259, 1
    %vm4324 = vcmp.ge.s32.totalorder %v4260, 1
    %vm4325 = vcmp.ge.s32.totalorder %v4261, 1
    %vm4326 = vcmp.ge.s32.totalorder %v4262, 1
    %vm4327 = vcmp.ge.s32.totalorder %v4263, 1
    %vm4328 = vcmp.ge.s32.totalorder %v4264, 1
    %vm4329 = vcmp.ge.s32.totalorder %v4265, 1
    %vm4330 = vcmp.ge.s32.totalorder %v4266, 1
    %vm4331 = vcmp.ge.s32.totalorder %v4267, 1
    %vm4332 = vcmp.ge.s32.totalorder %v4268, 1
    %vm4333 = vcmp.ge.s32.totalorder %v4269, 1
    %vm4334 = vcmp.ge.s32.totalorder %v4270, 1
    %vm4335 = vcmp.ge.s32.totalorder %v4271, 1
    %vm4336 = vcmp.ge.s32.totalorder %v4272, 1
    %vm4337 = vcmp.ge.s32.totalorder %v4273, 1
    %vm4338 = vcmp.ge.s32.totalorder %v4274, 1
    %vm4339 = vcmp.ge.s32.totalorder %v4275, 1
    %vm4340 = vcmp.ge.s32.totalorder %v4276, 1
    %vm4341 = vcmp.ge.s32.totalorder %v4277, 1
    %vm4342 = vcmp.ge.s32.totalorder %v4278, 1
    %vm4343 = vcmp.ge.s32.totalorder %v4279, 1
    %vm4344 = vcmp.ge.s32.totalorder %v4280, 1
    %vm4345 = vcmp.ge.s32.totalorder %v4281, 1
    %vm4346 = vcmp.ge.s32.totalorder %v4282, 1
    %vm4347 = vcmp.ge.s32.totalorder %v4283, 1
    %vm4348 = vcmp.ge.s32.totalorder %v4284, 1
    %vm4349 = vcmp.ge.s32.totalorder %v4285, 1
    %vm4350 = vcmp.ge.s32.totalorder %v4286, 1
    %vm4351 = vcmp.ge.s32.totalorder %v4287, 1
    %vm4352 = vcmp.ge.s32.totalorder %v4288, 1
    %vm4353 = vcmp.ge.s32.totalorder %v4289, 1
    %vm4354 = vcmp.ge.s32.totalorder %v4290, 1
    %vm4355 = vcmp.ge.s32.totalorder %v4291, 1
    %vm4356 = vcmp.ge.s32.totalorder %v4292, 1
    %vm4357 = vcmp.ge.s32.totalorder %v4293, 1
    %vm4358 = vcmp.ge.s32.totalorder %v4294, 1
    %vm4359 = vcmp.ge.s32.totalorder %v4295, 1
    %vm4360 = vcmp.ge.s32.totalorder %v4296, 1
    %vm4361 = vcmp.ge.s32.totalorder %v4297, 1
    %vm4362 = vcmp.ge.s32.totalorder %v4298, 1
    %vm4363 = vcmp.ge.s32.totalorder %v4299, 1
    %vm4364 = vcmp.ge.s32.totalorder %v4300, 1
    %vm4365 = vcmp.ge.s32.totalorder %v4301, 1
    %vm4366 = vcmp.ge.s32.totalorder %v4302, 1
    %vm4367 = vcmp.ge.s32.totalorder %v4303, 1
    %vm4368 = vcmp.ge.s32.totalorder %v4304, 1
    %vm4369 = vcmp.ge.s32.totalorder %v4305, 1
    %vm4370 = vcmp.le.s32.totalorder %v4242, 6
    %vm4371 = vcmp.le.s32.totalorder %v4243, 6
    %vm4372 = vcmp.le.s32.totalorder %v4244, 6
    %vm4373 = vcmp.le.s32.totalorder %v4245, 6
    %vm4374 = vcmp.le.s32.totalorder %v4246, 6
    %vm4375 = vcmp.le.s32.totalorder %v4247, 6
    %vm4376 = vcmp.le.s32.totalorder %v4248, 6
    %vm4377 = vcmp.le.s32.totalorder %v4249, 6
    %vm4378 = vcmp.le.s32.totalorder %v4250, 6
    %vm4379 = vcmp.le.s32.totalorder %v4251, 6
    %vm4380 = vcmp.le.s32.totalorder %v4252, 6
    %vm4381 = vcmp.le.s32.totalorder %v4253, 6
    %vm4382 = vcmp.le.s32.totalorder %v4254, 6
    %vm4383 = vcmp.le.s32.totalorder %v4255, 6
    %vm4384 = vcmp.le.s32.totalorder %v4256, 6
    %vm4385 = vcmp.le.s32.totalorder %v4257, 6
    %vm4386 = vcmp.le.s32.totalorder %v4258, 6
    %vm4387 = vcmp.le.s32.totalorder %v4259, 6
    %vm4388 = vcmp.le.s32.totalorder %v4260, 6
    %vm4389 = vcmp.le.s32.totalorder %v4261, 6
    %vm4390 = vcmp.le.s32.totalorder %v4262, 6
    %vm4391 = vcmp.le.s32.totalorder %v4263, 6
    %vm4392 = vcmp.le.s32.totalorder %v4264, 6
    %vm4393 = vcmp.le.s32.totalorder %v4265, 6
    %vm4394 = vcmp.le.s32.totalorder %v4266, 6
    %vm4395 = vcmp.le.s32.totalorder %v4267, 6
    %vm4396 = vcmp.le.s32.totalorder %v4268, 6
    %vm4397 = vcmp.le.s32.totalorder %v4269, 6
    %vm4398 = vcmp.le.s32.totalorder %v4270, 6
    %vm4399 = vcmp.le.s32.totalorder %v4271, 6
    %vm4400 = vcmp.le.s32.totalorder %v4272, 6
    %vm4401 = vcmp.le.s32.totalorder %v4273, 6
    %vm4402 = vcmp.le.s32.totalorder %v4274, 6
    %vm4403 = vcmp.le.s32.totalorder %v4275, 6
    %vm4404 = vcmp.le.s32.totalorder %v4276, 6
    %vm4405 = vcmp.le.s32.totalorder %v4277, 6
    %vm4406 = vcmp.le.s32.totalorder %v4278, 6
    %vm4407 = vcmp.le.s32.totalorder %v4279, 6
    %vm4408 = vcmp.le.s32.totalorder %v4280, 6
    %vm4409 = vcmp.le.s32.totalorder %v4281, 6
    %vm4410 = vcmp.le.s32.totalorder %v4282, 6
    %vm4411 = vcmp.le.s32.totalorder %v4283, 6
    %vm4412 = vcmp.le.s32.totalorder %v4284, 6
    %vm4413 = vcmp.le.s32.totalorder %v4285, 6
    %vm4414 = vcmp.le.s32.totalorder %v4286, 6
    %vm4415 = vcmp.le.s32.totalorder %v4287, 6
    %vm4416 = vcmp.le.s32.totalorder %v4288, 6
    %vm4417 = vcmp.le.s32.totalorder %v4289, 6
    %vm4418 = vcmp.le.s32.totalorder %v4290, 6
    %vm4419 = vcmp.le.s32.totalorder %v4291, 6
    %vm4420 = vcmp.le.s32.totalorder %v4292, 6
    %vm4421 = vcmp.le.s32.totalorder %v4293, 6
    %vm4422 = vcmp.le.s32.totalorder %v4294, 6
    %vm4423 = vcmp.le.s32.totalorder %v4295, 6
    %vm4424 = vcmp.le.s32.totalorder %v4296, 6
    %vm4425 = vcmp.le.s32.totalorder %v4297, 6
    %vm4426 = vcmp.le.s32.totalorder %v4298, 6
    %vm4427 = vcmp.le.s32.totalorder %v4299, 6
    %vm4428 = vcmp.le.s32.totalorder %v4300, 6
    %vm4429 = vcmp.le.s32.totalorder %v4301, 6
    %vm4430 = vcmp.le.s32.totalorder %v4302, 6
    %vm4431 = vcmp.le.s32.totalorder %v4303, 6
    %vm4432 = vcmp.le.s32.totalorder %v4304, 6
    %vm4433 = vcmp.le.s32.totalorder %v4305, 6
    %vm4434 = vcmp.ge.s32.totalorder %v4114, 1
    %vm4435 = vcmp.ge.s32.totalorder %v4115, 1
    %vm4436 = vcmp.ge.s32.totalorder %v4116, 1
    %vm4437 = vcmp.ge.s32.totalorder %v4117, 1
    %vm4438 = vcmp.ge.s32.totalorder %v4118, 1
    %vm4439 = vcmp.ge.s32.totalorder %v4119, 1
    %vm4440 = vcmp.ge.s32.totalorder %v4120, 1
    %vm4441 = vcmp.ge.s32.totalorder %v4121, 1
    %vm4442 = vcmp.ge.s32.totalorder %v4122, 1
    %vm4443 = vcmp.ge.s32.totalorder %v4123, 1
    %vm4444 = vcmp.ge.s32.totalorder %v4124, 1
    %vm4445 = vcmp.ge.s32.totalorder %v4125, 1
    %vm4446 = vcmp.ge.s32.totalorder %v4126, 1
    %vm4447 = vcmp.ge.s32.totalorder %v4127, 1
    %vm4448 = vcmp.ge.s32.totalorder %v4128, 1
    %vm4449 = vcmp.ge.s32.totalorder %v4129, 1
    %vm4450 = vcmp.ge.s32.totalorder %v4130, 1
    %vm4451 = vcmp.ge.s32.totalorder %v4131, 1
    %vm4452 = vcmp.ge.s32.totalorder %v4132, 1
    %vm4453 = vcmp.ge.s32.totalorder %v4133, 1
    %vm4454 = vcmp.ge.s32.totalorder %v4134, 1
    %vm4455 = vcmp.ge.s32.totalorder %v4135, 1
    %vm4456 = vcmp.ge.s32.totalorder %v4136, 1
    %vm4457 = vcmp.ge.s32.totalorder %v4137, 1
    %vm4458 = vcmp.ge.s32.totalorder %v4138, 1
    %vm4459 = vcmp.ge.s32.totalorder %v4139, 1
    %vm4460 = vcmp.ge.s32.totalorder %v4140, 1
    %vm4461 = vcmp.ge.s32.totalorder %v4141, 1
    %vm4462 = vcmp.ge.s32.totalorder %v4142, 1
    %vm4463 = vcmp.ge.s32.totalorder %v4143, 1
    %vm4464 = vcmp.ge.s32.totalorder %v4144, 1
    %vm4465 = vcmp.ge.s32.totalorder %v4145, 1
    %vm4466 = vcmp.ge.s32.totalorder %v4146, 1
    %vm4467 = vcmp.ge.s32.totalorder %v4147, 1
    %vm4468 = vcmp.ge.s32.totalorder %v4148, 1
    %vm4469 = vcmp.ge.s32.totalorder %v4149, 1
    %vm4470 = vcmp.ge.s32.totalorder %v4150, 1
    %vm4471 = vcmp.ge.s32.totalorder %v4151, 1
    %vm4472 = vcmp.ge.s32.totalorder %v4152, 1
    %vm4473 = vcmp.ge.s32.totalorder %v4153, 1
    %vm4474 = vcmp.ge.s32.totalorder %v4154, 1
    %vm4475 = vcmp.ge.s32.totalorder %v4155, 1
    %vm4476 = vcmp.ge.s32.totalorder %v4156, 1
    %vm4477 = vcmp.ge.s32.totalorder %v4157, 1
    %vm4478 = vcmp.ge.s32.totalorder %v4158, 1
    %vm4479 = vcmp.ge.s32.totalorder %v4159, 1
    %vm4480 = vcmp.ge.s32.totalorder %v4160, 1
    %vm4481 = vcmp.ge.s32.totalorder %v4161, 1
    %vm4482 = vcmp.ge.s32.totalorder %v4162, 1
    %vm4483 = vcmp.ge.s32.totalorder %v4163, 1
    %vm4484 = vcmp.ge.s32.totalorder %v4164, 1
    %vm4485 = vcmp.ge.s32.totalorder %v4165, 1
    %vm4486 = vcmp.ge.s32.totalorder %v4166, 1
    %vm4487 = vcmp.ge.s32.totalorder %v4167, 1
    %vm4488 = vcmp.ge.s32.totalorder %v4168, 1
    %vm4489 = vcmp.ge.s32.totalorder %v4169, 1
    %vm4490 = vcmp.ge.s32.totalorder %v4170, 1
    %vm4491 = vcmp.ge.s32.totalorder %v4171, 1
    %vm4492 = vcmp.ge.s32.totalorder %v4172, 1
    %vm4493 = vcmp.ge.s32.totalorder %v4173, 1
    %vm4494 = vcmp.ge.s32.totalorder %v4174, 1
    %vm4495 = vcmp.ge.s32.totalorder %v4175, 1
    %vm4496 = vcmp.ge.s32.totalorder %v4176, 1
    %vm4497 = vcmp.ge.s32.totalorder %v4177, 1
    %vm4498 = vcmp.le.s32.totalorder %v4114, 6
    %vm4499 = vcmp.le.s32.totalorder %v4115, 6
    %vm4500 = vcmp.le.s32.totalorder %v4116, 6
    %vm4501 = vcmp.le.s32.totalorder %v4117, 6
    %vm4502 = vcmp.le.s32.totalorder %v4118, 6
    %vm4503 = vcmp.le.s32.totalorder %v4119, 6
    %vm4504 = vcmp.le.s32.totalorder %v4120, 6
    %vm4505 = vcmp.le.s32.totalorder %v4121, 6
    %vm4506 = vcmp.le.s32.totalorder %v4122, 6
    %vm4507 = vcmp.le.s32.totalorder %v4123, 6
    %vm4508 = vcmp.le.s32.totalorder %v4124, 6
    %vm4509 = vcmp.le.s32.totalorder %v4125, 6
    %vm4510 = vcmp.le.s32.totalorder %v4126, 6
    %vm4511 = vcmp.le.s32.totalorder %v4127, 6
    %vm4512 = vcmp.le.s32.totalorder %v4128, 6
    %vm4513 = vcmp.le.s32.totalorder %v4129, 6
    %vm4514 = vcmp.le.s32.totalorder %v4130, 6
    %vm4515 = vcmp.le.s32.totalorder %v4131, 6
    %vm4516 = vcmp.le.s32.totalorder %v4132, 6
    %vm4517 = vcmp.le.s32.totalorder %v4133, 6
    %vm4518 = vcmp.le.s32.totalorder %v4134, 6
    %vm4519 = vcmp.le.s32.totalorder %v4135, 6
    %vm4520 = vcmp.le.s32.totalorder %v4136, 6
    %vm4521 = vcmp.le.s32.totalorder %v4137, 6
    %vm4522 = vcmp.le.s32.totalorder %v4138, 6
    %vm4523 = vcmp.le.s32.totalorder %v4139, 6
    %vm4524 = vcmp.le.s32.totalorder %v4140, 6
    %vm4525 = vcmp.le.s32.totalorder %v4141, 6
    %vm4526 = vcmp.le.s32.totalorder %v4142, 6
    %vm4527 = vcmp.le.s32.totalorder %v4143, 6
    %vm4528 = vcmp.le.s32.totalorder %v4144, 6
    %vm4529 = vcmp.le.s32.totalorder %v4145, 6
    %vm4530 = vcmp.le.s32.totalorder %v4146, 6
    %vm4531 = vcmp.le.s32.totalorder %v4147, 6
    %vm4532 = vcmp.le.s32.totalorder %v4148, 6
    %vm4533 = vcmp.le.s32.totalorder %v4149, 6
    %vm4534 = vcmp.le.s32.totalorder %v4150, 6
    %vm4535 = vcmp.le.s32.totalorder %v4151, 6
    %vm4536 = vcmp.le.s32.totalorder %v4152, 6
    %vm4537 = vcmp.le.s32.totalorder %v4153, 6
    %vm4538 = vcmp.le.s32.totalorder %v4154, 6
    %vm4539 = vcmp.le.s32.totalorder %v4155, 6
    %vm4540 = vcmp.le.s32.totalorder %v4156, 6
    %vm4541 = vcmp.le.s32.totalorder %v4157, 6
    %vm4542 = vcmp.le.s32.totalorder %v4158, 6
    %vm4543 = vcmp.le.s32.totalorder %v4159, 6
    %vm4544 = vcmp.le.s32.totalorder %v4160, 6
    %vm4545 = vcmp.le.s32.totalorder %v4161, 6
    %vm4546 = vcmp.le.s32.totalorder %v4162, 6
    %vm4547 = vcmp.le.s32.totalorder %v4163, 6
    %vm4548 = vcmp.le.s32.totalorder %v4164, 6
    %vm4549 = vcmp.le.s32.totalorder %v4165, 6
    %vm4550 = vcmp.le.s32.totalorder %v4166, 6
    %vm4551 = vcmp.le.s32.totalorder %v4167, 6
    %vm4552 = vcmp.le.s32.totalorder %v4168, 6
    %vm4553 = vcmp.le.s32.totalorder %v4169, 6
    %vm4554 = vcmp.le.s32.totalorder %v4170, 6
    %vm4555 = vcmp.le.s32.totalorder %v4171, 6
    %vm4556 = vcmp.le.s32.totalorder %v4172, 6
    %vm4557 = vcmp.le.s32.totalorder %v4173, 6
    %vm4558 = vcmp.le.s32.totalorder %v4174, 6
    %vm4559 = vcmp.le.s32.totalorder %v4175, 6
    %vm4560 = vcmp.le.s32.totalorder %v4176, 6
    %vm4561 = vcmp.le.s32.totalorder %v4177, 6
    %v4562 = vrot.slane %v3924, 7
    %v4563 = vrot.slane %v3926, 7
    %v4564 = vrot.slane %v3928, 7
    %v4565 = vrot.slane %v3930, 7
    %v4566 = vrot.slane %v3932, 7
    %v4567 = vrot.slane %v3934, 7
    %v4568 = vrot.slane %v3936, 7
    %v4569 = vrot.slane %v3938, 7
    %v4570 = vrot.slane %v3940, 7
    %v4571 = vrot.slane %v3942, 7
    %v4572 = vrot.slane %v3944, 7
    %v4573 = vrot.slane %v3946, 7
    %v4574 = vrot.slane %v3948, 7
    %v4575 = vrot.slane %v3950, 7
    %v4576 = vrot.slane %v3952, 7
    %v4577 = vrot.slane %v3954, 7
    %v4578 = vrot.slane %v3956, 7
    %v4579 = vrot.slane %v3958, 7
    %v4580 = vrot.slane %v3960, 7
    %v4581 = vrot.slane %v3962, 7
    %v4582 = vrot.slane %v3964, 7
    %v4583 = vrot.slane %v3966, 7
    %v4584 = vrot.slane %v3968, 7
    %v4585 = vrot.slane %v3970, 7
    %v4586 = vrot.slane %v3972, 7
    %v4587 = vrot.slane %v3974, 7
    %v4588 = vrot.slane %v3976, 7
    %v4589 = vrot.slane %v3978, 7
    %v4590 = vrot.slane %v3980, 7
    %v4591 = vrot.slane %v3982, 7
    %v4592 = vrot.slane %v3984, 7
    %v4593 = vrot.slane %v3986, 7
    %v4594 = vrot.slane %v3988, 7
    %v4595 = vrot.slane %v3990, 7
    %v4596 = vrot.slane %v3992, 7
    %v4597 = vrot.slane %v3994, 7
    %v4598 = vrot.slane %v3996, 7
    %v4599 = vrot.slane %v3998, 7
    %v4600 = vrot.slane %v4000, 7
    %v4601 = vrot.slane %v4002, 7
    %v4602 = vrot.slane %v4004, 7
    %v4603 = vrot.slane %v4006, 7
    %v4604 = vrot.slane %v4008, 7
    %v4605 = vrot.slane %v4010, 7
    %v4606 = vrot.slane %v4012, 7
    %v4607 = vrot.slane %v4014, 7
    %v4608 = vrot.slane %v4016, 7
    %v4609 = vrot.slane %v4018, 7
    %v4610 = vrot.slane %v4020, 7
    %v4611 = vrot.slane %v4022, 7
    %v4612 = vrot.slane %v4024, 7
    %v4613 = vrot.slane %v4026, 7
    %v4614 = vrot.slane %v4028, 7
    %v4615 = vrot.slane %v4030, 7
    %v4616 = vrot.slane %v4032, 7
    %v4617 = vrot.slane %v4034, 7
    %v4618 = vrot.slane %v4036, 7
    %v4619 = vrot.slane %v4038, 7
    %v4620 = vrot.slane %v4040, 7
    %v4621 = vrot.slane %v4042, 7
    %v4622 = vrot.slane %v4044, 7
    %v4623 = vrot.slane %v4046, 7
    %v4624 = vrot.slane %v4048, 7
    %v4625 = vrot.slane %v4050, 7
    %vm4626 = vcmp.lt.s32.totalorder %v2897, 1
    %v4627 = vsel %vm4626, %v4624, %v4625
    %v4628 = vsel %vm4626, %v4623, %v4624
    %v4629 = vsel %vm4626, %v4622, %v4623
    %v4630 = vsel %vm4626, %v4621, %v4622
    %v4631 = vsel %vm4626, %v4620, %v4621
    %v4632 = vsel %vm4626, %v4619, %v4620
    %v4633 = vsel %vm4626, %v4618, %v4619
    %v4634 = vsel %vm4626, %v4617, %v4618
    %v4635 = vsel %vm4626, %v4616, %v4617
    %v4636 = vsel %vm4626, %v4615, %v4616
    %v4637 = vsel %vm4626, %v4614, %v4615
    %v4638 = vsel %vm4626, %v4613, %v4614
    %v4639 = vsel %vm4626, %v4612, %v4613
    %v4640 = vsel %vm4626, %v4611, %v4612
    %v4641 = vsel %vm4626, %v4610, %v4611
    %v4642 = vsel %vm4626, %v4609, %v4610
    %v4643 = vsel %vm4626, %v4608, %v4609
    %v4644 = vsel %vm4626, %v4607, %v4608
    %v4645 = vsel %vm4626, %v4606, %v4607
    %v4646 = vsel %vm4626, %v4605, %v4606
    %v4647 = vsel %vm4626, %v4604, %v4605
    %v4648 = vsel %vm4626, %v4603, %v4604
    %v4649 = vsel %vm4626, %v4602, %v4603
    %v4650 = vsel %vm4626, %v4601, %v4602
    %v4651 = vsel %vm4626, %v4600, %v4601
    %v4652 = vsel %vm4626, %v4599, %v4600
    %v4653 = vsel %vm4626, %v4598, %v4599
    %v4654 = vsel %vm4626, %v4597, %v4598
    %v4655 = vsel %vm4626, %v4596, %v4597
    %v4656 = vsel %vm4626, %v4595, %v4596
    %v4657 = vsel %vm4626, %v4594, %v4595
    %v4658 = vsel %vm4626, %v4593, %v4594
    %v4659 = vsel %vm4626, %v4592, %v4593
    %v4660 = vsel %vm4626, %v4591, %v4592
    %v4661 = vsel %vm4626, %v4590, %v4591
    %v4662 = vsel %vm4626, %v4589, %v4590
    %v4663 = vsel %vm4626, %v4588, %v4589
    %v4664 = vsel %vm4626, %v4587, %v4588
    %v4665 = vsel %vm4626, %v4586, %v4587
    %v4666 = vsel %vm4626, %v4585, %v4586
    %v4667 = vsel %vm4626, %v4584, %v4585
    %v4668 = vsel %vm4626, %v4583, %v4584
    %v4669 = vsel %vm4626, %v4582, %v4583
    %v4670 = vsel %vm4626, %v4581, %v4582
    %v4671 = vsel %vm4626, %v4580, %v4581
    %v4672 = vsel %vm4626, %v4579, %v4580
    %v4673 = vsel %vm4626, %v4578, %v4579
    %v4674 = vsel %vm4626, %v4577, %v4578
    %v4675 = vsel %vm4626, %v4576, %v4577
    %v4676 = vsel %vm4626, %v4575, %v4576
    %v4677 = vsel %vm4626, %v4574, %v4575
    %v4678 = vsel %vm4626, %v4573, %v4574
    %v4679 = vsel %vm4626, %v4572, %v4573
    %v4680 = vsel %vm4626, %v4571, %v4572
    %v4681 = vsel %vm4626, %v4570, %v4571
    %v4682 = vsel %vm4626, %v4569, %v4570
    %v4683 = vsel %vm4626, %v4568, %v4569
    %v4684 = vsel %vm4626, %v4567, %v4568
    %v4685 = vsel %vm4626, %v4566, %v4567
    %v4686 = vsel %vm4626, %v4565, %v4566
    %v4687 = vsel %vm4626, %v4564, %v4565
    %v4688 = vsel %vm4626, %v4563, %v4564
    %v4689 = vsel %vm4626, %v4562, %v4563
    %v4690 = vsel %vm4626, %v4625, %v4562
    %vm4691 = vmand %vm4306, %vm4434
    %vm4692 = vmand %vm4307, %vm4435
    %vm4693 = vmand %vm4308, %vm4436
    %vm4694 = vmand %vm4309, %vm4437
    %vm4695 = vmand %vm4310, %vm4438
    %vm4696 = vmand %vm4311, %vm4439
    %vm4697 = vmand %vm4312, %vm4440
    %vm4698 = vmand %vm4313, %vm4441
    %vm4699 = vmand %vm4314, %vm4442
    %vm4700 = vmand %vm4315, %vm4443
    %vm4701 = vmand %vm4316, %vm4444
    %vm4702 = vmand %vm4317, %vm4445
    %vm4703 = vmand %vm4318, %vm4446
    %vm4704 = vmand %vm4319, %vm4447
    %vm4705 = vmand %vm4320, %vm4448
    %vm4706 = vmand %vm4321, %vm4449
    %vm4707 = vmand %vm4322, %vm4450
    %vm4708 = vmand %vm4323, %vm4451
    %vm4709 = vmand %vm4324, %vm4452
    %vm4710 = vmand %vm4325, %vm4453
    %vm4711 = vmand %vm4326, %vm4454
    %vm4712 = vmand %vm4327, %vm4455
    %vm4713 = vmand %vm4328, %vm4456
    %vm4714 = vmand %vm4329, %vm4457
    %vm4715 = vmand %vm4330, %vm4458
    %vm4716 = vmand %vm4331, %vm4459
    %vm4717 = vmand %vm4332, %vm4460
    %vm4718 = vmand %vm4333, %vm4461
    %vm4719 = vmand %vm4334, %vm4462
    %vm4720 = vmand %vm4335, %vm4463
    %vm4721 = vmand %vm4336, %vm4464
    %vm4722 = vmand %vm4337, %vm4465
    %vm4723 = vmand %vm4338, %vm4466
    %vm4724 = vmand %vm4339, %vm4467
    %vm4725 = vmand %vm4340, %vm4468
    %vm4726 = vmand %vm4341, %vm4469
    %vm4727 = vmand %vm4342, %vm4470
    %vm4728 = vmand %vm4343, %vm4471
    %vm4729 = vmand %vm4344, %vm4472
    %vm4730 = vmand %vm4345, %vm4473
    %vm4731 = vmand %vm4346, %vm4474
    %vm4732 = vmand %vm4347, %vm4475
    %vm4733 = vmand %vm4348, %vm4476
    %vm4734 = vmand %vm4349, %vm4477
    %vm4735 = vmand %vm4350, %vm4478
    %vm4736 = vmand %vm4351, %vm4479
    %vm4737 = vmand %vm4352, %vm4480
    %vm4738 = vmand %vm4353, %vm4481
    %vm4739 = vmand %vm4354, %vm4482
    %vm4740 = vmand %vm4355, %vm4483
    %vm4741 = vmand %vm4356, %vm4484
    %vm4742 = vmand %vm4357, %vm4485
    %vm4743 = vmand %vm4358, %vm4486
    %vm4744 = vmand %vm4359, %vm4487
    %vm4745 = vmand %vm4360, %vm4488
    %vm4746 = vmand %vm4361, %vm4489
    %vm4747 = vmand %vm4362, %vm4490
    %vm4748 = vmand %vm4363, %vm4491
    %vm4749 = vmand %vm4364, %vm4492
    %vm4750 = vmand %vm4365, %vm4493
    %vm4751 = vmand %vm4366, %vm4494
    %vm4752 = vmand %vm4367, %vm4495
    %vm4753 = vmand %vm4368, %vm4496
    %vm4754 = vmand %vm4369, %vm4497
    %v4755 = vsel %vm4691, 1, 0
    %v4756 = vsel %vm4692, 1, 0
    %v4757 = vsel %vm4693, 1, 0
    %v4758 = vsel %vm4694, 1, 0
    %v4759 = vsel %vm4695, 1, 0
    %v4760 = vsel %vm4696, 1, 0
    %v4761 = vsel %vm4697, 1, 0
    %v4762 = vsel %vm4698, 1, 0
    %v4763 = vsel %vm4699, 1, 0
    %v4764 = vsel %vm4700, 1, 0
    %v4765 = vsel %vm4701, 1, 0
    %v4766 = vsel %vm4702, 1, 0
    %v4767 = vsel %vm4703, 1, 0
    %v4768 = vsel %vm4704, 1, 0
    %v4769 = vsel %vm4705, 1, 0
    %v4770 = vsel %vm4706, 1, 0
    %v4771 = vsel %vm4707, 1, 0
    %v4772 = vsel %vm4708, 1, 0
    %v4773 = vsel %vm4709, 1, 0
    %v4774 = vsel %vm4710, 1, 0
    %v4775 = vsel %vm4711, 1, 0
    %v4776 = vsel %vm4712, 1, 0
    %v4777 = vsel %vm4713, 1, 0
    %v4778 = vsel %vm4714, 1, 0
    %v4779 = vsel %vm4715, 1, 0
    %v4780 = vsel %vm4716, 1, 0
    %v4781 = vsel %vm4717, 1, 0
    %v4782 = vsel %vm4718, 1, 0
    %v4783 = vsel %vm4719, 1, 0
    %v4784 = vsel %vm4720, 1, 0
    %v4785 = vsel %vm4721, 1, 0
    %v4786 = vsel %vm4722, 1, 0
    %v4787 = vsel %vm4723, 1, 0
    %v4788 = vsel %vm4724, 1, 0
    %v4789 = vsel %vm4725, 1, 0
    %v4790 = vsel %vm4726, 1, 0
    %v4791 = vsel %vm4727, 1, 0
    %v4792 = vsel %vm4728, 1, 0
    %v4793 = vsel %vm4729, 1, 0
    %v4794 = vsel %vm4730, 1, 0
    %v4795 = vsel %vm4731, 1, 0
    %v4796 = vsel %vm4732, 1, 0
    %v4797 = vsel %vm4733, 1, 0
    %v4798 = vsel %vm4734, 1, 0
    %v4799 = vsel %vm4735, 1, 0
    %v4800 = vsel %vm4736, 1, 0
    %v4801 = vsel %vm4737, 1, 0
    %v4802 = vsel %vm4738, 1, 0
    %v4803 = vsel %vm4739, 1, 0
    %v4804 = vsel %vm4740, 1, 0
    %v4805 = vsel %vm4741, 1, 0
    %v4806 = vsel %vm4742, 1, 0
    %v4807 = vsel %vm4743, 1, 0
    %v4808 = vsel %vm4744, 1, 0
    %v4809 = vsel %vm4745, 1, 0
    %v4810 = vsel %vm4746, 1, 0
    %v4811 = vsel %vm4747, 1, 0
    %v4812 = vsel %vm4748, 1, 0
    %v4813 = vsel %vm4749, 1, 0
    %v4814 = vsel %vm4750, 1, 0
    %v4815 = vsel %vm4751, 1, 0
    %v4816 = vsel %vm4752, 1, 0
    %v4817 = vsel %vm4753, 1, 0
    %v4818 = vsel %vm4754, 1, 0
    %vm4819 = vcmp.eq.s32.totalorder %v4755, 1
    %vm4820 = vcmp.eq.s32.totalorder %v4756, 1
    %vm4821 = vcmp.eq.s32.totalorder %v4757, 1
    %vm4822 = vcmp.eq.s32.totalorder %v4758, 1
    %vm4823 = vcmp.eq.s32.totalorder %v4759, 1
    %vm4824 = vcmp.eq.s32.totalorder %v4760, 1
    %vm4825 = vcmp.eq.s32.totalorder %v4761, 1
    %vm4826 = vcmp.eq.s32.totalorder %v4762, 1
    %vm4827 = vcmp.eq.s32.totalorder %v4763, 1
    %vm4828 = vcmp.eq.s32.totalorder %v4764, 1
    %vm4829 = vcmp.eq.s32.totalorder %v4765, 1
    %vm4830 = vcmp.eq.s32.totalorder %v4766, 1
    %vm4831 = vcmp.eq.s32.totalorder %v4767, 1
    %vm4832 = vcmp.eq.s32.totalorder %v4768, 1
    %vm4833 = vcmp.eq.s32.totalorder %v4769, 1
    %vm4834 = vcmp.eq.s32.totalorder %v4770, 1
    %vm4835 = vcmp.eq.s32.totalorder %v4771, 1
    %vm4836 = vcmp.eq.s32.totalorder %v4772, 1
    %vm4837 = vcmp.eq.s32.totalorder %v4773, 1
    %vm4838 = vcmp.eq.s32.totalorder %v4774, 1
    %vm4839 = vcmp.eq.s32.totalorder %v4775, 1
    %vm4840 = vcmp.eq.s32.totalorder %v4776, 1
    %vm4841 = vcmp.eq.s32.totalorder %v4777, 1
    %vm4842 = vcmp.eq.s32.totalorder %v4778, 1
    %vm4843 = vcmp.eq.s32.totalorder %v4779, 1
    %vm4844 = vcmp.eq.s32.totalorder %v4780, 1
    %vm4845 = vcmp.eq.s32.totalorder %v4781, 1
    %vm4846 = vcmp.eq.s32.totalorder %v4782, 1
    %vm4847 = vcmp.eq.s32.totalorder %v4783, 1
    %vm4848 = vcmp.eq.s32.totalorder %v4784, 1
    %vm4849 = vcmp.eq.s32.totalorder %v4785, 1
    %vm4850 = vcmp.eq.s32.totalorder %v4786, 1
    %vm4851 = vcmp.eq.s32.totalorder %v4787, 1
    %vm4852 = vcmp.eq.s32.totalorder %v4788, 1
    %vm4853 = vcmp.eq.s32.totalorder %v4789, 1
    %vm4854 = vcmp.eq.s32.totalorder %v4790, 1
    %vm4855 = vcmp.eq.s32.totalorder %v4791, 1
    %vm4856 = vcmp.eq.s32.totalorder %v4792, 1
    %vm4857 = vcmp.eq.s32.totalorder %v4793, 1
    %vm4858 = vcmp.eq.s32.totalorder %v4794, 1
    %vm4859 = vcmp.eq.s32.totalorder %v4795, 1
    %vm4860 = vcmp.eq.s32.totalorder %v4796, 1
    %vm4861 = vcmp.eq.s32.totalorder %v4797, 1
    %vm4862 = vcmp.eq.s32.totalorder %v4798, 1
    %vm4863 = vcmp.eq.s32.totalorder %v4799, 1
    %vm4864 = vcmp.eq.s32.totalorder %v4800, 1
    %vm4865 = vcmp.eq.s32.totalorder %v4801, 1
    %vm4866 = vcmp.eq.s32.totalorder %v4802, 1
    %vm4867 = vcmp.eq.s32.totalorder %v4803, 1
    %vm4868 = vcmp.eq.s32.totalorder %v4804, 1
    %vm4869 = vcmp.eq.s32.totalorder %v4805, 1
    %vm4870 = vcmp.eq.s32.totalorder %v4806, 1
    %vm4871 = vcmp.eq.s32.totalorder %v4807, 1
    %vm4872 = vcmp.eq.s32.totalorder %v4808, 1
    %vm4873 = vcmp.eq.s32.totalorder %v4809, 1
    %vm4874 = vcmp.eq.s32.totalorder %v4810, 1
    %vm4875 = vcmp.eq.s32.totalorder %v4811, 1
    %vm4876 = vcmp.eq.s32.totalorder %v4812, 1
    %vm4877 = vcmp.eq.s32.totalorder %v4813, 1
    %vm4878 = vcmp.eq.s32.totalorder %v4814, 1
    %vm4879 = vcmp.eq.s32.totalorder %v4815, 1
    %vm4880 = vcmp.eq.s32.totalorder %v4816, 1
    %vm4881 = vcmp.eq.s32.totalorder %v4817, 1
    %vm4882 = vcmp.eq.s32.totalorder %v4818, 1
    %v4883 = vsel %vm4819, %v4627, 0.0
    %v4884 = vsel %vm4820, %v4690, 0.0
    %v4885 = vsel %vm4821, %v4689, 0.0
    %v4886 = vsel %vm4822, %v4688, 0.0
    %v4887 = vsel %vm4823, %v4687, 0.0
    %v4888 = vsel %vm4824, %v4686, 0.0
    %v4889 = vsel %vm4825, %v4685, 0.0
    %v4890 = vsel %vm4826, %v4684, 0.0
    %v4891 = vsel %vm4827, %v4683, 0.0
    %v4892 = vsel %vm4828, %v4682, 0.0
    %v4893 = vsel %vm4829, %v4681, 0.0
    %v4894 = vsel %vm4830, %v4680, 0.0
    %v4895 = vsel %vm4831, %v4679, 0.0
    %v4896 = vsel %vm4832, %v4678, 0.0
    %v4897 = vsel %vm4833, %v4677, 0.0
    %v4898 = vsel %vm4834, %v4676, 0.0
    %v4899 = vsel %vm4835, %v4675, 0.0
    %v4900 = vsel %vm4836, %v4674, 0.0
    %v4901 = vsel %vm4837, %v4673, 0.0
    %v4902 = vsel %vm4838, %v4672, 0.0
    %v4903 = vsel %vm4839, %v4671, 0.0
    %v4904 = vsel %vm4840, %v4670, 0.0
    %v4905 = vsel %vm4841, %v4669, 0.0
    %v4906 = vsel %vm4842, %v4668, 0.0
    %v4907 = vsel %vm4843, %v4667, 0.0
    %v4908 = vsel %vm4844, %v4666, 0.0
    %v4909 = vsel %vm4845, %v4665, 0.0
    %v4910 = vsel %vm4846, %v4664, 0.0
    %v4911 = vsel %vm4847, %v4663, 0.0
    %v4912 = vsel %vm4848, %v4662, 0.0
    %v4913 = vsel %vm4849, %v4661, 0.0
    %v4914 = vsel %vm4850, %v4660, 0.0
    %v4915 = vsel %vm4851, %v4659, 0.0
    %v4916 = vsel %vm4852, %v4658, 0.0
    %v4917 = vsel %vm4853, %v4657, 0.0
    %v4918 = vsel %vm4854, %v4656, 0.0
    %v4919 = vsel %vm4855, %v4655, 0.0
    %v4920 = vsel %vm4856, %v4654, 0.0
    %v4921 = vsel %vm4857, %v4653, 0.0
    %v4922 = vsel %vm4858, %v4652, 0.0
    %v4923 = vsel %vm4859, %v4651, 0.0
    %v4924 = vsel %vm4860, %v4650, 0.0
    %v4925 = vsel %vm4861, %v4649, 0.0
    %v4926 = vsel %vm4862, %v4648, 0.0
    %v4927 = vsel %vm4863, %v4647, 0.0
    %v4928 = vsel %vm4864, %v4646, 0.0
    %v4929 = vsel %vm4865, %v4645, 0.0
    %v4930 = vsel %vm4866, %v4644, 0.0
    %v4931 = vsel %vm4867, %v4643, 0.0
    %v4932 = vsel %vm4868, %v4642, 0.0
    %v4933 = vsel %vm4869, %v4641, 0.0
    %v4934 = vsel %vm4870, %v4640, 0.0
    %v4935 = vsel %vm4871, %v4639, 0.0
    %v4936 = vsel %vm4872, %v4638, 0.0
    %v4937 = vsel %vm4873, %v4637, 0.0
    %v4938 = vsel %vm4874, %v4636, 0.0
    %v4939 = vsel %vm4875, %v4635, 0.0
    %v4940 = vsel %vm4876, %v4634, 0.0
    %v4941 = vsel %vm4877, %v4633, 0.0
    %v4942 = vsel %vm4878, %v4632, 0.0
    %v4943 = vsel %vm4879, %v4631, 0.0
    %v4944 = vsel %vm4880, %v4630, 0.0
    %v4945 = vsel %vm4881, %v4629, 0.0
    %v4946 = vsel %vm4882, %v4628, 0.0
    %v4947 = vpack.c.bf16 %v4884, %v4883
    %v4948 = vpack.c.bf16 %v4886, %v4885
    %v4949 = vpack.c.bf16 %v4888, %v4887
    %v4950 = vpack.c.bf16 %v4890, %v4889
    %v4951 = vpack.c.bf16 %v4892, %v4891
    %v4952 = vpack.c.bf16 %v4894, %v4893
    %v4953 = vpack.c.bf16 %v4896, %v4895
    %v4954 = vpack.c.bf16 %v4898, %v4897
    %v4955 = vpack.c.bf16 %v4900, %v4899
    %v4956 = vpack.c.bf16 %v4902, %v4901
    %v4957 = vpack.c.bf16 %v4904, %v4903
    %v4958 = vpack.c.bf16 %v4906, %v4905
    %v4959 = vpack.c.bf16 %v4908, %v4907
    %v4960 = vpack.c.bf16 %v4910, %v4909
    %v4961 = vpack.c.bf16 %v4912, %v4911
    %v4962 = vpack.c.bf16 %v4914, %v4913
    %v4963 = vpack.c.bf16 %v4916, %v4915
    %v4964 = vpack.c.bf16 %v4918, %v4917
    %v4965 = vpack.c.bf16 %v4920, %v4919
    %v4966 = vpack.c.bf16 %v4922, %v4921
    %v4967 = vpack.c.bf16 %v4924, %v4923
    %v4968 = vpack.c.bf16 %v4926, %v4925
    %v4969 = vpack.c.bf16 %v4928, %v4927
    %v4970 = vpack.c.bf16 %v4930, %v4929
    %v4971 = vpack.c.bf16 %v4932, %v4931
    %v4972 = vpack.c.bf16 %v4934, %v4933
    %v4973 = vpack.c.bf16 %v4936, %v4935
    %v4974 = vpack.c.bf16 %v4938, %v4937
    %v4975 = vpack.c.bf16 %v4940, %v4939
    %v4976 = vpack.c.bf16 %v4942, %v4941
    %v4977 = vpack.c.bf16 %v4944, %v4943
    %v4978 = vpack.c.bf16 %v4946, %v4945
    %4979 = vst.msk [vmem:[#allocation3] sm:$0xff] %vm3667, %v4947
    %4980 = vst.msk [vmem:[#allocation3 + $0x28] sm:$0xff] %vm3667, %v4948
    %4981 = vst.msk [vmem:[#allocation3 + $0x50] sm:$0xff] %vm3667, %v4949
    %4982 = vst.msk [vmem:[#allocation3 + $0x78] sm:$0xff] %vm3667, %v4950
    %4983 = vst.msk [vmem:[#allocation3 + $0xa0] sm:$0xff] %vm3667, %v4951
    %4984 = vst.msk [vmem:[#allocation3 + $0xc8] sm:$0xff] %vm3667, %v4952
    %4985 = vst.msk [vmem:[#allocation3 + $0xf0] sm:$0xff] %vm3667, %v4953
    %4986 = vst.msk [vmem:[#allocation3 + $0x118] sm:$0xff] %vm3667, %v4954
    %4987 = vst.msk [vmem:[#allocation3 + $0x140] sm:$0xff] %vm3667, %v4955
    %4988 = vst.msk [vmem:[#allocation3 + $0x168] sm:$0xff] %vm3667, %v4956
    %4989 = vst.msk [vmem:[#allocation3 + $0x190] sm:$0xff] %vm3667, %v4957
    %4990 = vst.msk [vmem:[#allocation3 + $0x1b8] sm:$0xff] %vm3667, %v4958
    %4991 = vst.msk [vmem:[#allocation3 + $0x1e0] sm:$0xff] %vm3667, %v4959
    %4992 = vst.msk [vmem:[#allocation3 + $0x208] sm:$0xff] %vm3667, %v4960
    %4993 = vst.msk [vmem:[#allocation3 + $0x230] sm:$0xff] %vm3667, %v4961
    %4994 = vst.msk [vmem:[#allocation3 + $0x258] sm:$0xff] %vm3667, %v4962
    %4995 = vst.msk [vmem:[#allocation3 + $0x280] sm:$0xff] %vm3667, %v4963
    %4996 = vst.msk [vmem:[#allocation3 + $0x2a8] sm:$0xff] %vm3667, %v4964
    %4997 = vst.msk [vmem:[#allocation3 + $0x2d0] sm:$0xff] %vm3667, %v4965
    %4998 = vst.msk [vmem:[#allocation3 + $0x2f8] sm:$0xff] %vm3667, %v4966
    %4999 = vst.msk [vmem:[#allocation3 + $0x320] sm:$0xff] %vm3667, %v4967
    %5000 = vst.msk [vmem:[#allocation3 + $0x348] sm:$0xff] %vm3667, %v4968
    %5001 = vst.msk [vmem:[#allocation3 + $0x370] sm:$0xff] %vm3667, %v4969
    %5002 = vst.msk [vmem:[#allocation3 + $0x398] sm:$0xff] %vm3667, %v4970
    %5003 = vst.msk [vmem:[#allocation3 + $0x3c0] sm:$0xff] %vm3667, %v4971
    %5004 = vst.msk [vmem:[#allocation3 + $0x3e8] sm:$0xff] %vm3667, %v4972
    %5005 = vst.msk [vmem:[#allocation3 + $0x410] sm:$0xff] %vm3667, %v4973
    %5006 = vst.msk [vmem:[#allocation3 + $0x438] sm:$0xff] %vm3667, %v4974
    %5007 = vst.msk [vmem:[#allocation3 + $0x460] sm:$0xff] %vm3667, %v4975
    %5008 = vst.msk [vmem:[#allocation3 + $0x488] sm:$0xff] %vm3667, %v4976
    %5009 = vst.msk [vmem:[#allocation3 + $0x4b0] sm:$0xff] %vm3667, %v4977
    %5010 = vst.msk [vmem:[#allocation3 + $0x4d8] sm:$0xff] %vm3667, %v4978
    %v5011 = vsel %vm4306, 1, 0
    %v5012 = vsel %vm4307, 1, 0
    %v5013 = vsel %vm4308, 1, 0
    %v5014 = vsel %vm4309, 1, 0
    %v5015 = vsel %vm4310, 1, 0
    %v5016 = vsel %vm4311, 1, 0
    %v5017 = vsel %vm4312, 1, 0
    %v5018 = vsel %vm4313, 1, 0
    %v5019 = vsel %vm4314, 1, 0
    %v5020 = vsel %vm4315, 1, 0
    %v5021 = vsel %vm4316, 1, 0
    %v5022 = vsel %vm4317, 1, 0
    %v5023 = vsel %vm4318, 1, 0
    %v5024 = vsel %vm4319, 1, 0
    %v5025 = vsel %vm4320, 1, 0
    %v5026 = vsel %vm4321, 1, 0
    %v5027 = vsel %vm4322, 1, 0
    %v5028 = vsel %vm4323, 1, 0
    %v5029 = vsel %vm4324, 1, 0
    %v5030 = vsel %vm4325, 1, 0
    %v5031 = vsel %vm4326, 1, 0
    %v5032 = vsel %vm4327, 1, 0
    %v5033 = vsel %vm4328, 1, 0
    %v5034 = vsel %vm4329, 1, 0
    %v5035 = vsel %vm4330, 1, 0
    %v5036 = vsel %vm4331, 1, 0
    %v5037 = vsel %vm4332, 1, 0
    %v5038 = vsel %vm4333, 1, 0
    %v5039 = vsel %vm4334, 1, 0
    %v5040 = vsel %vm4335, 1, 0
    %v5041 = vsel %vm4336, 1, 0
    %v5042 = vsel %vm4337, 1, 0
    %v5043 = vsel %vm4338, 1, 0
    %v5044 = vsel %vm4339, 1, 0
    %v5045 = vsel %vm4340, 1, 0
    %v5046 = vsel %vm4341, 1, 0
    %v5047 = vsel %vm4342, 1, 0
    %v5048 = vsel %vm4343, 1, 0
    %v5049 = vsel %vm4344, 1, 0
    %v5050 = vsel %vm4345, 1, 0
    %v5051 = vsel %vm4346, 1, 0
    %v5052 = vsel %vm4347, 1, 0
    %v5053 = vsel %vm4348, 1, 0
    %v5054 = vsel %vm4349, 1, 0
    %v5055 = vsel %vm4350, 1, 0
    %v5056 = vsel %vm4351, 1, 0
    %v5057 = vsel %vm4352, 1, 0
    %v5058 = vsel %vm4353, 1, 0
    %v5059 = vsel %vm4354, 1, 0
    %v5060 = vsel %vm4355, 1, 0
    %v5061 = vsel %vm4356, 1, 0
    %v5062 = vsel %vm4357, 1, 0
    %v5063 = vsel %vm4358, 1, 0
    %v5064 = vsel %vm4359, 1, 0
    %v5065 = vsel %vm4360, 1, 0
    %v5066 = vsel %vm4361, 1, 0
    %v5067 = vsel %vm4362, 1, 0
    %v5068 = vsel %vm4363, 1, 0
    %v5069 = vsel %vm4364, 1, 0
    %v5070 = vsel %vm4365, 1, 0
    %v5071 = vsel %vm4366, 1, 0
    %v5072 = vsel %vm4367, 1, 0
    %v5073 = vsel %vm4368, 1, 0
    %v5074 = vsel %vm4369, 1, 0
    %vm5075 = vcmp.eq.s32.totalorder %v5011, 1
    %vm5076 = vcmp.eq.s32.totalorder %v5012, 1
    %vm5077 = vcmp.eq.s32.totalorder %v5013, 1
    %vm5078 = vcmp.eq.s32.totalorder %v5014, 1
    %vm5079 = vcmp.eq.s32.totalorder %v5015, 1
    %vm5080 = vcmp.eq.s32.totalorder %v5016, 1
    %vm5081 = vcmp.eq.s32.totalorder %v5017, 1
    %vm5082 = vcmp.eq.s32.totalorder %v5018, 1
    %vm5083 = vcmp.eq.s32.totalorder %v5019, 1
    %vm5084 = vcmp.eq.s32.totalorder %v5020, 1
    %vm5085 = vcmp.eq.s32.totalorder %v5021, 1
    %vm5086 = vcmp.eq.s32.totalorder %v5022, 1
    %vm5087 = vcmp.eq.s32.totalorder %v5023, 1
    %vm5088 = vcmp.eq.s32.totalorder %v5024, 1
    %vm5089 = vcmp.eq.s32.totalorder %v5025, 1
    %vm5090 = vcmp.eq.s32.totalorder %v5026, 1
    %vm5091 = vcmp.eq.s32.totalorder %v5027, 1
    %vm5092 = vcmp.eq.s32.totalorder %v5028, 1
    %vm5093 = vcmp.eq.s32.totalorder %v5029, 1
    %vm5094 = vcmp.eq.s32.totalorder %v5030, 1
    %vm5095 = vcmp.eq.s32.totalorder %v5031, 1
    %vm5096 = vcmp.eq.s32.totalorder %v5032, 1
    %vm5097 = vcmp.eq.s32.totalorder %v5033, 1
    %vm5098 = vcmp.eq.s32.totalorder %v5034, 1
    %vm5099 = vcmp.eq.s32.totalorder %v5035, 1
    %vm5100 = vcmp.eq.s32.totalorder %v5036, 1
    %vm5101 = vcmp.eq.s32.totalorder %v5037, 1
    %vm5102 = vcmp.eq.s32.totalorder %v5038, 1
    %vm5103 = vcmp.eq.s32.totalorder %v5039, 1
    %vm5104 = vcmp.eq.s32.totalorder %v5040, 1
    %vm5105 = vcmp.eq.s32.totalorder %v5041, 1
    %vm5106 = vcmp.eq.s32.totalorder %v5042, 1
    %vm5107 = vcmp.eq.s32.totalorder %v5043, 1
    %vm5108 = vcmp.eq.s32.totalorder %v5044, 1
    %vm5109 = vcmp.eq.s32.totalorder %v5045, 1
    %vm5110 = vcmp.eq.s32.totalorder %v5046, 1
    %vm5111 = vcmp.eq.s32.totalorder %v5047, 1
    %vm5112 = vcmp.eq.s32.totalorder %v5048, 1
    %vm5113 = vcmp.eq.s32.totalorder %v5049, 1
    %vm5114 = vcmp.eq.s32.totalorder %v5050, 1
    %vm5115 = vcmp.eq.s32.totalorder %v5051, 1
    %vm5116 = vcmp.eq.s32.totalorder %v5052, 1
    %vm5117 = vcmp.eq.s32.totalorder %v5053, 1
    %vm5118 = vcmp.eq.s32.totalorder %v5054, 1
    %vm5119 = vcmp.eq.s32.totalorder %v5055, 1
    %vm5120 = vcmp.eq.s32.totalorder %v5056, 1
    %vm5121 = vcmp.eq.s32.totalorder %v5057, 1
    %vm5122 = vcmp.eq.s32.totalorder %v5058, 1
    %vm5123 = vcmp.eq.s32.totalorder %v5059, 1
    %vm5124 = vcmp.eq.s32.totalorder %v5060, 1
    %vm5125 = vcmp.eq.s32.totalorder %v5061, 1
    %vm5126 = vcmp.eq.s32.totalorder %v5062, 1
    %vm5127 = vcmp.eq.s32.totalorder %v5063, 1
    %vm5128 = vcmp.eq.s32.totalorder %v5064, 1
    %vm5129 = vcmp.eq.s32.totalorder %v5065, 1
    %vm5130 = vcmp.eq.s32.totalorder %v5066, 1
    %vm5131 = vcmp.eq.s32.totalorder %v5067, 1
    %vm5132 = vcmp.eq.s32.totalorder %v5068, 1
    %vm5133 = vcmp.eq.s32.totalorder %v5069, 1
    %vm5134 = vcmp.eq.s32.totalorder %v5070, 1
    %vm5135 = vcmp.eq.s32.totalorder %v5071, 1
    %vm5136 = vcmp.eq.s32.totalorder %v5072, 1
    %vm5137 = vcmp.eq.s32.totalorder %v5073, 1
    %vm5138 = vcmp.eq.s32.totalorder %v5074, 1
    %v5139 = vsel %vm5075, %v4050, 0.0
    %v5140 = vsel %vm5076, %v3924, 0.0
    %v5141 = vsel %vm5077, %v3926, 0.0
    %v5142 = vsel %vm5078, %v3928, 0.0
    %v5143 = vsel %vm5079, %v3930, 0.0
    %v5144 = vsel %vm5080, %v3932, 0.0
    %v5145 = vsel %vm5081, %v3934, 0.0
    %v5146 = vsel %vm5082, %v3936, 0.0
    %v5147 = vsel %vm5083, %v3938, 0.0
    %v5148 = vsel %vm5084, %v3940, 0.0
    %v5149 = vsel %vm5085, %v3942, 0.0
    %v5150 = vsel %vm5086, %v3944, 0.0
    %v5151 = vsel %vm5087, %v3946, 0.0
    %v5152 = vsel %vm5088, %v3948, 0.0
    %v5153 = vsel %vm5089, %v3950, 0.0
    %v5154 = vsel %vm5090, %v3952, 0.0
    %v5155 = vsel %vm5091, %v3954, 0.0
    %v5156 = vsel %vm5092, %v3956, 0.0
    %v5157 = vsel %vm5093, %v3958, 0.0
    %v5158 = vsel %vm5094, %v3960, 0.0
    %v5159 = vsel %vm5095, %v3962, 0.0
    %v5160 = vsel %vm5096, %v3964, 0.0
    %v5161 = vsel %vm5097, %v3966, 0.0
    %v5162 = vsel %vm5098, %v3968, 0.0
    %v5163 = vsel %vm5099, %v3970, 0.0
    %v5164 = vsel %vm5100, %v3972, 0.0
    %v5165 = vsel %vm5101, %v3974, 0.0
    %v5166 = vsel %vm5102, %v3976, 0.0
    %v5167 = vsel %vm5103, %v3978, 0.0
    %v5168 = vsel %vm5104, %v3980, 0.0
    %v5169 = vsel %vm5105, %v3982, 0.0
    %v5170 = vsel %vm5106, %v3984, 0.0
    %v5171 = vsel %vm5107, %v3986, 0.0
    %v5172 = vsel %vm5108, %v3988, 0.0
    %v5173 = vsel %vm5109, %v3990, 0.0
    %v5174 = vsel %vm5110, %v3992, 0.0
    %v5175 = vsel %vm5111, %v3994, 0.0
    %v5176 = vsel %vm5112, %v3996, 0.0
    %v5177 = vsel %vm5113, %v3998, 0.0
    %v5178 = vsel %vm5114, %v4000, 0.0
    %v5179 = vsel %vm5115, %v4002, 0.0
    %v5180 = vsel %vm5116, %v4004, 0.0
    %v5181 = vsel %vm5117, %v4006, 0.0
    %v5182 = vsel %vm5118, %v4008, 0.0
    %v5183 = vsel %vm5119, %v4010, 0.0
    %v5184 = vsel %vm5120, %v4012, 0.0
    %v5185 = vsel %vm5121, %v4014, 0.0
    %v5186 = vsel %vm5122, %v4016, 0.0
    %v5187 = vsel %vm5123, %v4018, 0.0
    %v5188 = vsel %vm5124, %v4020, 0.0
    %v5189 = vsel %vm5125, %v4022, 0.0
    %v5190 = vsel %vm5126, %v4024, 0.0
    %v5191 = vsel %vm5127, %v4026, 0.0
    %v5192 = vsel %vm5128, %v4028, 0.0
    %v5193 = vsel %vm5129, %v4030, 0.0
    %v5194 = vsel %vm5130, %v4032, 0.0
    %v5195 = vsel %vm5131, %v4034, 0.0
    %v5196 = vsel %vm5132, %v4036, 0.0
    %v5197 = vsel %vm5133, %v4038, 0.0
    %v5198 = vsel %vm5134, %v4040, 0.0
    %v5199 = vsel %vm5135, %v4042, 0.0
    %v5200 = vsel %vm5136, %v4044, 0.0
    %v5201 = vsel %vm5137, %v4046, 0.0
    %v5202 = vsel %vm5138, %v4048, 0.0
    %v5203 = vpack.c.bf16 %v5140, %v5139
    %v5204 = vpack.c.bf16 %v5142, %v5141
    %v5205 = vpack.c.bf16 %v5144, %v5143
    %v5206 = vpack.c.bf16 %v5146, %v5145
    %v5207 = vpack.c.bf16 %v5148, %v5147
    %v5208 = vpack.c.bf16 %v5150, %v5149
    %v5209 = vpack.c.bf16 %v5152, %v5151
    %v5210 = vpack.c.bf16 %v5154, %v5153
    %v5211 = vpack.c.bf16 %v5156, %v5155
    %v5212 = vpack.c.bf16 %v5158, %v5157
    %v5213 = vpack.c.bf16 %v5160, %v5159
    %v5214 = vpack.c.bf16 %v5162, %v5161
    %v5215 = vpack.c.bf16 %v5164, %v5163
    %v5216 = vpack.c.bf16 %v5166, %v5165
    %v5217 = vpack.c.bf16 %v5168, %v5167
    %v5218 = vpack.c.bf16 %v5170, %v5169
    %v5219 = vpack.c.bf16 %v5172, %v5171
    %v5220 = vpack.c.bf16 %v5174, %v5173
    %v5221 = vpack.c.bf16 %v5176, %v5175
    %v5222 = vpack.c.bf16 %v5178, %v5177
    %v5223 = vpack.c.bf16 %v5180, %v5179
    %v5224 = vpack.c.bf16 %v5182, %v5181
    %v5225 = vpack.c.bf16 %v5184, %v5183
    %v5226 = vpack.c.bf16 %v5186, %v5185
    %v5227 = vpack.c.bf16 %v5188, %v5187
    %v5228 = vpack.c.bf16 %v5190, %v5189
    %v5229 = vpack.c.bf16 %v5192, %v5191
    %v5230 = vpack.c.bf16 %v5194, %v5193
    %v5231 = vpack.c.bf16 %v5196, %v5195
    %v5232 = vpack.c.bf16 %v5198, %v5197
    %v5233 = vpack.c.bf16 %v5200, %v5199
    %v5234 = vpack.c.bf16 %v5202, %v5201
    %5267 = vrot.lane.b32.xlu0 %v5203, 64
    %v5268 = vpop.permute.xlu0 %5267
    %5269 = vrot.lane.b32.xlu0 %v5204, 64
    %v5270 = vpop.permute.xlu0 %5269
    %5271 = vrot.lane.b32.xlu0 %v5205, 64
    %v5272 = vpop.permute.xlu0 %5271
    %5273 = vrot.lane.b32.xlu0 %v5206, 64
    %v5274 = vpop.permute.xlu0 %5273
    %5275 = vrot.lane.b32.xlu0 %v5207, 64
    %v5276 = vpop.permute.xlu0 %5275
    %5277 = vrot.lane.b32.xlu0 %v5208, 64
    %v5278 = vpop.permute.xlu0 %5277
    %5279 = vrot.lane.b32.xlu0 %v5209, 64
    %v5280 = vpop.permute.xlu0 %5279
    %5281 = vrot.lane.b32.xlu0 %v5210, 64
    %v5282 = vpop.permute.xlu0 %5281
    %5283 = vrot.lane.b32.xlu0 %v5211, 64
    %v5284 = vpop.permute.xlu0 %5283
    %5285 = vrot.lane.b32.xlu0 %v5212, 64
    %v5286 = vpop.permute.xlu0 %5285
    %5287 = vrot.lane.b32.xlu0 %v5213, 64
    %v5288 = vpop.permute.xlu0 %5287
    %5289 = vrot.lane.b32.xlu0 %v5214, 64
    %v5290 = vpop.permute.xlu0 %5289
    %5291 = vrot.lane.b32.xlu0 %v5215, 64
    %v5292 = vpop.permute.xlu0 %5291
    %5293 = vrot.lane.b32.xlu0 %v5216, 64
    %v5294 = vpop.permute.xlu0 %5293
    %5295 = vrot.lane.b32.xlu0 %v5217, 64
    %v5296 = vpop.permute.xlu0 %5295
    %5297 = vrot.lane.b32.xlu0 %v5218, 64
    %v5298 = vpop.permute.xlu0 %5297
    %5299 = vrot.lane.b32.xlu0 %v5219, 64
    %v5300 = vpop.permute.xlu0 %5299
    %5301 = vrot.lane.b32.xlu0 %v5220, 64
    %v5302 = vpop.permute.xlu0 %5301
    %5303 = vrot.lane.b32.xlu0 %v5221, 64
    %v5304 = vpop.permute.xlu0 %5303
    %5305 = vrot.lane.b32.xlu0 %v5222, 64
    %v5306 = vpop.permute.xlu0 %5305
    %5307 = vrot.lane.b32.xlu0 %v5223, 64
    %v5308 = vpop.permute.xlu0 %5307
    %5309 = vrot.lane.b32.xlu0 %v5224, 64
    %v5310 = vpop.permute.xlu0 %5309
    %5311 = vrot.lane.b32.xlu0 %v5225, 64
    %v5312 = vpop.permute.xlu0 %5311
    %5313 = vrot.lane.b32.xlu0 %v5226, 64
    %v5314 = vpop.permute.xlu0 %5313
    %5315 = vrot.lane.b32.xlu0 %v5227, 64
    %v5316 = vpop.permute.xlu0 %5315
    %5317 = vrot.lane.b32.xlu0 %v5228, 64
    %v5318 = vpop.permute.xlu0 %5317
    %5319 = vrot.lane.b32.xlu0 %v5229, 64
    %v5320 = vpop.permute.xlu0 %5319
    %5321 = vrot.lane.b32.xlu0 %v5230, 64
    %v5322 = vpop.permute.xlu0 %5321
    %5323 = vrot.lane.b32.xlu0 %v5231, 64
    %v5324 = vpop.permute.xlu0 %5323
    %5325 = vrot.lane.b32.xlu0 %v5232, 64
    %v5326 = vpop.permute.xlu0 %5325
    %5327 = vrot.lane.b32.xlu0 %v5233, 64
    %v5328 = vpop.permute.xlu0 %5327
    %5329 = vrot.lane.b32.xlu0 %v5234, 64
    %v5330 = vpop.permute.xlu0 %5329
    %vm5363 = vcmask 1048064
    %5364 = vst.msk [vmem:[#allocation3] sm:$0xff] %vm5363, %v5268
    %5365 = vst.msk [vmem:[#allocation3 + $0x28] sm:$0xff] %vm5363, %v5270
    %5366 = vst.msk [vmem:[#allocation3 + $0x50] sm:$0xff] %vm5363, %v5272
    %5367 = vst.msk [vmem:[#allocation3 + $0x78] sm:$0xff] %vm5363, %v5274
    %5368 = vst.msk [vmem:[#allocation3 + $0xa0] sm:$0xff] %vm5363, %v5276
    %5369 = vst.msk [vmem:[#allocation3 + $0xc8] sm:$0xff] %vm5363, %v5278
    %5370 = vst.msk [vmem:[#allocation3 + $0xf0] sm:$0xff] %vm5363, %v5280
    %5371 = vst.msk [vmem:[#allocation3 + $0x118] sm:$0xff] %vm5363, %v5282
    %5372 = vst.msk [vmem:[#allocation3 + $0x140] sm:$0xff] %vm5363, %v5284
    %5373 = vst.msk [vmem:[#allocation3 + $0x168] sm:$0xff] %vm5363, %v5286
    %5374 = vst.msk [vmem:[#allocation3 + $0x190] sm:$0xff] %vm5363, %v5288
    %5375 = vst.msk [vmem:[#allocation3 + $0x1b8] sm:$0xff] %vm5363, %v5290
    %5376 = vst.msk [vmem:[#allocation3 + $0x1e0] sm:$0xff] %vm5363, %v5292
    %5377 = vst.msk [vmem:[#allocation3 + $0x208] sm:$0xff] %vm5363, %v5294
    %5378 = vst.msk [vmem:[#allocation3 + $0x230] sm:$0xff] %vm5363, %v5296
    %5379 = vst.msk [vmem:[#allocation3 + $0x258] sm:$0xff] %vm5363, %v5298
    %5380 = vst.msk [vmem:[#allocation3 + $0x280] sm:$0xff] %vm5363, %v5300
    %5381 = vst.msk [vmem:[#allocation3 + $0x2a8] sm:$0xff] %vm5363, %v5302
    %5382 = vst.msk [vmem:[#allocation3 + $0x2d0] sm:$0xff] %vm5363, %v5304
    %5383 = vst.msk [vmem:[#allocation3 + $0x2f8] sm:$0xff] %vm5363, %v5306
    %5384 = vst.msk [vmem:[#allocation3 + $0x320] sm:$0xff] %vm5363, %v5308
    %5385 = vst.msk [vmem:[#allocation3 + $0x348] sm:$0xff] %vm5363, %v5310
    %5386 = vst.msk [vmem:[#allocation3 + $0x370] sm:$0xff] %vm5363, %v5312
    %5387 = vst.msk [vmem:[#allocation3 + $0x398] sm:$0xff] %vm5363, %v5314
    %5388 = vst.msk [vmem:[#allocation3 + $0x3c0] sm:$0xff] %vm5363, %v5316
    %5389 = vst.msk [vmem:[#allocation3 + $0x3e8] sm:$0xff] %vm5363, %v5318
    %5390 = vst.msk [vmem:[#allocation3 + $0x410] sm:$0xff] %vm5363, %v5320
    %5391 = vst.msk [vmem:[#allocation3 + $0x438] sm:$0xff] %vm5363, %v5322
    %5392 = vst.msk [vmem:[#allocation3 + $0x460] sm:$0xff] %vm5363, %v5324
    %5393 = vst.msk [vmem:[#allocation3 + $0x488] sm:$0xff] %vm5363, %v5326
    %5394 = vst.msk [vmem:[#allocation3 + $0x4b0] sm:$0xff] %vm5363, %v5328
    %5395 = vst.msk [vmem:[#allocation3 + $0x4d8] sm:$0xff] %vm5363, %v5330
    %v5396 = vrot.slane %v3924, 1
    %v5397 = vrot.slane %v3926, 1
    %v5398 = vrot.slane %v3928, 1
    %v5399 = vrot.slane %v3930, 1
    %v5400 = vrot.slane %v3932, 1
    %v5401 = vrot.slane %v3934, 1
    %v5402 = vrot.slane %v3936, 1
    %v5403 = vrot.slane %v3938, 1
    %v5404 = vrot.slane %v3940, 1
    %v5405 = vrot.slane %v3942, 1
    %v5406 = vrot.slane %v3944, 1
    %v5407 = vrot.slane %v3946, 1
    %v5408 = vrot.slane %v3948, 1
    %v5409 = vrot.slane %v3950, 1
    %v5410 = vrot.slane %v3952, 1
    %v5411 = vrot.slane %v3954, 1
    %v5412 = vrot.slane %v3956, 1
    %v5413 = vrot.slane %v3958, 1
    %v5414 = vrot.slane %v3960, 1
    %v5415 = vrot.slane %v3962, 1
    %v5416 = vrot.slane %v3964, 1
    %v5417 = vrot.slane %v3966, 1
    %v5418 = vrot.slane %v3968, 1
    %v5419 = vrot.slane %v3970, 1
    %v5420 = vrot.slane %v3972, 1
    %v5421 = vrot.slane %v3974, 1
    %v5422 = vrot.slane %v3976, 1
    %v5423 = vrot.slane %v3978, 1
    %v5424 = vrot.slane %v3980, 1
    %v5425 = vrot.slane %v3982, 1
    %v5426 = vrot.slane %v3984, 1
    %v5427 = vrot.slane %v3986, 1
    %v5428 = vrot.slane %v3988, 1
    %v5429 = vrot.slane %v3990, 1
    %v5430 = vrot.slane %v3992, 1
    %v5431 = vrot.slane %v3994, 1
    %v5432 = vrot.slane %v3996, 1
    %v5433 = vrot.slane %v3998, 1
    %v5434 = vrot.slane %v4000, 1
    %v5435 = vrot.slane %v4002, 1
    %v5436 = vrot.slane %v4004, 1
    %v5437 = vrot.slane %v4006, 1
    %v5438 = vrot.slane %v4008, 1
    %v5439 = vrot.slane %v4010, 1
    %v5440 = vrot.slane %v4012, 1
    %v5441 = vrot.slane %v4014, 1
    %v5442 = vrot.slane %v4016, 1
    %v5443 = vrot.slane %v4018, 1
    %v5444 = vrot.slane %v4020, 1
    %v5445 = vrot.slane %v4022, 1
    %v5446 = vrot.slane %v4024, 1
    %v5447 = vrot.slane %v4026, 1
    %v5448 = vrot.slane %v4028, 1
    %v5449 = vrot.slane %v4030, 1
    %v5450 = vrot.slane %v4032, 1
    %v5451 = vrot.slane %v4034, 1
    %v5452 = vrot.slane %v4036, 1
    %v5453 = vrot.slane %v4038, 1
    %v5454 = vrot.slane %v4040, 1
    %v5455 = vrot.slane %v4042, 1
    %v5456 = vrot.slane %v4044, 1
    %v5457 = vrot.slane %v4046, 1
    %v5458 = vrot.slane %v4048, 1
    %v5459 = vrot.slane %v4050, 1
    %v5460 = vsel %vm2898, %v5458, %v5459
    %v5461 = vsel %vm2898, %v5457, %v5458
    %v5462 = vsel %vm2898, %v5456, %v5457
    %v5463 = vsel %vm2898, %v5455, %v5456
    %v5464 = vsel %vm2898, %v5454, %v5455
    %v5465 = vsel %vm2898, %v5453, %v5454
    %v5466 = vsel %vm2898, %v5452, %v5453
    %v5467 = vsel %vm2898, %v5451, %v5452
    %v5468 = vsel %vm2898, %v5450, %v5451
    %v5469 = vsel %vm2898, %v5449, %v5450
    %v5470 = vsel %vm2898, %v5448, %v5449
    %v5471 = vsel %vm2898, %v5447, %v5448
    %v5472 = vsel %vm2898, %v5446, %v5447
    %v5473 = vsel %vm2898, %v5445, %v5446
    %v5474 = vsel %vm2898, %v5444, %v5445
    %v5475 = vsel %vm2898, %v5443, %v5444
    %v5476 = vsel %vm2898, %v5442, %v5443
    %v5477 = vsel %vm2898, %v5441, %v5442
    %v5478 = vsel %vm2898, %v5440, %v5441
    %v5479 = vsel %vm2898, %v5439, %v5440
    %v5480 = vsel %vm2898, %v5438, %v5439
    %v5481 = vsel %vm2898, %v5437, %v5438
    %v5482 = vsel %vm2898, %v5436, %v5437
    %v5483 = vsel %vm2898, %v5435, %v5436
    %v5484 = vsel %vm2898, %v5434, %v5435
    %v5485 = vsel %vm2898, %v5433, %v5434
    %v5486 = vsel %vm2898, %v5432, %v5433
    %v5487 = vsel %vm2898, %v5431, %v5432
    %v5488 = vsel %vm2898, %v5430, %v5431
    %v5489 = vsel %vm2898, %v5429, %v5430
    %v5490 = vsel %vm2898, %v5428, %v5429
    %v5491 = vsel %vm2898, %v5427, %v5428
    %v5492 = vsel %vm2898, %v5426, %v5427
    %v5493 = vsel %vm2898, %v5425, %v5426
    %v5494 = vsel %vm2898, %v5424, %v5425
    %v5495 = vsel %vm2898, %v5423, %v5424
    %v5496 = vsel %vm2898, %v5422, %v5423
    %v5497 = vsel %vm2898, %v5421, %v5422
    %v5498 = vsel %vm2898, %v5420, %v5421
    %v5499 = vsel %vm2898, %v5419, %v5420
    %v5500 = vsel %vm2898, %v5418, %v5419
    %v5501 = vsel %vm2898, %v5417, %v5418
    %v5502 = vsel %vm2898, %v5416, %v5417
    %v5503 = vsel %vm2898, %v5415, %v5416
    %v5504 = vsel %vm2898, %v5414, %v5415
    %v5505 = vsel %vm2898, %v5413, %v5414
    %v5506 = vsel %vm2898, %v5412, %v5413
    %v5507 = vsel %vm2898, %v5411, %v5412
    %v5508 = vsel %vm2898, %v5410, %v5411
    %v5509 = vsel %vm2898, %v5409, %v5410
    %v5510 = vsel %vm2898, %v5408, %v5409
    %v5511 = vsel %vm2898, %v5407, %v5408
    %v5512 = vsel %vm2898, %v5406, %v5407
    %v5513 = vsel %vm2898, %v5405, %v5406
    %v5514 = vsel %vm2898, %v5404, %v5405
    %v5515 = vsel %vm2898, %v5403, %v5404
    %v5516 = vsel %vm2898, %v5402, %v5403
    %v5517 = vsel %vm2898, %v5401, %v5402
    %v5518 = vsel %vm2898, %v5400, %v5401
    %v5519 = vsel %vm2898, %v5399, %v5400
    %v5520 = vsel %vm2898, %v5398, %v5399
    %v5521 = vsel %vm2898, %v5397, %v5398
    %v5522 = vsel %vm2898, %v5396, %v5397
    %v5523 = vsel %vm2898, %v5459, %v5396
    %vm5524 = vmand %vm4306, %vm4498
    %vm5525 = vmand %vm4307, %vm4499
    %vm5526 = vmand %vm4308, %vm4500
    %vm5527 = vmand %vm4309, %vm4501
    %vm5528 = vmand %vm4310, %vm4502
    %vm5529 = vmand %vm4311, %vm4503
    %vm5530 = vmand %vm4312, %vm4504
    %vm5531 = vmand %vm4313, %vm4505
    %vm5532 = vmand %vm4314, %vm4506
    %vm5533 = vmand %vm4315, %vm4507
    %vm5534 = vmand %vm4316, %vm4508
    %vm5535 = vmand %vm4317, %vm4509
    %vm5536 = vmand %vm4318, %vm4510
    %vm5537 = vmand %vm4319, %vm4511
    %vm5538 = vmand %vm4320, %vm4512
    %vm5539 = vmand %vm4321, %vm4513
    %vm5540 = vmand %vm4322, %vm4514
    %vm5541 = vmand %vm4323, %vm4515
    %vm5542 = vmand %vm4324, %vm4516
    %vm5543 = vmand %vm4325, %vm4517
    %vm5544 = vmand %vm4326, %vm4518
    %vm5545 = vmand %vm4327, %vm4519
    %vm5546 = vmand %vm4328, %vm4520
    %vm5547 = vmand %vm4329, %vm4521
    %vm5548 = vmand %vm4330, %vm4522
    %vm5549 = vmand %vm4331, %vm4523
    %vm5550 = vmand %vm4332, %vm4524
    %vm5551 = vmand %vm4333, %vm4525
    %vm5552 = vmand %vm4334, %vm4526
    %vm5553 = vmand %vm4335, %vm4527
    %vm5554 = vmand %vm4336, %vm4528
    %vm5555 = vmand %vm4337, %vm4529
    %vm5556 = vmand %vm4338, %vm4530
    %vm5557 = vmand %vm4339, %vm4531
    %vm5558 = vmand %vm4340, %vm4532
    %vm5559 = vmand %vm4341, %vm4533
    %vm5560 = vmand %vm4342, %vm4534
    %vm5561 = vmand %vm4343, %vm4535
    %vm5562 = vmand %vm4344, %vm4536
    %vm5563 = vmand %vm4345, %vm4537
    %vm5564 = vmand %vm4346, %vm4538
    %vm5565 = vmand %vm4347, %vm4539
    %vm5566 = vmand %vm4348, %vm4540
    %vm5567 = vmand %vm4349, %vm4541
    %vm5568 = vmand %vm4350, %vm4542
    %vm5569 = vmand %vm4351, %vm4543
    %vm5570 = vmand %vm4352, %vm4544
    %vm5571 = vmand %vm4353, %vm4545
    %vm5572 = vmand %vm4354, %vm4546
    %vm5573 = vmand %vm4355, %vm4547
    %vm5574 = vmand %vm4356, %vm4548
    %vm5575 = vmand %vm4357, %vm4549
    %vm5576 = vmand %vm4358, %vm4550
    %vm5577 = vmand %vm4359, %vm4551
    %vm5578 = vmand %vm4360, %vm4552
    %vm5579 = vmand %vm4361, %vm4553
    %vm5580 = vmand %vm4362, %vm4554
    %vm5581 = vmand %vm4363, %vm4555
    %vm5582 = vmand %vm4364, %vm4556
    %vm5583 = vmand %vm4365, %vm4557
    %vm5584 = vmand %vm4366, %vm4558
    %vm5585 = vmand %vm4367, %vm4559
    %vm5586 = vmand %vm4368, %vm4560
    %vm5587 = vmand %vm4369, %vm4561
    %v5588 = vsel %vm5524, 1, 0
    %v5589 = vsel %vm5525, 1, 0
    %v5590 = vsel %vm5526, 1, 0
    %v5591 = vsel %vm5527, 1, 0
    %v5592 = vsel %vm5528, 1, 0
    %v5593 = vsel %vm5529, 1, 0
    %v5594 = vsel %vm5530, 1, 0
    %v5595 = vsel %vm5531, 1, 0
    %v5596 = vsel %vm5532, 1, 0
    %v5597 = vsel %vm5533, 1, 0
    %v5598 = vsel %vm5534, 1, 0
    %v5599 = vsel %vm5535, 1, 0
    %v5600 = vsel %vm5536, 1, 0
    %v5601 = vsel %vm5537, 1, 0
    %v5602 = vsel %vm5538, 1, 0
    %v5603 = vsel %vm5539, 1, 0
    %v5604 = vsel %vm5540, 1, 0
    %v5605 = vsel %vm5541, 1, 0
    %v5606 = vsel %vm5542, 1, 0
    %v5607 = vsel %vm5543, 1, 0
    %v5608 = vsel %vm5544, 1, 0
    %v5609 = vsel %vm5545, 1, 0
    %v5610 = vsel %vm5546, 1, 0
    %v5611 = vsel %vm5547, 1, 0
    %v5612 = vsel %vm5548, 1, 0
    %v5613 = vsel %vm5549, 1, 0
    %v5614 = vsel %vm5550, 1, 0
    %v5615 = vsel %vm5551, 1, 0
    %v5616 = vsel %vm5552, 1, 0
    %v5617 = vsel %vm5553, 1, 0
    %v5618 = vsel %vm5554, 1, 0
    %v5619 = vsel %vm5555, 1, 0
    %v5620 = vsel %vm5556, 1, 0
    %v5621 = vsel %vm5557, 1, 0
    %v5622 = vsel %vm5558, 1, 0
    %v5623 = vsel %vm5559, 1, 0
    %v5624 = vsel %vm5560, 1, 0
    %v5625 = vsel %vm5561, 1, 0
    %v5626 = vsel %vm5562, 1, 0
    %v5627 = vsel %vm5563, 1, 0
    %v5628 = vsel %vm5564, 1, 0
    %v5629 = vsel %vm5565, 1, 0
    %v5630 = vsel %vm5566, 1, 0
    %v5631 = vsel %vm5567, 1, 0
    %v5632 = vsel %vm5568, 1, 0
    %v5633 = vsel %vm5569, 1, 0
    %v5634 = vsel %vm5570, 1, 0
    %v5635 = vsel %vm5571, 1, 0
    %v5636 = vsel %vm5572, 1, 0
    %v5637 = vsel %vm5573, 1, 0
    %v5638 = vsel %vm5574, 1, 0
    %v5639 = vsel %vm5575, 1, 0
    %v5640 = vsel %vm5576, 1, 0
    %v5641 = vsel %vm5577, 1, 0
    %v5642 = vsel %vm5578, 1, 0
    %v5643 = vsel %vm5579, 1, 0
    %v5644 = vsel %vm5580, 1, 0
    %v5645 = vsel %vm5581, 1, 0
    %v5646 = vsel %vm5582, 1, 0
    %v5647 = vsel %vm5583, 1, 0
    %v5648 = vsel %vm5584, 1, 0
    %v5649 = vsel %vm5585, 1, 0
    %v5650 = vsel %vm5586, 1, 0
    %v5651 = vsel %vm5587, 1, 0
    %vm5652 = vcmp.eq.s32.totalorder %v5588, 1
    %vm5653 = vcmp.eq.s32.totalorder %v5589, 1
    %vm5654 = vcmp.eq.s32.totalorder %v5590, 1
    %vm5655 = vcmp.eq.s32.totalorder %v5591, 1
    %vm5656 = vcmp.eq.s32.totalorder %v5592, 1
    %vm5657 = vcmp.eq.s32.totalorder %v5593, 1
    %vm5658 = vcmp.eq.s32.totalorder %v5594, 1
    %vm5659 = vcmp.eq.s32.totalorder %v5595, 1
    %vm5660 = vcmp.eq.s32.totalorder %v5596, 1
    %vm5661 = vcmp.eq.s32.totalorder %v5597, 1
    %vm5662 = vcmp.eq.s32.totalorder %v5598, 1
    %vm5663 = vcmp.eq.s32.totalorder %v5599, 1
    %vm5664 = vcmp.eq.s32.totalorder %v5600, 1
    %vm5665 = vcmp.eq.s32.totalorder %v5601, 1
    %vm5666 = vcmp.eq.s32.totalorder %v5602, 1
    %vm5667 = vcmp.eq.s32.totalorder %v5603, 1
    %vm5668 = vcmp.eq.s32.totalorder %v5604, 1
    %vm5669 = vcmp.eq.s32.totalorder %v5605, 1
    %vm5670 = vcmp.eq.s32.totalorder %v5606, 1
    %vm5671 = vcmp.eq.s32.totalorder %v5607, 1
    %vm5672 = vcmp.eq.s32.totalorder %v5608, 1
    %vm5673 = vcmp.eq.s32.totalorder %v5609, 1
    %vm5674 = vcmp.eq.s32.totalorder %v5610, 1
    %vm5675 = vcmp.eq.s32.totalorder %v5611, 1
    %vm5676 = vcmp.eq.s32.totalorder %v5612, 1
    %vm5677 = vcmp.eq.s32.totalorder %v5613, 1
    %vm5678 = vcmp.eq.s32.totalorder %v5614, 1
    %vm5679 = vcmp.eq.s32.totalorder %v5615, 1
    %vm5680 = vcmp.eq.s32.totalorder %v5616, 1
    %vm5681 = vcmp.eq.s32.totalorder %v5617, 1
    %vm5682 = vcmp.eq.s32.totalorder %v5618, 1
    %vm5683 = vcmp.eq.s32.totalorder %v5619, 1
    %vm5684 = vcmp.eq.s32.totalorder %v5620, 1
    %vm5685 = vcmp.eq.s32.totalorder %v5621, 1
    %vm5686 = vcmp.eq.s32.totalorder %v5622, 1
    %vm5687 = vcmp.eq.s32.totalorder %v5623, 1
    %vm5688 = vcmp.eq.s32.totalorder %v5624, 1
    %vm5689 = vcmp.eq.s32.totalorder %v5625, 1
    %vm5690 = vcmp.eq.s32.totalorder %v5626, 1
    %vm5691 = vcmp.eq.s32.totalorder %v5627, 1
    %vm5692 = vcmp.eq.s32.totalorder %v5628, 1
    %vm5693 = vcmp.eq.s32.totalorder %v5629, 1
    %vm5694 = vcmp.eq.s32.totalorder %v5630, 1
    %vm5695 = vcmp.eq.s32.totalorder %v5631, 1
    %vm5696 = vcmp.eq.s32.totalorder %v5632, 1
    %vm5697 = vcmp.eq.s32.totalorder %v5633, 1
    %vm5698 = vcmp.eq.s32.totalorder %v5634, 1
    %vm5699 = vcmp.eq.s32.totalorder %v5635, 1
    %vm5700 = vcmp.eq.s32.totalorder %v5636, 1
    %vm5701 = vcmp.eq.s32.totalorder %v5637, 1
    %vm5702 = vcmp.eq.s32.totalorder %v5638, 1
    %vm5703 = vcmp.eq.s32.totalorder %v5639, 1
    %vm5704 = vcmp.eq.s32.totalorder %v5640, 1
    %vm5705 = vcmp.eq.s32.totalorder %v5641, 1
    %vm5706 = vcmp.eq.s32.totalorder %v5642, 1
    %vm5707 = vcmp.eq.s32.totalorder %v5643, 1
    %vm5708 = vcmp.eq.s32.totalorder %v5644, 1
    %vm5709 = vcmp.eq.s32.totalorder %v5645, 1
    %vm5710 = vcmp.eq.s32.totalorder %v5646, 1
    %vm5711 = vcmp.eq.s32.totalorder %v5647, 1
    %vm5712 = vcmp.eq.s32.totalorder %v5648, 1
    %vm5713 = vcmp.eq.s32.totalorder %v5649, 1
    %vm5714 = vcmp.eq.s32.totalorder %v5650, 1
    %vm5715 = vcmp.eq.s32.totalorder %v5651, 1
    %v5716 = vsel %vm5652, %v5523, 0.0
    %v5717 = vsel %vm5653, %v5522, 0.0
    %v5718 = vsel %vm5654, %v5521, 0.0
    %v5719 = vsel %vm5655, %v5520, 0.0
    %v5720 = vsel %vm5656, %v5519, 0.0
    %v5721 = vsel %vm5657, %v5518, 0.0
    %v5722 = vsel %vm5658, %v5517, 0.0
    %v5723 = vsel %vm5659, %v5516, 0.0
    %v5724 = vsel %vm5660, %v5515, 0.0
    %v5725 = vsel %vm5661, %v5514, 0.0
    %v5726 = vsel %vm5662, %v5513, 0.0
    %v5727 = vsel %vm5663, %v5512, 0.0
    %v5728 = vsel %vm5664, %v5511, 0.0
    %v5729 = vsel %vm5665, %v5510, 0.0
    %v5730 = vsel %vm5666, %v5509, 0.0
    %v5731 = vsel %vm5667, %v5508, 0.0
    %v5732 = vsel %vm5668, %v5507, 0.0
    %v5733 = vsel %vm5669, %v5506, 0.0
    %v5734 = vsel %vm5670, %v5505, 0.0
    %v5735 = vsel %vm5671, %v5504, 0.0
    %v5736 = vsel %vm5672, %v5503, 0.0
    %v5737 = vsel %vm5673, %v5502, 0.0
    %v5738 = vsel %vm5674, %v5501, 0.0
    %v5739 = vsel %vm5675, %v5500, 0.0
    %v5740 = vsel %vm5676, %v5499, 0.0
    %v5741 = vsel %vm5677, %v5498, 0.0
    %v5742 = vsel %vm5678, %v5497, 0.0
    %v5743 = vsel %vm5679, %v5496, 0.0
    %v5744 = vsel %vm5680, %v5495, 0.0
    %v5745 = vsel %vm5681, %v5494, 0.0
    %v5746 = vsel %vm5682, %v5493, 0.0
    %v5747 = vsel %vm5683, %v5492, 0.0
    %v5748 = vsel %vm5684, %v5491, 0.0
    %v5749 = vsel %vm5685, %v5490, 0.0
    %v5750 = vsel %vm5686, %v5489, 0.0
    %v5751 = vsel %vm5687, %v5488, 0.0
    %v5752 = vsel %vm5688, %v5487, 0.0
    %v5753 = vsel %vm5689, %v5486, 0.0
    %v5754 = vsel %vm5690, %v5485, 0.0
    %v5755 = vsel %vm5691, %v5484, 0.0
    %v5756 = vsel %vm5692, %v5483, 0.0
    %v5757 = vsel %vm5693, %v5482, 0.0
    %v5758 = vsel %vm5694, %v5481, 0.0
    %v5759 = vsel %vm5695, %v5480, 0.0
    %v5760 = vsel %vm5696, %v5479, 0.0
    %v5761 = vsel %vm5697, %v5478, 0.0
    %v5762 = vsel %vm5698, %v5477, 0.0
    %v5763 = vsel %vm5699, %v5476, 0.0
    %v5764 = vsel %vm5700, %v5475, 0.0
    %v5765 = vsel %vm5701, %v5474, 0.0
    %v5766 = vsel %vm5702, %v5473, 0.0
    %v5767 = vsel %vm5703, %v5472, 0.0
    %v5768 = vsel %vm5704, %v5471, 0.0
    %v5769 = vsel %vm5705, %v5470, 0.0
    %v5770 = vsel %vm5706, %v5469, 0.0
    %v5771 = vsel %vm5707, %v5468, 0.0
    %v5772 = vsel %vm5708, %v5467, 0.0
    %v5773 = vsel %vm5709, %v5466, 0.0
    %v5774 = vsel %vm5710, %v5465, 0.0
    %v5775 = vsel %vm5711, %v5464, 0.0
    %v5776 = vsel %vm5712, %v5463, 0.0
    %v5777 = vsel %vm5713, %v5462, 0.0
    %v5778 = vsel %vm5714, %v5461, 0.0
    %v5779 = vsel %vm5715, %v5460, 0.0
    %v5780 = vpack.c.bf16 %v5717, %v5716
    %v5781 = vpack.c.bf16 %v5719, %v5718
    %v5782 = vpack.c.bf16 %v5721, %v5720
    %v5783 = vpack.c.bf16 %v5723, %v5722
    %v5784 = vpack.c.bf16 %v5725, %v5724
    %v5785 = vpack.c.bf16 %v5727, %v5726
    %v5786 = vpack.c.bf16 %v5729, %v5728
    %v5787 = vpack.c.bf16 %v5731, %v5730
    %v5788 = vpack.c.bf16 %v5733, %v5732
    %v5789 = vpack.c.bf16 %v5735, %v5734
    %v5790 = vpack.c.bf16 %v5737, %v5736
    %v5791 = vpack.c.bf16 %v5739, %v5738
    %v5792 = vpack.c.bf16 %v5741, %v5740
    %v5793 = vpack.c.bf16 %v5743, %v5742
    %v5794 = vpack.c.bf16 %v5745, %v5744
    %v5795 = vpack.c.bf16 %v5747, %v5746
    %v5796 = vpack.c.bf16 %v5749, %v5748
    %v5797 = vpack.c.bf16 %v5751, %v5750
    %v5798 = vpack.c.bf16 %v5753, %v5752
    %v5799 = vpack.c.bf16 %v5755, %v5754
    %v5800 = vpack.c.bf16 %v5757, %v5756
    %v5801 = vpack.c.bf16 %v5759, %v5758
    %v5802 = vpack.c.bf16 %v5761, %v5760
    %v5803 = vpack.c.bf16 %v5763, %v5762
    %v5804 = vpack.c.bf16 %v5765, %v5764
    %v5805 = vpack.c.bf16 %v5767, %v5766
    %v5806 = vpack.c.bf16 %v5769, %v5768
    %v5807 = vpack.c.bf16 %v5771, %v5770
    %v5808 = vpack.c.bf16 %v5773, %v5772
    %v5809 = vpack.c.bf16 %v5775, %v5774
    %v5810 = vpack.c.bf16 %v5777, %v5776
    %v5811 = vpack.c.bf16 %v5779, %v5778
    %5812 = vst.msk [vmem:[#allocation3 + $0x8] sm:$0xff] %vm3667, %v5780
    %5813 = vst.msk [vmem:[#allocation3 + $0x30] sm:$0xff] %vm3667, %v5781
    %5814 = vst.msk [vmem:[#allocation3 + $0x58] sm:$0xff] %vm3667, %v5782
    %5815 = vst.msk [vmem:[#allocation3 + $0x80] sm:$0xff] %vm3667, %v5783
    %5816 = vst.msk [vmem:[#allocation3 + $0xa8] sm:$0xff] %vm3667, %v5784
    %5817 = vst.msk [vmem:[#allocation3 + $0xd0] sm:$0xff] %vm3667, %v5785
    %5818 = vst.msk [vmem:[#allocation3 + $0xf8] sm:$0xff] %vm3667, %v5786
    %5819 = vst.msk [vmem:[#allocation3 + $0x120] sm:$0xff] %vm3667, %v5787
    %5820 = vst.msk [vmem:[#allocation3 + $0x148] sm:$0xff] %vm3667, %v5788
    %5821 = vst.msk [vmem:[#allocation3 + $0x170] sm:$0xff] %vm3667, %v5789
    %5822 = vst.msk [vmem:[#allocation3 + $0x198] sm:$0xff] %vm3667, %v5790
    %5823 = vst.msk [vmem:[#allocation3 + $0x1c0] sm:$0xff] %vm3667, %v5791
    %5824 = vst.msk [vmem:[#allocation3 + $0x1e8] sm:$0xff] %vm3667, %v5792
    %5825 = vst.msk [vmem:[#allocation3 + $0x210] sm:$0xff] %vm3667, %v5793
    %5826 = vst.msk [vmem:[#allocation3 + $0x238] sm:$0xff] %vm3667, %v5794
    %5827 = vst.msk [vmem:[#allocation3 + $0x260] sm:$0xff] %vm3667, %v5795
    %5828 = vst.msk [vmem:[#allocation3 + $0x288] sm:$0xff] %vm3667, %v5796
    %5829 = vst.msk [vmem:[#allocation3 + $0x2b0] sm:$0xff] %vm3667, %v5797
    %5830 = vst.msk [vmem:[#allocation3 + $0x2d8] sm:$0xff] %vm3667, %v5798
    %5831 = vst.msk [vmem:[#allocation3 + $0x300] sm:$0xff] %vm3667, %v5799
    %5832 = vst.msk [vmem:[#allocation3 + $0x328] sm:$0xff] %vm3667, %v5800
    %5833 = vst.msk [vmem:[#allocation3 + $0x350] sm:$0xff] %vm3667, %v5801
    %5834 = vst.msk [vmem:[#allocation3 + $0x378] sm:$0xff] %vm3667, %v5802
    %5835 = vst.msk [vmem:[#allocation3 + $0x3a0] sm:$0xff] %vm3667, %v5803
    %5836 = vst.msk [vmem:[#allocation3 + $0x3c8] sm:$0xff] %vm3667, %v5804
    %5837 = vst.msk [vmem:[#allocation3 + $0x3f0] sm:$0xff] %vm3667, %v5805
    %5838 = vst.msk [vmem:[#allocation3 + $0x418] sm:$0xff] %vm3667, %v5806
    %5839 = vst.msk [vmem:[#allocation3 + $0x440] sm:$0xff] %vm3667, %v5807
    %5840 = vst.msk [vmem:[#allocation3 + $0x468] sm:$0xff] %vm3667, %v5808
    %5841 = vst.msk [vmem:[#allocation3 + $0x490] sm:$0xff] %vm3667, %v5809
    %5842 = vst.msk [vmem:[#allocation3 + $0x4b8] sm:$0xff] %vm3667, %v5810
    %5843 = vst.msk [vmem:[#allocation3 + $0x4e0] sm:$0xff] %vm3667, %v5811
    %v5844 = vsel %vm4434, 1, 0
    %v5845 = vsel %vm4435, 1, 0
    %v5846 = vsel %vm4436, 1, 0
    %v5847 = vsel %vm4437, 1, 0
    %v5848 = vsel %vm4438, 1, 0
    %v5849 = vsel %vm4439, 1, 0
    %v5850 = vsel %vm4440, 1, 0
    %v5851 = vsel %vm4441, 1, 0
    %v5852 = vsel %vm4442, 1, 0
    %v5853 = vsel %vm4443, 1, 0
    %v5854 = vsel %vm4444, 1, 0
    %v5855 = vsel %vm4445, 1, 0
    %v5856 = vsel %vm4446, 1, 0
    %v5857 = vsel %vm4447, 1, 0
    %v5858 = vsel %vm4448, 1, 0
    %v5859 = vsel %vm4449, 1, 0
    %v5860 = vsel %vm4450, 1, 0
    %v5861 = vsel %vm4451, 1, 0
    %v5862 = vsel %vm4452, 1, 0
    %v5863 = vsel %vm4453, 1, 0
    %v5864 = vsel %vm4454, 1, 0
    %v5865 = vsel %vm4455, 1, 0
    %v5866 = vsel %vm4456, 1, 0
    %v5867 = vsel %vm4457, 1, 0
    %v5868 = vsel %vm4458, 1, 0
    %v5869 = vsel %vm4459, 1, 0
    %v5870 = vsel %vm4460, 1, 0
    %v5871 = vsel %vm4461, 1, 0
    %v5872 = vsel %vm4462, 1, 0
    %v5873 = vsel %vm4463, 1, 0
    %v5874 = vsel %vm4464, 1, 0
    %v5875 = vsel %vm4465, 1, 0
    %v5876 = vsel %vm4466, 1, 0
    %v5877 = vsel %vm4467, 1, 0
    %v5878 = vsel %vm4468, 1, 0
    %v5879 = vsel %vm4469, 1, 0
    %v5880 = vsel %vm4470, 1, 0
    %v5881 = vsel %vm4471, 1, 0
    %v5882 = vsel %vm4472, 1, 0
    %v5883 = vsel %vm4473, 1, 0
    %v5884 = vsel %vm4474, 1, 0
    %v5885 = vsel %vm4475, 1, 0
    %v5886 = vsel %vm4476, 1, 0
    %v5887 = vsel %vm4477, 1, 0
    %v5888 = vsel %vm4478, 1, 0
    %v5889 = vsel %vm4479, 1, 0
    %v5890 = vsel %vm4480, 1, 0
    %v5891 = vsel %vm4481, 1, 0
    %v5892 = vsel %vm4482, 1, 0
    %v5893 = vsel %vm4483, 1, 0
    %v5894 = vsel %vm4484, 1, 0
    %v5895 = vsel %vm4485, 1, 0
    %v5896 = vsel %vm4486, 1, 0
    %v5897 = vsel %vm4487, 1, 0
    %v5898 = vsel %vm4488, 1, 0
    %v5899 = vsel %vm4489, 1, 0
    %v5900 = vsel %vm4490, 1, 0
    %v5901 = vsel %vm4491, 1, 0
    %v5902 = vsel %vm4492, 1, 0
    %v5903 = vsel %vm4493, 1, 0
    %v5904 = vsel %vm4494, 1, 0
    %v5905 = vsel %vm4495, 1, 0
    %v5906 = vsel %vm4496, 1, 0
    %v5907 = vsel %vm4497, 1, 0
    %vm5908 = vcmp.eq.s32.totalorder %v5844, 1
    %vm5909 = vcmp.eq.s32.totalorder %v5845, 1
    %vm5910 = vcmp.eq.s32.totalorder %v5846, 1
    %vm5911 = vcmp.eq.s32.totalorder %v5847, 1
    %vm5912 = vcmp.eq.s32.totalorder %v5848, 1
    %vm5913 = vcmp.eq.s32.totalorder %v5849, 1
    %vm5914 = vcmp.eq.s32.totalorder %v5850, 1
    %vm5915 = vcmp.eq.s32.totalorder %v5851, 1
    %vm5916 = vcmp.eq.s32.totalorder %v5852, 1
    %vm5917 = vcmp.eq.s32.totalorder %v5853, 1
    %vm5918 = vcmp.eq.s32.totalorder %v5854, 1
    %vm5919 = vcmp.eq.s32.totalorder %v5855, 1
    %vm5920 = vcmp.eq.s32.totalorder %v5856, 1
    %vm5921 = vcmp.eq.s32.totalorder %v5857, 1
    %vm5922 = vcmp.eq.s32.totalorder %v5858, 1
    %vm5923 = vcmp.eq.s32.totalorder %v5859, 1
    %vm5924 = vcmp.eq.s32.totalorder %v5860, 1
    %vm5925 = vcmp.eq.s32.totalorder %v5861, 1
    %vm5926 = vcmp.eq.s32.totalorder %v5862, 1
    %vm5927 = vcmp.eq.s32.totalorder %v5863, 1
    %vm5928 = vcmp.eq.s32.totalorder %v5864, 1
    %vm5929 = vcmp.eq.s32.totalorder %v5865, 1
    %vm5930 = vcmp.eq.s32.totalorder %v5866, 1
    %vm5931 = vcmp.eq.s32.totalorder %v5867, 1
    %vm5932 = vcmp.eq.s32.totalorder %v5868, 1
    %vm5933 = vcmp.eq.s32.totalorder %v5869, 1
    %vm5934 = vcmp.eq.s32.totalorder %v5870, 1
    %vm5935 = vcmp.eq.s32.totalorder %v5871, 1
    %vm5936 = vcmp.eq.s32.totalorder %v5872, 1
    %vm5937 = vcmp.eq.s32.totalorder %v5873, 1
    %vm5938 = vcmp.eq.s32.totalorder %v5874, 1
    %vm5939 = vcmp.eq.s32.totalorder %v5875, 1
    %vm5940 = vcmp.eq.s32.totalorder %v5876, 1
    %vm5941 = vcmp.eq.s32.totalorder %v5877, 1
    %vm5942 = vcmp.eq.s32.totalorder %v5878, 1
    %vm5943 = vcmp.eq.s32.totalorder %v5879, 1
    %vm5944 = vcmp.eq.s32.totalorder %v5880, 1
    %vm5945 = vcmp.eq.s32.totalorder %v5881, 1
    %vm5946 = vcmp.eq.s32.totalorder %v5882, 1
    %vm5947 = vcmp.eq.s32.totalorder %v5883, 1
    %vm5948 = vcmp.eq.s32.totalorder %v5884, 1
    %vm5949 = vcmp.eq.s32.totalorder %v5885, 1
    %vm5950 = vcmp.eq.s32.totalorder %v5886, 1
    %vm5951 = vcmp.eq.s32.totalorder %v5887, 1
    %vm5952 = vcmp.eq.s32.totalorder %v5888, 1
    %vm5953 = vcmp.eq.s32.totalorder %v5889, 1
    %vm5954 = vcmp.eq.s32.totalorder %v5890, 1
    %vm5955 = vcmp.eq.s32.totalorder %v5891, 1
    %vm5956 = vcmp.eq.s32.totalorder %v5892, 1
    %vm5957 = vcmp.eq.s32.totalorder %v5893, 1
    %vm5958 = vcmp.eq.s32.totalorder %v5894, 1
    %vm5959 = vcmp.eq.s32.totalorder %v5895, 1
    %vm5960 = vcmp.eq.s32.totalorder %v5896, 1
    %vm5961 = vcmp.eq.s32.totalorder %v5897, 1
    %vm5962 = vcmp.eq.s32.totalorder %v5898, 1
    %vm5963 = vcmp.eq.s32.totalorder %v5899, 1
    %vm5964 = vcmp.eq.s32.totalorder %v5900, 1
    %vm5965 = vcmp.eq.s32.totalorder %v5901, 1
    %vm5966 = vcmp.eq.s32.totalorder %v5902, 1
    %vm5967 = vcmp.eq.s32.totalorder %v5903, 1
    %vm5968 = vcmp.eq.s32.totalorder %v5904, 1
    %vm5969 = vcmp.eq.s32.totalorder %v5905, 1
    %vm5970 = vcmp.eq.s32.totalorder %v5906, 1
    %vm5971 = vcmp.eq.s32.totalorder %v5907, 1
    %v5972 = vsel %vm5908, %v4690, 0.0
    %v5973 = vsel %vm5909, %v4689, 0.0
    %v5974 = vsel %vm5910, %v4688, 0.0
    %v5975 = vsel %vm5911, %v4687, 0.0
    %v5976 = vsel %vm5912, %v4686, 0.0
    %v5977 = vsel %vm5913, %v4685, 0.0
    %v5978 = vsel %vm5914, %v4684, 0.0
    %v5979 = vsel %vm5915, %v4683, 0.0
    %v5980 = vsel %vm5916, %v4682, 0.0
    %v5981 = vsel %vm5917, %v4681, 0.0
    %v5982 = vsel %vm5918, %v4680, 0.0
    %v5983 = vsel %vm5919, %v4679, 0.0
    %v5984 = vsel %vm5920, %v4678, 0.0
    %v5985 = vsel %vm5921, %v4677, 0.0
    %v5986 = vsel %vm5922, %v4676, 0.0
    %v5987 = vsel %vm5923, %v4675, 0.0
    %v5988 = vsel %vm5924, %v4674, 0.0
    %v5989 = vsel %vm5925, %v4673, 0.0
    %v5990 = vsel %vm5926, %v4672, 0.0
    %v5991 = vsel %vm5927, %v4671, 0.0
    %v5992 = vsel %vm5928, %v4670, 0.0
    %v5993 = vsel %vm5929, %v4669, 0.0
    %v5994 = vsel %vm5930, %v4668, 0.0
    %v5995 = vsel %vm5931, %v4667, 0.0
    %v5996 = vsel %vm5932, %v4666, 0.0
    %v5997 = vsel %vm5933, %v4665, 0.0
    %v5998 = vsel %vm5934, %v4664, 0.0
    %v5999 = vsel %vm5935, %v4663, 0.0
    %v6000 = vsel %vm5936, %v4662, 0.0
    %v6001 = vsel %vm5937, %v4661, 0.0
    %v6002 = vsel %vm5938, %v4660, 0.0
    %v6003 = vsel %vm5939, %v4659, 0.0
    %v6004 = vsel %vm5940, %v4658, 0.0
    %v6005 = vsel %vm5941, %v4657, 0.0
    %v6006 = vsel %vm5942, %v4656, 0.0
    %v6007 = vsel %vm5943, %v4655, 0.0
    %v6008 = vsel %vm5944, %v4654, 0.0
    %v6009 = vsel %vm5945, %v4653, 0.0
    %v6010 = vsel %vm5946, %v4652, 0.0
    %v6011 = vsel %vm5947, %v4651, 0.0
    %v6012 = vsel %vm5948, %v4650, 0.0
    %v6013 = vsel %vm5949, %v4649, 0.0
    %v6014 = vsel %vm5950, %v4648, 0.0
    %v6015 = vsel %vm5951, %v4647, 0.0
    %v6016 = vsel %vm5952, %v4646, 0.0
    %v6017 = vsel %vm5953, %v4645, 0.0
    %v6018 = vsel %vm5954, %v4644, 0.0
    %v6019 = vsel %vm5955, %v4643, 0.0
    %v6020 = vsel %vm5956, %v4642, 0.0
    %v6021 = vsel %vm5957, %v4641, 0.0
    %v6022 = vsel %vm5958, %v4640, 0.0
    %v6023 = vsel %vm5959, %v4639, 0.0
    %v6024 = vsel %vm5960, %v4638, 0.0
    %v6025 = vsel %vm5961, %v4637, 0.0
    %v6026 = vsel %vm5962, %v4636, 0.0
    %v6027 = vsel %vm5963, %v4635, 0.0
    %v6028 = vsel %vm5964, %v4634, 0.0
    %v6029 = vsel %vm5965, %v4633, 0.0
    %v6030 = vsel %vm5966, %v4632, 0.0
    %v6031 = vsel %vm5967, %v4631, 0.0
    %v6032 = vsel %vm5968, %v4630, 0.0
    %v6033 = vsel %vm5969, %v4629, 0.0
    %v6034 = vsel %vm5970, %v4628, 0.0
    %v6035 = vsel %vm5971, %v4627, 0.0
    %v6036 = vpack.c.bf16 %v5973, %v5972
    %v6037 = vpack.c.bf16 %v5975, %v5974
    %v6038 = vpack.c.bf16 %v5977, %v5976
    %v6039 = vpack.c.bf16 %v5979, %v5978
    %v6040 = vpack.c.bf16 %v5981, %v5980
    %v6041 = vpack.c.bf16 %v5983, %v5982
    %v6042 = vpack.c.bf16 %v5985, %v5984
    %v6043 = vpack.c.bf16 %v5987, %v5986
    %v6044 = vpack.c.bf16 %v5989, %v5988
    %v6045 = vpack.c.bf16 %v5991, %v5990
    %v6046 = vpack.c.bf16 %v5993, %v5992
    %v6047 = vpack.c.bf16 %v5995, %v5994
    %v6048 = vpack.c.bf16 %v5997, %v5996
    %v6049 = vpack.c.bf16 %v5999, %v5998
    %v6050 = vpack.c.bf16 %v6001, %v6000
    %v6051 = vpack.c.bf16 %v6003, %v6002
    %v6052 = vpack.c.bf16 %v6005, %v6004
    %v6053 = vpack.c.bf16 %v6007, %v6006
    %v6054 = vpack.c.bf16 %v6009, %v6008
    %v6055 = vpack.c.bf16 %v6011, %v6010
    %v6056 = vpack.c.bf16 %v6013, %v6012
    %v6057 = vpack.c.bf16 %v6015, %v6014
    %v6058 = vpack.c.bf16 %v6017, %v6016
    %v6059 = vpack.c.bf16 %v6019, %v6018
    %v6060 = vpack.c.bf16 %v6021, %v6020
    %v6061 = vpack.c.bf16 %v6023, %v6022
    %v6062 = vpack.c.bf16 %v6025, %v6024
    %v6063 = vpack.c.bf16 %v6027, %v6026
    %v6064 = vpack.c.bf16 %v6029, %v6028
    %v6065 = vpack.c.bf16 %v6031, %v6030
    %v6066 = vpack.c.bf16 %v6033, %v6032
    %v6067 = vpack.c.bf16 %v6035, %v6034
    %6100 = vrot.lane.b32.xlu0 %v6036, 64
    %v6101 = vpop.permute.xlu0 %6100
    %6102 = vrot.lane.b32.xlu0 %v6037, 64
    %v6103 = vpop.permute.xlu0 %6102
    %6104 = vrot.lane.b32.xlu0 %v6038, 64
    %v6105 = vpop.permute.xlu0 %6104
    %6106 = vrot.lane.b32.xlu0 %v6039, 64
    %v6107 = vpop.permute.xlu0 %6106
    %6108 = vrot.lane.b32.xlu0 %v6040, 64
    %v6109 = vpop.permute.xlu0 %6108
    %6110 = vrot.lane.b32.xlu0 %v6041, 64
    %v6111 = vpop.permute.xlu0 %6110
    %6112 = vrot.lane.b32.xlu0 %v6042, 64
    %v6113 = vpop.permute.xlu0 %6112
    %6114 = vrot.lane.b32.xlu0 %v6043, 64
    %v6115 = vpop.permute.xlu0 %6114
    %6116 = vrot.lane.b32.xlu0 %v6044, 64
    %v6117 = vpop.permute.xlu0 %6116
    %6118 = vrot.lane.b32.xlu0 %v6045, 64
    %v6119 = vpop.permute.xlu0 %6118
    %6120 = vrot.lane.b32.xlu0 %v6046, 64
    %v6121 = vpop.permute.xlu0 %6120
    %6122 = vrot.lane.b32.xlu0 %v6047, 64
    %v6123 = vpop.permute.xlu0 %6122
    %6124 = vrot.lane.b32.xlu0 %v6048, 64
    %v6125 = vpop.permute.xlu0 %6124
    %6126 = vrot.lane.b32.xlu0 %v6049, 64
    %v6127 = vpop.permute.xlu0 %6126
    %6128 = vrot.lane.b32.xlu0 %v6050, 64
    %v6129 = vpop.permute.xlu0 %6128
    %6130 = vrot.lane.b32.xlu0 %v6051, 64
    %v6131 = vpop.permute.xlu0 %6130
    %6132 = vrot.lane.b32.xlu0 %v6052, 64
    %v6133 = vpop.permute.xlu0 %6132
    %6134 = vrot.lane.b32.xlu0 %v6053, 64
    %v6135 = vpop.permute.xlu0 %6134
    %6136 = vrot.lane.b32.xlu0 %v6054, 64
    %v6137 = vpop.permute.xlu0 %6136
    %6138 = vrot.lane.b32.xlu0 %v6055, 64
    %v6139 = vpop.permute.xlu0 %6138
    %6140 = vrot.lane.b32.xlu0 %v6056, 64
    %v6141 = vpop.permute.xlu0 %6140
    %6142 = vrot.lane.b32.xlu0 %v6057, 64
    %v6143 = vpop.permute.xlu0 %6142
    %6144 = vrot.lane.b32.xlu0 %v6058, 64
    %v6145 = vpop.permute.xlu0 %6144
    %6146 = vrot.lane.b32.xlu0 %v6059, 64
    %v6147 = vpop.permute.xlu0 %6146
    %6148 = vrot.lane.b32.xlu0 %v6060, 64
    %v6149 = vpop.permute.xlu0 %6148
    %6150 = vrot.lane.b32.xlu0 %v6061, 64
    %v6151 = vpop.permute.xlu0 %6150
    %6152 = vrot.lane.b32.xlu0 %v6062, 64
    %v6153 = vpop.permute.xlu0 %6152
    %6154 = vrot.lane.b32.xlu0 %v6063, 64
    %v6155 = vpop.permute.xlu0 %6154
    %6156 = vrot.lane.b32.xlu0 %v6064, 64
    %v6157 = vpop.permute.xlu0 %6156
    %6158 = vrot.lane.b32.xlu0 %v6065, 64
    %v6159 = vpop.permute.xlu0 %6158
    %6160 = vrot.lane.b32.xlu0 %v6066, 64
    %v6161 = vpop.permute.xlu0 %6160
    %6162 = vrot.lane.b32.xlu0 %v6067, 64
    %v6163 = vpop.permute.xlu0 %6162
    %6196 = vst.msk [vmem:[#allocation3 + $0x8] sm:$0xff] %vm5363, %v6101
    %6197 = vst.msk [vmem:[#allocation3 + $0x30] sm:$0xff] %vm5363, %v6103
    %6198 = vst.msk [vmem:[#allocation3 + $0x58] sm:$0xff] %vm5363, %v6105
    %6199 = vst.msk [vmem:[#allocation3 + $0x80] sm:$0xff] %vm5363, %v6107
    %6200 = vst.msk [vmem:[#allocation3 + $0xa8] sm:$0xff] %vm5363, %v6109
    %6201 = vst.msk [vmem:[#allocation3 + $0xd0] sm:$0xff] %vm5363, %v6111
    %6202 = vst.msk [vmem:[#allocation3 + $0xf8] sm:$0xff] %vm5363, %v6113
    %6203 = vst.msk [vmem:[#allocation3 + $0x120] sm:$0xff] %vm5363, %v6115
    %6204 = vst.msk [vmem:[#allocation3 + $0x148] sm:$0xff] %vm5363, %v6117
    %6205 = vst.msk [vmem:[#allocation3 + $0x170] sm:$0xff] %vm5363, %v6119
    %6206 = vst.msk [vmem:[#allocation3 + $0x198] sm:$0xff] %vm5363, %v6121
    %6207 = vst.msk [vmem:[#allocation3 + $0x1c0] sm:$0xff] %vm5363, %v6123
    %6208 = vst.msk [vmem:[#allocation3 + $0x1e8] sm:$0xff] %vm5363, %v6125
    %6209 = vst.msk [vmem:[#allocation3 + $0x210] sm:$0xff] %vm5363, %v6127
    %6210 = vst.msk [vmem:[#allocation3 + $0x238] sm:$0xff] %vm5363, %v6129
    %6211 = vst.msk [vmem:[#allocation3 + $0x260] sm:$0xff] %vm5363, %v6131
    %6212 = vst.msk [vmem:[#allocation3 + $0x288] sm:$0xff] %vm5363, %v6133
    %6213 = vst.msk [vmem:[#allocation3 + $0x2b0] sm:$0xff] %vm5363, %v6135
    %6214 = vst.msk [vmem:[#allocation3 + $0x2d8] sm:$0xff] %vm5363, %v6137
    %6215 = vst.msk [vmem:[#allocation3 + $0x300] sm:$0xff] %vm5363, %v6139
    %6216 = vst.msk [vmem:[#allocation3 + $0x328] sm:$0xff] %vm5363, %v6141
    %6217 = vst.msk [vmem:[#allocation3 + $0x350] sm:$0xff] %vm5363, %v6143
    %6218 = vst.msk [vmem:[#allocation3 + $0x378] sm:$0xff] %vm5363, %v6145
    %6219 = vst.msk [vmem:[#allocation3 + $0x3a0] sm:$0xff] %vm5363, %v6147
    %6220 = vst.msk [vmem:[#allocation3 + $0x3c8] sm:$0xff] %vm5363, %v6149
    %6221 = vst.msk [vmem:[#allocation3 + $0x3f0] sm:$0xff] %vm5363, %v6151
    %6222 = vst.msk [vmem:[#allocation3 + $0x418] sm:$0xff] %vm5363, %v6153
    %6223 = vst.msk [vmem:[#allocation3 + $0x440] sm:$0xff] %vm5363, %v6155
    %6224 = vst.msk [vmem:[#allocation3 + $0x468] sm:$0xff] %vm5363, %v6157
    %6225 = vst.msk [vmem:[#allocation3 + $0x490] sm:$0xff] %vm5363, %v6159
    %6226 = vst.msk [vmem:[#allocation3 + $0x4b8] sm:$0xff] %vm5363, %v6161
    %6227 = vst.msk [vmem:[#allocation3 + $0x4e0] sm:$0xff] %vm5363, %v6163
    %v6228 = vpack.c.bf16 %v3926, %v3924
    %v6229 = vpack.c.bf16 %v3930, %v3928
    %v6230 = vpack.c.bf16 %v3934, %v3932
    %v6231 = vpack.c.bf16 %v3938, %v3936
    %v6232 = vpack.c.bf16 %v3942, %v3940
    %v6233 = vpack.c.bf16 %v3946, %v3944
    %v6234 = vpack.c.bf16 %v3950, %v3948
    %v6235 = vpack.c.bf16 %v3954, %v3952
    %v6236 = vpack.c.bf16 %v3958, %v3956
    %v6237 = vpack.c.bf16 %v3962, %v3960
    %v6238 = vpack.c.bf16 %v3966, %v3964
    %v6239 = vpack.c.bf16 %v3970, %v3968
    %v6240 = vpack.c.bf16 %v3974, %v3972
    %v6241 = vpack.c.bf16 %v3978, %v3976
    %v6242 = vpack.c.bf16 %v3982, %v3980
    %v6243 = vpack.c.bf16 %v3986, %v3984
    %v6244 = vpack.c.bf16 %v3990, %v3988
    %v6245 = vpack.c.bf16 %v3994, %v3992
    %v6246 = vpack.c.bf16 %v3998, %v3996
    %v6247 = vpack.c.bf16 %v4002, %v4000
    %v6248 = vpack.c.bf16 %v4006, %v4004
    %v6249 = vpack.c.bf16 %v4010, %v4008
    %v6250 = vpack.c.bf16 %v4014, %v4012
    %v6251 = vpack.c.bf16 %v4018, %v4016
    %v6252 = vpack.c.bf16 %v4022, %v4020
    %v6253 = vpack.c.bf16 %v4026, %v4024
    %v6254 = vpack.c.bf16 %v4030, %v4028
    %v6255 = vpack.c.bf16 %v4034, %v4032
    %v6256 = vpack.c.bf16 %v4038, %v4036
    %v6257 = vpack.c.bf16 %v4042, %v4040
    %v6258 = vpack.c.bf16 %v4046, %v4044
    %v6259 = vpack.c.bf16 %v4050, %v4048
    %6260 = vst.msk [vmem:[#allocation3 + $0x10] sm:$0xff] %vm3667, %v6228
    %6261 = vst.msk [vmem:[#allocation3 + $0x38] sm:$0xff] %vm3667, %v6229
    %6262 = vst.msk [vmem:[#allocation3 + $0x60] sm:$0xff] %vm3667, %v6230
    %6263 = vst.msk [vmem:[#allocation3 + $0x88] sm:$0xff] %vm3667, %v6231
    %6264 = vst.msk [vmem:[#allocation3 + $0xb0] sm:$0xff] %vm3667, %v6232
    %6265 = vst.msk [vmem:[#allocation3 + $0xd8] sm:$0xff] %vm3667, %v6233
    %6266 = vst.msk [vmem:[#allocation3 + $0x100] sm:$0xff] %vm3667, %v6234
    %6267 = vst.msk [vmem:[#allocation3 + $0x128] sm:$0xff] %vm3667, %v6235
    %6268 = vst.msk [vmem:[#allocation3 + $0x150] sm:$0xff] %vm3667, %v6236
    %6269 = vst.msk [vmem:[#allocation3 + $0x178] sm:$0xff] %vm3667, %v6237
    %6270 = vst.msk [vmem:[#allocation3 + $0x1a0] sm:$0xff] %vm3667, %v6238
    %6271 = vst.msk [vmem:[#allocation3 + $0x1c8] sm:$0xff] %vm3667, %v6239
    %6272 = vst.msk [vmem:[#allocation3 + $0x1f0] sm:$0xff] %vm3667, %v6240
    %6273 = vst.msk [vmem:[#allocation3 + $0x218] sm:$0xff] %vm3667, %v6241
    %6274 = vst.msk [vmem:[#allocation3 + $0x240] sm:$0xff] %vm3667, %v6242
    %6275 = vst.msk [vmem:[#allocation3 + $0x268] sm:$0xff] %vm3667, %v6243
    %6276 = vst.msk [vmem:[#allocation3 + $0x290] sm:$0xff] %vm3667, %v6244
    %6277 = vst.msk [vmem:[#allocation3 + $0x2b8] sm:$0xff] %vm3667, %v6245
    %6278 = vst.msk [vmem:[#allocation3 + $0x2e0] sm:$0xff] %vm3667, %v6246
    %6279 = vst.msk [vmem:[#allocation3 + $0x308] sm:$0xff] %vm3667, %v6247
    %6280 = vst.msk [vmem:[#allocation3 + $0x330] sm:$0xff] %vm3667, %v6248
    %6281 = vst.msk [vmem:[#allocation3 + $0x358] sm:$0xff] %vm3667, %v6249
    %6282 = vst.msk [vmem:[#allocation3 + $0x380] sm:$0xff] %vm3667, %v6250
    %6283 = vst.msk [vmem:[#allocation3 + $0x3a8] sm:$0xff] %vm3667, %v6251
    %6284 = vst.msk [vmem:[#allocation3 + $0x3d0] sm:$0xff] %vm3667, %v6252
    %6285 = vst.msk [vmem:[#allocation3 + $0x3f8] sm:$0xff] %vm3667, %v6253
    %6286 = vst.msk [vmem:[#allocation3 + $0x420] sm:$0xff] %vm3667, %v6254
    %6287 = vst.msk [vmem:[#allocation3 + $0x448] sm:$0xff] %vm3667, %v6255
    %6288 = vst.msk [vmem:[#allocation3 + $0x470] sm:$0xff] %vm3667, %v6256
    %6289 = vst.msk [vmem:[#allocation3 + $0x498] sm:$0xff] %vm3667, %v6257
    %6290 = vst.msk [vmem:[#allocation3 + $0x4c0] sm:$0xff] %vm3667, %v6258
    %6291 = vst.msk [vmem:[#allocation3 + $0x4e8] sm:$0xff] %vm3667, %v6259
    %v6292 = vsel %vm4498, 1, 0
    %v6293 = vsel %vm4499, 1, 0
    %v6294 = vsel %vm4500, 1, 0
    %v6295 = vsel %vm4501, 1, 0
    %v6296 = vsel %vm4502, 1, 0
    %v6297 = vsel %vm4503, 1, 0
    %v6298 = vsel %vm4504, 1, 0
    %v6299 = vsel %vm4505, 1, 0
    %v6300 = vsel %vm4506, 1, 0
    %v6301 = vsel %vm4507, 1, 0
    %v6302 = vsel %vm4508, 1, 0
    %v6303 = vsel %vm4509, 1, 0
    %v6304 = vsel %vm4510, 1, 0
    %v6305 = vsel %vm4511, 1, 0
    %v6306 = vsel %vm4512, 1, 0
    %v6307 = vsel %vm4513, 1, 0
    %v6308 = vsel %vm4514, 1, 0
    %v6309 = vsel %vm4515, 1, 0
    %v6310 = vsel %vm4516, 1, 0
    %v6311 = vsel %vm4517, 1, 0
    %v6312 = vsel %vm4518, 1, 0
    %v6313 = vsel %vm4519, 1, 0
    %v6314 = vsel %vm4520, 1, 0
    %v6315 = vsel %vm4521, 1, 0
    %v6316 = vsel %vm4522, 1, 0
    %v6317 = vsel %vm4523, 1, 0
    %v6318 = vsel %vm4524, 1, 0
    %v6319 = vsel %vm4525, 1, 0
    %v6320 = vsel %vm4526, 1, 0
    %v6321 = vsel %vm4527, 1, 0
    %v6322 = vsel %vm4528, 1, 0
    %v6323 = vsel %vm4529, 1, 0
    %v6324 = vsel %vm4530, 1, 0
    %v6325 = vsel %vm4531, 1, 0
    %v6326 = vsel %vm4532, 1, 0
    %v6327 = vsel %vm4533, 1, 0
    %v6328 = vsel %vm4534, 1, 0
    %v6329 = vsel %vm4535, 1, 0
    %v6330 = vsel %vm4536, 1, 0
    %v6331 = vsel %vm4537, 1, 0
    %v6332 = vsel %vm4538, 1, 0
    %v6333 = vsel %vm4539, 1, 0
    %v6334 = vsel %vm4540, 1, 0
    %v6335 = vsel %vm4541, 1, 0
    %v6336 = vsel %vm4542, 1, 0
    %v6337 = vsel %vm4543, 1, 0
    %v6338 = vsel %vm4544, 1, 0
    %v6339 = vsel %vm4545, 1, 0
    %v6340 = vsel %vm4546, 1, 0
    %v6341 = vsel %vm4547, 1, 0
    %v6342 = vsel %vm4548, 1, 0
    %v6343 = vsel %vm4549, 1, 0
    %v6344 = vsel %vm4550, 1, 0
    %v6345 = vsel %vm4551, 1, 0
    %v6346 = vsel %vm4552, 1, 0
    %v6347 = vsel %vm4553, 1, 0
    %v6348 = vsel %vm4554, 1, 0
    %v6349 = vsel %vm4555, 1, 0
    %v6350 = vsel %vm4556, 1, 0
    %v6351 = vsel %vm4557, 1, 0
    %v6352 = vsel %vm4558, 1, 0
    %v6353 = vsel %vm4559, 1, 0
    %v6354 = vsel %vm4560, 1, 0
    %v6355 = vsel %vm4561, 1, 0
    %vm6356 = vcmp.eq.s32.totalorder %v6292, 1
    %vm6357 = vcmp.eq.s32.totalorder %v6293, 1
    %vm6358 = vcmp.eq.s32.totalorder %v6294, 1
    %vm6359 = vcmp.eq.s32.totalorder %v6295, 1
    %vm6360 = vcmp.eq.s32.totalorder %v6296, 1
    %vm6361 = vcmp.eq.s32.totalorder %v6297, 1
    %vm6362 = vcmp.eq.s32.totalorder %v6298, 1
    %vm6363 = vcmp.eq.s32.totalorder %v6299, 1
    %vm6364 = vcmp.eq.s32.totalorder %v6300, 1
    %vm6365 = vcmp.eq.s32.totalorder %v6301, 1
    %vm6366 = vcmp.eq.s32.totalorder %v6302, 1
    %vm6367 = vcmp.eq.s32.totalorder %v6303, 1
    %vm6368 = vcmp.eq.s32.totalorder %v6304, 1
    %vm6369 = vcmp.eq.s32.totalorder %v6305, 1
    %vm6370 = vcmp.eq.s32.totalorder %v6306, 1
    %vm6371 = vcmp.eq.s32.totalorder %v6307, 1
    %vm6372 = vcmp.eq.s32.totalorder %v6308, 1
    %vm6373 = vcmp.eq.s32.totalorder %v6309, 1
    %vm6374 = vcmp.eq.s32.totalorder %v6310, 1
    %vm6375 = vcmp.eq.s32.totalorder %v6311, 1
    %vm6376 = vcmp.eq.s32.totalorder %v6312, 1
    %vm6377 = vcmp.eq.s32.totalorder %v6313, 1
    %vm6378 = vcmp.eq.s32.totalorder %v6314, 1
    %vm6379 = vcmp.eq.s32.totalorder %v6315, 1
    %vm6380 = vcmp.eq.s32.totalorder %v6316, 1
    %vm6381 = vcmp.eq.s32.totalorder %v6317, 1
    %vm6382 = vcmp.eq.s32.totalorder %v6318, 1
    %vm6383 = vcmp.eq.s32.totalorder %v6319, 1
    %vm6384 = vcmp.eq.s32.totalorder %v6320, 1
    %vm6385 = vcmp.eq.s32.totalorder %v6321, 1
    %vm6386 = vcmp.eq.s32.totalorder %v6322, 1
    %vm6387 = vcmp.eq.s32.totalorder %v6323, 1
    %vm6388 = vcmp.eq.s32.totalorder %v6324, 1
    %vm6389 = vcmp.eq.s32.totalorder %v6325, 1
    %vm6390 = vcmp.eq.s32.totalorder %v6326, 1
    %vm6391 = vcmp.eq.s32.totalorder %v6327, 1
    %vm6392 = vcmp.eq.s32.totalorder %v6328, 1
    %vm6393 = vcmp.eq.s32.totalorder %v6329, 1
    %vm6394 = vcmp.eq.s32.totalorder %v6330, 1
    %vm6395 = vcmp.eq.s32.totalorder %v6331, 1
    %vm6396 = vcmp.eq.s32.totalorder %v6332, 1
    %vm6397 = vcmp.eq.s32.totalorder %v6333, 1
    %vm6398 = vcmp.eq.s32.totalorder %v6334, 1
    %vm6399 = vcmp.eq.s32.totalorder %v6335, 1
    %vm6400 = vcmp.eq.s32.totalorder %v6336, 1
    %vm6401 = vcmp.eq.s32.totalorder %v6337, 1
    %vm6402 = vcmp.eq.s32.totalorder %v6338, 1
    %vm6403 = vcmp.eq.s32.totalorder %v6339, 1
    %vm6404 = vcmp.eq.s32.totalorder %v6340, 1
    %vm6405 = vcmp.eq.s32.totalorder %v6341, 1
    %vm6406 = vcmp.eq.s32.totalorder %v6342, 1
    %vm6407 = vcmp.eq.s32.totalorder %v6343, 1
    %vm6408 = vcmp.eq.s32.totalorder %v6344, 1
    %vm6409 = vcmp.eq.s32.totalorder %v6345, 1
    %vm6410 = vcmp.eq.s32.totalorder %v6346, 1
    %vm6411 = vcmp.eq.s32.totalorder %v6347, 1
    %vm6412 = vcmp.eq.s32.totalorder %v6348, 1
    %vm6413 = vcmp.eq.s32.totalorder %v6349, 1
    %vm6414 = vcmp.eq.s32.totalorder %v6350, 1
    %vm6415 = vcmp.eq.s32.totalorder %v6351, 1
    %vm6416 = vcmp.eq.s32.totalorder %v6352, 1
    %vm6417 = vcmp.eq.s32.totalorder %v6353, 1
    %vm6418 = vcmp.eq.s32.totalorder %v6354, 1
    %vm6419 = vcmp.eq.s32.totalorder %v6355, 1
    %v6420 = vsel %vm6356, %v5522, 0.0
    %v6421 = vsel %vm6357, %v5521, 0.0
    %v6422 = vsel %vm6358, %v5520, 0.0
    %v6423 = vsel %vm6359, %v5519, 0.0
    %v6424 = vsel %vm6360, %v5518, 0.0
    %v6425 = vsel %vm6361, %v5517, 0.0
    %v6426 = vsel %vm6362, %v5516, 0.0
    %v6427 = vsel %vm6363, %v5515, 0.0
    %v6428 = vsel %vm6364, %v5514, 0.0
    %v6429 = vsel %vm6365, %v5513, 0.0
    %v6430 = vsel %vm6366, %v5512, 0.0
    %v6431 = vsel %vm6367, %v5511, 0.0
    %v6432 = vsel %vm6368, %v5510, 0.0
    %v6433 = vsel %vm6369, %v5509, 0.0
    %v6434 = vsel %vm6370, %v5508, 0.0
    %v6435 = vsel %vm6371, %v5507, 0.0
    %v6436 = vsel %vm6372, %v5506, 0.0
    %v6437 = vsel %vm6373, %v5505, 0.0
    %v6438 = vsel %vm6374, %v5504, 0.0
    %v6439 = vsel %vm6375, %v5503, 0.0
    %v6440 = vsel %vm6376, %v5502, 0.0
    %v6441 = vsel %vm6377, %v5501, 0.0
    %v6442 = vsel %vm6378, %v5500, 0.0
    %v6443 = vsel %vm6379, %v5499, 0.0
    %v6444 = vsel %vm6380, %v5498, 0.0
    %v6445 = vsel %vm6381, %v5497, 0.0
    %v6446 = vsel %vm6382, %v5496, 0.0
    %v6447 = vsel %vm6383, %v5495, 0.0
    %v6448 = vsel %vm6384, %v5494, 0.0
    %v6449 = vsel %vm6385, %v5493, 0.0
    %v6450 = vsel %vm6386, %v5492, 0.0
    %v6451 = vsel %vm6387, %v5491, 0.0
    %v6452 = vsel %vm6388, %v5490, 0.0
    %v6453 = vsel %vm6389, %v5489, 0.0
    %v6454 = vsel %vm6390, %v5488, 0.0
    %v6455 = vsel %vm6391, %v5487, 0.0
    %v6456 = vsel %vm6392, %v5486, 0.0
    %v6457 = vsel %vm6393, %v5485, 0.0
    %v6458 = vsel %vm6394, %v5484, 0.0
    %v6459 = vsel %vm6395, %v5483, 0.0
    %v6460 = vsel %vm6396, %v5482, 0.0
    %v6461 = vsel %vm6397, %v5481, 0.0
    %v6462 = vsel %vm6398, %v5480, 0.0
    %v6463 = vsel %vm6399, %v5479, 0.0
    %v6464 = vsel %vm6400, %v5478, 0.0
    %v6465 = vsel %vm6401, %v5477, 0.0
    %v6466 = vsel %vm6402, %v5476, 0.0
    %v6467 = vsel %vm6403, %v5475, 0.0
    %v6468 = vsel %vm6404, %v5474, 0.0
    %v6469 = vsel %vm6405, %v5473, 0.0
    %v6470 = vsel %vm6406, %v5472, 0.0
    %v6471 = vsel %vm6407, %v5471, 0.0
    %v6472 = vsel %vm6408, %v5470, 0.0
    %v6473 = vsel %vm6409, %v5469, 0.0
    %v6474 = vsel %vm6410, %v5468, 0.0
    %v6475 = vsel %vm6411, %v5467, 0.0
    %v6476 = vsel %vm6412, %v5466, 0.0
    %v6477 = vsel %vm6413, %v5465, 0.0
    %v6478 = vsel %vm6414, %v5464, 0.0
    %v6479 = vsel %vm6415, %v5463, 0.0
    %v6480 = vsel %vm6416, %v5462, 0.0
    %v6481 = vsel %vm6417, %v5461, 0.0
    %v6482 = vsel %vm6418, %v5460, 0.0
    %v6483 = vsel %vm6419, %v5523, 0.0
    %v6484 = vpack.c.bf16 %v6421, %v6420
    %v6485 = vpack.c.bf16 %v6423, %v6422
    %v6486 = vpack.c.bf16 %v6425, %v6424
    %v6487 = vpack.c.bf16 %v6427, %v6426
    %v6488 = vpack.c.bf16 %v6429, %v6428
    %v6489 = vpack.c.bf16 %v6431, %v6430
    %v6490 = vpack.c.bf16 %v6433, %v6432
    %v6491 = vpack.c.bf16 %v6435, %v6434
    %v6492 = vpack.c.bf16 %v6437, %v6436
    %v6493 = vpack.c.bf16 %v6439, %v6438
    %v6494 = vpack.c.bf16 %v6441, %v6440
    %v6495 = vpack.c.bf16 %v6443, %v6442
    %v6496 = vpack.c.bf16 %v6445, %v6444
    %v6497 = vpack.c.bf16 %v6447, %v6446
    %v6498 = vpack.c.bf16 %v6449, %v6448
    %v6499 = vpack.c.bf16 %v6451, %v6450
    %v6500 = vpack.c.bf16 %v6453, %v6452
    %v6501 = vpack.c.bf16 %v6455, %v6454
    %v6502 = vpack.c.bf16 %v6457, %v6456
    %v6503 = vpack.c.bf16 %v6459, %v6458
    %v6504 = vpack.c.bf16 %v6461, %v6460
    %v6505 = vpack.c.bf16 %v6463, %v6462
    %v6506 = vpack.c.bf16 %v6465, %v6464
    %v6507 = vpack.c.bf16 %v6467, %v6466
    %v6508 = vpack.c.bf16 %v6469, %v6468
    %v6509 = vpack.c.bf16 %v6471, %v6470
    %v6510 = vpack.c.bf16 %v6473, %v6472
    %v6511 = vpack.c.bf16 %v6475, %v6474
    %v6512 = vpack.c.bf16 %v6477, %v6476
    %v6513 = vpack.c.bf16 %v6479, %v6478
    %v6514 = vpack.c.bf16 %v6481, %v6480
    %v6515 = vpack.c.bf16 %v6483, %v6482
    %6548 = vrot.lane.b32.xlu0 %v6484, 64
    %v6549 = vpop.permute.xlu0 %6548
    %6550 = vrot.lane.b32.xlu0 %v6485, 64
    %v6551 = vpop.permute.xlu0 %6550
    %6552 = vrot.lane.b32.xlu0 %v6486, 64
    %v6553 = vpop.permute.xlu0 %6552
    %6554 = vrot.lane.b32.xlu0 %v6487, 64
    %v6555 = vpop.permute.xlu0 %6554
    %6556 = vrot.lane.b32.xlu0 %v6488, 64
    %v6557 = vpop.permute.xlu0 %6556
    %6558 = vrot.lane.b32.xlu0 %v6489, 64
    %v6559 = vpop.permute.xlu0 %6558
    %6560 = vrot.lane.b32.xlu0 %v6490, 64
    %v6561 = vpop.permute.xlu0 %6560
    %6562 = vrot.lane.b32.xlu0 %v6491, 64
    %v6563 = vpop.permute.xlu0 %6562
    %6564 = vrot.lane.b32.xlu0 %v6492, 64
    %v6565 = vpop.permute.xlu0 %6564
    %6566 = vrot.lane.b32.xlu0 %v6493, 64
    %v6567 = vpop.permute.xlu0 %6566
    %6568 = vrot.lane.b32.xlu0 %v6494, 64
    %v6569 = vpop.permute.xlu0 %6568
    %6570 = vrot.lane.b32.xlu0 %v6495, 64
    %v6571 = vpop.permute.xlu0 %6570
    %6572 = vrot.lane.b32.xlu0 %v6496, 64
    %v6573 = vpop.permute.xlu0 %6572
    %6574 = vrot.lane.b32.xlu0 %v6497, 64
    %v6575 = vpop.permute.xlu0 %6574
    %6576 = vrot.lane.b32.xlu0 %v6498, 64
    %v6577 = vpop.permute.xlu0 %6576
    %6578 = vrot.lane.b32.xlu0 %v6499, 64
    %v6579 = vpop.permute.xlu0 %6578
    %6580 = vrot.lane.b32.xlu0 %v6500, 64
    %v6581 = vpop.permute.xlu0 %6580
    %6582 = vrot.lane.b32.xlu0 %v6501, 64
    %v6583 = vpop.permute.xlu0 %6582
    %6584 = vrot.lane.b32.xlu0 %v6502, 64
    %v6585 = vpop.permute.xlu0 %6584
    %6586 = vrot.lane.b32.xlu0 %v6503, 64
    %v6587 = vpop.permute.xlu0 %6586
    %6588 = vrot.lane.b32.xlu0 %v6504, 64
    %v6589 = vpop.permute.xlu0 %6588
    %6590 = vrot.lane.b32.xlu0 %v6505, 64
    %v6591 = vpop.permute.xlu0 %6590
    %6592 = vrot.lane.b32.xlu0 %v6506, 64
    %v6593 = vpop.permute.xlu0 %6592
    %6594 = vrot.lane.b32.xlu0 %v6507, 64
    %v6595 = vpop.permute.xlu0 %6594
    %6596 = vrot.lane.b32.xlu0 %v6508, 64
    %v6597 = vpop.permute.xlu0 %6596
    %6598 = vrot.lane.b32.xlu0 %v6509, 64
    %v6599 = vpop.permute.xlu0 %6598
    %6600 = vrot.lane.b32.xlu0 %v6510, 64
    %v6601 = vpop.permute.xlu0 %6600
    %6602 = vrot.lane.b32.xlu0 %v6511, 64
    %v6603 = vpop.permute.xlu0 %6602
    %6604 = vrot.lane.b32.xlu0 %v6512, 64
    %v6605 = vpop.permute.xlu0 %6604
    %6606 = vrot.lane.b32.xlu0 %v6513, 64
    %v6607 = vpop.permute.xlu0 %6606
    %6608 = vrot.lane.b32.xlu0 %v6514, 64
    %v6609 = vpop.permute.xlu0 %6608
    %6610 = vrot.lane.b32.xlu0 %v6515, 64
    %v6611 = vpop.permute.xlu0 %6610
    %6644 = vst.msk [vmem:[#allocation3 + $0x10] sm:$0xff] %vm5363, %v6549
    %6645 = vst.msk [vmem:[#allocation3 + $0x38] sm:$0xff] %vm5363, %v6551
    %6646 = vst.msk [vmem:[#allocation3 + $0x60] sm:$0xff] %vm5363, %v6553
    %6647 = vst.msk [vmem:[#allocation3 + $0x88] sm:$0xff] %vm5363, %v6555
    %6648 = vst.msk [vmem:[#allocation3 + $0xb0] sm:$0xff] %vm5363, %v6557
    %6649 = vst.msk [vmem:[#allocation3 + $0xd8] sm:$0xff] %vm5363, %v6559
    %6650 = vst.msk [vmem:[#allocation3 + $0x100] sm:$0xff] %vm5363, %v6561
    %6651 = vst.msk [vmem:[#allocation3 + $0x128] sm:$0xff] %vm5363, %v6563
    %6652 = vst.msk [vmem:[#allocation3 + $0x150] sm:$0xff] %vm5363, %v6565
    %6653 = vst.msk [vmem:[#allocation3 + $0x178] sm:$0xff] %vm5363, %v6567
    %6654 = vst.msk [vmem:[#allocation3 + $0x1a0] sm:$0xff] %vm5363, %v6569
    %6655 = vst.msk [vmem:[#allocation3 + $0x1c8] sm:$0xff] %vm5363, %v6571
    %6656 = vst.msk [vmem:[#allocation3 + $0x1f0] sm:$0xff] %vm5363, %v6573
    %6657 = vst.msk [vmem:[#allocation3 + $0x218] sm:$0xff] %vm5363, %v6575
    %6658 = vst.msk [vmem:[#allocation3 + $0x240] sm:$0xff] %vm5363, %v6577
    %6659 = vst.msk [vmem:[#allocation3 + $0x268] sm:$0xff] %vm5363, %v6579
    %6660 = vst.msk [vmem:[#allocation3 + $0x290] sm:$0xff] %vm5363, %v6581
    %6661 = vst.msk [vmem:[#allocation3 + $0x2b8] sm:$0xff] %vm5363, %v6583
    %6662 = vst.msk [vmem:[#allocation3 + $0x2e0] sm:$0xff] %vm5363, %v6585
    %6663 = vst.msk [vmem:[#allocation3 + $0x308] sm:$0xff] %vm5363, %v6587
    %6664 = vst.msk [vmem:[#allocation3 + $0x330] sm:$0xff] %vm5363, %v6589
    %6665 = vst.msk [vmem:[#allocation3 + $0x358] sm:$0xff] %vm5363, %v6591
    %6666 = vst.msk [vmem:[#allocation3 + $0x380] sm:$0xff] %vm5363, %v6593
    %6667 = vst.msk [vmem:[#allocation3 + $0x3a8] sm:$0xff] %vm5363, %v6595
    %6668 = vst.msk [vmem:[#allocation3 + $0x3d0] sm:$0xff] %vm5363, %v6597
    %6669 = vst.msk [vmem:[#allocation3 + $0x3f8] sm:$0xff] %vm5363, %v6599
    %6670 = vst.msk [vmem:[#allocation3 + $0x420] sm:$0xff] %vm5363, %v6601
    %6671 = vst.msk [vmem:[#allocation3 + $0x448] sm:$0xff] %vm5363, %v6603
    %6672 = vst.msk [vmem:[#allocation3 + $0x470] sm:$0xff] %vm5363, %v6605
    %6673 = vst.msk [vmem:[#allocation3 + $0x498] sm:$0xff] %vm5363, %v6607
    %6674 = vst.msk [vmem:[#allocation3 + $0x4c0] sm:$0xff] %vm5363, %v6609
    %6675 = vst.msk [vmem:[#allocation3 + $0x4e8] sm:$0xff] %vm5363, %v6611
    %vm6676 = vmand %vm4370, %vm4434
    %vm6677 = vmand %vm4371, %vm4435
    %vm6678 = vmand %vm4372, %vm4436
    %vm6679 = vmand %vm4373, %vm4437
    %vm6680 = vmand %vm4374, %vm4438
    %vm6681 = vmand %vm4375, %vm4439
    %vm6682 = vmand %vm4376, %vm4440
    %vm6683 = vmand %vm4377, %vm4441
    %vm6684 = vmand %vm4378, %vm4442
    %vm6685 = vmand %vm4379, %vm4443
    %vm6686 = vmand %vm4380, %vm4444
    %vm6687 = vmand %vm4381, %vm4445
    %vm6688 = vmand %vm4382, %vm4446
    %vm6689 = vmand %vm4383, %vm4447
    %vm6690 = vmand %vm4384, %vm4448
    %vm6691 = vmand %vm4385, %vm4449
    %vm6692 = vmand %vm4386, %vm4450
    %vm6693 = vmand %vm4387, %vm4451
    %vm6694 = vmand %vm4388, %vm4452
    %vm6695 = vmand %vm4389, %vm4453
    %vm6696 = vmand %vm4390, %vm4454
    %vm6697 = vmand %vm4391, %vm4455
    %vm6698 = vmand %vm4392, %vm4456
    %vm6699 = vmand %vm4393, %vm4457
    %vm6700 = vmand %vm4394, %vm4458
    %vm6701 = vmand %vm4395, %vm4459
    %vm6702 = vmand %vm4396, %vm4460
    %vm6703 = vmand %vm4397, %vm4461
    %vm6704 = vmand %vm4398, %vm4462
    %vm6705 = vmand %vm4399, %vm4463
    %vm6706 = vmand %vm4400, %vm4464
    %vm6707 = vmand %vm4401, %vm4465
    %vm6708 = vmand %vm4402, %vm4466
    %vm6709 = vmand %vm4403, %vm4467
    %vm6710 = vmand %vm4404, %vm4468
    %vm6711 = vmand %vm4405, %vm4469
    %vm6712 = vmand %vm4406, %vm4470
    %vm6713 = vmand %vm4407, %vm4471
    %vm6714 = vmand %vm4408, %vm4472
    %vm6715 = vmand %vm4409, %vm4473
    %vm6716 = vmand %vm4410, %vm4474
    %vm6717 = vmand %vm4411, %vm4475
    %vm6718 = vmand %vm4412, %vm4476
    %vm6719 = vmand %vm4413, %vm4477
    %vm6720 = vmand %vm4414, %vm4478
    %vm6721 = vmand %vm4415, %vm4479
    %vm6722 = vmand %vm4416, %vm4480
    %vm6723 = vmand %vm4417, %vm4481
    %vm6724 = vmand %vm4418, %vm4482
    %vm6725 = vmand %vm4419, %vm4483
    %vm6726 = vmand %vm4420, %vm4484
    %vm6727 = vmand %vm4421, %vm4485
    %vm6728 = vmand %vm4422, %vm4486
    %vm6729 = vmand %vm4423, %vm4487
    %vm6730 = vmand %vm4424, %vm4488
    %vm6731 = vmand %vm4425, %vm4489
    %vm6732 = vmand %vm4426, %vm4490
    %vm6733 = vmand %vm4427, %vm4491
    %vm6734 = vmand %vm4428, %vm4492
    %vm6735 = vmand %vm4429, %vm4493
    %vm6736 = vmand %vm4430, %vm4494
    %vm6737 = vmand %vm4431, %vm4495
    %vm6738 = vmand %vm4432, %vm4496
    %vm6739 = vmand %vm4433, %vm4497
    %v6740 = vsel %vm6676, 1, 0
    %v6741 = vsel %vm6677, 1, 0
    %v6742 = vsel %vm6678, 1, 0
    %v6743 = vsel %vm6679, 1, 0
    %v6744 = vsel %vm6680, 1, 0
    %v6745 = vsel %vm6681, 1, 0
    %v6746 = vsel %vm6682, 1, 0
    %v6747 = vsel %vm6683, 1, 0
    %v6748 = vsel %vm6684, 1, 0
    %v6749 = vsel %vm6685, 1, 0
    %v6750 = vsel %vm6686, 1, 0
    %v6751 = vsel %vm6687, 1, 0
    %v6752 = vsel %vm6688, 1, 0
    %v6753 = vsel %vm6689, 1, 0
    %v6754 = vsel %vm6690, 1, 0
    %v6755 = vsel %vm6691, 1, 0
    %v6756 = vsel %vm6692, 1, 0
    %v6757 = vsel %vm6693, 1, 0
    %v6758 = vsel %vm6694, 1, 0
    %v6759 = vsel %vm6695, 1, 0
    %v6760 = vsel %vm6696, 1, 0
    %v6761 = vsel %vm6697, 1, 0
    %v6762 = vsel %vm6698, 1, 0
    %v6763 = vsel %vm6699, 1, 0
    %v6764 = vsel %vm6700, 1, 0
    %v6765 = vsel %vm6701, 1, 0
    %v6766 = vsel %vm6702, 1, 0
    %v6767 = vsel %vm6703, 1, 0
    %v6768 = vsel %vm6704, 1, 0
    %v6769 = vsel %vm6705, 1, 0
    %v6770 = vsel %vm6706, 1, 0
    %v6771 = vsel %vm6707, 1, 0
    %v6772 = vsel %vm6708, 1, 0
    %v6773 = vsel %vm6709, 1, 0
    %v6774 = vsel %vm6710, 1, 0
    %v6775 = vsel %vm6711, 1, 0
    %v6776 = vsel %vm6712, 1, 0
    %v6777 = vsel %vm6713, 1, 0
    %v6778 = vsel %vm6714, 1, 0
    %v6779 = vsel %vm6715, 1, 0
    %v6780 = vsel %vm6716, 1, 0
    %v6781 = vsel %vm6717, 1, 0
    %v6782 = vsel %vm6718, 1, 0
    %v6783 = vsel %vm6719, 1, 0
    %v6784 = vsel %vm6720, 1, 0
    %v6785 = vsel %vm6721, 1, 0
    %v6786 = vsel %vm6722, 1, 0
    %v6787 = vsel %vm6723, 1, 0
    %v6788 = vsel %vm6724, 1, 0
    %v6789 = vsel %vm6725, 1, 0
    %v6790 = vsel %vm6726, 1, 0
    %v6791 = vsel %vm6727, 1, 0
    %v6792 = vsel %vm6728, 1, 0
    %v6793 = vsel %vm6729, 1, 0
    %v6794 = vsel %vm6730, 1, 0
    %v6795 = vsel %vm6731, 1, 0
    %v6796 = vsel %vm6732, 1, 0
    %v6797 = vsel %vm6733, 1, 0
    %v6798 = vsel %vm6734, 1, 0
    %v6799 = vsel %vm6735, 1, 0
    %v6800 = vsel %vm6736, 1, 0
    %v6801 = vsel %vm6737, 1, 0
    %v6802 = vsel %vm6738, 1, 0
    %v6803 = vsel %vm6739, 1, 0
    %vm6804 = vcmp.eq.s32.totalorder %v6740, 1
    %vm6805 = vcmp.eq.s32.totalorder %v6741, 1
    %vm6806 = vcmp.eq.s32.totalorder %v6742, 1
    %vm6807 = vcmp.eq.s32.totalorder %v6743, 1
    %vm6808 = vcmp.eq.s32.totalorder %v6744, 1
    %vm6809 = vcmp.eq.s32.totalorder %v6745, 1
    %vm6810 = vcmp.eq.s32.totalorder %v6746, 1
    %vm6811 = vcmp.eq.s32.totalorder %v6747, 1
    %vm6812 = vcmp.eq.s32.totalorder %v6748, 1
    %vm6813 = vcmp.eq.s32.totalorder %v6749, 1
    %vm6814 = vcmp.eq.s32.totalorder %v6750, 1
    %vm6815 = vcmp.eq.s32.totalorder %v6751, 1
    %vm6816 = vcmp.eq.s32.totalorder %v6752, 1
    %vm6817 = vcmp.eq.s32.totalorder %v6753, 1
    %vm6818 = vcmp.eq.s32.totalorder %v6754, 1
    %vm6819 = vcmp.eq.s32.totalorder %v6755, 1
    %vm6820 = vcmp.eq.s32.totalorder %v6756, 1
    %vm6821 = vcmp.eq.s32.totalorder %v6757, 1
    %vm6822 = vcmp.eq.s32.totalorder %v6758, 1
    %vm6823 = vcmp.eq.s32.totalorder %v6759, 1
    %vm6824 = vcmp.eq.s32.totalorder %v6760, 1
    %vm6825 = vcmp.eq.s32.totalorder %v6761, 1
    %vm6826 = vcmp.eq.s32.totalorder %v6762, 1
    %vm6827 = vcmp.eq.s32.totalorder %v6763, 1
    %vm6828 = vcmp.eq.s32.totalorder %v6764, 1
    %vm6829 = vcmp.eq.s32.totalorder %v6765, 1
    %vm6830 = vcmp.eq.s32.totalorder %v6766, 1
    %vm6831 = vcmp.eq.s32.totalorder %v6767, 1
    %vm6832 = vcmp.eq.s32.totalorder %v6768, 1
    %vm6833 = vcmp.eq.s32.totalorder %v6769, 1
    %vm6834 = vcmp.eq.s32.totalorder %v6770, 1
    %vm6835 = vcmp.eq.s32.totalorder %v6771, 1
    %vm6836 = vcmp.eq.s32.totalorder %v6772, 1
    %vm6837 = vcmp.eq.s32.totalorder %v6773, 1
    %vm6838 = vcmp.eq.s32.totalorder %v6774, 1
    %vm6839 = vcmp.eq.s32.totalorder %v6775, 1
    %vm6840 = vcmp.eq.s32.totalorder %v6776, 1
    %vm6841 = vcmp.eq.s32.totalorder %v6777, 1
    %vm6842 = vcmp.eq.s32.totalorder %v6778, 1
    %vm6843 = vcmp.eq.s32.totalorder %v6779, 1
    %vm6844 = vcmp.eq.s32.totalorder %v6780, 1
    %vm6845 = vcmp.eq.s32.totalorder %v6781, 1
    %vm6846 = vcmp.eq.s32.totalorder %v6782, 1
    %vm6847 = vcmp.eq.s32.totalorder %v6783, 1
    %vm6848 = vcmp.eq.s32.totalorder %v6784, 1
    %vm6849 = vcmp.eq.s32.totalorder %v6785, 1
    %vm6850 = vcmp.eq.s32.totalorder %v6786, 1
    %vm6851 = vcmp.eq.s32.totalorder %v6787, 1
    %vm6852 = vcmp.eq.s32.totalorder %v6788, 1
    %vm6853 = vcmp.eq.s32.totalorder %v6789, 1
    %vm6854 = vcmp.eq.s32.totalorder %v6790, 1
    %vm6855 = vcmp.eq.s32.totalorder %v6791, 1
    %vm6856 = vcmp.eq.s32.totalorder %v6792, 1
    %vm6857 = vcmp.eq.s32.totalorder %v6793, 1
    %vm6858 = vcmp.eq.s32.totalorder %v6794, 1
    %vm6859 = vcmp.eq.s32.totalorder %v6795, 1
    %vm6860 = vcmp.eq.s32.totalorder %v6796, 1
    %vm6861 = vcmp.eq.s32.totalorder %v6797, 1
    %vm6862 = vcmp.eq.s32.totalorder %v6798, 1
    %vm6863 = vcmp.eq.s32.totalorder %v6799, 1
    %vm6864 = vcmp.eq.s32.totalorder %v6800, 1
    %vm6865 = vcmp.eq.s32.totalorder %v6801, 1
    %vm6866 = vcmp.eq.s32.totalorder %v6802, 1
    %vm6867 = vcmp.eq.s32.totalorder %v6803, 1
    %v6868 = vsel %vm6804, %v4689, 0.0
    %v6869 = vsel %vm6805, %v4688, 0.0
    %v6870 = vsel %vm6806, %v4687, 0.0
    %v6871 = vsel %vm6807, %v4686, 0.0
    %v6872 = vsel %vm6808, %v4685, 0.0
    %v6873 = vsel %vm6809, %v4684, 0.0
    %v6874 = vsel %vm6810, %v4683, 0.0
    %v6875 = vsel %vm6811, %v4682, 0.0
    %v6876 = vsel %vm6812, %v4681, 0.0
    %v6877 = vsel %vm6813, %v4680, 0.0
    %v6878 = vsel %vm6814, %v4679, 0.0
    %v6879 = vsel %vm6815, %v4678, 0.0
    %v6880 = vsel %vm6816, %v4677, 0.0
    %v6881 = vsel %vm6817, %v4676, 0.0
    %v6882 = vsel %vm6818, %v4675, 0.0
    %v6883 = vsel %vm6819, %v4674, 0.0
    %v6884 = vsel %vm6820, %v4673, 0.0
    %v6885 = vsel %vm6821, %v4672, 0.0
    %v6886 = vsel %vm6822, %v4671, 0.0
    %v6887 = vsel %vm6823, %v4670, 0.0
    %v6888 = vsel %vm6824, %v4669, 0.0
    %v6889 = vsel %vm6825, %v4668, 0.0
    %v6890 = vsel %vm6826, %v4667, 0.0
    %v6891 = vsel %vm6827, %v4666, 0.0
    %v6892 = vsel %vm6828, %v4665, 0.0
    %v6893 = vsel %vm6829, %v4664, 0.0
    %v6894 = vsel %vm6830, %v4663, 0.0
    %v6895 = vsel %vm6831, %v4662, 0.0
    %v6896 = vsel %vm6832, %v4661, 0.0
    %v6897 = vsel %vm6833, %v4660, 0.0
    %v6898 = vsel %vm6834, %v4659, 0.0
    %v6899 = vsel %vm6835, %v4658, 0.0
    %v6900 = vsel %vm6836, %v4657, 0.0
    %v6901 = vsel %vm6837, %v4656, 0.0
    %v6902 = vsel %vm6838, %v4655, 0.0
    %v6903 = vsel %vm6839, %v4654, 0.0
    %v6904 = vsel %vm6840, %v4653, 0.0
    %v6905 = vsel %vm6841, %v4652, 0.0
    %v6906 = vsel %vm6842, %v4651, 0.0
    %v6907 = vsel %vm6843, %v4650, 0.0
    %v6908 = vsel %vm6844, %v4649, 0.0
    %v6909 = vsel %vm6845, %v4648, 0.0
    %v6910 = vsel %vm6846, %v4647, 0.0
    %v6911 = vsel %vm6847, %v4646, 0.0
    %v6912 = vsel %vm6848, %v4645, 0.0
    %v6913 = vsel %vm6849, %v4644, 0.0
    %v6914 = vsel %vm6850, %v4643, 0.0
    %v6915 = vsel %vm6851, %v4642, 0.0
    %v6916 = vsel %vm6852, %v4641, 0.0
    %v6917 = vsel %vm6853, %v4640, 0.0
    %v6918 = vsel %vm6854, %v4639, 0.0
    %v6919 = vsel %vm6855, %v4638, 0.0
    %v6920 = vsel %vm6856, %v4637, 0.0
    %v6921 = vsel %vm6857, %v4636, 0.0
    %v6922 = vsel %vm6858, %v4635, 0.0
    %v6923 = vsel %vm6859, %v4634, 0.0
    %v6924 = vsel %vm6860, %v4633, 0.0
    %v6925 = vsel %vm6861, %v4632, 0.0
    %v6926 = vsel %vm6862, %v4631, 0.0
    %v6927 = vsel %vm6863, %v4630, 0.0
    %v6928 = vsel %vm6864, %v4629, 0.0
    %v6929 = vsel %vm6865, %v4628, 0.0
    %v6930 = vsel %vm6866, %v4627, 0.0
    %v6931 = vsel %vm6867, %v4690, 0.0
    %v6932 = vpack.c.bf16 %v6869, %v6868
    %v6933 = vpack.c.bf16 %v6871, %v6870
    %v6934 = vpack.c.bf16 %v6873, %v6872
    %v6935 = vpack.c.bf16 %v6875, %v6874
    %v6936 = vpack.c.bf16 %v6877, %v6876
    %v6937 = vpack.c.bf16 %v6879, %v6878
    %v6938 = vpack.c.bf16 %v6881, %v6880
    %v6939 = vpack.c.bf16 %v6883, %v6882
    %v6940 = vpack.c.bf16 %v6885, %v6884
    %v6941 = vpack.c.bf16 %v6887, %v6886
    %v6942 = vpack.c.bf16 %v6889, %v6888
    %v6943 = vpack.c.bf16 %v6891, %v6890
    %v6944 = vpack.c.bf16 %v6893, %v6892
    %v6945 = vpack.c.bf16 %v6895, %v6894
    %v6946 = vpack.c.bf16 %v6897, %v6896
    %v6947 = vpack.c.bf16 %v6899, %v6898
    %v6948 = vpack.c.bf16 %v6901, %v6900
    %v6949 = vpack.c.bf16 %v6903, %v6902
    %v6950 = vpack.c.bf16 %v6905, %v6904
    %v6951 = vpack.c.bf16 %v6907, %v6906
    %v6952 = vpack.c.bf16 %v6909, %v6908
    %v6953 = vpack.c.bf16 %v6911, %v6910
    %v6954 = vpack.c.bf16 %v6913, %v6912
    %v6955 = vpack.c.bf16 %v6915, %v6914
    %v6956 = vpack.c.bf16 %v6917, %v6916
    %v6957 = vpack.c.bf16 %v6919, %v6918
    %v6958 = vpack.c.bf16 %v6921, %v6920
    %v6959 = vpack.c.bf16 %v6923, %v6922
    %v6960 = vpack.c.bf16 %v6925, %v6924
    %v6961 = vpack.c.bf16 %v6927, %v6926
    %v6962 = vpack.c.bf16 %v6929, %v6928
    %v6963 = vpack.c.bf16 %v6931, %v6930
    %6964 = vst.msk [vmem:[#allocation3 + $0x18] sm:$0xff] %vm3667, %v6932
    %6965 = vst.msk [vmem:[#allocation3 + $0x40] sm:$0xff] %vm3667, %v6933
    %6966 = vst.msk [vmem:[#allocation3 + $0x68] sm:$0xff] %vm3667, %v6934
    %6967 = vst.msk [vmem:[#allocation3 + $0x90] sm:$0xff] %vm3667, %v6935
    %6968 = vst.msk [vmem:[#allocation3 + $0xb8] sm:$0xff] %vm3667, %v6936
    %6969 = vst.msk [vmem:[#allocation3 + $0xe0] sm:$0xff] %vm3667, %v6937
    %6970 = vst.msk [vmem:[#allocation3 + $0x108] sm:$0xff] %vm3667, %v6938
    %6971 = vst.msk [vmem:[#allocation3 + $0x130] sm:$0xff] %vm3667, %v6939
    %6972 = vst.msk [vmem:[#allocation3 + $0x158] sm:$0xff] %vm3667, %v6940
    %6973 = vst.msk [vmem:[#allocation3 + $0x180] sm:$0xff] %vm3667, %v6941
    %6974 = vst.msk [vmem:[#allocation3 + $0x1a8] sm:$0xff] %vm3667, %v6942
    %6975 = vst.msk [vmem:[#allocation3 + $0x1d0] sm:$0xff] %vm3667, %v6943
    %6976 = vst.msk [vmem:[#allocation3 + $0x1f8] sm:$0xff] %vm3667, %v6944
    %6977 = vst.msk [vmem:[#allocation3 + $0x220] sm:$0xff] %vm3667, %v6945
    %6978 = vst.msk [vmem:[#allocation3 + $0x248] sm:$0xff] %vm3667, %v6946
    %6979 = vst.msk [vmem:[#allocation3 + $0x270] sm:$0xff] %vm3667, %v6947
    %6980 = vst.msk [vmem:[#allocation3 + $0x298] sm:$0xff] %vm3667, %v6948
    %6981 = vst.msk [vmem:[#allocation3 + $0x2c0] sm:$0xff] %vm3667, %v6949
    %6982 = vst.msk [vmem:[#allocation3 + $0x2e8] sm:$0xff] %vm3667, %v6950
    %6983 = vst.msk [vmem:[#allocation3 + $0x310] sm:$0xff] %vm3667, %v6951
    %6984 = vst.msk [vmem:[#allocation3 + $0x338] sm:$0xff] %vm3667, %v6952
    %6985 = vst.msk [vmem:[#allocation3 + $0x360] sm:$0xff] %vm3667, %v6953
    %6986 = vst.msk [vmem:[#allocation3 + $0x388] sm:$0xff] %vm3667, %v6954
    %6987 = vst.msk [vmem:[#allocation3 + $0x3b0] sm:$0xff] %vm3667, %v6955
    %6988 = vst.msk [vmem:[#allocation3 + $0x3d8] sm:$0xff] %vm3667, %v6956
    %6989 = vst.msk [vmem:[#allocation3 + $0x400] sm:$0xff] %vm3667, %v6957
    %6990 = vst.msk [vmem:[#allocation3 + $0x428] sm:$0xff] %vm3667, %v6958
    %6991 = vst.msk [vmem:[#allocation3 + $0x450] sm:$0xff] %vm3667, %v6959
    %6992 = vst.msk [vmem:[#allocation3 + $0x478] sm:$0xff] %vm3667, %v6960
    %6993 = vst.msk [vmem:[#allocation3 + $0x4a0] sm:$0xff] %vm3667, %v6961
    %6994 = vst.msk [vmem:[#allocation3 + $0x4c8] sm:$0xff] %vm3667, %v6962
    %6995 = vst.msk [vmem:[#allocation3 + $0x4f0] sm:$0xff] %vm3667, %v6963
    %v6996 = vsel %vm4370, 1, 0
    %v6997 = vsel %vm4371, 1, 0
    %v6998 = vsel %vm4372, 1, 0
    %v6999 = vsel %vm4373, 1, 0
    %v7000 = vsel %vm4374, 1, 0
    %v7001 = vsel %vm4375, 1, 0
    %v7002 = vsel %vm4376, 1, 0
    %v7003 = vsel %vm4377, 1, 0
    %v7004 = vsel %vm4378, 1, 0
    %v7005 = vsel %vm4379, 1, 0
    %v7006 = vsel %vm4380, 1, 0
    %v7007 = vsel %vm4381, 1, 0
    %v7008 = vsel %vm4382, 1, 0
    %v7009 = vsel %vm4383, 1, 0
    %v7010 = vsel %vm4384, 1, 0
    %v7011 = vsel %vm4385, 1, 0
    %v7012 = vsel %vm4386, 1, 0
    %v7013 = vsel %vm4387, 1, 0
    %v7014 = vsel %vm4388, 1, 0
    %v7015 = vsel %vm4389, 1, 0
    %v7016 = vsel %vm4390, 1, 0
    %v7017 = vsel %vm4391, 1, 0
    %v7018 = vsel %vm4392, 1, 0
    %v7019 = vsel %vm4393, 1, 0
    %v7020 = vsel %vm4394, 1, 0
    %v7021 = vsel %vm4395, 1, 0
    %v7022 = vsel %vm4396, 1, 0
    %v7023 = vsel %vm4397, 1, 0
    %v7024 = vsel %vm4398, 1, 0
    %v7025 = vsel %vm4399, 1, 0
    %v7026 = vsel %vm4400, 1, 0
    %v7027 = vsel %vm4401, 1, 0
    %v7028 = vsel %vm4402, 1, 0
    %v7029 = vsel %vm4403, 1, 0
    %v7030 = vsel %vm4404, 1, 0
    %v7031 = vsel %vm4405, 1, 0
    %v7032 = vsel %vm4406, 1, 0
    %v7033 = vsel %vm4407, 1, 0
    %v7034 = vsel %vm4408, 1, 0
    %v7035 = vsel %vm4409, 1, 0
    %v7036 = vsel %vm4410, 1, 0
    %v7037 = vsel %vm4411, 1, 0
    %v7038 = vsel %vm4412, 1, 0
    %v7039 = vsel %vm4413, 1, 0
    %v7040 = vsel %vm4414, 1, 0
    %v7041 = vsel %vm4415, 1, 0
    %v7042 = vsel %vm4416, 1, 0
    %v7043 = vsel %vm4417, 1, 0
    %v7044 = vsel %vm4418, 1, 0
    %v7045 = vsel %vm4419, 1, 0
    %v7046 = vsel %vm4420, 1, 0
    %v7047 = vsel %vm4421, 1, 0
    %v7048 = vsel %vm4422, 1, 0
    %v7049 = vsel %vm4423, 1, 0
    %v7050 = vsel %vm4424, 1, 0
    %v7051 = vsel %vm4425, 1, 0
    %v7052 = vsel %vm4426, 1, 0
    %v7053 = vsel %vm4427, 1, 0
    %v7054 = vsel %vm4428, 1, 0
    %v7055 = vsel %vm4429, 1, 0
    %v7056 = vsel %vm4430, 1, 0
    %v7057 = vsel %vm4431, 1, 0
    %v7058 = vsel %vm4432, 1, 0
    %v7059 = vsel %vm4433, 1, 0
    %vm7060 = vcmp.eq.s32.totalorder %v6996, 1
    %vm7061 = vcmp.eq.s32.totalorder %v6997, 1
    %vm7062 = vcmp.eq.s32.totalorder %v6998, 1
    %vm7063 = vcmp.eq.s32.totalorder %v6999, 1
    %vm7064 = vcmp.eq.s32.totalorder %v7000, 1
    %vm7065 = vcmp.eq.s32.totalorder %v7001, 1
    %vm7066 = vcmp.eq.s32.totalorder %v7002, 1
    %vm7067 = vcmp.eq.s32.totalorder %v7003, 1
    %vm7068 = vcmp.eq.s32.totalorder %v7004, 1
    %vm7069 = vcmp.eq.s32.totalorder %v7005, 1
    %vm7070 = vcmp.eq.s32.totalorder %v7006, 1
    %vm7071 = vcmp.eq.s32.totalorder %v7007, 1
    %vm7072 = vcmp.eq.s32.totalorder %v7008, 1
    %vm7073 = vcmp.eq.s32.totalorder %v7009, 1
    %vm7074 = vcmp.eq.s32.totalorder %v7010, 1
    %vm7075 = vcmp.eq.s32.totalorder %v7011, 1
    %vm7076 = vcmp.eq.s32.totalorder %v7012, 1
    %vm7077 = vcmp.eq.s32.totalorder %v7013, 1
    %vm7078 = vcmp.eq.s32.totalorder %v7014, 1
    %vm7079 = vcmp.eq.s32.totalorder %v7015, 1
    %vm7080 = vcmp.eq.s32.totalorder %v7016, 1
    %vm7081 = vcmp.eq.s32.totalorder %v7017, 1
    %vm7082 = vcmp.eq.s32.totalorder %v7018, 1
    %vm7083 = vcmp.eq.s32.totalorder %v7019, 1
    %vm7084 = vcmp.eq.s32.totalorder %v7020, 1
    %vm7085 = vcmp.eq.s32.totalorder %v7021, 1
    %vm7086 = vcmp.eq.s32.totalorder %v7022, 1
    %vm7087 = vcmp.eq.s32.totalorder %v7023, 1
    %vm7088 = vcmp.eq.s32.totalorder %v7024, 1
    %vm7089 = vcmp.eq.s32.totalorder %v7025, 1
    %vm7090 = vcmp.eq.s32.totalorder %v7026, 1
    %vm7091 = vcmp.eq.s32.totalorder %v7027, 1
    %vm7092 = vcmp.eq.s32.totalorder %v7028, 1
    %vm7093 = vcmp.eq.s32.totalorder %v7029, 1
    %vm7094 = vcmp.eq.s32.totalorder %v7030, 1
    %vm7095 = vcmp.eq.s32.totalorder %v7031, 1
    %vm7096 = vcmp.eq.s32.totalorder %v7032, 1
    %vm7097 = vcmp.eq.s32.totalorder %v7033, 1
    %vm7098 = vcmp.eq.s32.totalorder %v7034, 1
    %vm7099 = vcmp.eq.s32.totalorder %v7035, 1
    %vm7100 = vcmp.eq.s32.totalorder %v7036, 1
    %vm7101 = vcmp.eq.s32.totalorder %v7037, 1
    %vm7102 = vcmp.eq.s32.totalorder %v7038, 1
    %vm7103 = vcmp.eq.s32.totalorder %v7039, 1
    %vm7104 = vcmp.eq.s32.totalorder %v7040, 1
    %vm7105 = vcmp.eq.s32.totalorder %v7041, 1
    %vm7106 = vcmp.eq.s32.totalorder %v7042, 1
    %vm7107 = vcmp.eq.s32.totalorder %v7043, 1
    %vm7108 = vcmp.eq.s32.totalorder %v7044, 1
    %vm7109 = vcmp.eq.s32.totalorder %v7045, 1
    %vm7110 = vcmp.eq.s32.totalorder %v7046, 1
    %vm7111 = vcmp.eq.s32.totalorder %v7047, 1
    %vm7112 = vcmp.eq.s32.totalorder %v7048, 1
    %vm7113 = vcmp.eq.s32.totalorder %v7049, 1
    %vm7114 = vcmp.eq.s32.totalorder %v7050, 1
    %vm7115 = vcmp.eq.s32.totalorder %v7051, 1
    %vm7116 = vcmp.eq.s32.totalorder %v7052, 1
    %vm7117 = vcmp.eq.s32.totalorder %v7053, 1
    %vm7118 = vcmp.eq.s32.totalorder %v7054, 1
    %vm7119 = vcmp.eq.s32.totalorder %v7055, 1
    %vm7120 = vcmp.eq.s32.totalorder %v7056, 1
    %vm7121 = vcmp.eq.s32.totalorder %v7057, 1
    %vm7122 = vcmp.eq.s32.totalorder %v7058, 1
    %vm7123 = vcmp.eq.s32.totalorder %v7059, 1
    %v7124 = vsel %vm7060, %v3926, 0.0
    %v7125 = vsel %vm7061, %v3928, 0.0
    %v7126 = vsel %vm7062, %v3930, 0.0
    %v7127 = vsel %vm7063, %v3932, 0.0
    %v7128 = vsel %vm7064, %v3934, 0.0
    %v7129 = vsel %vm7065, %v3936, 0.0
    %v7130 = vsel %vm7066, %v3938, 0.0
    %v7131 = vsel %vm7067, %v3940, 0.0
    %v7132 = vsel %vm7068, %v3942, 0.0
    %v7133 = vsel %vm7069, %v3944, 0.0
    %v7134 = vsel %vm7070, %v3946, 0.0
    %v7135 = vsel %vm7071, %v3948, 0.0
    %v7136 = vsel %vm7072, %v3950, 0.0
    %v7137 = vsel %vm7073, %v3952, 0.0
    %v7138 = vsel %vm7074, %v3954, 0.0
    %v7139 = vsel %vm7075, %v3956, 0.0
    %v7140 = vsel %vm7076, %v3958, 0.0
    %v7141 = vsel %vm7077, %v3960, 0.0
    %v7142 = vsel %vm7078, %v3962, 0.0
    %v7143 = vsel %vm7079, %v3964, 0.0
    %v7144 = vsel %vm7080, %v3966, 0.0
    %v7145 = vsel %vm7081, %v3968, 0.0
    %v7146 = vsel %vm7082, %v3970, 0.0
    %v7147 = vsel %vm7083, %v3972, 0.0
    %v7148 = vsel %vm7084, %v3974, 0.0
    %v7149 = vsel %vm7085, %v3976, 0.0
    %v7150 = vsel %vm7086, %v3978, 0.0
    %v7151 = vsel %vm7087, %v3980, 0.0
    %v7152 = vsel %vm7088, %v3982, 0.0
    %v7153 = vsel %vm7089, %v3984, 0.0
    %v7154 = vsel %vm7090, %v3986, 0.0
    %v7155 = vsel %vm7091, %v3988, 0.0
    %v7156 = vsel %vm7092, %v3990, 0.0
    %v7157 = vsel %vm7093, %v3992, 0.0
    %v7158 = vsel %vm7094, %v3994, 0.0
    %v7159 = vsel %vm7095, %v3996, 0.0
    %v7160 = vsel %vm7096, %v3998, 0.0
    %v7161 = vsel %vm7097, %v4000, 0.0
    %v7162 = vsel %vm7098, %v4002, 0.0
    %v7163 = vsel %vm7099, %v4004, 0.0
    %v7164 = vsel %vm7100, %v4006, 0.0
    %v7165 = vsel %vm7101, %v4008, 0.0
    %v7166 = vsel %vm7102, %v4010, 0.0
    %v7167 = vsel %vm7103, %v4012, 0.0
    %v7168 = vsel %vm7104, %v4014, 0.0
    %v7169 = vsel %vm7105, %v4016, 0.0
    %v7170 = vsel %vm7106, %v4018, 0.0
    %v7171 = vsel %vm7107, %v4020, 0.0
    %v7172 = vsel %vm7108, %v4022, 0.0
    %v7173 = vsel %vm7109, %v4024, 0.0
    %v7174 = vsel %vm7110, %v4026, 0.0
    %v7175 = vsel %vm7111, %v4028, 0.0
    %v7176 = vsel %vm7112, %v4030, 0.0
    %v7177 = vsel %vm7113, %v4032, 0.0
    %v7178 = vsel %vm7114, %v4034, 0.0
    %v7179 = vsel %vm7115, %v4036, 0.0
    %v7180 = vsel %vm7116, %v4038, 0.0
    %v7181 = vsel %vm7117, %v4040, 0.0
    %v7182 = vsel %vm7118, %v4042, 0.0
    %v7183 = vsel %vm7119, %v4044, 0.0
    %v7184 = vsel %vm7120, %v4046, 0.0
    %v7185 = vsel %vm7121, %v4048, 0.0
    %v7186 = vsel %vm7122, %v4050, 0.0
    %v7187 = vsel %vm7123, %v3924, 0.0
    %v7188 = vpack.c.bf16 %v7125, %v7124
    %v7189 = vpack.c.bf16 %v7127, %v7126
    %v7190 = vpack.c.bf16 %v7129, %v7128
    %v7191 = vpack.c.bf16 %v7131, %v7130
    %v7192 = vpack.c.bf16 %v7133, %v7132
    %v7193 = vpack.c.bf16 %v7135, %v7134
    %v7194 = vpack.c.bf16 %v7137, %v7136
    %v7195 = vpack.c.bf16 %v7139, %v7138
    %v7196 = vpack.c.bf16 %v7141, %v7140
    %v7197 = vpack.c.bf16 %v7143, %v7142
    %v7198 = vpack.c.bf16 %v7145, %v7144
    %v7199 = vpack.c.bf16 %v7147, %v7146
    %v7200 = vpack.c.bf16 %v7149, %v7148
    %v7201 = vpack.c.bf16 %v7151, %v7150
    %v7202 = vpack.c.bf16 %v7153, %v7152
    %v7203 = vpack.c.bf16 %v7155, %v7154
    %v7204 = vpack.c.bf16 %v7157, %v7156
    %v7205 = vpack.c.bf16 %v7159, %v7158
    %v7206 = vpack.c.bf16 %v7161, %v7160
    %v7207 = vpack.c.bf16 %v7163, %v7162
    %v7208 = vpack.c.bf16 %v7165, %v7164
    %v7209 = vpack.c.bf16 %v7167, %v7166
    %v7210 = vpack.c.bf16 %v7169, %v7168
    %v7211 = vpack.c.bf16 %v7171, %v7170
    %v7212 = vpack.c.bf16 %v7173, %v7172
    %v7213 = vpack.c.bf16 %v7175, %v7174
    %v7214 = vpack.c.bf16 %v7177, %v7176
    %v7215 = vpack.c.bf16 %v7179, %v7178
    %v7216 = vpack.c.bf16 %v7181, %v7180
    %v7217 = vpack.c.bf16 %v7183, %v7182
    %v7218 = vpack.c.bf16 %v7185, %v7184
    %v7219 = vpack.c.bf16 %v7187, %v7186
    %7252 = vrot.lane.b32.xlu0 %v7188, 64
    %v7253 = vpop.permute.xlu0 %7252
    %7254 = vrot.lane.b32.xlu0 %v7189, 64
    %v7255 = vpop.permute.xlu0 %7254
    %7256 = vrot.lane.b32.xlu0 %v7190, 64
    %v7257 = vpop.permute.xlu0 %7256
    %7258 = vrot.lane.b32.xlu0 %v7191, 64
    %v7259 = vpop.permute.xlu0 %7258
    %7260 = vrot.lane.b32.xlu0 %v7192, 64
    %v7261 = vpop.permute.xlu0 %7260
    %7262 = vrot.lane.b32.xlu0 %v7193, 64
    %v7263 = vpop.permute.xlu0 %7262
    %7264 = vrot.lane.b32.xlu0 %v7194, 64
    %v7265 = vpop.permute.xlu0 %7264
    %7266 = vrot.lane.b32.xlu0 %v7195, 64
    %v7267 = vpop.permute.xlu0 %7266
    %7268 = vrot.lane.b32.xlu0 %v7196, 64
    %v7269 = vpop.permute.xlu0 %7268
    %7270 = vrot.lane.b32.xlu0 %v7197, 64
    %v7271 = vpop.permute.xlu0 %7270
    %7272 = vrot.lane.b32.xlu0 %v7198, 64
    %v7273 = vpop.permute.xlu0 %7272
    %7274 = vrot.lane.b32.xlu0 %v7199, 64
    %v7275 = vpop.permute.xlu0 %7274
    %7276 = vrot.lane.b32.xlu0 %v7200, 64
    %v7277 = vpop.permute.xlu0 %7276
    %7278 = vrot.lane.b32.xlu0 %v7201, 64
    %v7279 = vpop.permute.xlu0 %7278
    %7280 = vrot.lane.b32.xlu0 %v7202, 64
    %v7281 = vpop.permute.xlu0 %7280
    %7282 = vrot.lane.b32.xlu0 %v7203, 64
    %v7283 = vpop.permute.xlu0 %7282
    %7284 = vrot.lane.b32.xlu0 %v7204, 64
    %v7285 = vpop.permute.xlu0 %7284
    %7286 = vrot.lane.b32.xlu0 %v7205, 64
    %v7287 = vpop.permute.xlu0 %7286
    %7288 = vrot.lane.b32.xlu0 %v7206, 64
    %v7289 = vpop.permute.xlu0 %7288
    %7290 = vrot.lane.b32.xlu0 %v7207, 64
    %v7291 = vpop.permute.xlu0 %7290
    %7292 = vrot.lane.b32.xlu0 %v7208, 64
    %v7293 = vpop.permute.xlu0 %7292
    %7294 = vrot.lane.b32.xlu0 %v7209, 64
    %v7295 = vpop.permute.xlu0 %7294
    %7296 = vrot.lane.b32.xlu0 %v7210, 64
    %v7297 = vpop.permute.xlu0 %7296
    %7298 = vrot.lane.b32.xlu0 %v7211, 64
    %v7299 = vpop.permute.xlu0 %7298
    %7300 = vrot.lane.b32.xlu0 %v7212, 64
    %v7301 = vpop.permute.xlu0 %7300
    %7302 = vrot.lane.b32.xlu0 %v7213, 64
    %v7303 = vpop.permute.xlu0 %7302
    %7304 = vrot.lane.b32.xlu0 %v7214, 64
    %v7305 = vpop.permute.xlu0 %7304
    %7306 = vrot.lane.b32.xlu0 %v7215, 64
    %v7307 = vpop.permute.xlu0 %7306
    %7308 = vrot.lane.b32.xlu0 %v7216, 64
    %v7309 = vpop.permute.xlu0 %7308
    %7310 = vrot.lane.b32.xlu0 %v7217, 64
    %v7311 = vpop.permute.xlu0 %7310
    %7312 = vrot.lane.b32.xlu0 %v7218, 64
    %v7313 = vpop.permute.xlu0 %7312
    %7314 = vrot.lane.b32.xlu0 %v7219, 64
    %v7315 = vpop.permute.xlu0 %7314
    %7348 = vst.msk [vmem:[#allocation3 + $0x18] sm:$0xff] %vm5363, %v7253
    %7349 = vst.msk [vmem:[#allocation3 + $0x40] sm:$0xff] %vm5363, %v7255
    %7350 = vst.msk [vmem:[#allocation3 + $0x68] sm:$0xff] %vm5363, %v7257
    %7351 = vst.msk [vmem:[#allocation3 + $0x90] sm:$0xff] %vm5363, %v7259
    %7352 = vst.msk [vmem:[#allocation3 + $0xb8] sm:$0xff] %vm5363, %v7261
    %7353 = vst.msk [vmem:[#allocation3 + $0xe0] sm:$0xff] %vm5363, %v7263
    %7354 = vst.msk [vmem:[#allocation3 + $0x108] sm:$0xff] %vm5363, %v7265
    %7355 = vst.msk [vmem:[#allocation3 + $0x130] sm:$0xff] %vm5363, %v7267
    %7356 = vst.msk [vmem:[#allocation3 + $0x158] sm:$0xff] %vm5363, %v7269
    %7357 = vst.msk [vmem:[#allocation3 + $0x180] sm:$0xff] %vm5363, %v7271
    %7358 = vst.msk [vmem:[#allocation3 + $0x1a8] sm:$0xff] %vm5363, %v7273
    %7359 = vst.msk [vmem:[#allocation3 + $0x1d0] sm:$0xff] %vm5363, %v7275
    %7360 = vst.msk [vmem:[#allocation3 + $0x1f8] sm:$0xff] %vm5363, %v7277
    %7361 = vst.msk [vmem:[#allocation3 + $0x220] sm:$0xff] %vm5363, %v7279
    %7362 = vst.msk [vmem:[#allocation3 + $0x248] sm:$0xff] %vm5363, %v7281
    %7363 = vst.msk [vmem:[#allocation3 + $0x270] sm:$0xff] %vm5363, %v7283
    %7364 = vst.msk [vmem:[#allocation3 + $0x298] sm:$0xff] %vm5363, %v7285
    %7365 = vst.msk [vmem:[#allocation3 + $0x2c0] sm:$0xff] %vm5363, %v7287
    %7366 = vst.msk [vmem:[#allocation3 + $0x2e8] sm:$0xff] %vm5363, %v7289
    %7367 = vst.msk [vmem:[#allocation3 + $0x310] sm:$0xff] %vm5363, %v7291
    %7368 = vst.msk [vmem:[#allocation3 + $0x338] sm:$0xff] %vm5363, %v7293
    %7369 = vst.msk [vmem:[#allocation3 + $0x360] sm:$0xff] %vm5363, %v7295
    %7370 = vst.msk [vmem:[#allocation3 + $0x388] sm:$0xff] %vm5363, %v7297
    %7371 = vst.msk [vmem:[#allocation3 + $0x3b0] sm:$0xff] %vm5363, %v7299
    %7372 = vst.msk [vmem:[#allocation3 + $0x3d8] sm:$0xff] %vm5363, %v7301
    %7373 = vst.msk [vmem:[#allocation3 + $0x400] sm:$0xff] %vm5363, %v7303
    %7374 = vst.msk [vmem:[#allocation3 + $0x428] sm:$0xff] %vm5363, %v7305
    %7375 = vst.msk [vmem:[#allocation3 + $0x450] sm:$0xff] %vm5363, %v7307
    %7376 = vst.msk [vmem:[#allocation3 + $0x478] sm:$0xff] %vm5363, %v7309
    %7377 = vst.msk [vmem:[#allocation3 + $0x4a0] sm:$0xff] %vm5363, %v7311
    %7378 = vst.msk [vmem:[#allocation3 + $0x4c8] sm:$0xff] %vm5363, %v7313
    %7379 = vst.msk [vmem:[#allocation3 + $0x4f0] sm:$0xff] %vm5363, %v7315
    %vm7380 = vmand %vm4370, %vm4498
    %vm7381 = vmand %vm4371, %vm4499
    %vm7382 = vmand %vm4372, %vm4500
    %vm7383 = vmand %vm4373, %vm4501
    %vm7384 = vmand %vm4374, %vm4502
    %vm7385 = vmand %vm4375, %vm4503
    %vm7386 = vmand %vm4376, %vm4504
    %vm7387 = vmand %vm4377, %vm4505
    %vm7388 = vmand %vm4378, %vm4506
    %vm7389 = vmand %vm4379, %vm4507
    %vm7390 = vmand %vm4380, %vm4508
    %vm7391 = vmand %vm4381, %vm4509
    %vm7392 = vmand %vm4382, %vm4510
    %vm7393 = vmand %vm4383, %vm4511
    %vm7394 = vmand %vm4384, %vm4512
    %vm7395 = vmand %vm4385, %vm4513
    %vm7396 = vmand %vm4386, %vm4514
    %vm7397 = vmand %vm4387, %vm4515
    %vm7398 = vmand %vm4388, %vm4516
    %vm7399 = vmand %vm4389, %vm4517
    %vm7400 = vmand %vm4390, %vm4518
    %vm7401 = vmand %vm4391, %vm4519
    %vm7402 = vmand %vm4392, %vm4520
    %vm7403 = vmand %vm4393, %vm4521
    %vm7404 = vmand %vm4394, %vm4522
    %vm7405 = vmand %vm4395, %vm4523
    %vm7406 = vmand %vm4396, %vm4524
    %vm7407 = vmand %vm4397, %vm4525
    %vm7408 = vmand %vm4398, %vm4526
    %vm7409 = vmand %vm4399, %vm4527
    %vm7410 = vmand %vm4400, %vm4528
    %vm7411 = vmand %vm4401, %vm4529
    %vm7412 = vmand %vm4402, %vm4530
    %vm7413 = vmand %vm4403, %vm4531
    %vm7414 = vmand %vm4404, %vm4532
    %vm7415 = vmand %vm4405, %vm4533
    %vm7416 = vmand %vm4406, %vm4534
    %vm7417 = vmand %vm4407, %vm4535
    %vm7418 = vmand %vm4408, %vm4536
    %vm7419 = vmand %vm4409, %vm4537
    %vm7420 = vmand %vm4410, %vm4538
    %vm7421 = vmand %vm4411, %vm4539
    %vm7422 = vmand %vm4412, %vm4540
    %vm7423 = vmand %vm4413, %vm4541
    %vm7424 = vmand %vm4414, %vm4542
    %vm7425 = vmand %vm4415, %vm4543
    %vm7426 = vmand %vm4416, %vm4544
    %vm7427 = vmand %vm4417, %vm4545
    %vm7428 = vmand %vm4418, %vm4546
    %vm7429 = vmand %vm4419, %vm4547
    %vm7430 = vmand %vm4420, %vm4548
    %vm7431 = vmand %vm4421, %vm4549
    %vm7432 = vmand %vm4422, %vm4550
    %vm7433 = vmand %vm4423, %vm4551
    %vm7434 = vmand %vm4424, %vm4552
    %vm7435 = vmand %vm4425, %vm4553
    %vm7436 = vmand %vm4426, %vm4554
    %vm7437 = vmand %vm4427, %vm4555
    %vm7438 = vmand %vm4428, %vm4556
    %vm7439 = vmand %vm4429, %vm4557
    %vm7440 = vmand %vm4430, %vm4558
    %vm7441 = vmand %vm4431, %vm4559
    %vm7442 = vmand %vm4432, %vm4560
    %vm7443 = vmand %vm4433, %vm4561
    %v7444 = vsel %vm7380, 1, 0
    %v7445 = vsel %vm7381, 1, 0
    %v7446 = vsel %vm7382, 1, 0
    %v7447 = vsel %vm7383, 1, 0
    %v7448 = vsel %vm7384, 1, 0
    %v7449 = vsel %vm7385, 1, 0
    %v7450 = vsel %vm7386, 1, 0
    %v7451 = vsel %vm7387, 1, 0
    %v7452 = vsel %vm7388, 1, 0
    %v7453 = vsel %vm7389, 1, 0
    %v7454 = vsel %vm7390, 1, 0
    %v7455 = vsel %vm7391, 1, 0
    %v7456 = vsel %vm7392, 1, 0
    %v7457 = vsel %vm7393, 1, 0
    %v7458 = vsel %vm7394, 1, 0
    %v7459 = vsel %vm7395, 1, 0
    %v7460 = vsel %vm7396, 1, 0
    %v7461 = vsel %vm7397, 1, 0
    %v7462 = vsel %vm7398, 1, 0
    %v7463 = vsel %vm7399, 1, 0
    %v7464 = vsel %vm7400, 1, 0
    %v7465 = vsel %vm7401, 1, 0
    %v7466 = vsel %vm7402, 1, 0
    %v7467 = vsel %vm7403, 1, 0
    %v7468 = vsel %vm7404, 1, 0
    %v7469 = vsel %vm7405, 1, 0
    %v7470 = vsel %vm7406, 1, 0
    %v7471 = vsel %vm7407, 1, 0
    %v7472 = vsel %vm7408, 1, 0
    %v7473 = vsel %vm7409, 1, 0
    %v7474 = vsel %vm7410, 1, 0
    %v7475 = vsel %vm7411, 1, 0
    %v7476 = vsel %vm7412, 1, 0
    %v7477 = vsel %vm7413, 1, 0
    %v7478 = vsel %vm7414, 1, 0
    %v7479 = vsel %vm7415, 1, 0
    %v7480 = vsel %vm7416, 1, 0
    %v7481 = vsel %vm7417, 1, 0
    %v7482 = vsel %vm7418, 1, 0
    %v7483 = vsel %vm7419, 1, 0
    %v7484 = vsel %vm7420, 1, 0
    %v7485 = vsel %vm7421, 1, 0
    %v7486 = vsel %vm7422, 1, 0
    %v7487 = vsel %vm7423, 1, 0
    %v7488 = vsel %vm7424, 1, 0
    %v7489 = vsel %vm7425, 1, 0
    %v7490 = vsel %vm7426, 1, 0
    %v7491 = vsel %vm7427, 1, 0
    %v7492 = vsel %vm7428, 1, 0
    %v7493 = vsel %vm7429, 1, 0
    %v7494 = vsel %vm7430, 1, 0
    %v7495 = vsel %vm7431, 1, 0
    %v7496 = vsel %vm7432, 1, 0
    %v7497 = vsel %vm7433, 1, 0
    %v7498 = vsel %vm7434, 1, 0
    %v7499 = vsel %vm7435, 1, 0
    %v7500 = vsel %vm7436, 1, 0
    %v7501 = vsel %vm7437, 1, 0
    %v7502 = vsel %vm7438, 1, 0
    %v7503 = vsel %vm7439, 1, 0
    %v7504 = vsel %vm7440, 1, 0
    %v7505 = vsel %vm7441, 1, 0
    %v7506 = vsel %vm7442, 1, 0
    %v7507 = vsel %vm7443, 1, 0
    %vm7508 = vcmp.eq.s32.totalorder %v7444, 1
    %vm7509 = vcmp.eq.s32.totalorder %v7445, 1
    %vm7510 = vcmp.eq.s32.totalorder %v7446, 1
    %vm7511 = vcmp.eq.s32.totalorder %v7447, 1
    %vm7512 = vcmp.eq.s32.totalorder %v7448, 1
    %vm7513 = vcmp.eq.s32.totalorder %v7449, 1
    %vm7514 = vcmp.eq.s32.totalorder %v7450, 1
    %vm7515 = vcmp.eq.s32.totalorder %v7451, 1
    %vm7516 = vcmp.eq.s32.totalorder %v7452, 1
    %vm7517 = vcmp.eq.s32.totalorder %v7453, 1
    %vm7518 = vcmp.eq.s32.totalorder %v7454, 1
    %vm7519 = vcmp.eq.s32.totalorder %v7455, 1
    %vm7520 = vcmp.eq.s32.totalorder %v7456, 1
    %vm7521 = vcmp.eq.s32.totalorder %v7457, 1
    %vm7522 = vcmp.eq.s32.totalorder %v7458, 1
    %vm7523 = vcmp.eq.s32.totalorder %v7459, 1
    %vm7524 = vcmp.eq.s32.totalorder %v7460, 1
    %vm7525 = vcmp.eq.s32.totalorder %v7461, 1
    %vm7526 = vcmp.eq.s32.totalorder %v7462, 1
    %vm7527 = vcmp.eq.s32.totalorder %v7463, 1
    %vm7528 = vcmp.eq.s32.totalorder %v7464, 1
    %vm7529 = vcmp.eq.s32.totalorder %v7465, 1
    %vm7530 = vcmp.eq.s32.totalorder %v7466, 1
    %vm7531 = vcmp.eq.s32.totalorder %v7467, 1
    %vm7532 = vcmp.eq.s32.totalorder %v7468, 1
    %vm7533 = vcmp.eq.s32.totalorder %v7469, 1
    %vm7534 = vcmp.eq.s32.totalorder %v7470, 1
    %vm7535 = vcmp.eq.s32.totalorder %v7471, 1
    %vm7536 = vcmp.eq.s32.totalorder %v7472, 1
    %vm7537 = vcmp.eq.s32.totalorder %v7473, 1
    %vm7538 = vcmp.eq.s32.totalorder %v7474, 1
    %vm7539 = vcmp.eq.s32.totalorder %v7475, 1
    %vm7540 = vcmp.eq.s32.totalorder %v7476, 1
    %vm7541 = vcmp.eq.s32.totalorder %v7477, 1
    %vm7542 = vcmp.eq.s32.totalorder %v7478, 1
    %vm7543 = vcmp.eq.s32.totalorder %v7479, 1
    %vm7544 = vcmp.eq.s32.totalorder %v7480, 1
    %vm7545 = vcmp.eq.s32.totalorder %v7481, 1
    %vm7546 = vcmp.eq.s32.totalorder %v7482, 1
    %vm7547 = vcmp.eq.s32.totalorder %v7483, 1
    %vm7548 = vcmp.eq.s32.totalorder %v7484, 1
    %vm7549 = vcmp.eq.s32.totalorder %v7485, 1
    %vm7550 = vcmp.eq.s32.totalorder %v7486, 1
    %vm7551 = vcmp.eq.s32.totalorder %v7487, 1
    %vm7552 = vcmp.eq.s32.totalorder %v7488, 1
    %vm7553 = vcmp.eq.s32.totalorder %v7489, 1
    %vm7554 = vcmp.eq.s32.totalorder %v7490, 1
    %vm7555 = vcmp.eq.s32.totalorder %v7491, 1
    %vm7556 = vcmp.eq.s32.totalorder %v7492, 1
    %vm7557 = vcmp.eq.s32.totalorder %v7493, 1
    %vm7558 = vcmp.eq.s32.totalorder %v7494, 1
    %vm7559 = vcmp.eq.s32.totalorder %v7495, 1
    %vm7560 = vcmp.eq.s32.totalorder %v7496, 1
    %vm7561 = vcmp.eq.s32.totalorder %v7497, 1
    %vm7562 = vcmp.eq.s32.totalorder %v7498, 1
    %vm7563 = vcmp.eq.s32.totalorder %v7499, 1
    %vm7564 = vcmp.eq.s32.totalorder %v7500, 1
    %vm7565 = vcmp.eq.s32.totalorder %v7501, 1
    %vm7566 = vcmp.eq.s32.totalorder %v7502, 1
    %vm7567 = vcmp.eq.s32.totalorder %v7503, 1
    %vm7568 = vcmp.eq.s32.totalorder %v7504, 1
    %vm7569 = vcmp.eq.s32.totalorder %v7505, 1
    %vm7570 = vcmp.eq.s32.totalorder %v7506, 1
    %vm7571 = vcmp.eq.s32.totalorder %v7507, 1
    %v7572 = vsel %vm7508, %v5521, 0.0
    %v7573 = vsel %vm7509, %v5520, 0.0
    %v7574 = vsel %vm7510, %v5519, 0.0
    %v7575 = vsel %vm7511, %v5518, 0.0
    %v7576 = vsel %vm7512, %v5517, 0.0
    %v7577 = vsel %vm7513, %v5516, 0.0
    %v7578 = vsel %vm7514, %v5515, 0.0
    %v7579 = vsel %vm7515, %v5514, 0.0
    %v7580 = vsel %vm7516, %v5513, 0.0
    %v7581 = vsel %vm7517, %v5512, 0.0
    %v7582 = vsel %vm7518, %v5511, 0.0
    %v7583 = vsel %vm7519, %v5510, 0.0
    %v7584 = vsel %vm7520, %v5509, 0.0
    %v7585 = vsel %vm7521, %v5508, 0.0
    %v7586 = vsel %vm7522, %v5507, 0.0
    %v7587 = vsel %vm7523, %v5506, 0.0
    %v7588 = vsel %vm7524, %v5505, 0.0
    %v7589 = vsel %vm7525, %v5504, 0.0
    %v7590 = vsel %vm7526, %v5503, 0.0
    %v7591 = vsel %vm7527, %v5502, 0.0
    %v7592 = vsel %vm7528, %v5501, 0.0
    %v7593 = vsel %vm7529, %v5500, 0.0
    %v7594 = vsel %vm7530, %v5499, 0.0
    %v7595 = vsel %vm7531, %v5498, 0.0
    %v7596 = vsel %vm7532, %v5497, 0.0
    %v7597 = vsel %vm7533, %v5496, 0.0
    %v7598 = vsel %vm7534, %v5495, 0.0
    %v7599 = vsel %vm7535, %v5494, 0.0
    %v7600 = vsel %vm7536, %v5493, 0.0
    %v7601 = vsel %vm7537, %v5492, 0.0
    %v7602 = vsel %vm7538, %v5491, 0.0
    %v7603 = vsel %vm7539, %v5490, 0.0
    %v7604 = vsel %vm7540, %v5489, 0.0
    %v7605 = vsel %vm7541, %v5488, 0.0
    %v7606 = vsel %vm7542, %v5487, 0.0
    %v7607 = vsel %vm7543, %v5486, 0.0
    %v7608 = vsel %vm7544, %v5485, 0.0
    %v7609 = vsel %vm7545, %v5484, 0.0
    %v7610 = vsel %vm7546, %v5483, 0.0
    %v7611 = vsel %vm7547, %v5482, 0.0
    %v7612 = vsel %vm7548, %v5481, 0.0
    %v7613 = vsel %vm7549, %v5480, 0.0
    %v7614 = vsel %vm7550, %v5479, 0.0
    %v7615 = vsel %vm7551, %v5478, 0.0
    %v7616 = vsel %vm7552, %v5477, 0.0
    %v7617 = vsel %vm7553, %v5476, 0.0
    %v7618 = vsel %vm7554, %v5475, 0.0
    %v7619 = vsel %vm7555, %v5474, 0.0
    %v7620 = vsel %vm7556, %v5473, 0.0
    %v7621 = vsel %vm7557, %v5472, 0.0
    %v7622 = vsel %vm7558, %v5471, 0.0
    %v7623 = vsel %vm7559, %v5470, 0.0
    %v7624 = vsel %vm7560, %v5469, 0.0
    %v7625 = vsel %vm7561, %v5468, 0.0
    %v7626 = vsel %vm7562, %v5467, 0.0
    %v7627 = vsel %vm7563, %v5466, 0.0
    %v7628 = vsel %vm7564, %v5465, 0.0
    %v7629 = vsel %vm7565, %v5464, 0.0
    %v7630 = vsel %vm7566, %v5463, 0.0
    %v7631 = vsel %vm7567, %v5462, 0.0
    %v7632 = vsel %vm7568, %v5461, 0.0
    %v7633 = vsel %vm7569, %v5460, 0.0
    %v7634 = vsel %vm7570, %v5523, 0.0
    %v7635 = vsel %vm7571, %v5522, 0.0
    %v7636 = vpack.c.bf16 %v7573, %v7572
    %v7637 = vpack.c.bf16 %v7575, %v7574
    %v7638 = vpack.c.bf16 %v7577, %v7576
    %v7639 = vpack.c.bf16 %v7579, %v7578
    %v7640 = vpack.c.bf16 %v7581, %v7580
    %v7641 = vpack.c.bf16 %v7583, %v7582
    %v7642 = vpack.c.bf16 %v7585, %v7584
    %v7643 = vpack.c.bf16 %v7587, %v7586
    %v7644 = vpack.c.bf16 %v7589, %v7588
    %v7645 = vpack.c.bf16 %v7591, %v7590
    %v7646 = vpack.c.bf16 %v7593, %v7592
    %v7647 = vpack.c.bf16 %v7595, %v7594
    %v7648 = vpack.c.bf16 %v7597, %v7596
    %v7649 = vpack.c.bf16 %v7599, %v7598
    %v7650 = vpack.c.bf16 %v7601, %v7600
    %v7651 = vpack.c.bf16 %v7603, %v7602
    %v7652 = vpack.c.bf16 %v7605, %v7604
    %v7653 = vpack.c.bf16 %v7607, %v7606
    %v7654 = vpack.c.bf16 %v7609, %v7608
    %v7655 = vpack.c.bf16 %v7611, %v7610
    %v7656 = vpack.c.bf16 %v7613, %v7612
    %v7657 = vpack.c.bf16 %v7615, %v7614
    %v7658 = vpack.c.bf16 %v7617, %v7616
    %v7659 = vpack.c.bf16 %v7619, %v7618
    %v7660 = vpack.c.bf16 %v7621, %v7620
    %v7661 = vpack.c.bf16 %v7623, %v7622
    %v7662 = vpack.c.bf16 %v7625, %v7624
    %v7663 = vpack.c.bf16 %v7627, %v7626
    %v7664 = vpack.c.bf16 %v7629, %v7628
    %v7665 = vpack.c.bf16 %v7631, %v7630
    %v7666 = vpack.c.bf16 %v7633, %v7632
    %v7667 = vpack.c.bf16 %v7635, %v7634
    %7668 = vst.msk [vmem:[#allocation3 + $0x20] sm:$0xff] %vm3667, %v7636
    %7669 = vst.msk [vmem:[#allocation3 + $0x48] sm:$0xff] %vm3667, %v7637
    %7670 = vst.msk [vmem:[#allocation3 + $0x70] sm:$0xff] %vm3667, %v7638
    %7671 = vst.msk [vmem:[#allocation3 + $0x98] sm:$0xff] %vm3667, %v7639
    %7672 = vst.msk [vmem:[#allocation3 + $0xc0] sm:$0xff] %vm3667, %v7640
    %7673 = vst.msk [vmem:[#allocation3 + $0xe8] sm:$0xff] %vm3667, %v7641
    %7674 = vst.msk [vmem:[#allocation3 + $0x110] sm:$0xff] %vm3667, %v7642
    %7675 = vst.msk [vmem:[#allocation3 + $0x138] sm:$0xff] %vm3667, %v7643
    %7676 = vst.msk [vmem:[#allocation3 + $0x160] sm:$0xff] %vm3667, %v7644
    %7677 = vst.msk [vmem:[#allocation3 + $0x188] sm:$0xff] %vm3667, %v7645
    %7678 = vst.msk [vmem:[#allocation3 + $0x1b0] sm:$0xff] %vm3667, %v7646
    %7679 = vst.msk [vmem:[#allocation3 + $0x1d8] sm:$0xff] %vm3667, %v7647
    %7680 = vst.msk [vmem:[#allocation3 + $0x200] sm:$0xff] %vm3667, %v7648
    %7681 = vst.msk [vmem:[#allocation3 + $0x228] sm:$0xff] %vm3667, %v7649
    %7682 = vst.msk [vmem:[#allocation3 + $0x250] sm:$0xff] %vm3667, %v7650
    %7683 = vst.msk [vmem:[#allocation3 + $0x278] sm:$0xff] %vm3667, %v7651
    %7684 = vst.msk [vmem:[#allocation3 + $0x2a0] sm:$0xff] %vm3667, %v7652
    %7685 = vst.msk [vmem:[#allocation3 + $0x2c8] sm:$0xff] %vm3667, %v7653
    %7686 = vst.msk [vmem:[#allocation3 + $0x2f0] sm:$0xff] %vm3667, %v7654
    %7687 = vst.msk [vmem:[#allocation3 + $0x318] sm:$0xff] %vm3667, %v7655
    %7688 = vst.msk [vmem:[#allocation3 + $0x340] sm:$0xff] %vm3667, %v7656
    %7689 = vst.msk [vmem:[#allocation3 + $0x368] sm:$0xff] %vm3667, %v7657
    %7690 = vst.msk [vmem:[#allocation3 + $0x390] sm:$0xff] %vm3667, %v7658
    %7691 = vst.msk [vmem:[#allocation3 + $0x3b8] sm:$0xff] %vm3667, %v7659
    %7692 = vst.msk [vmem:[#allocation3 + $0x3e0] sm:$0xff] %vm3667, %v7660
    %7693 = vst.msk [vmem:[#allocation3 + $0x408] sm:$0xff] %vm3667, %v7661
    %7694 = vst.msk [vmem:[#allocation3 + $0x430] sm:$0xff] %vm3667, %v7662
    %7695 = vst.msk [vmem:[#allocation3 + $0x458] sm:$0xff] %vm3667, %v7663
    %7696 = vst.msk [vmem:[#allocation3 + $0x480] sm:$0xff] %vm3667, %v7664
    %7697 = vst.msk [vmem:[#allocation3 + $0x4a8] sm:$0xff] %vm3667, %v7665
    %7698 = vst.msk [vmem:[#allocation3 + $0x4d0] sm:$0xff] %vm3667, %v7666
    %7699 = vst.msk [vmem:[#allocation3 + $0x4f8] sm:$0xff] %vm3667, %v7667
    %v7700 = vld [vmem:[#allocation3] sm:$0xff]
    %v7701 = vld [vmem:[#allocation3 + $0x8] sm:$0xff]
    %v7702 = vld [vmem:[#allocation3 + $0x10] sm:$0xff]
    %v7703 = vld [vmem:[#allocation3 + $0x18] sm:$0xff]
    %v7704 = vld [vmem:[#allocation3 + $0x20] sm:$0xff]
    %v7705 = vld [vmem:[#allocation3 + $0x28] sm:$0xff]
    %v7706 = vld [vmem:[#allocation3 + $0x30] sm:$0xff]
    %v7707 = vld [vmem:[#allocation3 + $0x38] sm:$0xff]
    %v7708 = vld [vmem:[#allocation3 + $0x40] sm:$0xff]
    %v7709 = vld [vmem:[#allocation3 + $0x48] sm:$0xff]
    %v7710 = vld [vmem:[#allocation3 + $0x50] sm:$0xff]
    %v7711 = vld [vmem:[#allocation3 + $0x58] sm:$0xff]
    %v7712 = vld [vmem:[#allocation3 + $0x60] sm:$0xff]
    %v7713 = vld [vmem:[#allocation3 + $0x68] sm:$0xff]
    %v7714 = vld [vmem:[#allocation3 + $0x70] sm:$0xff]
    %v7715 = vld [vmem:[#allocation3 + $0x78] sm:$0xff]
    %v7716 = vld [vmem:[#allocation3 + $0x80] sm:$0xff]
    %v7717 = vld [vmem:[#allocation3 + $0x88] sm:$0xff]
    %v7718 = vld [vmem:[#allocation3 + $0x90] sm:$0xff]
    %v7719 = vld [vmem:[#allocation3 + $0x98] sm:$0xff]
    %v7720 = vld [vmem:[#allocation3 + $0xa0] sm:$0xff]
    %v7721 = vld [vmem:[#allocation3 + $0xa8] sm:$0xff]
    %v7722 = vld [vmem:[#allocation3 + $0xb0] sm:$0xff]
    %v7723 = vld [vmem:[#allocation3 + $0xb8] sm:$0xff]
    %v7724 = vld [vmem:[#allocation3 + $0xc0] sm:$0xff]
    %v7725 = vld [vmem:[#allocation3 + $0xc8] sm:$0xff]
    %v7726 = vld [vmem:[#allocation3 + $0xd0] sm:$0xff]
    %v7727 = vld [vmem:[#allocation3 + $0xd8] sm:$0xff]
    %v7728 = vld [vmem:[#allocation3 + $0xe0] sm:$0xff]
    %v7729 = vld [vmem:[#allocation3 + $0xe8] sm:$0xff]
    %v7730 = vld [vmem:[#allocation3 + $0xf0] sm:$0xff]
    %v7731 = vld [vmem:[#allocation3 + $0xf8] sm:$0xff]
    %v7732 = vld [vmem:[#allocation3 + $0x100] sm:$0xff]
    %v7733 = vld [vmem:[#allocation3 + $0x108] sm:$0xff]
    %v7734 = vld [vmem:[#allocation3 + $0x110] sm:$0xff]
    %v7735 = vld [vmem:[#allocation3 + $0x118] sm:$0xff]
    %v7736 = vld [vmem:[#allocation3 + $0x120] sm:$0xff]
    %v7737 = vld [vmem:[#allocation3 + $0x128] sm:$0xff]
    %v7738 = vld [vmem:[#allocation3 + $0x130] sm:$0xff]
    %v7739 = vld [vmem:[#allocation3 + $0x138] sm:$0xff]
    %v7740 = vld [vmem:[#allocation3 + $0x140] sm:$0xff]
    %v7741 = vld [vmem:[#allocation3 + $0x148] sm:$0xff]
    %v7742 = vld [vmem:[#allocation3 + $0x150] sm:$0xff]
    %v7743 = vld [vmem:[#allocation3 + $0x158] sm:$0xff]
    %v7744 = vld [vmem:[#allocation3 + $0x160] sm:$0xff]
    %v7745 = vld [vmem:[#allocation3 + $0x168] sm:$0xff]
    %v7746 = vld [vmem:[#allocation3 + $0x170] sm:$0xff]
    %v7747 = vld [vmem:[#allocation3 + $0x178] sm:$0xff]
    %v7748 = vld [vmem:[#allocation3 + $0x180] sm:$0xff]
    %v7749 = vld [vmem:[#allocation3 + $0x188] sm:$0xff]
    %v7750 = vld [vmem:[#allocation3 + $0x190] sm:$0xff]
    %v7751 = vld [vmem:[#allocation3 + $0x198] sm:$0xff]
    %v7752 = vld [vmem:[#allocation3 + $0x1a0] sm:$0xff]
    %v7753 = vld [vmem:[#allocation3 + $0x1a8] sm:$0xff]
    %v7754 = vld [vmem:[#allocation3 + $0x1b0] sm:$0xff]
    %v7755 = vld [vmem:[#allocation3 + $0x1b8] sm:$0xff]
    %v7756 = vld [vmem:[#allocation3 + $0x1c0] sm:$0xff]
    %v7757 = vld [vmem:[#allocation3 + $0x1c8] sm:$0xff]
    %v7758 = vld [vmem:[#allocation3 + $0x1d0] sm:$0xff]
    %v7759 = vld [vmem:[#allocation3 + $0x1d8] sm:$0xff]
    %v7760 = vld [vmem:[#allocation3 + $0x1e0] sm:$0xff]
    %v7761 = vld [vmem:[#allocation3 + $0x1e8] sm:$0xff]
    %v7762 = vld [vmem:[#allocation3 + $0x1f0] sm:$0xff]
    %v7763 = vld [vmem:[#allocation3 + $0x1f8] sm:$0xff]
    %v7764 = vld [vmem:[#allocation3 + $0x200] sm:$0xff]
    %v7765 = vld [vmem:[#allocation3 + $0x208] sm:$0xff]
    %v7766 = vld [vmem:[#allocation3 + $0x210] sm:$0xff]
    %v7767 = vld [vmem:[#allocation3 + $0x218] sm:$0xff]
    %v7768 = vld [vmem:[#allocation3 + $0x220] sm:$0xff]
    %v7769 = vld [vmem:[#allocation3 + $0x228] sm:$0xff]
    %v7770 = vld [vmem:[#allocation3 + $0x230] sm:$0xff]
    %v7771 = vld [vmem:[#allocation3 + $0x238] sm:$0xff]
    %v7772 = vld [vmem:[#allocation3 + $0x240] sm:$0xff]
    %v7773 = vld [vmem:[#allocation3 + $0x248] sm:$0xff]
    %v7774 = vld [vmem:[#allocation3 + $0x250] sm:$0xff]
    %v7775 = vld [vmem:[#allocation3 + $0x258] sm:$0xff]
    %v7776 = vld [vmem:[#allocation3 + $0x260] sm:$0xff]
    %v7777 = vld [vmem:[#allocation3 + $0x268] sm:$0xff]
    %v7778 = vld [vmem:[#allocation3 + $0x270] sm:$0xff]
    %v7779 = vld [vmem:[#allocation3 + $0x278] sm:$0xff]
    %v7780 = vld [vmem:[#allocation3 + $0x280] sm:$0xff]
    %v7781 = vld [vmem:[#allocation3 + $0x288] sm:$0xff]
    %v7782 = vld [vmem:[#allocation3 + $0x290] sm:$0xff]
    %v7783 = vld [vmem:[#allocation3 + $0x298] sm:$0xff]
    %v7784 = vld [vmem:[#allocation3 + $0x2a0] sm:$0xff]
    %v7785 = vld [vmem:[#allocation3 + $0x2a8] sm:$0xff]
    %v7786 = vld [vmem:[#allocation3 + $0x2b0] sm:$0xff]
    %v7787 = vld [vmem:[#allocation3 + $0x2b8] sm:$0xff]
    %v7788 = vld [vmem:[#allocation3 + $0x2c0] sm:$0xff]
    %v7789 = vld [vmem:[#allocation3 + $0x2c8] sm:$0xff]
    %v7790 = vld [vmem:[#allocation3 + $0x2d0] sm:$0xff]
    %v7791 = vld [vmem:[#allocation3 + $0x2d8] sm:$0xff]
    %v7792 = vld [vmem:[#allocation3 + $0x2e0] sm:$0xff]
    %v7793 = vld [vmem:[#allocation3 + $0x2e8] sm:$0xff]
    %v7794 = vld [vmem:[#allocation3 + $0x2f0] sm:$0xff]
    %v7795 = vld [vmem:[#allocation3 + $0x2f8] sm:$0xff]
    %v7796 = vld [vmem:[#allocation3 + $0x300] sm:$0xff]
    %v7797 = vld [vmem:[#allocation3 + $0x308] sm:$0xff]
    %v7798 = vld [vmem:[#allocation3 + $0x310] sm:$0xff]
    %v7799 = vld [vmem:[#allocation3 + $0x318] sm:$0xff]
    %v7800 = vld [vmem:[#allocation3 + $0x320] sm:$0xff]
    %v7801 = vld [vmem:[#allocation3 + $0x328] sm:$0xff]
    %v7802 = vld [vmem:[#allocation3 + $0x330] sm:$0xff]
    %v7803 = vld [vmem:[#allocation3 + $0x338] sm:$0xff]
    %v7804 = vld [vmem:[#allocation3 + $0x340] sm:$0xff]
    %v7805 = vld [vmem:[#allocation3 + $0x348] sm:$0xff]
    %v7806 = vld [vmem:[#allocation3 + $0x350] sm:$0xff]
    %v7807 = vld [vmem:[#allocation3 + $0x358] sm:$0xff]
    %v7808 = vld [vmem:[#allocation3 + $0x360] sm:$0xff]
    %v7809 = vld [vmem:[#allocation3 + $0x368] sm:$0xff]
    %v7810 = vld [vmem:[#allocation3 + $0x370] sm:$0xff]
    %v7811 = vld [vmem:[#allocation3 + $0x378] sm:$0xff]
    %v7812 = vld [vmem:[#allocation3 + $0x380] sm:$0xff]
    %v7813 = vld [vmem:[#allocation3 + $0x388] sm:$0xff]
    %v7814 = vld [vmem:[#allocation3 + $0x390] sm:$0xff]
    %v7815 = vld [vmem:[#allocation3 + $0x398] sm:$0xff]
    %v7816 = vld [vmem:[#allocation3 + $0x3a0] sm:$0xff]
    %v7817 = vld [vmem:[#allocation3 + $0x3a8] sm:$0xff]
    %v7818 = vld [vmem:[#allocation3 + $0x3b0] sm:$0xff]
    %v7819 = vld [vmem:[#allocation3 + $0x3b8] sm:$0xff]
    %v7820 = vld [vmem:[#allocation3 + $0x3c0] sm:$0xff]
    %v7821 = vld [vmem:[#allocation3 + $0x3c8] sm:$0xff]
    %v7822 = vld [vmem:[#allocation3 + $0x3d0] sm:$0xff]
    %v7823 = vld [vmem:[#allocation3 + $0x3d8] sm:$0xff]
    %v7824 = vld [vmem:[#allocation3 + $0x3e0] sm:$0xff]
    %v7825 = vld [vmem:[#allocation3 + $0x3e8] sm:$0xff]
    %v7826 = vld [vmem:[#allocation3 + $0x3f0] sm:$0xff]
    %v7827 = vld [vmem:[#allocation3 + $0x3f8] sm:$0xff]
    %v7828 = vld [vmem:[#allocation3 + $0x400] sm:$0xff]
    %v7829 = vld [vmem:[#allocation3 + $0x408] sm:$0xff]
    %v7830 = vld [vmem:[#allocation3 + $0x410] sm:$0xff]
    %v7831 = vld [vmem:[#allocation3 + $0x418] sm:$0xff]
    %v7832 = vld [vmem:[#allocation3 + $0x420] sm:$0xff]
    %v7833 = vld [vmem:[#allocation3 + $0x428] sm:$0xff]
    %v7834 = vld [vmem:[#allocation3 + $0x430] sm:$0xff]
    %v7835 = vld [vmem:[#allocation3 + $0x438] sm:$0xff]
    %v7836 = vld [vmem:[#allocation3 + $0x440] sm:$0xff]
    %v7837 = vld [vmem:[#allocation3 + $0x448] sm:$0xff]
    %v7838 = vld [vmem:[#allocation3 + $0x450] sm:$0xff]
    %v7839 = vld [vmem:[#allocation3 + $0x458] sm:$0xff]
    %v7840 = vld [vmem:[#allocation3 + $0x460] sm:$0xff]
    %v7841 = vld [vmem:[#allocation3 + $0x468] sm:$0xff]
    %v7842 = vld [vmem:[#allocation3 + $0x470] sm:$0xff]
    %v7843 = vld [vmem:[#allocation3 + $0x478] sm:$0xff]
    %v7844 = vld [vmem:[#allocation3 + $0x480] sm:$0xff]
    %v7845 = vld [vmem:[#allocation3 + $0x488] sm:$0xff]
    %v7846 = vld [vmem:[#allocation3 + $0x490] sm:$0xff]
    %v7847 = vld [vmem:[#allocation3 + $0x498] sm:$0xff]
    %v7848 = vld [vmem:[#allocation3 + $0x4a0] sm:$0xff]
    %v7849 = vld [vmem:[#allocation3 + $0x4a8] sm:$0xff]
    %v7850 = vld [vmem:[#allocation3 + $0x4b0] sm:$0xff]
    %v7851 = vld [vmem:[#allocation3 + $0x4b8] sm:$0xff]
    %v7852 = vld [vmem:[#allocation3 + $0x4c0] sm:$0xff]
    %v7853 = vld [vmem:[#allocation3 + $0x4c8] sm:$0xff]
    %v7854 = vld [vmem:[#allocation3 + $0x4d0] sm:$0xff]
    %v7855 = vld [vmem:[#allocation3 + $0x4d8] sm:$0xff]
    %v7856 = vld [vmem:[#allocation3 + $0x4e0] sm:$0xff]
    %v7857 = vld [vmem:[#allocation3 + $0x4e8] sm:$0xff]
    %v7858 = vld [vmem:[#allocation3 + $0x4f0] sm:$0xff]
    %v7859 = vld [vmem:[#allocation3 + $0x4f8] sm:$0xff]
    %v7860 = vld [vmem:[%s2] sm:$0xf]
    %v7861 = vld [vmem:[%s2 + $0x4] sm:$0xf]
    %v7862 = vld [vmem:[%s2 + $0x8] sm:$0xf]
    %v7863 = vld [vmem:[%s2 + $0xc] sm:$0xf]
    %v7864 = vld [vmem:[%s2 + $0x10] sm:$0xf]
    %v7865 = vld [vmem:[%s2 + $0x14] sm:$0xf]
    %v7866 = vld [vmem:[%s2 + $0x18] sm:$0xf]
    %v7867 = vld [vmem:[%s2 + $0x1c] sm:$0xf]
    %v7868 = vld [vmem:[%s2 + $0x20] sm:$0xf]
    %v7869 = vld [vmem:[%s2 + $0x24] sm:$0xf]
    %v7870 = vld [vmem:[%s2 + $0x28] sm:$0xf]
    %v7871 = vld [vmem:[%s2 + $0x2c] sm:$0xf]
    %v7872 = vld [vmem:[%s2 + $0x30] sm:$0xf]
    %v7873 = vld [vmem:[%s2 + $0x34] sm:$0xf]
    %v7874 = vld [vmem:[%s2 + $0x38] sm:$0xf]
    %v7875 = vld [vmem:[%s2 + $0x3c] sm:$0xf]
    %v7876 = vld [vmem:[%s2 + $0x40] sm:$0xf]
    %v7877 = vld [vmem:[%s2 + $0x44] sm:$0xf]
    %v7878 = vld [vmem:[%s2 + $0x48] sm:$0xf]
    %v7879 = vld [vmem:[%s2 + $0x4c] sm:$0xf]
    %v7880 = vld [vmem:[%s2 + $0x50] sm:$0xf]
    %v7881 = vld [vmem:[%s2 + $0x54] sm:$0xf]
    %v7882 = vld [vmem:[%s2 + $0x58] sm:$0xf]
    %v7883 = vld [vmem:[%s2 + $0x5c] sm:$0xf]
    %v7884 = vld [vmem:[%s2 + $0x60] sm:$0xf]
    %v7885 = vld [vmem:[%s2 + $0x64] sm:$0xf]
    %v7886 = vld [vmem:[%s2 + $0x68] sm:$0xf]
    %v7887 = vld [vmem:[%s2 + $0x6c] sm:$0xf]
    %v7888 = vld [vmem:[%s2 + $0x70] sm:$0xf]
    %v7889 = vld [vmem:[%s2 + $0x74] sm:$0xf]
    %v7890 = vld [vmem:[%s2 + $0x78] sm:$0xf]
    %v7891 = vld [vmem:[%s2 + $0x7c] sm:$0xf]
    %v7892 = vld [vmem:[%s2 + $0x80] sm:$0xf]
    %v7893 = vld [vmem:[%s2 + $0x84] sm:$0xf]
    %v7894 = vld [vmem:[%s2 + $0x88] sm:$0xf]
    %v7895 = vld [vmem:[%s2 + $0x8c] sm:$0xf]
    %v7896 = vld [vmem:[%s2 + $0x90] sm:$0xf]
    %v7897 = vld [vmem:[%s2 + $0x94] sm:$0xf]
    %v7898 = vld [vmem:[%s2 + $0x98] sm:$0xf]
    %v7899 = vld [vmem:[%s2 + $0x9c] sm:$0xf]
    %v7900 = vld [vmem:[%s2 + $0xa0] sm:$0xf]
    %v7901 = vld [vmem:[%s2 + $0xa4] sm:$0xf]
    %v7902 = vld [vmem:[%s2 + $0xa8] sm:$0xf]
    %v7903 = vld [vmem:[%s2 + $0xac] sm:$0xf]
    %v7904 = vld [vmem:[%s2 + $0xb0] sm:$0xf]
    %v7905 = vld [vmem:[%s2 + $0xb4] sm:$0xf]
    %v7906 = vld [vmem:[%s2 + $0xb8] sm:$0xf]
    %v7907 = vld [vmem:[%s2 + $0xbc] sm:$0xf]
    %v7908 = vld [vmem:[%s2 + $0xc0] sm:$0xf]
    %v7909 = vld [vmem:[%s2 + $0xc4] sm:$0xf]
    %v7910 = vld [vmem:[%s2 + $0xc8] sm:$0xf]
    %v7911 = vld [vmem:[%s2 + $0xcc] sm:$0xf]
    %v7912 = vld [vmem:[%s2 + $0xd0] sm:$0xf]
    %v7913 = vld [vmem:[%s2 + $0xd4] sm:$0xf]
    %v7914 = vld [vmem:[%s2 + $0xd8] sm:$0xf]
    %v7915 = vld [vmem:[%s2 + $0xdc] sm:$0xf]
    %v7916 = vld [vmem:[%s2 + $0xe0] sm:$0xf]
    %v7917 = vld [vmem:[%s2 + $0xe4] sm:$0xf]
    %v7918 = vld [vmem:[%s2 + $0xe8] sm:$0xf]
    %v7919 = vld [vmem:[%s2 + $0xec] sm:$0xf]
    %v7920 = vld [vmem:[%s2 + $0xf0] sm:$0xf]
    %v7921 = vld [vmem:[%s2 + $0xf4] sm:$0xf]
    %v7922 = vld [vmem:[%s2 + $0xf8] sm:$0xf]
    %v7923 = vld [vmem:[%s2 + $0xfc] sm:$0xf]
    %v7924 = vld [vmem:[%s2 + $0x100] sm:$0xf]
    %v7925 = vld [vmem:[%s2 + $0x104] sm:$0xf]
    %v7926 = vld [vmem:[%s2 + $0x108] sm:$0xf]
    %v7927 = vld [vmem:[%s2 + $0x10c] sm:$0xf]
    %v7928 = vld [vmem:[%s2 + $0x110] sm:$0xf]
    %v7929 = vld [vmem:[%s2 + $0x114] sm:$0xf]
    %v7930 = vld [vmem:[%s2 + $0x118] sm:$0xf]
    %v7931 = vld [vmem:[%s2 + $0x11c] sm:$0xf]
    %v8004 = vunpack.c.l.b16 %v7860
    %v8005 = vunpack.c.l.b16 %v7861
    %v8006 = vunpack.c.l.b16 %v7862
    %v8007 = vunpack.c.l.b16 %v7863
    %v8008 = vunpack.c.l.b16 %v7864
    %v8009 = vunpack.c.l.b16 %v7865
    %v8010 = vunpack.c.l.b16 %v7866
    %v8011 = vunpack.c.l.b16 %v7867
    %v8012 = vunpack.c.l.b16 %v7868
    %v8013 = vunpack.c.l.b16 %v7869
    %v8014 = vunpack.c.l.b16 %v7870
    %v8015 = vunpack.c.l.b16 %v7871
    %v8016 = vunpack.c.l.b16 %v7872
    %v8017 = vunpack.c.l.b16 %v7873
    %v8018 = vunpack.c.l.b16 %v7874
    %v8019 = vunpack.c.l.b16 %v7875
    %v8020 = vunpack.c.l.b16 %v7876
    %v8021 = vunpack.c.l.b16 %v7877
    %v8022 = vunpack.c.l.b16 %v7878
    %v8023 = vunpack.c.l.b16 %v7879
    %v8024 = vunpack.c.l.b16 %v7880
    %v8025 = vunpack.c.l.b16 %v7881
    %v8026 = vunpack.c.l.b16 %v7882
    %v8027 = vunpack.c.l.b16 %v7883
    %v8028 = vunpack.c.l.b16 %v7884
    %v8029 = vunpack.c.l.b16 %v7885
    %v8030 = vunpack.c.l.b16 %v7886
    %v8031 = vunpack.c.l.b16 %v7887
    %v8032 = vunpack.c.l.b16 %v7888
    %v8033 = vunpack.c.l.b16 %v7889
    %v8034 = vunpack.c.l.b16 %v7890
    %v8035 = vunpack.c.l.b16 %v7891
    %v8036 = vunpack.c.l.b16 %v7892
    %v8037 = vunpack.c.l.b16 %v7893
    %v8038 = vunpack.c.l.b16 %v7894
    %v8039 = vunpack.c.l.b16 %v7895
    %v8040 = vunpack.c.l.b16 %v7896
    %v8041 = vunpack.c.l.b16 %v7897
    %v8042 = vunpack.c.l.b16 %v7898
    %v8043 = vunpack.c.l.b16 %v7899
    %v8044 = vunpack.c.l.b16 %v7900
    %v8045 = vunpack.c.l.b16 %v7901
    %v8046 = vunpack.c.l.b16 %v7902
    %v8047 = vunpack.c.l.b16 %v7903
    %v8048 = vunpack.c.l.b16 %v7904
    %v8049 = vunpack.c.l.b16 %v7905
    %v8050 = vunpack.c.l.b16 %v7906
    %v8051 = vunpack.c.l.b16 %v7907
    %v8052 = vunpack.c.l.b16 %v7908
    %v8053 = vunpack.c.l.b16 %v7909
    %v8054 = vunpack.c.l.b16 %v7910
    %v8055 = vunpack.c.l.b16 %v7911
    %v8056 = vunpack.c.l.b16 %v7912
    %v8057 = vunpack.c.l.b16 %v7913
    %v8058 = vunpack.c.l.b16 %v7914
    %v8059 = vunpack.c.l.b16 %v7915
    %v8060 = vunpack.c.l.b16 %v7916
    %v8061 = vunpack.c.l.b16 %v7917
    %v8062 = vunpack.c.l.b16 %v7918
    %v8063 = vunpack.c.l.b16 %v7919
    %v8064 = vunpack.c.l.b16 %v7920
    %v8065 = vunpack.c.l.b16 %v7921
    %v8066 = vunpack.c.l.b16 %v7922
    %v8067 = vunpack.c.l.b16 %v7923
    %v8068 = vunpack.c.l.b16 %v7924
    %v8069 = vunpack.c.l.b16 %v7925
    %v8070 = vunpack.c.l.b16 %v7926
    %v8071 = vunpack.c.l.b16 %v7927
    %v8072 = vunpack.c.l.b16 %v7928
    %v8073 = vunpack.c.l.b16 %v7929
    %v8074 = vunpack.c.l.b16 %v7930
    %v8075 = vunpack.c.l.b16 %v7931
    %v8076 = vpack.c.b16 %v8005, %v8004
    %v8077 = vpack.c.b16 %v8007, %v8006
    %v8078 = vpack.c.b16 %v8009, %v8008
    %v8079 = vpack.c.b16 %v8011, %v8010
    %v8080 = vpack.c.b16 %v8013, %v8012
    %v8081 = vpack.c.b16 %v8015, %v8014
    %v8082 = vpack.c.b16 %v8017, %v8016
    %v8083 = vpack.c.b16 %v8019, %v8018
    %v8084 = vpack.c.b16 %v8021, %v8020
    %v8085 = vpack.c.b16 %v8023, %v8022
    %v8086 = vpack.c.b16 %v8025, %v8024
    %v8087 = vpack.c.b16 %v8027, %v8026
    %v8088 = vpack.c.b16 %v8029, %v8028
    %v8089 = vpack.c.b16 %v8031, %v8030
    %v8090 = vpack.c.b16 %v8033, %v8032
    %v8091 = vpack.c.b16 %v8035, %v8034
    %v8092 = vpack.c.b16 %v8037, %v8036
    %v8093 = vpack.c.b16 %v8039, %v8038
    %v8094 = vpack.c.b16 %v8041, %v8040
    %v8095 = vpack.c.b16 %v8043, %v8042
    %v8096 = vpack.c.b16 %v8045, %v8044
    %v8097 = vpack.c.b16 %v8047, %v8046
    %v8098 = vpack.c.b16 %v8049, %v8048
    %v8099 = vpack.c.b16 %v8051, %v8050
    %v8100 = vpack.c.b16 %v8053, %v8052
    %v8101 = vpack.c.b16 %v8055, %v8054
    %v8102 = vpack.c.b16 %v8057, %v8056
    %v8103 = vpack.c.b16 %v8059, %v8058
    %v8104 = vpack.c.b16 %v8061, %v8060
    %v8105 = vpack.c.b16 %v8063, %v8062
    %v8106 = vpack.c.b16 %v8065, %v8064
    %v8107 = vpack.c.b16 %v8067, %v8066
    %v8108 = vpack.c.b16 %v8069, %v8068
    %v8109 = vpack.c.b16 %v8071, %v8070
    %v8110 = vpack.c.b16 %v8073, %v8072
    %v8111 = vpack.c.b16 %v8075, %v8074
    %v8149 = vsel %vm3667, %v7704, 0
    %v8152 = vsel %vm3667, %v7709, 0
    %v8155 = vsel %vm3667, %v7714, 0
    %v8158 = vsel %vm3667, %v7719, 0
    %v8161 = vsel %vm3667, %v7724, 0
    %v8164 = vsel %vm3667, %v7729, 0
    %v8167 = vsel %vm3667, %v7734, 0
    %v8170 = vsel %vm3667, %v7739, 0
    %v8173 = vsel %vm3667, %v7744, 0
    %v8176 = vsel %vm3667, %v7749, 0
    %v8179 = vsel %vm3667, %v7754, 0
    %v8182 = vsel %vm3667, %v7759, 0
    %v8185 = vsel %vm3667, %v7764, 0
    %v8188 = vsel %vm3667, %v7769, 0
    %v8191 = vsel %vm3667, %v7774, 0
    %v8194 = vsel %vm3667, %v7779, 0
    %v8197 = vsel %vm3667, %v7784, 0
    %v8200 = vsel %vm3667, %v7789, 0
    %v8203 = vsel %vm3667, %v7794, 0
    %v8206 = vsel %vm3667, %v7799, 0
    %v8209 = vsel %vm3667, %v7804, 0
    %v8212 = vsel %vm3667, %v7809, 0
    %v8215 = vsel %vm3667, %v7814, 0
    %v8218 = vsel %vm3667, %v7819, 0
    %v8221 = vsel %vm3667, %v7824, 0
    %v8224 = vsel %vm3667, %v7829, 0
    %v8227 = vsel %vm3667, %v7834, 0
    %v8230 = vsel %vm3667, %v7839, 0
    %v8233 = vsel %vm3667, %v7844, 0
    %v8236 = vsel %vm3667, %v7849, 0
    %v8239 = vsel %vm3667, %v7854, 0
    %v8242 = vsel %vm3667, %v7859, 0
    %8244 = vmatprep.subr.bf16.mxu0 0
    %8245 = vmatpush1.bf16.msra.mxu0 %v8076
    %8246 = vmatprep.subr.bf16.mxu0 0
    %8247 = vmatpush1.bf16.msra.mxu0 %v8077
    %8248 = vmatprep.subr.bf16.mxu0 0
    %8249 = vmatpush1.bf16.msra.mxu0 %v8078
    %8250 = vmatprep.subr.bf16.mxu0 0
    %8251 = vmatpush1.bf16.msra.mxu0 %v8079
    %8252 = vmatprep.subr.bf16.mxu0 0
    %8253 = vmatpush1.bf16.msra.mxu0 %v8080
    %8254 = vmatprep.subr.bf16.mxu0 0
    %8255 = vmatpush1.bf16.msra.mxu0 %v8081
    %8256 = vmatprep.subr.bf16.mxu0 0
    %8257 = vmatpush1.bf16.msra.mxu0 %v8082
    %8258 = vmatprep.subr.bf16.mxu0 0
    %8259 = vmatpush1.bf16.msra.mxu0 %v8083
    %8260 = vmatprep.subr.bf16.mxu0 0
    %8261 = vmatpush1.bf16.msra.mxu0 %v8084
    %8262 = vmatprep.subr.bf16.mxu0 0
    %8263 = vmatpush1.bf16.msra.mxu0 %v8085
    %8264 = vmatprep.subr.bf16.mxu0 0
    %8265 = vmatpush1.bf16.msra.mxu0 %v8086
    %8266 = vmatprep.subr.bf16.mxu0 0
    %8267 = vmatpush1.bf16.msra.mxu0 %v8087
    %8268 = vmatprep.subr.bf16.mxu0 0
    %8269 = vmatpush1.bf16.msra.mxu0 %v8088
    %8270 = vmatprep.subr.bf16.mxu0 0
    %8271 = vmatpush1.bf16.msra.mxu0 %v8089
    %8272 = vmatprep.subr.bf16.mxu0 0
    %8273 = vmatpush1.bf16.msra.mxu0 %v8090
    %8274 = vmatprep.subr.bf16.mxu0 0
    %8275 = vmatpush1.bf16.msra.mxu0 %v8091
    %8276 = vmatprep.mubr.bf16.mxu0 %v7701
    %8277 = vmatmul.mubr.bf16.gmra.mrb[0].mxu0 %v7700
    %v8278 = vpop.f32.mrb[0].mxu0
    %v8279 = vadd.f32 0.0, %v8278
    %v8280 = vpop.f32.mrb[0].mxu0
    %v8281 = vpop.f32.mrb[0].mxu0
    %v8282 = vadd.f32 0.0, %v8281
    %v8283 = vpop.f32.mrb[0].mxu0
    %8284 = vmatprep.mubr.bf16.mxu0 %v7706
    %8285 = vmatmul.mubr.bf16.gmra.mrb[0].mxu0 %v7705
    %v8286 = vpop.f32.mrb[0].mxu0
    %v8287 = vadd.f32 0.0, %v8286
    %v8288 = vpop.f32.mrb[0].mxu0
    %v8289 = vpop.f32.mrb[0].mxu0
    %v8290 = vadd.f32 0.0, %v8289
    %v8291 = vpop.f32.mrb[0].mxu0
    %8292 = vmatprep.mubr.bf16.mxu0 %v7711
    %8293 = vmatmul.mubr.bf16.gmra.mrb[0].mxu0 %v7710
    %v8294 = vpop.f32.mrb[0].mxu0
    %v8295 = vadd.f32 0.0, %v8294
    %v8296 = vpop.f32.mrb[0].mxu0
    %v8297 = vpop.f32.mrb[0].mxu0
    %v8298 = vadd.f32 0.0, %v8297
    %v8299 = vpop.f32.mrb[0].mxu0
    %8300 = vmatprep.mubr.bf16.mxu0 %v7716
    %8301 = vmatmul.mubr.bf16.gmra.mrb[0].mxu0 %v7715
    %v8302 = vpop.f32.mrb[0].mxu0
    %v8303 = vadd.f32 0.0, %v8302
    %v8304 = vpop.f32.mrb[0].mxu0
    %v8305 = vpop.f32.mrb[0].mxu0
    %v8306 = vadd.f32 0.0, %v8305
    %v8307 = vpop.f32.mrb[0].mxu0
    %8308 = vmatprep.mubr.bf16.mxu0 %v7721
    %8309 = vmatmul.mubr.bf16.gmra.mrb[0].mxu0 %v7720
    %v8310 = vpop.f32.mrb[0].mxu0
    %v8311 = vadd.f32 0.0, %v8310
    %v8312 = vpop.f32.mrb[0].mxu0
    %v8313 = vpop.f32.mrb[0].mxu0
    %v8314 = vadd.f32 0.0, %v8313
    %v8315 = vpop.f32.mrb[0].mxu0
    %8316 = vmatprep.mubr.bf16.mxu0 %v7726
    %8317 = vmatmul.mubr.bf16.gmra.mrb[0].mxu0 %v7725
    %v8318 = vpop.f32.mrb[0].mxu0
    %v8319 = vadd.f32 0.0, %v8318
    %v8320 = vpop.f32.mrb[0].mxu0
    %v8321 = vpop.f32.mrb[0].mxu0
    %v8322 = vadd.f32 0.0, %v8321
    %v8323 = vpop.f32.mrb[0].mxu0
    %8324 = vmatprep.mubr.bf16.mxu0 %v7731
    %8325 = vmatmul.mubr.bf16.gmra.mrb[0].mxu0 %v7730
    %v8326 = vpop.f32.mrb[0].mxu0
    %v8327 = vadd.f32 0.0, %v8326
    %v8328 = vpop.f32.mrb[0].mxu0
    %v8329 = vpop.f32.mrb[0].mxu0
    %v8330 = vadd.f32 0.0, %v8329
    %v8331 = vpop.f32.mrb[0].mxu0
    %8332 = vmatprep.mubr.bf16.mxu0 %v7736
    %8333 = vmatmul.mubr.bf16.gmra.mrb[0].mxu0 %v7735
    %v8334 = vpop.f32.mrb[0].mxu0
    %v8335 = vadd.f32 0.0, %v8334
    %v8336 = vpop.f32.mrb[0].mxu0
    %v8337 = vpop.f32.mrb[0].mxu0
    %v8338 = vadd.f32 0.0, %v8337
    %v8339 = vpop.f32.mrb[0].mxu0
    %8340 = vmatprep.mubr.bf16.mxu0 %v7741
    %8341 = vmatmul.mubr.bf16.gmra.mrb[0].mxu0 %v7740
    %v8342 = vpop.f32.mrb[0].mxu0
    %v8343 = vadd.f32 0.0, %v8342
    %v8344 = vpop.f32.mrb[0].mxu0
    %v8345 = vpop.f32.mrb[0].mxu0
    %v8346 = vadd.f32 0.0, %v8345
    %v8347 = vpop.f32.mrb[0].mxu0
    %8348 = vmatprep.mubr.bf16.mxu0 %v7746
    %8349 = vmatmul.mubr.bf16.gmra.mrb[0].mxu0 %v7745
    %v8350 = vpop.f32.mrb[0].mxu0
    %v8351 = vadd.f32 0.0, %v8350
    %v8352 = vpop.f32.mrb[0].mxu0
    %v8353 = vpop.f32.mrb[0].mxu0
    %v8354 = vadd.f32 0.0, %v8353
    %v8355 = vpop.f32.mrb[0].mxu0
    %8356 = vmatprep.mubr.bf16.mxu0 %v7751
    %8357 = vmatmul.mubr.bf16.gmra.mrb[0].mxu0 %v7750
    %v8358 = vpop.f32.mrb[0].mxu0
    %v8359 = vadd.f32 0.0, %v8358
    %v8360 = vpop.f32.mrb[0].mxu0
    %v8361 = vpop.f32.mrb[0].mxu0
    %v8362 = vadd.f32 0.0, %v8361
    %v8363 = vpop.f32.mrb[0].mxu0
    %8364 = vmatprep.mubr.bf16.mxu0 %v7756
    %8365 = vmatmul.mubr.bf16.gmra.mrb[0].mxu0 %v7755
    %v8366 = vpop.f32.mrb[0].mxu0
    %v8367 = vadd.f32 0.0, %v8366
    %v8368 = vpop.f32.mrb[0].mxu0
    %v8369 = vpop.f32.mrb[0].mxu0
    %v8370 = vadd.f32 0.0, %v8369
    %v8371 = vpop.f32.mrb[0].mxu0
    %8372 = vmatprep.mubr.bf16.mxu0 %v7761
    %8373 = vmatmul.mubr.bf16.gmra.mrb[0].mxu0 %v7760
    %v8374 = vpop.f32.mrb[0].mxu0
    %v8375 = vadd.f32 0.0, %v8374
    %v8376 = vpop.f32.mrb[0].mxu0
    %v8377 = vpop.f32.mrb[0].mxu0
    %v8378 = vadd.f32 0.0, %v8377
    %v8379 = vpop.f32.mrb[0].mxu0
    %8380 = vmatprep.mubr.bf16.mxu0 %v7766
    %8381 = vmatmul.mubr.bf16.gmra.mrb[0].mxu0 %v7765
    %v8382 = vpop.f32.mrb[0].mxu0
    %v8383 = vadd.f32 0.0, %v8382
    %v8384 = vpop.f32.mrb[0].mxu0
    %v8385 = vpop.f32.mrb[0].mxu0
    %v8386 = vadd.f32 0.0, %v8385
    %v8387 = vpop.f32.mrb[0].mxu0
    %8388 = vmatprep.mubr.bf16.mxu0 %v7771
    %8389 = vmatmul.mubr.bf16.gmra.mrb[0].mxu0 %v7770
    %v8390 = vpop.f32.mrb[0].mxu0
    %v8391 = vadd.f32 0.0, %v8390
    %v8392 = vpop.f32.mrb[0].mxu0
    %v8393 = vpop.f32.mrb[0].mxu0
    %v8394 = vadd.f32 0.0, %v8393
    %v8395 = vpop.f32.mrb[0].mxu0
    %8396 = vmatprep.mubr.bf16.mxu0 %v7776
    %8397 = vmatmul.mubr.bf16.gmra.mrb[0].mxu0 %v7775
    %v8398 = vpop.f32.mrb[0].mxu0
    %v8399 = vadd.f32 0.0, %v8398
    %v8400 = vpop.f32.mrb[0].mxu0
    %v8401 = vpop.f32.mrb[0].mxu0
    %v8402 = vadd.f32 0.0, %v8401
    %v8403 = vpop.f32.mrb[0].mxu0
    %8404 = vmatprep.mubr.bf16.mxu0 %v7781
    %8405 = vmatmul.mubr.bf16.gmra.mrb[0].mxu0 %v7780
    %v8406 = vpop.f32.mrb[0].mxu0
    %v8407 = vadd.f32 0.0, %v8406
    %v8408 = vpop.f32.mrb[0].mxu0
    %v8409 = vpop.f32.mrb[0].mxu0
    %v8410 = vadd.f32 0.0, %v8409
    %v8411 = vpop.f32.mrb[0].mxu0
    %8412 = vmatprep.mubr.bf16.mxu0 %v7786
    %8413 = vmatmul.mubr.bf16.gmra.mrb[0].mxu0 %v7785
    %v8414 = vpop.f32.mrb[0].mxu0
    %v8415 = vadd.f32 0.0, %v8414
    %v8416 = vpop.f32.mrb[0].mxu0
    %v8417 = vpop.f32.mrb[0].mxu0
    %v8418 = vadd.f32 0.0, %v8417
    %v8419 = vpop.f32.mrb[0].mxu0
    %8420 = vmatprep.mubr.bf16.mxu0 %v7791
    %8421 = vmatmul.mubr.bf16.gmra.mrb[0].mxu0 %v7790
    %v8422 = vpop.f32.mrb[0].mxu0
    %v8423 = vadd.f32 0.0, %v8422
    %v8424 = vpop.f32.mrb[0].mxu0
    %v8425 = vpop.f32.mrb[0].mxu0
    %v8426 = vadd.f32 0.0, %v8425
    %v8427 = vpop.f32.mrb[0].mxu0
    %8428 = vmatprep.mubr.bf16.mxu0 %v7796
    %8429 = vmatmul.mubr.bf16.gmra.mrb[0].mxu0 %v7795
    %v8430 = vpop.f32.mrb[0].mxu0
    %v8431 = vadd.f32 0.0, %v8430
    %v8432 = vpop.f32.mrb[0].mxu0
    %v8433 = vpop.f32.mrb[0].mxu0
    %v8434 = vadd.f32 0.0, %v8433
    %v8435 = vpop.f32.mrb[0].mxu0
    %8436 = vmatprep.mubr.bf16.mxu0 %v7801
    %8437 = vmatmul.mubr.bf16.gmra.mrb[0].mxu0 %v7800
    %v8438 = vpop.f32.mrb[0].mxu0
    %v8439 = vadd.f32 0.0, %v8438
    %v8440 = vpop.f32.mrb[0].mxu0
    %v8441 = vpop.f32.mrb[0].mxu0
    %v8442 = vadd.f32 0.0, %v8441
    %v8443 = vpop.f32.mrb[0].mxu0
    %8444 = vmatprep.mubr.bf16.mxu0 %v7806
    %8445 = vmatmul.mubr.bf16.gmra.mrb[0].mxu0 %v7805
    %v8446 = vpop.f32.mrb[0].mxu0
    %v8447 = vadd.f32 0.0, %v8446
    %v8448 = vpop.f32.mrb[0].mxu0
    %v8449 = vpop.f32.mrb[0].mxu0
    %v8450 = vadd.f32 0.0, %v8449
    %v8451 = vpop.f32.mrb[0].mxu0
    %8452 = vmatprep.mubr.bf16.mxu0 %v7811
    %8453 = vmatmul.mubr.bf16.gmra.mrb[0].mxu0 %v7810
    %v8454 = vpop.f32.mrb[0].mxu0
    %v8455 = vadd.f32 0.0, %v8454
    %v8456 = vpop.f32.mrb[0].mxu0
    %v8457 = vpop.f32.mrb[0].mxu0
    %v8458 = vadd.f32 0.0, %v8457
    %v8459 = vpop.f32.mrb[0].mxu0
    %8460 = vmatprep.mubr.bf16.mxu0 %v7816
    %8461 = vmatmul.mubr.bf16.gmra.mrb[0].mxu0 %v7815
    %v8462 = vpop.f32.mrb[0].mxu0
    %v8463 = vadd.f32 0.0, %v8462
    %v8464 = vpop.f32.mrb[0].mxu0
    %v8465 = vpop.f32.mrb[0].mxu0
    %v8466 = vadd.f32 0.0, %v8465
    %v8467 = vpop.f32.mrb[0].mxu0
    %8468 = vmatprep.mubr.bf16.mxu0 %v7821
    %8469 = vmatmul.mubr.bf16.gmra.mrb[0].mxu0 %v7820
    %v8470 = vpop.f32.mrb[0].mxu0
    %v8471 = vadd.f32 0.0, %v8470
    %v8472 = vpop.f32.mrb[0].mxu0
    %v8473 = vpop.f32.mrb[0].mxu0
    %v8474 = vadd.f32 0.0, %v8473
    %v8475 = vpop.f32.mrb[0].mxu0
    %8476 = vmatprep.mubr.bf16.mxu0 %v7826
    %8477 = vmatmul.mubr.bf16.gmra.mrb[0].mxu0 %v7825
    %v8478 = vpop.f32.mrb[0].mxu0
    %v8479 = vadd.f32 0.0, %v8478
    %v8480 = vpop.f32.mrb[0].mxu0
    %v8481 = vpop.f32.mrb[0].mxu0
    %v8482 = vadd.f32 0.0, %v8481
    %v8483 = vpop.f32.mrb[0].mxu0
    %8484 = vmatprep.mubr.bf16.mxu0 %v7831
    %8485 = vmatmul.mubr.bf16.gmra.mrb[0].mxu0 %v7830
    %v8486 = vpop.f32.mrb[0].mxu0
    %v8487 = vadd.f32 0.0, %v8486
    %v8488 = vpop.f32.mrb[0].mxu0
    %v8489 = vpop.f32.mrb[0].mxu0
    %v8490 = vadd.f32 0.0, %v8489
    %v8491 = vpop.f32.mrb[0].mxu0
    %8492 = vmatprep.mubr.bf16.mxu0 %v7836
    %8493 = vmatmul.mubr.bf16.gmra.mrb[0].mxu0 %v7835
    %v8494 = vpop.f32.mrb[0].mxu0
    %v8495 = vadd.f32 0.0, %v8494
    %v8496 = vpop.f32.mrb[0].mxu0
    %v8497 = vpop.f32.mrb[0].mxu0
    %v8498 = vadd.f32 0.0, %v8497
    %v8499 = vpop.f32.mrb[0].mxu0
    %8500 = vmatprep.mubr.bf16.mxu0 %v7841
    %8501 = vmatmul.mubr.bf16.gmra.mrb[0].mxu0 %v7840
    %v8502 = vpop.f32.mrb[0].mxu0
    %v8503 = vadd.f32 0.0, %v8502
    %v8504 = vpop.f32.mrb[0].mxu0
    %v8505 = vpop.f32.mrb[0].mxu0
    %v8506 = vadd.f32 0.0, %v8505
    %v8507 = vpop.f32.mrb[0].mxu0
    %8508 = vmatprep.mubr.bf16.mxu0 %v7846
    %8509 = vmatmul.mubr.bf16.gmra.mrb[0].mxu0 %v7845
    %v8510 = vpop.f32.mrb[0].mxu0
    %v8511 = vadd.f32 0.0, %v8510
    %v8512 = vpop.f32.mrb[0].mxu0
    %v8513 = vpop.f32.mrb[0].mxu0
    %v8514 = vadd.f32 0.0, %v8513
    %v8515 = vpop.f32.mrb[0].mxu0
    %8516 = vmatprep.mubr.bf16.mxu0 %v7851
    %8517 = vmatmul.mubr.bf16.gmra.mrb[0].mxu0 %v7850
    %v8518 = vpop.f32.mrb[0].mxu0
    %v8519 = vadd.f32 0.0, %v8518
    %v8520 = vpop.f32.mrb[0].mxu0
    %v8521 = vpop.f32.mrb[0].mxu0
    %v8522 = vadd.f32 0.0, %v8521
    %v8523 = vpop.f32.mrb[0].mxu0
    %8524 = vmatprep.mubr.bf16.mxu0 %v7856
    %8525 = vmatmul.mubr.bf16.gmra.mrb[0].mxu0 %v7855
    %v8526 = vpop.f32.mrb[0].mxu0
    %v8527 = vadd.f32 0.0, %v8526
    %v8528 = vpop.f32.mrb[0].mxu0
    %v8529 = vpop.f32.mrb[0].mxu0
    %v8530 = vadd.f32 0.0, %v8529
    %v8531 = vpop.f32.mrb[0].mxu0
    %8532 = vdwg.mxu0
    %8533 = vmatprep.subr.bf16.mxu0 0
    %8534 = vmatpush1.bf16.msra.mxu0 %v8092
    %8535 = vmatprep.subr.bf16.mxu0 0
    %8536 = vmatpush1.bf16.msra.mxu0 %v8093
    %8537 = vmatprep.subr.bf16.mxu0 0
    %8538 = vmatpush1.bf16.msra.mxu0 %v8094
    %8539 = vmatprep.subr.bf16.mxu0 0
    %8540 = vmatpush1.bf16.msra.mxu0 %v8095
    %8541 = vmatprep.subr.bf16.mxu0 0
    %8542 = vmatpush1.bf16.msra.mxu0 %v8096
    %8543 = vmatprep.subr.bf16.mxu0 0
    %8544 = vmatpush1.bf16.msra.mxu0 %v8097
    %8545 = vmatprep.subr.bf16.mxu0 0
    %8546 = vmatpush1.bf16.msra.mxu0 %v8098
    %8547 = vmatprep.subr.bf16.mxu0 0
    %8548 = vmatpush1.bf16.msra.mxu0 %v8099
    %8549 = vmatprep.subr.bf16.mxu0 0
    %8550 = vmatpush1.bf16.msra.mxu0 %v8100
    %8551 = vmatprep.subr.bf16.mxu0 0
    %8552 = vmatpush1.bf16.msra.mxu0 %v8101
    %8553 = vmatprep.subr.bf16.mxu0 0
    %8554 = vmatpush1.bf16.msra.mxu0 %v8102
    %8555 = vmatprep.subr.bf16.mxu0 0
    %8556 = vmatpush1.bf16.msra.mxu0 %v8103
    %8557 = vmatprep.subr.bf16.mxu0 0
    %8558 = vmatpush1.bf16.msra.mxu0 %v8104
    %8559 = vmatprep.subr.bf16.mxu0 0
    %8560 = vmatpush1.bf16.msra.mxu0 %v8105
    %8561 = vmatprep.subr.bf16.mxu0 0
    %8562 = vmatpush1.bf16.msra.mxu0 %v8106
    %8563 = vmatprep.subr.bf16.mxu0 0
    %8564 = vmatpush1.bf16.msra.mxu0 %v8107
    %8565 = vmatprep.mubr.bf16.mxu0 %v7703
    %8566 = vmatmul.mubr.bf16.gmra.mrb[0].mxu0 %v7702
    %v8567 = vpop.f32.mrb[0].mxu0
    %v8568 = vadd.f32 %v8279, %v8567
    %v8569 = vpop.f32.mrb[0].mxu0
    %v8570 = vpop.f32.mrb[0].mxu0
    %v8571 = vadd.f32 %v8282, %v8570
    %v8572 = vpop.f32.mrb[0].mxu0
    %8573 = vmatprep.mubr.bf16.mxu0 %v7708
    %8574 = vmatmul.mubr.bf16.gmra.mrb[0].mxu0 %v7707
    %v8575 = vpop.f32.mrb[0].mxu0
    %v8576 = vadd.f32 %v8287, %v8575
    %v8577 = vpop.f32.mrb[0].mxu0
    %v8578 = vpop.f32.mrb[0].mxu0
    %v8579 = vadd.f32 %v8290, %v8578
    %v8580 = vpop.f32.mrb[0].mxu0
    %8581 = vmatprep.mubr.bf16.mxu0 %v7713
    %8582 = vmatmul.mubr.bf16.gmra.mrb[0].mxu0 %v7712
    %v8583 = vpop.f32.mrb[0].mxu0
    %v8584 = vadd.f32 %v8295, %v8583
    %v8585 = vpop.f32.mrb[0].mxu0
    %v8586 = vpop.f32.mrb[0].mxu0
    %v8587 = vadd.f32 %v8298, %v8586
    %v8588 = vpop.f32.mrb[0].mxu0
    %8589 = vmatprep.mubr.bf16.mxu0 %v7718
    %8590 = vmatmul.mubr.bf16.gmra.mrb[0].mxu0 %v7717
    %v8591 = vpop.f32.mrb[0].mxu0
    %v8592 = vadd.f32 %v8303, %v8591
    %v8593 = vpop.f32.mrb[0].mxu0
    %v8594 = vpop.f32.mrb[0].mxu0
    %v8595 = vadd.f32 %v8306, %v8594
    %v8596 = vpop.f32.mrb[0].mxu0
    %8597 = vmatprep.mubr.bf16.mxu0 %v7723
    %8598 = vmatmul.mubr.bf16.gmra.mrb[0].mxu0 %v7722
    %v8599 = vpop.f32.mrb[0].mxu0
    %v8600 = vadd.f32 %v8311, %v8599
    %v8601 = vpop.f32.mrb[0].mxu0
    %v8602 = vpop.f32.mrb[0].mxu0
    %v8603 = vadd.f32 %v8314, %v8602
    %v8604 = vpop.f32.mrb[0].mxu0
    %8605 = vmatprep.mubr.bf16.mxu0 %v7728
    %8606 = vmatmul.mubr.bf16.gmra.mrb[0].mxu0 %v7727
    %v8607 = vpop.f32.mrb[0].mxu0
    %v8608 = vadd.f32 %v8319, %v8607
    %v8609 = vpop.f32.mrb[0].mxu0
    %v8610 = vpop.f32.mrb[0].mxu0
    %v8611 = vadd.f32 %v8322, %v8610
    %v8612 = vpop.f32.mrb[0].mxu0
    %8613 = vmatprep.mubr.bf16.mxu0 %v7733
    %8614 = vmatmul.mubr.bf16.gmra.mrb[0].mxu0 %v7732
    %v8615 = vpop.f32.mrb[0].mxu0
    %v8616 = vadd.f32 %v8327, %v8615
    %v8617 = vpop.f32.mrb[0].mxu0
    %v8618 = vpop.f32.mrb[0].mxu0
    %v8619 = vadd.f32 %v8330, %v8618
    %v8620 = vpop.f32.mrb[0].mxu0
    %8621 = vmatprep.mubr.bf16.mxu0 %v7738
    %8622 = vmatmul.mubr.bf16.gmra.mrb[0].mxu0 %v7737
    %v8623 = vpop.f32.mrb[0].mxu0
    %v8624 = vadd.f32 %v8335, %v8623
    %v8625 = vpop.f32.mrb[0].mxu0
    %v8626 = vpop.f32.mrb[0].mxu0
    %v8627 = vadd.f32 %v8338, %v8626
    %v8628 = vpop.f32.mrb[0].mxu0
    %8629 = vmatprep.mubr.bf16.mxu0 %v7743
    %8630 = vmatmul.mubr.bf16.gmra.mrb[0].mxu0 %v7742
    %v8631 = vpop.f32.mrb[0].mxu0
    %v8632 = vadd.f32 %v8343, %v8631
    %v8633 = vpop.f32.mrb[0].mxu0
    %v8634 = vpop.f32.mrb[0].mxu0
    %v8635 = vadd.f32 %v8346, %v8634
    %v8636 = vpop.f32.mrb[0].mxu0
    %8637 = vmatprep.mubr.bf16.mxu0 %v7748
    %8638 = vmatmul.mubr.bf16.gmra.mrb[0].mxu0 %v7747
    %v8639 = vpop.f32.mrb[0].mxu0
    %v8640 = vadd.f32 %v8351, %v8639
    %v8641 = vpop.f32.mrb[0].mxu0
    %v8642 = vpop.f32.mrb[0].mxu0
    %v8643 = vadd.f32 %v8354, %v8642
    %v8644 = vpop.f32.mrb[0].mxu0
    %8645 = vmatprep.mubr.bf16.mxu0 %v7753
    %8646 = vmatmul.mubr.bf16.gmra.mrb[0].mxu0 %v7752
    %v8647 = vpop.f32.mrb[0].mxu0
    %v8648 = vadd.f32 %v8359, %v8647
    %v8649 = vpop.f32.mrb[0].mxu0
    %v8650 = vpop.f32.mrb[0].mxu0
    %v8651 = vadd.f32 %v8362, %v8650
    %v8652 = vpop.f32.mrb[0].mxu0
    %8653 = vmatprep.mubr.bf16.mxu0 %v7758
    %8654 = vmatmul.mubr.bf16.gmra.mrb[0].mxu0 %v7757
    %v8655 = vpop.f32.mrb[0].mxu0
    %v8656 = vadd.f32 %v8367, %v8655
    %v8657 = vpop.f32.mrb[0].mxu0
    %v8658 = vpop.f32.mrb[0].mxu0
    %v8659 = vadd.f32 %v8370, %v8658
    %v8660 = vpop.f32.mrb[0].mxu0
    %8661 = vmatprep.mubr.bf16.mxu0 %v7763
    %8662 = vmatmul.mubr.bf16.gmra.mrb[0].mxu0 %v7762
    %v8663 = vpop.f32.mrb[0].mxu0
    %v8664 = vadd.f32 %v8375, %v8663
    %v8665 = vpop.f32.mrb[0].mxu0
    %v8666 = vpop.f32.mrb[0].mxu0
    %v8667 = vadd.f32 %v8378, %v8666
    %v8668 = vpop.f32.mrb[0].mxu0
    %8669 = vmatprep.mubr.bf16.mxu0 %v7768
    %8670 = vmatmul.mubr.bf16.gmra.mrb[0].mxu0 %v7767
    %v8671 = vpop.f32.mrb[0].mxu0
    %v8672 = vadd.f32 %v8383, %v8671
    %v8673 = vpop.f32.mrb[0].mxu0
    %v8674 = vpop.f32.mrb[0].mxu0
    %v8675 = vadd.f32 %v8386, %v8674
    %v8676 = vpop.f32.mrb[0].mxu0
    %8677 = vmatprep.mubr.bf16.mxu0 %v7773
    %8678 = vmatmul.mubr.bf16.gmra.mrb[0].mxu0 %v7772
    %v8679 = vpop.f32.mrb[0].mxu0
    %v8680 = vadd.f32 %v8391, %v8679
    %v8681 = vpop.f32.mrb[0].mxu0
    %v8682 = vpop.f32.mrb[0].mxu0
    %v8683 = vadd.f32 %v8394, %v8682
    %v8684 = vpop.f32.mrb[0].mxu0
    %8685 = vmatprep.mubr.bf16.mxu0 %v7778
    %8686 = vmatmul.mubr.bf16.gmra.mrb[0].mxu0 %v7777
    %v8687 = vpop.f32.mrb[0].mxu0
    %v8688 = vadd.f32 %v8399, %v8687
    %v8689 = vpop.f32.mrb[0].mxu0
    %v8690 = vpop.f32.mrb[0].mxu0
    %v8691 = vadd.f32 %v8402, %v8690
    %v8692 = vpop.f32.mrb[0].mxu0
    %8693 = vmatprep.mubr.bf16.mxu0 %v7783
    %8694 = vmatmul.mubr.bf16.gmra.mrb[0].mxu0 %v7782
    %v8695 = vpop.f32.mrb[0].mxu0
    %v8696 = vadd.f32 %v8407, %v8695
    %v8697 = vpop.f32.mrb[0].mxu0
    %v8698 = vpop.f32.mrb[0].mxu0
    %v8699 = vadd.f32 %v8410, %v8698
    %v8700 = vpop.f32.mrb[0].mxu0
    %8701 = vmatprep.mubr.bf16.mxu0 %v7788
    %8702 = vmatmul.mubr.bf16.gmra.mrb[0].mxu0 %v7787
    %v8703 = vpop.f32.mrb[0].mxu0
    %v8704 = vadd.f32 %v8415, %v8703
    %v8705 = vpop.f32.mrb[0].mxu0
    %v8706 = vpop.f32.mrb[0].mxu0
    %v8707 = vadd.f32 %v8418, %v8706
    %v8708 = vpop.f32.mrb[0].mxu0
    %8709 = vmatprep.mubr.bf16.mxu0 %v7793
    %8710 = vmatmul.mubr.bf16.gmra.mrb[0].mxu0 %v7792
    %v8711 = vpop.f32.mrb[0].mxu0
    %v8712 = vadd.f32 %v8423, %v8711
    %v8713 = vpop.f32.mrb[0].mxu0
    %v8714 = vpop.f32.mrb[0].mxu0
    %v8715 = vadd.f32 %v8426, %v8714
    %v8716 = vpop.f32.mrb[0].mxu0
    %8717 = vmatprep.mubr.bf16.mxu0 %v7798
    %8718 = vmatmul.mubr.bf16.gmra.mrb[0].mxu0 %v7797
    %v8719 = vpop.f32.mrb[0].mxu0
    %v8720 = vadd.f32 %v8431, %v8719
    %v8721 = vpop.f32.mrb[0].mxu0
    %v8722 = vpop.f32.mrb[0].mxu0
    %v8723 = vadd.f32 %v8434, %v8722
    %v8724 = vpop.f32.mrb[0].mxu0
    %8725 = vmatprep.mubr.bf16.mxu0 %v7803
    %8726 = vmatmul.mubr.bf16.gmra.mrb[0].mxu0 %v7802
    %v8727 = vpop.f32.mrb[0].mxu0
    %v8728 = vadd.f32 %v8439, %v8727
    %v8729 = vpop.f32.mrb[0].mxu0
    %v8730 = vpop.f32.mrb[0].mxu0
    %v8731 = vadd.f32 %v8442, %v8730
    %v8732 = vpop.f32.mrb[0].mxu0
    %8733 = vmatprep.mubr.bf16.mxu0 %v7808
    %8734 = vmatmul.mubr.bf16.gmra.mrb[0].mxu0 %v7807
    %v8735 = vpop.f32.mrb[0].mxu0
    %v8736 = vadd.f32 %v8447, %v8735
    %v8737 = vpop.f32.mrb[0].mxu0
    %v8738 = vpop.f32.mrb[0].mxu0
    %v8739 = vadd.f32 %v8450, %v8738
    %v8740 = vpop.f32.mrb[0].mxu0
    %8741 = vmatprep.mubr.bf16.mxu0 %v7813
    %8742 = vmatmul.mubr.bf16.gmra.mrb[0].mxu0 %v7812
    %v8743 = vpop.f32.mrb[0].mxu0
    %v8744 = vadd.f32 %v8455, %v8743
    %v8745 = vpop.f32.mrb[0].mxu0
    %v8746 = vpop.f32.mrb[0].mxu0
    %v8747 = vadd.f32 %v8458, %v8746
    %v8748 = vpop.f32.mrb[0].mxu0
    %8749 = vmatprep.mubr.bf16.mxu0 %v7818
    %8750 = vmatmul.mubr.bf16.gmra.mrb[0].mxu0 %v7817
    %v8751 = vpop.f32.mrb[0].mxu0
    %v8752 = vadd.f32 %v8463, %v8751
    %v8753 = vpop.f32.mrb[0].mxu0
    %v8754 = vpop.f32.mrb[0].mxu0
    %v8755 = vadd.f32 %v8466, %v8754
    %v8756 = vpop.f32.mrb[0].mxu0
    %8757 = vmatprep.mubr.bf16.mxu0 %v7823
    %8758 = vmatmul.mubr.bf16.gmra.mrb[0].mxu0 %v7822
    %v8759 = vpop.f32.mrb[0].mxu0
    %v8760 = vadd.f32 %v8471, %v8759
    %v8761 = vpop.f32.mrb[0].mxu0
    %v8762 = vpop.f32.mrb[0].mxu0
    %v8763 = vadd.f32 %v8474, %v8762
    %v8764 = vpop.f32.mrb[0].mxu0
    %8765 = vmatprep.mubr.bf16.mxu0 %v7828
    %8766 = vmatmul.mubr.bf16.gmra.mrb[0].mxu0 %v7827
    %v8767 = vpop.f32.mrb[0].mxu0
    %v8768 = vadd.f32 %v8479, %v8767
    %v8769 = vpop.f32.mrb[0].mxu0
    %v8770 = vpop.f32.mrb[0].mxu0
    %v8771 = vadd.f32 %v8482, %v8770
    %v8772 = vpop.f32.mrb[0].mxu0
    %8773 = vmatprep.mubr.bf16.mxu0 %v7833
    %8774 = vmatmul.mubr.bf16.gmra.mrb[0].mxu0 %v7832
    %v8775 = vpop.f32.mrb[0].mxu0
    %v8776 = vadd.f32 %v8487, %v8775
    %v8777 = vpop.f32.mrb[0].mxu0
    %v8778 = vpop.f32.mrb[0].mxu0
    %v8779 = vadd.f32 %v8490, %v8778
    %v8780 = vpop.f32.mrb[0].mxu0
    %8781 = vmatprep.mubr.bf16.mxu0 %v7838
    %8782 = vmatmul.mubr.bf16.gmra.mrb[0].mxu0 %v7837
    %v8783 = vpop.f32.mrb[0].mxu0
    %v8784 = vadd.f32 %v8495, %v8783
    %v8785 = vpop.f32.mrb[0].mxu0
    %v8786 = vpop.f32.mrb[0].mxu0
    %v8787 = vadd.f32 %v8498, %v8786
    %v8788 = vpop.f32.mrb[0].mxu0
    %8789 = vmatprep.mubr.bf16.mxu0 %v7843
    %8790 = vmatmul.mubr.bf16.gmra.mrb[0].mxu0 %v7842
    %v8791 = vpop.f32.mrb[0].mxu0
    %v8792 = vadd.f32 %v8503, %v8791
    %v8793 = vpop.f32.mrb[0].mxu0
    %v8794 = vpop.f32.mrb[0].mxu0
    %v8795 = vadd.f32 %v8506, %v8794
    %v8796 = vpop.f32.mrb[0].mxu0
    %8797 = vmatprep.mubr.bf16.mxu0 %v7848
    %8798 = vmatmul.mubr.bf16.gmra.mrb[0].mxu0 %v7847
    %v8799 = vpop.f32.mrb[0].mxu0
    %v8800 = vadd.f32 %v8511, %v8799
    %v8801 = vpop.f32.mrb[0].mxu0
    %v8802 = vpop.f32.mrb[0].mxu0
    %v8803 = vadd.f32 %v8514, %v8802
    %v8804 = vpop.f32.mrb[0].mxu0
    %8805 = vmatprep.mubr.bf16.mxu0 %v7853
    %8806 = vmatmul.mubr.bf16.gmra.mrb[0].mxu0 %v7852
    %v8807 = vpop.f32.mrb[0].mxu0
    %v8808 = vadd.f32 %v8519, %v8807
    %v8809 = vpop.f32.mrb[0].mxu0
    %v8810 = vpop.f32.mrb[0].mxu0
    %v8811 = vadd.f32 %v8522, %v8810
    %v8812 = vpop.f32.mrb[0].mxu0
    %8813 = vmatprep.mubr.bf16.mxu0 %v7858
    %8814 = vmatmul.mubr.bf16.gmra.mrb[0].mxu0 %v7857
    %v8815 = vpop.f32.mrb[0].mxu0
    %v8816 = vadd.f32 %v8527, %v8815
    %v8817 = vpop.f32.mrb[0].mxu0
    %v8818 = vpop.f32.mrb[0].mxu0
    %v8819 = vadd.f32 %v8530, %v8818
    %v8820 = vpop.f32.mrb[0].mxu0
    %8821 = vdwg.mxu0
    %8822 = vmatprep.subr.bf16.mxu0 0
    %8823 = vmatpush1.bf16.msra.mxu0 %v8108
    %8824 = vmatprep.subr.bf16.mxu0 0
    %8825 = vmatpush1.bf16.msra.mxu0 %v8109
    %8826 = vmatprep.subr.bf16.mxu0 0
    %8827 = vmatpush1.bf16.msra.mxu0 %v8110
    %8828 = vmatprep.subr.bf16.mxu0 0
    %8829 = vmatpush1.bf16.msra.mxu0 %v8111
    %8830 = vmatprep.subr.bf16.mxu0 0
    %8831 = vmatpush1.bf16.msra.mxu0 0
    %8832 = vmatprep.subr.bf16.mxu0 0
    %8833 = vmatpush1.bf16.msra.mxu0 0
    %8834 = vmatprep.subr.bf16.mxu0 0
    %8835 = vmatpush1.bf16.msra.mxu0 0
    %8836 = vmatprep.subr.bf16.mxu0 0
    %8837 = vmatpush1.bf16.msra.mxu0 0
    %8838 = vmatprep.subr.bf16.mxu0 0
    %8839 = vmatpush1.bf16.msra.mxu0 0
    %8840 = vmatprep.subr.bf16.mxu0 0
    %8841 = vmatpush1.bf16.msra.mxu0 0
    %8842 = vmatprep.subr.bf16.mxu0 0
    %8843 = vmatpush1.bf16.msra.mxu0 0
    %8844 = vmatprep.subr.bf16.mxu0 0
    %8845 = vmatpush1.bf16.msra.mxu0 0
    %8846 = vmatprep.subr.bf16.mxu0 0
    %8847 = vmatpush1.bf16.msra.mxu0 0
    %8848 = vmatprep.subr.bf16.mxu0 0
    %8849 = vmatpush1.bf16.msra.mxu0 0
    %8850 = vmatprep.subr.bf16.mxu0 0
    %8851 = vmatpush1.bf16.msra.mxu0 0
    %8852 = vmatprep.subr.bf16.mxu0 0
    %8853 = vmatpush1.bf16.msra.mxu0 0
    %8854 = vmatprep.mubr.bf16.mxu0 0
    %8855 = vmatmul.mubr.bf16.gmra.mrb[0].mxu0 %v8149
    %v8856 = vpop.f32.mrb[0].mxu0
    %v8857 = vadd.f32 %v8568, %v8856
    %v8858 = vpop.f32.mrb[0].mxu0
    %v8859 = vpop.f32.mrb[0].mxu0
    %v8860 = vadd.f32 %v8571, %v8859
    %v8861 = vpop.f32.mrb[0].mxu0
    %8862 = vmatprep.mubr.bf16.mxu0 0
    %8863 = vmatmul.mubr.bf16.gmra.mrb[0].mxu0 %v8152
    %v8864 = vpop.f32.mrb[0].mxu0
    %v8865 = vadd.f32 %v8576, %v8864
    %v8866 = vpop.f32.mrb[0].mxu0
    %v8867 = vpop.f32.mrb[0].mxu0
    %v8868 = vadd.f32 %v8579, %v8867
    %v8869 = vpop.f32.mrb[0].mxu0
    %8870 = vmatprep.mubr.bf16.mxu0 0
    %8871 = vmatmul.mubr.bf16.gmra.mrb[0].mxu0 %v8155
    %v8872 = vpop.f32.mrb[0].mxu0
    %v8873 = vadd.f32 %v8584, %v8872
    %v8874 = vpop.f32.mrb[0].mxu0
    %v8875 = vpop.f32.mrb[0].mxu0
    %v8876 = vadd.f32 %v8587, %v8875
    %v8877 = vpop.f32.mrb[0].mxu0
    %8878 = vmatprep.mubr.bf16.mxu0 0
    %8879 = vmatmul.mubr.bf16.gmra.mrb[0].mxu0 %v8158
    %v8880 = vpop.f32.mrb[0].mxu0
    %v8881 = vadd.f32 %v8592, %v8880
    %v8882 = vpop.f32.mrb[0].mxu0
    %v8883 = vpop.f32.mrb[0].mxu0
    %v8884 = vadd.f32 %v8595, %v8883
    %v8885 = vpop.f32.mrb[0].mxu0
    %8886 = vmatprep.mubr.bf16.mxu0 0
    %8887 = vmatmul.mubr.bf16.gmra.mrb[0].mxu0 %v8161
    %v8888 = vpop.f32.mrb[0].mxu0
    %v8889 = vadd.f32 %v8600, %v8888
    %v8890 = vpop.f32.mrb[0].mxu0
    %v8891 = vpop.f32.mrb[0].mxu0
    %v8892 = vadd.f32 %v8603, %v8891
    %v8893 = vpop.f32.mrb[0].mxu0
    %8894 = vmatprep.mubr.bf16.mxu0 0
    %8895 = vmatmul.mubr.bf16.gmra.mrb[0].mxu0 %v8164
    %v8896 = vpop.f32.mrb[0].mxu0
    %v8897 = vadd.f32 %v8608, %v8896
    %v8898 = vpop.f32.mrb[0].mxu0
    %v8899 = vpop.f32.mrb[0].mxu0
    %v8900 = vadd.f32 %v8611, %v8899
    %v8901 = vpop.f32.mrb[0].mxu0
    %8902 = vmatprep.mubr.bf16.mxu0 0
    %8903 = vmatmul.mubr.bf16.gmra.mrb[0].mxu0 %v8167
    %v8904 = vpop.f32.mrb[0].mxu0
    %v8905 = vadd.f32 %v8616, %v8904
    %v8906 = vpop.f32.mrb[0].mxu0
    %v8907 = vpop.f32.mrb[0].mxu0
    %v8908 = vadd.f32 %v8619, %v8907
    %v8909 = vpop.f32.mrb[0].mxu0
    %8910 = vmatprep.mubr.bf16.mxu0 0
    %8911 = vmatmul.mubr.bf16.gmra.mrb[0].mxu0 %v8170
    %v8912 = vpop.f32.mrb[0].mxu0
    %v8913 = vadd.f32 %v8624, %v8912
    %v8914 = vpop.f32.mrb[0].mxu0
    %v8915 = vpop.f32.mrb[0].mxu0
    %v8916 = vadd.f32 %v8627, %v8915
    %v8917 = vpop.f32.mrb[0].mxu0
    %8918 = vmatprep.mubr.bf16.mxu0 0
    %8919 = vmatmul.mubr.bf16.gmra.mrb[0].mxu0 %v8173
    %v8920 = vpop.f32.mrb[0].mxu0
    %v8921 = vadd.f32 %v8632, %v8920
    %v8922 = vpop.f32.mrb[0].mxu0
    %v8923 = vpop.f32.mrb[0].mxu0
    %v8924 = vadd.f32 %v8635, %v8923
    %v8925 = vpop.f32.mrb[0].mxu0
    %8926 = vmatprep.mubr.bf16.mxu0 0
    %8927 = vmatmul.mubr.bf16.gmra.mrb[0].mxu0 %v8176
    %v8928 = vpop.f32.mrb[0].mxu0
    %v8929 = vadd.f32 %v8640, %v8928
    %v8930 = vpop.f32.mrb[0].mxu0
    %v8931 = vpop.f32.mrb[0].mxu0
    %v8932 = vadd.f32 %v8643, %v8931
    %v8933 = vpop.f32.mrb[0].mxu0
    %8934 = vmatprep.mubr.bf16.mxu0 0
    %8935 = vmatmul.mubr.bf16.gmra.mrb[0].mxu0 %v8179
    %v8936 = vpop.f32.mrb[0].mxu0
    %v8937 = vadd.f32 %v8648, %v8936
    %v8938 = vpop.f32.mrb[0].mxu0
    %v8939 = vpop.f32.mrb[0].mxu0
    %v8940 = vadd.f32 %v8651, %v8939
    %v8941 = vpop.f32.mrb[0].mxu0
    %8942 = vmatprep.mubr.bf16.mxu0 0
    %8943 = vmatmul.mubr.bf16.gmra.mrb[0].mxu0 %v8182
    %v8944 = vpop.f32.mrb[0].mxu0
    %v8945 = vadd.f32 %v8656, %v8944
    %v8946 = vpop.f32.mrb[0].mxu0
    %v8947 = vpop.f32.mrb[0].mxu0
    %v8948 = vadd.f32 %v8659, %v8947
    %v8949 = vpop.f32.mrb[0].mxu0
    %8950 = vmatprep.mubr.bf16.mxu0 0
    %8951 = vmatmul.mubr.bf16.gmra.mrb[0].mxu0 %v8185
    %v8952 = vpop.f32.mrb[0].mxu0
    %v8953 = vadd.f32 %v8664, %v8952
    %v8954 = vpop.f32.mrb[0].mxu0
    %v8955 = vpop.f32.mrb[0].mxu0
    %v8956 = vadd.f32 %v8667, %v8955
    %v8957 = vpop.f32.mrb[0].mxu0
    %8958 = vmatprep.mubr.bf16.mxu0 0
    %8959 = vmatmul.mubr.bf16.gmra.mrb[0].mxu0 %v8188
    %v8960 = vpop.f32.mrb[0].mxu0
    %v8961 = vadd.f32 %v8672, %v8960
    %v8962 = vpop.f32.mrb[0].mxu0
    %v8963 = vpop.f32.mrb[0].mxu0
    %v8964 = vadd.f32 %v8675, %v8963
    %v8965 = vpop.f32.mrb[0].mxu0
    %8966 = vmatprep.mubr.bf16.mxu0 0
    %8967 = vmatmul.mubr.bf16.gmra.mrb[0].mxu0 %v8191
    %v8968 = vpop.f32.mrb[0].mxu0
    %v8969 = vadd.f32 %v8680, %v8968
    %v8970 = vpop.f32.mrb[0].mxu0
    %v8971 = vpop.f32.mrb[0].mxu0
    %v8972 = vadd.f32 %v8683, %v8971
    %v8973 = vpop.f32.mrb[0].mxu0
    %8974 = vmatprep.mubr.bf16.mxu0 0
    %8975 = vmatmul.mubr.bf16.gmra.mrb[0].mxu0 %v8194
    %v8976 = vpop.f32.mrb[0].mxu0
    %v8977 = vadd.f32 %v8688, %v8976
    %v8978 = vpop.f32.mrb[0].mxu0
    %v8979 = vpop.f32.mrb[0].mxu0
    %v8980 = vadd.f32 %v8691, %v8979
    %v8981 = vpop.f32.mrb[0].mxu0
    %8982 = vmatprep.mubr.bf16.mxu0 0
    %8983 = vmatmul.mubr.bf16.gmra.mrb[0].mxu0 %v8197
    %v8984 = vpop.f32.mrb[0].mxu0
    %v8985 = vadd.f32 %v8696, %v8984
    %v8986 = vpop.f32.mrb[0].mxu0
    %v8987 = vpop.f32.mrb[0].mxu0
    %v8988 = vadd.f32 %v8699, %v8987
    %v8989 = vpop.f32.mrb[0].mxu0
    %8990 = vmatprep.mubr.bf16.mxu0 0
    %8991 = vmatmul.mubr.bf16.gmra.mrb[0].mxu0 %v8200
    %v8992 = vpop.f32.mrb[0].mxu0
    %v8993 = vadd.f32 %v8704, %v8992
    %v8994 = vpop.f32.mrb[0].mxu0
    %v8995 = vpop.f32.mrb[0].mxu0
    %v8996 = vadd.f32 %v8707, %v8995
    %v8997 = vpop.f32.mrb[0].mxu0
    %8998 = vmatprep.mubr.bf16.mxu0 0
    %8999 = vmatmul.mubr.bf16.gmra.mrb[0].mxu0 %v8203
    %v9000 = vpop.f32.mrb[0].mxu0
    %v9001 = vadd.f32 %v8712, %v9000
    %v9002 = vpop.f32.mrb[0].mxu0
    %v9003 = vpop.f32.mrb[0].mxu0
    %v9004 = vadd.f32 %v8715, %v9003
    %v9005 = vpop.f32.mrb[0].mxu0
    %9006 = vmatprep.mubr.bf16.mxu0 0
    %9007 = vmatmul.mubr.bf16.gmra.mrb[0].mxu0 %v8206
    %v9008 = vpop.f32.mrb[0].mxu0
    %v9009 = vadd.f32 %v8720, %v9008
    %v9010 = vpop.f32.mrb[0].mxu0
    %v9011 = vpop.f32.mrb[0].mxu0
    %v9012 = vadd.f32 %v8723, %v9011
    %v9013 = vpop.f32.mrb[0].mxu0
    %9014 = vmatprep.mubr.bf16.mxu0 0
    %9015 = vmatmul.mubr.bf16.gmra.mrb[0].mxu0 %v8209
    %v9016 = vpop.f32.mrb[0].mxu0
    %v9017 = vadd.f32 %v8728, %v9016
    %v9018 = vpop.f32.mrb[0].mxu0
    %v9019 = vpop.f32.mrb[0].mxu0
    %v9020 = vadd.f32 %v8731, %v9019
    %v9021 = vpop.f32.mrb[0].mxu0
    %9022 = vmatprep.mubr.bf16.mxu0 0
    %9023 = vmatmul.mubr.bf16.gmra.mrb[0].mxu0 %v8212
    %v9024 = vpop.f32.mrb[0].mxu0
    %v9025 = vadd.f32 %v8736, %v9024
    %v9026 = vpop.f32.mrb[0].mxu0
    %v9027 = vpop.f32.mrb[0].mxu0
    %v9028 = vadd.f32 %v8739, %v9027
    %v9029 = vpop.f32.mrb[0].mxu0
    %9030 = vmatprep.mubr.bf16.mxu0 0
    %9031 = vmatmul.mubr.bf16.gmra.mrb[0].mxu0 %v8215
    %v9032 = vpop.f32.mrb[0].mxu0
    %v9033 = vadd.f32 %v8744, %v9032
    %v9034 = vpop.f32.mrb[0].mxu0
    %v9035 = vpop.f32.mrb[0].mxu0
    %v9036 = vadd.f32 %v8747, %v9035
    %v9037 = vpop.f32.mrb[0].mxu0
    %9038 = vmatprep.mubr.bf16.mxu0 0
    %9039 = vmatmul.mubr.bf16.gmra.mrb[0].mxu0 %v8218
    %v9040 = vpop.f32.mrb[0].mxu0
    %v9041 = vadd.f32 %v8752, %v9040
    %v9042 = vpop.f32.mrb[0].mxu0
    %v9043 = vpop.f32.mrb[0].mxu0
    %v9044 = vadd.f32 %v8755, %v9043
    %v9045 = vpop.f32.mrb[0].mxu0
    %9046 = vmatprep.mubr.bf16.mxu0 0
    %9047 = vmatmul.mubr.bf16.gmra.mrb[0].mxu0 %v8221
    %v9048 = vpop.f32.mrb[0].mxu0
    %v9049 = vadd.f32 %v8760, %v9048
    %v9050 = vpop.f32.mrb[0].mxu0
    %v9051 = vpop.f32.mrb[0].mxu0
    %v9052 = vadd.f32 %v8763, %v9051
    %v9053 = vpop.f32.mrb[0].mxu0
    %9054 = vmatprep.mubr.bf16.mxu0 0
    %9055 = vmatmul.mubr.bf16.gmra.mrb[0].mxu0 %v8224
    %v9056 = vpop.f32.mrb[0].mxu0
    %v9057 = vadd.f32 %v8768, %v9056
    %v9058 = vpop.f32.mrb[0].mxu0
    %v9059 = vpop.f32.mrb[0].mxu0
    %v9060 = vadd.f32 %v8771, %v9059
    %v9061 = vpop.f32.mrb[0].mxu0
    %9062 = vmatprep.mubr.bf16.mxu0 0
    %9063 = vmatmul.mubr.bf16.gmra.mrb[0].mxu0 %v8227
    %v9064 = vpop.f32.mrb[0].mxu0
    %v9065 = vadd.f32 %v8776, %v9064
    %v9066 = vpop.f32.mrb[0].mxu0
    %v9067 = vpop.f32.mrb[0].mxu0
    %v9068 = vadd.f32 %v8779, %v9067
    %v9069 = vpop.f32.mrb[0].mxu0
    %9070 = vmatprep.mubr.bf16.mxu0 0
    %9071 = vmatmul.mubr.bf16.gmra.mrb[0].mxu0 %v8230
    %v9072 = vpop.f32.mrb[0].mxu0
    %v9073 = vadd.f32 %v8784, %v9072
    %v9074 = vpop.f32.mrb[0].mxu0
    %v9075 = vpop.f32.mrb[0].mxu0
    %v9076 = vadd.f32 %v8787, %v9075
    %v9077 = vpop.f32.mrb[0].mxu0
    %9078 = vmatprep.mubr.bf16.mxu0 0
    %9079 = vmatmul.mubr.bf16.gmra.mrb[0].mxu0 %v8233
    %v9080 = vpop.f32.mrb[0].mxu0
    %v9081 = vadd.f32 %v8792, %v9080
    %v9082 = vpop.f32.mrb[0].mxu0
    %v9083 = vpop.f32.mrb[0].mxu0
    %v9084 = vadd.f32 %v8795, %v9083
    %v9085 = vpop.f32.mrb[0].mxu0
    %9086 = vmatprep.mubr.bf16.mxu0 0
    %9087 = vmatmul.mubr.bf16.gmra.mrb[0].mxu0 %v8236
    %v9088 = vpop.f32.mrb[0].mxu0
    %v9089 = vadd.f32 %v8800, %v9088
    %v9090 = vpop.f32.mrb[0].mxu0
    %v9091 = vpop.f32.mrb[0].mxu0
    %v9092 = vadd.f32 %v8803, %v9091
    %v9093 = vpop.f32.mrb[0].mxu0
    %9094 = vmatprep.mubr.bf16.mxu0 0
    %9095 = vmatmul.mubr.bf16.gmra.mrb[0].mxu0 %v8239
    %v9096 = vpop.f32.mrb[0].mxu0
    %v9097 = vadd.f32 %v8808, %v9096
    %v9098 = vpop.f32.mrb[0].mxu0
    %v9099 = vpop.f32.mrb[0].mxu0
    %v9100 = vadd.f32 %v8811, %v9099
    %v9101 = vpop.f32.mrb[0].mxu0
    %9102 = vmatprep.mubr.bf16.mxu0 0
    %9103 = vmatmul.mubr.bf16.gmra.mrb[0].mxu0 %v8242
    %v9104 = vpop.f32.mrb[0].mxu0
    %v9105 = vadd.f32 %v8816, %v9104
    %v9106 = vpop.f32.mrb[0].mxu0
    %v9107 = vpop.f32.mrb[0].mxu0
    %v9108 = vadd.f32 %v8819, %v9107
    %v9109 = vpop.f32.mrb[0].mxu0
    %9110 = vdwg.mxu0
    %v9111 = vmax.f32 %v8857, 0.0
    %v9112 = vmax.f32 %v8860, 0.0
    %v9113 = vmax.f32 %v8865, 0.0
    %v9114 = vmax.f32 %v8868, 0.0
    %v9115 = vmax.f32 %v8873, 0.0
    %v9116 = vmax.f32 %v8876, 0.0
    %v9117 = vmax.f32 %v8881, 0.0
    %v9118 = vmax.f32 %v8884, 0.0
    %v9119 = vmax.f32 %v8889, 0.0
    %v9120 = vmax.f32 %v8892, 0.0
    %v9121 = vmax.f32 %v8897, 0.0
    %v9122 = vmax.f32 %v8900, 0.0
    %v9123 = vmax.f32 %v8905, 0.0
    %v9124 = vmax.f32 %v8908, 0.0
    %v9125 = vmax.f32 %v8913, 0.0
    %v9126 = vmax.f32 %v8916, 0.0
    %v9127 = vmax.f32 %v8921, 0.0
    %v9128 = vmax.f32 %v8924, 0.0
    %v9129 = vmax.f32 %v8929, 0.0
    %v9130 = vmax.f32 %v8932, 0.0
    %v9131 = vmax.f32 %v8937, 0.0
    %v9132 = vmax.f32 %v8940, 0.0
    %v9133 = vmax.f32 %v8945, 0.0
    %v9134 = vmax.f32 %v8948, 0.0
    %v9135 = vmax.f32 %v8953, 0.0
    %v9136 = vmax.f32 %v8956, 0.0
    %v9137 = vmax.f32 %v8961, 0.0
    %v9138 = vmax.f32 %v8964, 0.0
    %v9139 = vmax.f32 %v8969, 0.0
    %v9140 = vmax.f32 %v8972, 0.0
    %v9141 = vmax.f32 %v8977, 0.0
    %v9142 = vmax.f32 %v8980, 0.0
    %v9143 = vmax.f32 %v8985, 0.0
    %v9144 = vmax.f32 %v8988, 0.0
    %v9145 = vmax.f32 %v8993, 0.0
    %v9146 = vmax.f32 %v8996, 0.0
    %v9147 = vmax.f32 %v9001, 0.0
    %v9148 = vmax.f32 %v9004, 0.0
    %v9149 = vmax.f32 %v9009, 0.0
    %v9150 = vmax.f32 %v9012, 0.0
    %v9151 = vmax.f32 %v9017, 0.0
    %v9152 = vmax.f32 %v9020, 0.0
    %v9153 = vmax.f32 %v9025, 0.0
    %v9154 = vmax.f32 %v9028, 0.0
    %v9155 = vmax.f32 %v9033, 0.0
    %v9156 = vmax.f32 %v9036, 0.0
    %v9157 = vmax.f32 %v9041, 0.0
    %v9158 = vmax.f32 %v9044, 0.0
    %v9159 = vmax.f32 %v9049, 0.0
    %v9160 = vmax.f32 %v9052, 0.0
    %v9161 = vmax.f32 %v9057, 0.0
    %v9162 = vmax.f32 %v9060, 0.0
    %v9163 = vmax.f32 %v9065, 0.0
    %v9164 = vmax.f32 %v9068, 0.0
    %v9165 = vmax.f32 %v9073, 0.0
    %v9166 = vmax.f32 %v9076, 0.0
    %v9167 = vmax.f32 %v9081, 0.0
    %v9168 = vmax.f32 %v9084, 0.0
    %v9169 = vmax.f32 %v9089, 0.0
    %v9170 = vmax.f32 %v9092, 0.0
    %v9171 = vmax.f32 %v9097, 0.0
    %v9172 = vmax.f32 %v9100, 0.0
    %v9173 = vmax.f32 %v9105, 0.0
    %v9174 = vmax.f32 %v9108, 0.0
    %v9175 = vrot.slane %v9111, 1
    %v9176 = vrot.slane %v9112, 1
    %v9177 = vrot.slane %v9113, 1
    %v9178 = vrot.slane %v9114, 1
    %v9179 = vrot.slane %v9115, 1
    %v9180 = vrot.slane %v9116, 1
    %v9181 = vrot.slane %v9117, 1
    %v9182 = vrot.slane %v9118, 1
    %v9183 = vrot.slane %v9119, 1
    %v9184 = vrot.slane %v9120, 1
    %v9185 = vrot.slane %v9121, 1
    %v9186 = vrot.slane %v9122, 1
    %v9187 = vrot.slane %v9123, 1
    %v9188 = vrot.slane %v9124, 1
    %v9189 = vrot.slane %v9125, 1
    %v9190 = vrot.slane %v9126, 1
    %v9191 = vrot.slane %v9127, 1
    %v9192 = vrot.slane %v9128, 1
    %v9193 = vrot.slane %v9129, 1
    %v9194 = vrot.slane %v9130, 1
    %v9195 = vrot.slane %v9131, 1
    %v9196 = vrot.slane %v9132, 1
    %v9197 = vrot.slane %v9133, 1
    %v9198 = vrot.slane %v9134, 1
    %v9199 = vrot.slane %v9135, 1
    %v9200 = vrot.slane %v9136, 1
    %v9201 = vrot.slane %v9137, 1
    %v9202 = vrot.slane %v9138, 1
    %v9203 = vrot.slane %v9139, 1
    %v9204 = vrot.slane %v9140, 1
    %v9205 = vrot.slane %v9141, 1
    %v9206 = vrot.slane %v9142, 1
    %v9207 = vrot.slane %v9143, 1
    %v9208 = vrot.slane %v9144, 1
    %v9209 = vrot.slane %v9145, 1
    %v9210 = vrot.slane %v9146, 1
    %v9211 = vrot.slane %v9147, 1
    %v9212 = vrot.slane %v9148, 1
    %v9213 = vrot.slane %v9149, 1
    %v9214 = vrot.slane %v9150, 1
    %v9215 = vrot.slane %v9151, 1
    %v9216 = vrot.slane %v9152, 1
    %v9217 = vrot.slane %v9153, 1
    %v9218 = vrot.slane %v9154, 1
    %v9219 = vrot.slane %v9155, 1
    %v9220 = vrot.slane %v9156, 1
    %v9221 = vrot.slane %v9157, 1
    %v9222 = vrot.slane %v9158, 1
    %v9223 = vrot.slane %v9159, 1
    %v9224 = vrot.slane %v9160, 1
    %v9225 = vrot.slane %v9161, 1
    %v9226 = vrot.slane %v9162, 1
    %v9227 = vrot.slane %v9163, 1
    %v9228 = vrot.slane %v9164, 1
    %v9229 = vrot.slane %v9165, 1
    %v9230 = vrot.slane %v9166, 1
    %v9231 = vrot.slane %v9167, 1
    %v9232 = vrot.slane %v9168, 1
    %v9233 = vrot.slane %v9169, 1
    %v9234 = vrot.slane %v9170, 1
    %v9235 = vrot.slane %v9171, 1
    %v9236 = vrot.slane %v9172, 1
    %v9237 = vrot.slane %v9173, 1
    %v9238 = vrot.slane %v9174, 1
    %v9239 = vsel %vm2898, %v9237, %v9238
    %v9240 = vsel %vm2898, %v9236, %v9237
    %v9241 = vsel %vm2898, %v9235, %v9236
    %v9242 = vsel %vm2898, %v9234, %v9235
    %v9243 = vsel %vm2898, %v9233, %v9234
    %v9244 = vsel %vm2898, %v9232, %v9233
    %v9245 = vsel %vm2898, %v9231, %v9232
    %v9246 = vsel %vm2898, %v9230, %v9231
    %v9247 = vsel %vm2898, %v9229, %v9230
    %v9248 = vsel %vm2898, %v9228, %v9229
    %v9249 = vsel %vm2898, %v9227, %v9228
    %v9250 = vsel %vm2898, %v9226, %v9227
    %v9251 = vsel %vm2898, %v9225, %v9226
    %v9252 = vsel %vm2898, %v9224, %v9225
    %v9253 = vsel %vm2898, %v9223, %v9224
    %v9254 = vsel %vm2898, %v9222, %v9223
    %v9255 = vsel %vm2898, %v9221, %v9222
    %v9256 = vsel %vm2898, %v9220, %v9221
    %v9257 = vsel %vm2898, %v9219, %v9220
    %v9258 = vsel %vm2898, %v9218, %v9219
    %v9259 = vsel %vm2898, %v9217, %v9218
    %v9260 = vsel %vm2898, %v9216, %v9217
    %v9261 = vsel %vm2898, %v9215, %v9216
    %v9262 = vsel %vm2898, %v9214, %v9215
    %v9263 = vsel %vm2898, %v9213, %v9214
    %v9264 = vsel %vm2898, %v9212, %v9213
    %v9265 = vsel %vm2898, %v9211, %v9212
    %v9266 = vsel %vm2898, %v9210, %v9211
    %v9267 = vsel %vm2898, %v9209, %v9210
    %v9268 = vsel %vm2898, %v9208, %v9209
    %v9269 = vsel %vm2898, %v9207, %v9208
    %v9270 = vsel %vm2898, %v9206, %v9207
    %v9271 = vsel %vm2898, %v9205, %v9206
    %v9272 = vsel %vm2898, %v9204, %v9205
    %v9273 = vsel %vm2898, %v9203, %v9204
    %v9274 = vsel %vm2898, %v9202, %v9203
    %v9275 = vsel %vm2898, %v9201, %v9202
    %v9276 = vsel %vm2898, %v9200, %v9201
    %v9277 = vsel %vm2898, %v9199, %v9200
    %v9278 = vsel %vm2898, %v9198, %v9199
    %v9279 = vsel %vm2898, %v9197, %v9198
    %v9280 = vsel %vm2898, %v9196, %v9197
    %v9281 = vsel %vm2898, %v9195, %v9196
    %v9282 = vsel %vm2898, %v9194, %v9195
    %v9283 = vsel %vm2898, %v9193, %v9194
    %v9284 = vsel %vm2898, %v9192, %v9193
    %v9285 = vsel %vm2898, %v9191, %v9192
    %v9286 = vsel %vm2898, %v9190, %v9191
    %v9287 = vsel %vm2898, %v9189, %v9190
    %v9288 = vsel %vm2898, %v9188, %v9189
    %v9289 = vsel %vm2898, %v9187, %v9188
    %v9290 = vsel %vm2898, %v9186, %v9187
    %v9291 = vsel %vm2898, %v9185, %v9186
    %v9292 = vsel %vm2898, %v9184, %v9185
    %v9293 = vsel %vm2898, %v9183, %v9184
    %v9294 = vsel %vm2898, %v9182, %v9183
    %v9295 = vsel %vm2898, %v9181, %v9182
    %v9296 = vsel %vm2898, %v9180, %v9181
    %v9297 = vsel %vm2898, %v9179, %v9180
    %v9298 = vsel %vm2898, %v9178, %v9179
    %v9299 = vsel %vm2898, %v9177, %v9178
    %v9300 = vsel %vm2898, %v9176, %v9177
    %v9301 = vsel %vm2898, %v9175, %v9176
    %v9302 = vsel %vm2898, %v9238, %v9175
    %v9303 = vmax.f32 %v9111, %v9301
    %v9304 = vmax.f32 %v9112, %v9300
    %v9305 = vmax.f32 %v9113, %v9299
    %v9306 = vmax.f32 %v9114, %v9298
    %v9307 = vmax.f32 %v9115, %v9297
    %v9308 = vmax.f32 %v9116, %v9296
    %v9309 = vmax.f32 %v9117, %v9295
    %v9310 = vmax.f32 %v9118, %v9294
    %v9311 = vmax.f32 %v9119, %v9293
    %v9312 = vmax.f32 %v9120, %v9292
    %v9313 = vmax.f32 %v9121, %v9291
    %v9314 = vmax.f32 %v9122, %v9290
    %v9315 = vmax.f32 %v9123, %v9289
    %v9316 = vmax.f32 %v9124, %v9288
    %v9317 = vmax.f32 %v9125, %v9287
    %v9318 = vmax.f32 %v9126, %v9286
    %v9319 = vmax.f32 %v9127, %v9285
    %v9320 = vmax.f32 %v9128, %v9284
    %v9321 = vmax.f32 %v9129, %v9283
    %v9322 = vmax.f32 %v9130, %v9282
    %v9323 = vmax.f32 %v9131, %v9281
    %v9324 = vmax.f32 %v9132, %v9280
    %v9325 = vmax.f32 %v9133, %v9279
    %v9326 = vmax.f32 %v9134, %v9278
    %v9327 = vmax.f32 %v9135, %v9277
    %v9328 = vmax.f32 %v9136, %v9276
    %v9329 = vmax.f32 %v9137, %v9275
    %v9330 = vmax.f32 %v9138, %v9274
    %v9331 = vmax.f32 %v9139, %v9273
    %v9332 = vmax.f32 %v9140, %v9272
    %v9333 = vmax.f32 %v9141, %v9271
    %v9334 = vmax.f32 %v9142, %v9270
    %v9335 = vmax.f32 %v9143, %v9269
    %v9336 = vmax.f32 %v9144, %v9268
    %v9337 = vmax.f32 %v9145, %v9267
    %v9338 = vmax.f32 %v9146, %v9266
    %v9339 = vmax.f32 %v9147, %v9265
    %v9340 = vmax.f32 %v9148, %v9264
    %v9341 = vmax.f32 %v9149, %v9263
    %v9342 = vmax.f32 %v9150, %v9262
    %v9343 = vmax.f32 %v9151, %v9261
    %v9344 = vmax.f32 %v9152, %v9260
    %v9345 = vmax.f32 %v9153, %v9259
    %v9346 = vmax.f32 %v9154, %v9258
    %v9347 = vmax.f32 %v9155, %v9257
    %v9348 = vmax.f32 %v9156, %v9256
    %v9349 = vmax.f32 %v9157, %v9255
    %v9350 = vmax.f32 %v9158, %v9254
    %v9351 = vmax.f32 %v9159, %v9253
    %v9352 = vmax.f32 %v9160, %v9252
    %v9353 = vmax.f32 %v9161, %v9251
    %v9354 = vmax.f32 %v9162, %v9250
    %v9355 = vmax.f32 %v9163, %v9249
    %v9356 = vmax.f32 %v9164, %v9248
    %v9357 = vmax.f32 %v9165, %v9247
    %v9358 = vmax.f32 %v9166, %v9246
    %v9359 = vmax.f32 %v9167, %v9245
    %v9360 = vmax.f32 %v9168, %v9244
    %v9361 = vmax.f32 %v9169, %v9243
    %v9362 = vmax.f32 %v9170, %v9242
    %v9363 = vmax.f32 %v9171, %v9241
    %v9364 = vmax.f32 %v9172, %v9240
    %v9365 = vmax.f32 %v9173, %v9239
    %v9366 = vmax.f32 %v9174, %v9302
    %v9367 = vmax.f32 %v9303, %v9304
    %v9368 = vmax.f32 %v9304, %v9305
    %v9369 = vmax.f32 %v9305, %v9306
    %v9370 = vmax.f32 %v9306, %v9307
    %v9371 = vmax.f32 %v9307, %v9308
    %v9372 = vmax.f32 %v9308, %v9309
    %v9373 = vmax.f32 %v9309, %v9310
    %v9374 = vmax.f32 %v9310, %v9311
    %v9375 = vmax.f32 %v9311, %v9312
    %v9376 = vmax.f32 %v9312, %v9313
    %v9377 = vmax.f32 %v9313, %v9314
    %v9378 = vmax.f32 %v9314, %v9315
    %v9379 = vmax.f32 %v9315, %v9316
    %v9380 = vmax.f32 %v9316, %v9317
    %v9381 = vmax.f32 %v9317, %v9318
    %v9382 = vmax.f32 %v9318, %v9319
    %v9383 = vmax.f32 %v9319, %v9320
    %v9384 = vmax.f32 %v9320, %v9321
    %v9385 = vmax.f32 %v9321, %v9322
    %v9386 = vmax.f32 %v9322, %v9323
    %v9387 = vmax.f32 %v9323, %v9324
    %v9388 = vmax.f32 %v9324, %v9325
    %v9389 = vmax.f32 %v9325, %v9326
    %v9390 = vmax.f32 %v9326, %v9327
    %v9391 = vmax.f32 %v9327, %v9328
    %v9392 = vmax.f32 %v9328, %v9329
    %v9393 = vmax.f32 %v9329, %v9330
    %v9394 = vmax.f32 %v9330, %v9331
    %v9395 = vmax.f32 %v9331, %v9332
    %v9396 = vmax.f32 %v9332, %v9333
    %v9397 = vmax.f32 %v9333, %v9334
    %v9398 = vmax.f32 %v9334, %v9335
    %v9399 = vmax.f32 %v9335, %v9336
    %v9400 = vmax.f32 %v9336, %v9337
    %v9401 = vmax.f32 %v9337, %v9338
    %v9402 = vmax.f32 %v9338, %v9339
    %v9403 = vmax.f32 %v9339, %v9340
    %v9404 = vmax.f32 %v9340, %v9341
    %v9405 = vmax.f32 %v9341, %v9342
    %v9406 = vmax.f32 %v9342, %v9343
    %v9407 = vmax.f32 %v9343, %v9344
    %v9408 = vmax.f32 %v9344, %v9345
    %v9409 = vmax.f32 %v9345, %v9346
    %v9410 = vmax.f32 %v9346, %v9347
    %v9411 = vmax.f32 %v9347, %v9348
    %v9412 = vmax.f32 %v9348, %v9349
    %v9413 = vmax.f32 %v9349, %v9350
    %v9414 = vmax.f32 %v9350, %v9351
    %v9415 = vmax.f32 %v9351, %v9352
    %v9416 = vmax.f32 %v9352, %v9353
    %v9417 = vmax.f32 %v9353, %v9354
    %v9418 = vmax.f32 %v9354, %v9355
    %v9419 = vmax.f32 %v9355, %v9356
    %v9420 = vmax.f32 %v9356, %v9357
    %v9421 = vmax.f32 %v9357, %v9358
    %v9422 = vmax.f32 %v9358, %v9359
    %v9423 = vmax.f32 %v9359, %v9360
    %v9424 = vmax.f32 %v9360, %v9361
    %v9425 = vmax.f32 %v9361, %v9362
    %v9426 = vmax.f32 %v9362, %v9363
    %v9427 = vmax.f32 %v9363, %v9364
    %v9428 = vmax.f32 %v9364, %v9365
    %v9429 = vmax.f32 %v9365, %v9366
    %v9430 = vmax.f32 %v9366, %v9303
    %9431 = vst [vmem:[#allocation4] sm:$0xff] %v9367
    %9432 = vst [vmem:[#allocation4 + $0x8] sm:$0xff] %v9368
    %9433 = vst [vmem:[#allocation4 + $0x10] sm:$0xff] %v9369
    %9434 = vst [vmem:[#allocation4 + $0x18] sm:$0xff] %v9370
    %9435 = vst [vmem:[#allocation4 + $0x20] sm:$0xff] %v9371
    %9436 = vst [vmem:[#allocation4 + $0x28] sm:$0xff] %v9372
    %9437 = vst [vmem:[#allocation4 + $0x30] sm:$0xff] %v9373
    %9438 = vst [vmem:[#allocation4 + $0x38] sm:$0xff] %v9374
    %9439 = vst [vmem:[#allocation4 + $0x40] sm:$0xff] %v9375
    %9440 = vst [vmem:[#allocation4 + $0x48] sm:$0xff] %v9376
    %9441 = vst [vmem:[#allocation4 + $0x50] sm:$0xff] %v9377
    %9442 = vst [vmem:[#allocation4 + $0x58] sm:$0xff] %v9378
    %9443 = vst [vmem:[#allocation4 + $0x60] sm:$0xff] %v9379
    %9444 = vst [vmem:[#allocation4 + $0x68] sm:$0xff] %v9380
    %9445 = vst [vmem:[#allocation4 + $0x70] sm:$0xff] %v9381
    %9446 = vst [vmem:[#allocation4 + $0x78] sm:$0xff] %v9382
    %9447 = vst [vmem:[#allocation4 + $0x80] sm:$0xff] %v9383
    %9448 = vst [vmem:[#allocation4 + $0x88] sm:$0xff] %v9384
    %9449 = vst [vmem:[#allocation4 + $0x90] sm:$0xff] %v9385
    %9450 = vst [vmem:[#allocation4 + $0x98] sm:$0xff] %v9386
    %9451 = vst [vmem:[#allocation4 + $0xa0] sm:$0xff] %v9387
    %9452 = vst [vmem:[#allocation4 + $0xa8] sm:$0xff] %v9388
    %9453 = vst [vmem:[#allocation4 + $0xb0] sm:$0xff] %v9389
    %9454 = vst [vmem:[#allocation4 + $0xb8] sm:$0xff] %v9390
    %9455 = vst [vmem:[#allocation4 + $0xc0] sm:$0xff] %v9391
    %9456 = vst [vmem:[#allocation4 + $0xc8] sm:$0xff] %v9392
    %9457 = vst [vmem:[#allocation4 + $0xd0] sm:$0xff] %v9393
    %9458 = vst [vmem:[#allocation4 + $0xd8] sm:$0xff] %v9394
    %9459 = vst [vmem:[#allocation4 + $0xe0] sm:$0xff] %v9395
    %9460 = vst [vmem:[#allocation4 + $0xe8] sm:$0xff] %v9396
    %9461 = vst [vmem:[#allocation4 + $0xf0] sm:$0xff] %v9397
    %9462 = vst [vmem:[#allocation4 + $0xf8] sm:$0xff] %v9398
    %9463 = vst [vmem:[#allocation4 + $0x100] sm:$0xff] %v9399
    %9464 = vst [vmem:[#allocation4 + $0x108] sm:$0xff] %v9400
    %9465 = vst [vmem:[#allocation4 + $0x110] sm:$0xff] %v9401
    %9466 = vst [vmem:[#allocation4 + $0x118] sm:$0xff] %v9402
    %9467 = vst [vmem:[#allocation4 + $0x120] sm:$0xff] %v9403
    %9468 = vst [vmem:[#allocation4 + $0x128] sm:$0xff] %v9404
    %9469 = vst [vmem:[#allocation4 + $0x130] sm:$0xff] %v9405
    %9470 = vst [vmem:[#allocation4 + $0x138] sm:$0xff] %v9406
    %9471 = vst [vmem:[#allocation4 + $0x140] sm:$0xff] %v9407
    %9472 = vst [vmem:[#allocation4 + $0x148] sm:$0xff] %v9408
    %9473 = vst [vmem:[#allocation4 + $0x150] sm:$0xff] %v9409
    %9474 = vst [vmem:[#allocation4 + $0x158] sm:$0xff] %v9410
    %9475 = vst [vmem:[#allocation4 + $0x160] sm:$0xff] %v9411
    %9476 = vst [vmem:[#allocation4 + $0x168] sm:$0xff] %v9412
    %9477 = vst [vmem:[#allocation4 + $0x170] sm:$0xff] %v9413
    %9478 = vst [vmem:[#allocation4 + $0x178] sm:$0xff] %v9414
    %9479 = vst [vmem:[#allocation4 + $0x180] sm:$0xff] %v9415
    %9480 = vst [vmem:[#allocation4 + $0x188] sm:$0xff] %v9416
    %9481 = vst [vmem:[#allocation4 + $0x190] sm:$0xff] %v9417
    %9482 = vst [vmem:[#allocation4 + $0x198] sm:$0xff] %v9418
    %9483 = vst [vmem:[#allocation4 + $0x1a0] sm:$0xff] %v9419
    %9484 = vst [vmem:[#allocation4 + $0x1a8] sm:$0xff] %v9420
    %9485 = vst [vmem:[#allocation4 + $0x1b0] sm:$0xff] %v9421
    %9486 = vst [vmem:[#allocation4 + $0x1b8] sm:$0xff] %v9422
    %9487 = vst [vmem:[#allocation4 + $0x1c0] sm:$0xff] %v9423
    %9488 = vst [vmem:[#allocation4 + $0x1c8] sm:$0xff] %v9424
    %9489 = vst [vmem:[#allocation4 + $0x1d0] sm:$0xff] %v9425
    %9490 = vst [vmem:[#allocation4 + $0x1d8] sm:$0xff] %v9426
    %9491 = vst [vmem:[#allocation4 + $0x1e0] sm:$0xff] %v9427
    %9492 = vst [vmem:[#allocation4 + $0x1e8] sm:$0xff] %v9428
    %9493 = vst [vmem:[#allocation4 + $0x1f0] sm:$0xff] %v9429
    %9494 = vst [vmem:[#allocation4 + $0x1f8] sm:$0xff] %v9430
    %v9495 = vld [vmem:[#allocation4] ss:$64 sm:$0x1]
    %v9496 = vld [vmem:[#allocation4] ss:$64 sm:$0x2]
    %v9497 = vor.u32 %v9495, %v9496
    %v9498 = vld [vmem:[#allocation4] ss:$64 sm:$0x4]
    %v9499 = vor.u32 %v9497, %v9498
    %v9500 = vld [vmem:[#allocation4] ss:$64 sm:$0x8]
    %v9501 = vor.u32 %v9499, %v9500
    %v9502 = vld [vmem:[#allocation4] ss:$64 sm:$0x10]
    %v9503 = vor.u32 %v9501, %v9502
    %v9504 = vld [vmem:[#allocation4] ss:$64 sm:$0x20]
    %v9505 = vor.u32 %v9503, %v9504
    %v9506 = vld [vmem:[#allocation4] ss:$64 sm:$0x40]
    %v9507 = vor.u32 %v9505, %v9506
    %v9508 = vld [vmem:[#allocation4] ss:$64 sm:$0x80]
    %v9509 = vor.u32 %v9507, %v9508
    %s9510 = scalar_lea.vmem [#allocation4], 2
    %v9511 = vld [vmem:[%s9510] ss:$64 sm:$0x1]
    %v9512 = vld [vmem:[%s9510] ss:$64 sm:$0x2]
    %v9513 = vor.u32 %v9511, %v9512
    %v9514 = vld [vmem:[%s9510] ss:$64 sm:$0x4]
    %v9515 = vor.u32 %v9513, %v9514
    %v9516 = vld [vmem:[%s9510] ss:$64 sm:$0x8]
    %v9517 = vor.u32 %v9515, %v9516
    %v9518 = vld [vmem:[%s9510] ss:$64 sm:$0x10]
    %v9519 = vor.u32 %v9517, %v9518
    %v9520 = vld [vmem:[%s9510] ss:$64 sm:$0x20]
    %v9521 = vor.u32 %v9519, %v9520
    %v9522 = vld [vmem:[%s9510] ss:$64 sm:$0x40]
    %v9523 = vor.u32 %v9521, %v9522
    %v9524 = vld [vmem:[%s9510] ss:$64 sm:$0x80]
    %v9525 = vor.u32 %v9523, %v9524
    %s9526 = scalar_lea.vmem [#allocation4], 4
    %v9527 = vld [vmem:[%s9526] ss:$64 sm:$0x1]
    %v9528 = vld [vmem:[%s9526] ss:$64 sm:$0x2]
    %v9529 = vor.u32 %v9527, %v9528
    %v9530 = vld [vmem:[%s9526] ss:$64 sm:$0x4]
    %v9531 = vor.u32 %v9529, %v9530
    %v9532 = vld [vmem:[%s9526] ss:$64 sm:$0x8]
    %v9533 = vor.u32 %v9531, %v9532
    %v9534 = vld [vmem:[%s9526] ss:$64 sm:$0x10]
    %v9535 = vor.u32 %v9533, %v9534
    %v9536 = vld [vmem:[%s9526] ss:$64 sm:$0x20]
    %v9537 = vor.u32 %v9535, %v9536
    %v9538 = vld [vmem:[%s9526] ss:$64 sm:$0x40]
    %v9539 = vor.u32 %v9537, %v9538
    %v9540 = vld [vmem:[%s9526] ss:$64 sm:$0x80]
    %v9541 = vor.u32 %v9539, %v9540
    %s9542 = scalar_lea.vmem [#allocation4], 6
    %v9543 = vld [vmem:[%s9542] ss:$64 sm:$0x1]
    %v9544 = vld [vmem:[%s9542] ss:$64 sm:$0x2]
    %v9545 = vor.u32 %v9543, %v9544
    %v9546 = vld [vmem:[%s9542] ss:$64 sm:$0x4]
    %v9547 = vor.u32 %v9545, %v9546
    %v9548 = vld [vmem:[%s9542] ss:$64 sm:$0x8]
    %v9549 = vor.u32 %v9547, %v9548
    %v9550 = vld [vmem:[%s9542] ss:$64 sm:$0x10]
    %v9551 = vor.u32 %v9549, %v9550
    %v9552 = vld [vmem:[%s9542] ss:$64 sm:$0x20]
    %v9553 = vor.u32 %v9551, %v9552
    %v9554 = vld [vmem:[%s9542] ss:$64 sm:$0x40]
    %v9555 = vor.u32 %v9553, %v9554
    %v9556 = vld [vmem:[%s9542] ss:$64 sm:$0x80]
    %v9557 = vor.u32 %v9555, %v9556
    %s9558 = scalar_lea.vmem [#allocation4], 16
    %v9559 = vld [vmem:[%s9558] ss:$64 sm:$0x1]
    %v9560 = vld [vmem:[%s9558] ss:$64 sm:$0x2]
    %v9561 = vor.u32 %v9559, %v9560
    %v9562 = vld [vmem:[%s9558] ss:$64 sm:$0x4]
    %v9563 = vor.u32 %v9561, %v9562
    %v9564 = vld [vmem:[%s9558] ss:$64 sm:$0x8]
    %v9565 = vor.u32 %v9563, %v9564
    %v9566 = vld [vmem:[%s9558] ss:$64 sm:$0x10]
    %v9567 = vor.u32 %v9565, %v9566
    %v9568 = vld [vmem:[%s9558] ss:$64 sm:$0x20]
    %v9569 = vor.u32 %v9567, %v9568
    %v9570 = vld [vmem:[%s9558] ss:$64 sm:$0x40]
    %v9571 = vor.u32 %v9569, %v9570
    %v9572 = vld [vmem:[%s9558] ss:$64 sm:$0x80]
    %v9573 = vor.u32 %v9571, %v9572
    %s9574 = scalar_lea.vmem [#allocation4], 18
    %v9575 = vld [vmem:[%s9574] ss:$64 sm:$0x1]
    %v9576 = vld [vmem:[%s9574] ss:$64 sm:$0x2]
    %v9577 = vor.u32 %v9575, %v9576
    %v9578 = vld [vmem:[%s9574] ss:$64 sm:$0x4]
    %v9579 = vor.u32 %v9577, %v9578
    %v9580 = vld [vmem:[%s9574] ss:$64 sm:$0x8]
    %v9581 = vor.u32 %v9579, %v9580
    %v9582 = vld [vmem:[%s9574] ss:$64 sm:$0x10]
    %v9583 = vor.u32 %v9581, %v9582
    %v9584 = vld [vmem:[%s9574] ss:$64 sm:$0x20]
    %v9585 = vor.u32 %v9583, %v9584
    %v9586 = vld [vmem:[%s9574] ss:$64 sm:$0x40]
    %v9587 = vor.u32 %v9585, %v9586
    %v9588 = vld [vmem:[%s9574] ss:$64 sm:$0x80]
    %v9589 = vor.u32 %v9587, %v9588
    %s9590 = scalar_lea.vmem [#allocation4], 20
    %v9591 = vld [vmem:[%s9590] ss:$64 sm:$0x1]
    %v9592 = vld [vmem:[%s9590] ss:$64 sm:$0x2]
    %v9593 = vor.u32 %v9591, %v9592
    %v9594 = vld [vmem:[%s9590] ss:$64 sm:$0x4]
    %v9595 = vor.u32 %v9593, %v9594
    %v9596 = vld [vmem:[%s9590] ss:$64 sm:$0x8]
    %v9597 = vor.u32 %v9595, %v9596
    %v9598 = vld [vmem:[%s9590] ss:$64 sm:$0x10]
    %v9599 = vor.u32 %v9597, %v9598
    %v9600 = vld [vmem:[%s9590] ss:$64 sm:$0x20]
    %v9601 = vor.u32 %v9599, %v9600
    %v9602 = vld [vmem:[%s9590] ss:$64 sm:$0x40]
    %v9603 = vor.u32 %v9601, %v9602
    %v9604 = vld [vmem:[%s9590] ss:$64 sm:$0x80]
    %v9605 = vor.u32 %v9603, %v9604
    %s9606 = scalar_lea.vmem [#allocation4], 22
    %v9607 = vld [vmem:[%s9606] ss:$64 sm:$0x1]
    %v9608 = vld [vmem:[%s9606] ss:$64 sm:$0x2]
    %v9609 = vor.u32 %v9607, %v9608
    %v9610 = vld [vmem:[%s9606] ss:$64 sm:$0x4]
    %v9611 = vor.u32 %v9609, %v9610
    %v9612 = vld [vmem:[%s9606] ss:$64 sm:$0x8]
    %v9613 = vor.u32 %v9611, %v9612
    %v9614 = vld [vmem:[%s9606] ss:$64 sm:$0x10]
    %v9615 = vor.u32 %v9613, %v9614
    %v9616 = vld [vmem:[%s9606] ss:$64 sm:$0x20]
    %v9617 = vor.u32 %v9615, %v9616
    %v9618 = vld [vmem:[%s9606] ss:$64 sm:$0x40]
    %v9619 = vor.u32 %v9617, %v9618
    %v9620 = vld [vmem:[%s9606] ss:$64 sm:$0x80]
    %v9621 = vor.u32 %v9619, %v9620
    %s9622 = scalar_lea.vmem [#allocation4], 32
    %v9623 = vld [vmem:[%s9622] ss:$64 sm:$0x1]
    %v9624 = vld [vmem:[%s9622] ss:$64 sm:$0x2]
    %v9625 = vor.u32 %v9623, %v9624
    %v9626 = vld [vmem:[%s9622] ss:$64 sm:$0x4]
    %v9627 = vor.u32 %v9625, %v9626
    %v9628 = vld [vmem:[%s9622] ss:$64 sm:$0x8]
    %v9629 = vor.u32 %v9627, %v9628
    %v9630 = vld [vmem:[%s9622] ss:$64 sm:$0x10]
    %v9631 = vor.u32 %v9629, %v9630
    %v9632 = vld [vmem:[%s9622] ss:$64 sm:$0x20]
    %v9633 = vor.u32 %v9631, %v9632
    %v9634 = vld [vmem:[%s9622] ss:$64 sm:$0x40]
    %v9635 = vor.u32 %v9633, %v9634
    %v9636 = vld [vmem:[%s9622] ss:$64 sm:$0x80]
    %v9637 = vor.u32 %v9635, %v9636
    %s9638 = scalar_lea.vmem [#allocation4], 34
    %v9639 = vld [vmem:[%s9638] ss:$64 sm:$0x1]
    %v9640 = vld [vmem:[%s9638] ss:$64 sm:$0x2]
    %v9641 = vor.u32 %v9639, %v9640
    %v9642 = vld [vmem:[%s9638] ss:$64 sm:$0x4]
    %v9643 = vor.u32 %v9641, %v9642
    %v9644 = vld [vmem:[%s9638] ss:$64 sm:$0x8]
    %v9645 = vor.u32 %v9643, %v9644
    %v9646 = vld [vmem:[%s9638] ss:$64 sm:$0x10]
    %v9647 = vor.u32 %v9645, %v9646
    %v9648 = vld [vmem:[%s9638] ss:$64 sm:$0x20]
    %v9649 = vor.u32 %v9647, %v9648
    %v9650 = vld [vmem:[%s9638] ss:$64 sm:$0x40]
    %v9651 = vor.u32 %v9649, %v9650
    %v9652 = vld [vmem:[%s9638] ss:$64 sm:$0x80]
    %v9653 = vor.u32 %v9651, %v9652
    %s9654 = scalar_lea.vmem [#allocation4], 36
    %v9655 = vld [vmem:[%s9654] ss:$64 sm:$0x1]
    %v9656 = vld [vmem:[%s9654] ss:$64 sm:$0x2]
    %v9657 = vor.u32 %v9655, %v9656
    %v9658 = vld [vmem:[%s9654] ss:$64 sm:$0x4]
    %v9659 = vor.u32 %v9657, %v9658
    %v9660 = vld [vmem:[%s9654] ss:$64 sm:$0x8]
    %v9661 = vor.u32 %v9659, %v9660
    %v9662 = vld [vmem:[%s9654] ss:$64 sm:$0x10]
    %v9663 = vor.u32 %v9661, %v9662
    %v9664 = vld [vmem:[%s9654] ss:$64 sm:$0x20]
    %v9665 = vor.u32 %v9663, %v9664
    %v9666 = vld [vmem:[%s9654] ss:$64 sm:$0x40]
    %v9667 = vor.u32 %v9665, %v9666
    %v9668 = vld [vmem:[%s9654] ss:$64 sm:$0x80]
    %v9669 = vor.u32 %v9667, %v9668
    %s9670 = scalar_lea.vmem [#allocation4], 38
    %v9671 = vld [vmem:[%s9670] ss:$64 sm:$0x1]
    %v9672 = vld [vmem:[%s9670] ss:$64 sm:$0x2]
    %v9673 = vor.u32 %v9671, %v9672
    %v9674 = vld [vmem:[%s9670] ss:$64 sm:$0x4]
    %v9675 = vor.u32 %v9673, %v9674
    %v9676 = vld [vmem:[%s9670] ss:$64 sm:$0x8]
    %v9677 = vor.u32 %v9675, %v9676
    %v9678 = vld [vmem:[%s9670] ss:$64 sm:$0x10]
    %v9679 = vor.u32 %v9677, %v9678
    %v9680 = vld [vmem:[%s9670] ss:$64 sm:$0x20]
    %v9681 = vor.u32 %v9679, %v9680
    %v9682 = vld [vmem:[%s9670] ss:$64 sm:$0x40]
    %v9683 = vor.u32 %v9681, %v9682
    %v9684 = vld [vmem:[%s9670] ss:$64 sm:$0x80]
    %v9685 = vor.u32 %v9683, %v9684
    %s9686 = scalar_lea.vmem [#allocation4], 48
    %v9687 = vld [vmem:[%s9686] ss:$64 sm:$0x1]
    %v9688 = vld [vmem:[%s9686] ss:$64 sm:$0x2]
    %v9689 = vor.u32 %v9687, %v9688
    %v9690 = vld [vmem:[%s9686] ss:$64 sm:$0x4]
    %v9691 = vor.u32 %v9689, %v9690
    %v9692 = vld [vmem:[%s9686] ss:$64 sm:$0x8]
    %v9693 = vor.u32 %v9691, %v9692
    %v9694 = vld [vmem:[%s9686] ss:$64 sm:$0x10]
    %v9695 = vor.u32 %v9693, %v9694
    %v9696 = vld [vmem:[%s9686] ss:$64 sm:$0x20]
    %v9697 = vor.u32 %v9695, %v9696
    %v9698 = vld [vmem:[%s9686] ss:$64 sm:$0x40]
    %v9699 = vor.u32 %v9697, %v9698
    %v9700 = vld [vmem:[%s9686] ss:$64 sm:$0x80]
    %v9701 = vor.u32 %v9699, %v9700
    %s9702 = scalar_lea.vmem [#allocation4], 50
    %v9703 = vld [vmem:[%s9702] ss:$64 sm:$0x1]
    %v9704 = vld [vmem:[%s9702] ss:$64 sm:$0x2]
    %v9705 = vor.u32 %v9703, %v9704
    %v9706 = vld [vmem:[%s9702] ss:$64 sm:$0x4]
    %v9707 = vor.u32 %v9705, %v9706
    %v9708 = vld [vmem:[%s9702] ss:$64 sm:$0x8]
    %v9709 = vor.u32 %v9707, %v9708
    %v9710 = vld [vmem:[%s9702] ss:$64 sm:$0x10]
    %v9711 = vor.u32 %v9709, %v9710
    %v9712 = vld [vmem:[%s9702] ss:$64 sm:$0x20]
    %v9713 = vor.u32 %v9711, %v9712
    %v9714 = vld [vmem:[%s9702] ss:$64 sm:$0x40]
    %v9715 = vor.u32 %v9713, %v9714
    %v9716 = vld [vmem:[%s9702] ss:$64 sm:$0x80]
    %v9717 = vor.u32 %v9715, %v9716
    %s9718 = scalar_lea.vmem [#allocation4], 52
    %v9719 = vld [vmem:[%s9718] ss:$64 sm:$0x1]
    %v9720 = vld [vmem:[%s9718] ss:$64 sm:$0x2]
    %v9721 = vor.u32 %v9719, %v9720
    %v9722 = vld [vmem:[%s9718] ss:$64 sm:$0x4]
    %v9723 = vor.u32 %v9721, %v9722
    %v9724 = vld [vmem:[%s9718] ss:$64 sm:$0x8]
    %v9725 = vor.u32 %v9723, %v9724
    %v9726 = vld [vmem:[%s9718] ss:$64 sm:$0x10]
    %v9727 = vor.u32 %v9725, %v9726
    %v9728 = vld [vmem:[%s9718] ss:$64 sm:$0x20]
    %v9729 = vor.u32 %v9727, %v9728
    %v9730 = vld [vmem:[%s9718] ss:$64 sm:$0x40]
    %v9731 = vor.u32 %v9729, %v9730
    %v9732 = vld [vmem:[%s9718] ss:$64 sm:$0x80]
    %v9733 = vor.u32 %v9731, %v9732
    %s9734 = scalar_lea.vmem [#allocation4], 54
    %v9735 = vld [vmem:[%s9734] ss:$64 sm:$0x1]
    %v9736 = vld [vmem:[%s9734] ss:$64 sm:$0x2]
    %v9737 = vor.u32 %v9735, %v9736
    %v9738 = vld [vmem:[%s9734] ss:$64 sm:$0x4]
    %v9739 = vor.u32 %v9737, %v9738
    %v9740 = vld [vmem:[%s9734] ss:$64 sm:$0x8]
    %v9741 = vor.u32 %v9739, %v9740
    %v9742 = vld [vmem:[%s9734] ss:$64 sm:$0x10]
    %v9743 = vor.u32 %v9741, %v9742
    %v9744 = vld [vmem:[%s9734] ss:$64 sm:$0x20]
    %v9745 = vor.u32 %v9743, %v9744
    %v9746 = vld [vmem:[%s9734] ss:$64 sm:$0x40]
    %v9747 = vor.u32 %v9745, %v9746
    %v9748 = vld [vmem:[%s9734] ss:$64 sm:$0x80]
    %v9749 = vor.u32 %v9747, %v9748
    %v9750 = vpack.c.bf16 %v9509, %v9509
    %v9751 = vpack.c.bf16 %v9525, %v9525
    %v9752 = vpack.c.bf16 %v9541, %v9541
    %v9753 = vpack.c.bf16 %v9557, %v9557
    %v9754 = vpack.c.bf16 %v9573, %v9573
    %v9755 = vpack.c.bf16 %v9589, %v9589
    %v9756 = vpack.c.bf16 %v9605, %v9605
    %v9757 = vpack.c.bf16 %v9621, %v9621
    %v9758 = vpack.c.bf16 %v9637, %v9637
    %v9759 = vpack.c.bf16 %v9653, %v9653
    %v9760 = vpack.c.bf16 %v9669, %v9669
    %v9761 = vpack.c.bf16 %v9685, %v9685
    %v9762 = vpack.c.bf16 %v9701, %v9701
    %v9763 = vpack.c.bf16 %v9717, %v9717
    %v9764 = vpack.c.bf16 %v9733, %v9733
    %v9765 = vpack.c.bf16 %v9749, %v9749
    %v9766 = vld [vmem:[%s3] sm:$0xf]
    %v9767 = vld [vmem:[%s3 + $0x4] sm:$0xf]
    %v9768 = vld [vmem:[%s3 + $0x8] sm:$0xf]
    %v9769 = vld [vmem:[%s3 + $0xc] sm:$0xf]
    %v9770 = vld [vmem:[%s3 + $0x10] sm:$0xf]
    %v9771 = vld [vmem:[%s3 + $0x14] sm:$0xf]
    %v9772 = vld [vmem:[%s3 + $0x18] sm:$0xf]
    %v9773 = vld [vmem:[%s3 + $0x1c] sm:$0xf]
    %v9774 = vld [vmem:[%s3 + $0x20] sm:$0xf]
    %v9775 = vld [vmem:[%s3 + $0x24] sm:$0xf]
    %v9776 = vld [vmem:[%s3 + $0x28] sm:$0xf]
    %v9777 = vld [vmem:[%s3 + $0x2c] sm:$0xf]
    %v9778 = vld [vmem:[%s3 + $0x30] sm:$0xf]
    %v9779 = vld [vmem:[%s3 + $0x34] sm:$0xf]
    %v9780 = vld [vmem:[%s3 + $0x38] sm:$0xf]
    %v9781 = vld [vmem:[%s3 + $0x3c] sm:$0xf]
    %v9782 = vld [vmem:[%s3 + $0x40] sm:$0xf]
    %v9783 = vld [vmem:[%s3 + $0x44] sm:$0xf]
    %v9784 = vld [vmem:[%s3 + $0x48] sm:$0xf]
    %v9785 = vld [vmem:[%s3 + $0x4c] sm:$0xf]
    %v9786 = vld [vmem:[%s3 + $0x50] sm:$0xf]
    %v9787 = vld [vmem:[%s3 + $0x54] sm:$0xf]
    %v9788 = vld [vmem:[%s3 + $0x58] sm:$0xf]
    %v9789 = vld [vmem:[%s3 + $0x5c] sm:$0xf]
    %v9790 = vld [vmem:[%s3 + $0x60] sm:$0xf]
    %v9791 = vld [vmem:[%s3 + $0x64] sm:$0xf]
    %v9792 = vld [vmem:[%s3 + $0x68] sm:$0xf]
    %v9793 = vld [vmem:[%s3 + $0x6c] sm:$0xf]
    %v9794 = vld [vmem:[%s3 + $0x70] sm:$0xf]
    %v9795 = vld [vmem:[%s3 + $0x74] sm:$0xf]
    %v9796 = vld [vmem:[%s3 + $0x78] sm:$0xf]
    %v9797 = vld [vmem:[%s3 + $0x7c] sm:$0xf]
    %v9798 = vld [vmem:[%s3 + $0x80] sm:$0xf]
    %v9799 = vld [vmem:[%s3 + $0x84] sm:$0xf]
    %v9800 = vld [vmem:[%s3 + $0x88] sm:$0xf]
    %v9801 = vld [vmem:[%s3 + $0x8c] sm:$0xf]
    %v9802 = vld [vmem:[%s3 + $0x90] sm:$0xf]
    %v9803 = vld [vmem:[%s3 + $0x94] sm:$0xf]
    %v9804 = vld [vmem:[%s3 + $0x98] sm:$0xf]
    %v9805 = vld [vmem:[%s3 + $0x9c] sm:$0xf]
    %v9806 = vld [vmem:[%s3 + $0xa0] sm:$0xf]
    %v9807 = vld [vmem:[%s3 + $0xa4] sm:$0xf]
    %v9808 = vld [vmem:[%s3 + $0xa8] sm:$0xf]
    %v9809 = vld [vmem:[%s3 + $0xac] sm:$0xf]
    %v9810 = vld [vmem:[%s3 + $0xb0] sm:$0xf]
    %v9811 = vld [vmem:[%s3 + $0xb4] sm:$0xf]
    %v9812 = vld [vmem:[%s3 + $0xb8] sm:$0xf]
    %v9813 = vld [vmem:[%s3 + $0xbc] sm:$0xf]
    %v9814 = vld [vmem:[%s3 + $0xc0] sm:$0xf]
    %v9815 = vld [vmem:[%s3 + $0xc4] sm:$0xf]
    %v9816 = vld [vmem:[%s3 + $0xc8] sm:$0xf]
    %v9817 = vld [vmem:[%s3 + $0xcc] sm:$0xf]
    %v9818 = vld [vmem:[%s3 + $0xd0] sm:$0xf]
    %v9819 = vld [vmem:[%s3 + $0xd4] sm:$0xf]
    %v9820 = vld [vmem:[%s3 + $0xd8] sm:$0xf]
    %v9821 = vld [vmem:[%s3 + $0xdc] sm:$0xf]
    %v9822 = vld [vmem:[%s3 + $0xe0] sm:$0xf]
    %v9823 = vld [vmem:[%s3 + $0xe4] sm:$0xf]
    %v9824 = vld [vmem:[%s3 + $0xe8] sm:$0xf]
    %v9825 = vld [vmem:[%s3 + $0xec] sm:$0xf]
    %v9826 = vld [vmem:[%s3 + $0xf0] sm:$0xf]
    %v9827 = vld [vmem:[%s3 + $0xf4] sm:$0xf]
    %v9828 = vld [vmem:[%s3 + $0xf8] sm:$0xf]
    %v9829 = vld [vmem:[%s3 + $0xfc] sm:$0xf]
    %v9830 = vld [vmem:[%s3 + $0x100] sm:$0xf]
    %v9831 = vld [vmem:[%s3 + $0x104] sm:$0xf]
    %v9832 = vld [vmem:[%s3 + $0x108] sm:$0xf]
    %v9833 = vld [vmem:[%s3 + $0x10c] sm:$0xf]
    %v9834 = vld [vmem:[%s3 + $0x110] sm:$0xf]
    %v9835 = vld [vmem:[%s3 + $0x114] sm:$0xf]
    %v9836 = vld [vmem:[%s3 + $0x118] sm:$0xf]
    %v9837 = vld [vmem:[%s3 + $0x11c] sm:$0xf]
    %v9838 = vld [vmem:[%s3 + $0x120] sm:$0xf]
    %v9839 = vld [vmem:[%s3 + $0x124] sm:$0xf]
    %v9840 = vld [vmem:[%s3 + $0x128] sm:$0xf]
    %v9841 = vld [vmem:[%s3 + $0x12c] sm:$0xf]
    %v9842 = vld [vmem:[%s3 + $0x130] sm:$0xf]
    %v9843 = vld [vmem:[%s3 + $0x134] sm:$0xf]
    %v9844 = vld [vmem:[%s3 + $0x138] sm:$0xf]
    %v9845 = vld [vmem:[%s3 + $0x13c] sm:$0xf]
    %v9846 = vld [vmem:[%s3 + $0x140] sm:$0xf]
    %v9847 = vld [vmem:[%s3 + $0x144] sm:$0xf]
    %v9848 = vld [vmem:[%s3 + $0x148] sm:$0xf]
    %v9849 = vld [vmem:[%s3 + $0x14c] sm:$0xf]
    %v9850 = vld [vmem:[%s3 + $0x150] sm:$0xf]
    %v9851 = vld [vmem:[%s3 + $0x154] sm:$0xf]
    %v9852 = vld [vmem:[%s3 + $0x158] sm:$0xf]
    %v9853 = vld [vmem:[%s3 + $0x15c] sm:$0xf]
    %v9854 = vld [vmem:[%s3 + $0x160] sm:$0xf]
    %v9855 = vld [vmem:[%s3 + $0x164] sm:$0xf]
    %v9856 = vld [vmem:[%s3 + $0x168] sm:$0xf]
    %v9857 = vld [vmem:[%s3 + $0x16c] sm:$0xf]
    %v9858 = vld [vmem:[%s3 + $0x170] sm:$0xf]
    %v9859 = vld [vmem:[%s3 + $0x174] sm:$0xf]
    %v9860 = vld [vmem:[%s3 + $0x178] sm:$0xf]
    %v9861 = vld [vmem:[%s3 + $0x17c] sm:$0xf]
    %v9862 = vld [vmem:[%s3 + $0x180] sm:$0xf]
    %v9863 = vld [vmem:[%s3 + $0x184] sm:$0xf]
    %v9864 = vld [vmem:[%s3 + $0x188] sm:$0xf]
    %v9865 = vld [vmem:[%s3 + $0x18c] sm:$0xf]
    %v9866 = vld [vmem:[%s3 + $0x190] sm:$0xf]
    %v9867 = vld [vmem:[%s3 + $0x194] sm:$0xf]
    %v9868 = vld [vmem:[%s3 + $0x198] sm:$0xf]
    %v9869 = vld [vmem:[%s3 + $0x19c] sm:$0xf]
    %v9870 = vld [vmem:[%s3 + $0x1a0] sm:$0xf]
    %v9871 = vld [vmem:[%s3 + $0x1a4] sm:$0xf]
    %v9872 = vld [vmem:[%s3 + $0x1a8] sm:$0xf]
    %v9873 = vld [vmem:[%s3 + $0x1ac] sm:$0xf]
    %v9874 = vld [vmem:[%s3 + $0x1b0] sm:$0xf]
    %v9875 = vld [vmem:[%s3 + $0x1b4] sm:$0xf]
    %v9876 = vld [vmem:[%s3 + $0x1b8] sm:$0xf]
    %v9877 = vld [vmem:[%s3 + $0x1bc] sm:$0xf]
    %v9878 = vld [vmem:[%s3 + $0x1c0] sm:$0xf]
    %v9879 = vld [vmem:[%s3 + $0x1c4] sm:$0xf]
    %v9880 = vld [vmem:[%s3 + $0x1c8] sm:$0xf]
    %v9881 = vld [vmem:[%s3 + $0x1cc] sm:$0xf]
    %v9882 = vld [vmem:[%s3 + $0x1d0] sm:$0xf]
    %v9883 = vld [vmem:[%s3 + $0x1d4] sm:$0xf]
    %v9884 = vld [vmem:[%s3 + $0x1d8] sm:$0xf]
    %v9885 = vld [vmem:[%s3 + $0x1dc] sm:$0xf]
    %v9886 = vld [vmem:[%s3 + $0x1e0] sm:$0xf]
    %v9887 = vld [vmem:[%s3 + $0x1e4] sm:$0xf]
    %v9888 = vld [vmem:[%s3 + $0x1e8] sm:$0xf]
    %v9889 = vld [vmem:[%s3 + $0x1ec] sm:$0xf]
    %v9890 = vld [vmem:[%s3 + $0x1f0] sm:$0xf]
    %v9891 = vld [vmem:[%s3 + $0x1f4] sm:$0xf]
    %v9892 = vld [vmem:[%s3 + $0x1f8] sm:$0xf]
    %v9893 = vld [vmem:[%s3 + $0x1fc] sm:$0xf]
    %v9894 = vld [vmem:[%s3 + $0x200] sm:$0xf]
    %v9895 = vld [vmem:[%s3 + $0x204] sm:$0xf]
    %v9896 = vld [vmem:[%s3 + $0x208] sm:$0xf]
    %v9897 = vld [vmem:[%s3 + $0x20c] sm:$0xf]
    %v9898 = vld [vmem:[%s3 + $0x210] sm:$0xf]
    %v9899 = vld [vmem:[%s3 + $0x214] sm:$0xf]
    %v9900 = vld [vmem:[%s3 + $0x218] sm:$0xf]
    %v9901 = vld [vmem:[%s3 + $0x21c] sm:$0xf]
    %v9902 = vld [vmem:[%s3 + $0x220] sm:$0xf]
    %v9903 = vld [vmem:[%s3 + $0x224] sm:$0xf]
    %v9904 = vld [vmem:[%s3 + $0x228] sm:$0xf]
    %v9905 = vld [vmem:[%s3 + $0x22c] sm:$0xf]
    %v9906 = vld [vmem:[%s3 + $0x230] sm:$0xf]
    %v9907 = vld [vmem:[%s3 + $0x234] sm:$0xf]
    %v9908 = vld [vmem:[%s3 + $0x238] sm:$0xf]
    %v9909 = vld [vmem:[%s3 + $0x23c] sm:$0xf]
    %v9910 = vld [vmem:[%s3 + $0x240] sm:$0xf]
    %v9911 = vld [vmem:[%s3 + $0x244] sm:$0xf]
    %v9912 = vld [vmem:[%s3 + $0x248] sm:$0xf]
    %v9913 = vld [vmem:[%s3 + $0x24c] sm:$0xf]
    %v9914 = vld [vmem:[%s3 + $0x250] sm:$0xf]
    %v9915 = vld [vmem:[%s3 + $0x254] sm:$0xf]
    %v9916 = vld [vmem:[%s3 + $0x258] sm:$0xf]
    %v9917 = vld [vmem:[%s3 + $0x25c] sm:$0xf]
    %v9918 = vld [vmem:[%s3 + $0x260] sm:$0xf]
    %v9919 = vld [vmem:[%s3 + $0x264] sm:$0xf]
    %v9920 = vld [vmem:[%s3 + $0x268] sm:$0xf]
    %v9921 = vld [vmem:[%s3 + $0x26c] sm:$0xf]
    %v9922 = vld [vmem:[%s3 + $0x270] sm:$0xf]
    %v9923 = vld [vmem:[%s3 + $0x274] sm:$0xf]
    %v9924 = vld [vmem:[%s3 + $0x278] sm:$0xf]
    %v9925 = vld [vmem:[%s3 + $0x27c] sm:$0xf]
    %v9926 = vld [vmem:[%s3 + $0x280] sm:$0xf]
    %v9927 = vld [vmem:[%s3 + $0x284] sm:$0xf]
    %v9928 = vld [vmem:[%s3 + $0x288] sm:$0xf]
    %v9929 = vld [vmem:[%s3 + $0x28c] sm:$0xf]
    %v9930 = vld [vmem:[%s3 + $0x290] sm:$0xf]
    %v9931 = vld [vmem:[%s3 + $0x294] sm:$0xf]
    %v9932 = vld [vmem:[%s3 + $0x298] sm:$0xf]
    %v9933 = vld [vmem:[%s3 + $0x29c] sm:$0xf]
    %v9934 = vld [vmem:[%s3 + $0x2a0] sm:$0xf]
    %v9935 = vld [vmem:[%s3 + $0x2a4] sm:$0xf]
    %v9936 = vld [vmem:[%s3 + $0x2a8] sm:$0xf]
    %v9937 = vld [vmem:[%s3 + $0x2ac] sm:$0xf]
    %v9938 = vld [vmem:[%s3 + $0x2b0] sm:$0xf]
    %v9939 = vld [vmem:[%s3 + $0x2b4] sm:$0xf]
    %v9940 = vld [vmem:[%s3 + $0x2b8] sm:$0xf]
    %v9941 = vld [vmem:[%s3 + $0x2bc] sm:$0xf]
    %v9942 = vld [vmem:[%s3 + $0x2c0] sm:$0xf]
    %v9943 = vld [vmem:[%s3 + $0x2c4] sm:$0xf]
    %v9944 = vld [vmem:[%s3 + $0x2c8] sm:$0xf]
    %v9945 = vld [vmem:[%s3 + $0x2cc] sm:$0xf]
    %v9946 = vld [vmem:[%s3 + $0x2d0] sm:$0xf]
    %v9947 = vld [vmem:[%s3 + $0x2d4] sm:$0xf]
    %v9948 = vld [vmem:[%s3 + $0x2d8] sm:$0xf]
    %v9949 = vld [vmem:[%s3 + $0x2dc] sm:$0xf]
    %v9950 = vld [vmem:[%s3 + $0x2e0] sm:$0xf]
    %v9951 = vld [vmem:[%s3 + $0x2e4] sm:$0xf]
    %v9952 = vld [vmem:[%s3 + $0x2e8] sm:$0xf]
    %v9953 = vld [vmem:[%s3 + $0x2ec] sm:$0xf]
    %v9954 = vld [vmem:[%s3 + $0x2f0] sm:$0xf]
    %v9955 = vld [vmem:[%s3 + $0x2f4] sm:$0xf]
    %v9956 = vld [vmem:[%s3 + $0x2f8] sm:$0xf]
    %v9957 = vld [vmem:[%s3 + $0x2fc] sm:$0xf]
    %v9958 = vld [vmem:[%s3 + $0x300] sm:$0xf]
    %v9959 = vld [vmem:[%s3 + $0x304] sm:$0xf]
    %v9960 = vld [vmem:[%s3 + $0x308] sm:$0xf]
    %v9961 = vld [vmem:[%s3 + $0x30c] sm:$0xf]
    %v9962 = vld [vmem:[%s3 + $0x310] sm:$0xf]
    %v9963 = vld [vmem:[%s3 + $0x314] sm:$0xf]
    %v9964 = vld [vmem:[%s3 + $0x318] sm:$0xf]
    %v9965 = vld [vmem:[%s3 + $0x31c] sm:$0xf]
    %v9966 = vld [vmem:[%s3 + $0x320] sm:$0xf]
    %v9967 = vld [vmem:[%s3 + $0x324] sm:$0xf]
    %v9968 = vld [vmem:[%s3 + $0x328] sm:$0xf]
    %v9969 = vld [vmem:[%s3 + $0x32c] sm:$0xf]
    %v9970 = vld [vmem:[%s3 + $0x330] sm:$0xf]
    %v9971 = vld [vmem:[%s3 + $0x334] sm:$0xf]
    %v9972 = vld [vmem:[%s3 + $0x338] sm:$0xf]
    %v9973 = vld [vmem:[%s3 + $0x33c] sm:$0xf]
    %v9974 = vld [vmem:[%s3 + $0x340] sm:$0xf]
    %v9975 = vld [vmem:[%s3 + $0x344] sm:$0xf]
    %v9976 = vld [vmem:[%s3 + $0x348] sm:$0xf]
    %v9977 = vld [vmem:[%s3 + $0x34c] sm:$0xf]
    %v9978 = vld [vmem:[%s3 + $0x350] sm:$0xf]
    %v9979 = vld [vmem:[%s3 + $0x354] sm:$0xf]
    %v9980 = vld [vmem:[%s3 + $0x358] sm:$0xf]
    %v9981 = vld [vmem:[%s3 + $0x35c] sm:$0xf]
    %v9982 = vld [vmem:[%s3 + $0x360] sm:$0xf]
    %v9983 = vld [vmem:[%s3 + $0x364] sm:$0xf]
    %v9984 = vld [vmem:[%s3 + $0x368] sm:$0xf]
    %v9985 = vld [vmem:[%s3 + $0x36c] sm:$0xf]
    %v9986 = vld [vmem:[%s3 + $0x370] sm:$0xf]
    %v9987 = vld [vmem:[%s3 + $0x374] sm:$0xf]
    %v9988 = vld [vmem:[%s3 + $0x378] sm:$0xf]
    %v9989 = vld [vmem:[%s3 + $0x37c] sm:$0xf]
    %v9990 = vld [vmem:[%s3 + $0x380] sm:$0xf]
    %v9991 = vld [vmem:[%s3 + $0x384] sm:$0xf]
    %v9992 = vld [vmem:[%s3 + $0x388] sm:$0xf]
    %v9993 = vld [vmem:[%s3 + $0x38c] sm:$0xf]
    %v9994 = vld [vmem:[%s3 + $0x390] sm:$0xf]
    %v9995 = vld [vmem:[%s3 + $0x394] sm:$0xf]
    %v9996 = vld [vmem:[%s3 + $0x398] sm:$0xf]
    %v9997 = vld [vmem:[%s3 + $0x39c] sm:$0xf]
    %v9998 = vld [vmem:[%s3 + $0x3a0] sm:$0xf]
    %v9999 = vld [vmem:[%s3 + $0x3a4] sm:$0xf]
    %v10000 = vld [vmem:[%s3 + $0x3a8] sm:$0xf]
    %v10001 = vld [vmem:[%s3 + $0x3ac] sm:$0xf]
    %v10002 = vld [vmem:[%s3 + $0x3b0] sm:$0xf]
    %v10003 = vld [vmem:[%s3 + $0x3b4] sm:$0xf]
    %v10004 = vld [vmem:[%s3 + $0x3b8] sm:$0xf]
    %v10005 = vld [vmem:[%s3 + $0x3bc] sm:$0xf]
    %v10006 = vld [vmem:[%s3 + $0x3c0] sm:$0xf]
    %v10007 = vld [vmem:[%s3 + $0x3c4] sm:$0xf]
    %v10008 = vld [vmem:[%s3 + $0x3c8] sm:$0xf]
    %v10009 = vld [vmem:[%s3 + $0x3cc] sm:$0xf]
    %v10010 = vld [vmem:[%s3 + $0x3d0] sm:$0xf]
    %v10011 = vld [vmem:[%s3 + $0x3d4] sm:$0xf]
    %v10012 = vld [vmem:[%s3 + $0x3d8] sm:$0xf]
    %v10013 = vld [vmem:[%s3 + $0x3dc] sm:$0xf]
    %v10014 = vld [vmem:[%s3 + $0x3e0] sm:$0xf]
    %v10015 = vld [vmem:[%s3 + $0x3e4] sm:$0xf]
    %v10016 = vld [vmem:[%s3 + $0x3e8] sm:$0xf]
    %v10017 = vld [vmem:[%s3 + $0x3ec] sm:$0xf]
    %v10018 = vld [vmem:[%s3 + $0x3f0] sm:$0xf]
    %v10019 = vld [vmem:[%s3 + $0x3f4] sm:$0xf]
    %v10020 = vld [vmem:[%s3 + $0x3f8] sm:$0xf]
    %v10021 = vld [vmem:[%s3 + $0x3fc] sm:$0xf]
    %v10022 = vld [vmem:[%s4] sm:$0x1]
    %v10024 = vlaneseq
    %v10025 = vshrl.u32 %v10024, 7
    %v10026 = vsub.s32 0, %v10025
    %v10027 = vrot.slane %v10022, %v10026
    %v10285 = vunpack.c.l.b16 %v9766
    %v10286 = vunpack.c.l.b16 %v9767
    %v10287 = vunpack.c.l.b16 %v9768
    %v10288 = vunpack.c.l.b16 %v9769
    %v10289 = vunpack.c.l.b16 %v9770
    %v10290 = vunpack.c.l.b16 %v9771
    %v10291 = vunpack.c.l.b16 %v9772
    %v10292 = vunpack.c.l.b16 %v9773
    %v10293 = vunpack.c.l.b16 %v9774
    %v10294 = vunpack.c.l.b16 %v9775
    %v10295 = vunpack.c.l.b16 %v9776
    %v10296 = vunpack.c.l.b16 %v9777
    %v10297 = vunpack.c.l.b16 %v9778
    %v10298 = vunpack.c.l.b16 %v9779
    %v10299 = vunpack.c.l.b16 %v9780
    %v10300 = vunpack.c.l.b16 %v9781
    %v10301 = vunpack.c.l.b16 %v9782
    %v10302 = vunpack.c.l.b16 %v9783
    %v10303 = vunpack.c.l.b16 %v9784
    %v10304 = vunpack.c.l.b16 %v9785
    %v10305 = vunpack.c.l.b16 %v9786
    %v10306 = vunpack.c.l.b16 %v9787
    %v10307 = vunpack.c.l.b16 %v9788
    %v10308 = vunpack.c.l.b16 %v9789
    %v10309 = vunpack.c.l.b16 %v9790
    %v10310 = vunpack.c.l.b16 %v9791
    %v10311 = vunpack.c.l.b16 %v9792
    %v10312 = vunpack.c.l.b16 %v9793
    %v10313 = vunpack.c.l.b16 %v9794
    %v10314 = vunpack.c.l.b16 %v9795
    %v10315 = vunpack.c.l.b16 %v9796
    %v10316 = vunpack.c.l.b16 %v9797
    %v10317 = vunpack.c.l.b16 %v9798
    %v10318 = vunpack.c.l.b16 %v9799
    %v10319 = vunpack.c.l.b16 %v9800
    %v10320 = vunpack.c.l.b16 %v9801
    %v10321 = vunpack.c.l.b16 %v9802
    %v10322 = vunpack.c.l.b16 %v9803
    %v10323 = vunpack.c.l.b16 %v9804
    %v10324 = vunpack.c.l.b16 %v9805
    %v10325 = vunpack.c.l.b16 %v9806
    %v10326 = vunpack.c.l.b16 %v9807
    %v10327 = vunpack.c.l.b16 %v9808
    %v10328 = vunpack.c.l.b16 %v9809
    %v10329 = vunpack.c.l.b16 %v9810
    %v10330 = vunpack.c.l.b16 %v9811
    %v10331 = vunpack.c.l.b16 %v9812
    %v10332 = vunpack.c.l.b16 %v9813
    %v10333 = vunpack.c.l.b16 %v9814
    %v10334 = vunpack.c.l.b16 %v9815
    %v10335 = vunpack.c.l.b16 %v9816
    %v10336 = vunpack.c.l.b16 %v9817
    %v10337 = vunpack.c.l.b16 %v9818
    %v10338 = vunpack.c.l.b16 %v9819
    %v10339 = vunpack.c.l.b16 %v9820
    %v10340 = vunpack.c.l.b16 %v9821
    %v10341 = vunpack.c.l.b16 %v9822
    %v10342 = vunpack.c.l.b16 %v9823
    %v10343 = vunpack.c.l.b16 %v9824
    %v10344 = vunpack.c.l.b16 %v9825
    %v10345 = vunpack.c.l.b16 %v9826
    %v10346 = vunpack.c.l.b16 %v9827
    %v10347 = vunpack.c.l.b16 %v9828
    %v10348 = vunpack.c.l.b16 %v9829
    %v10349 = vunpack.c.l.b16 %v9830
    %v10350 = vunpack.c.l.b16 %v9831
    %v10351 = vunpack.c.l.b16 %v9832
    %v10352 = vunpack.c.l.b16 %v9833
    %v10353 = vunpack.c.l.b16 %v9834
    %v10354 = vunpack.c.l.b16 %v9835
    %v10355 = vunpack.c.l.b16 %v9836
    %v10356 = vunpack.c.l.b16 %v9837
    %v10357 = vunpack.c.l.b16 %v9838
    %v10358 = vunpack.c.l.b16 %v9839
    %v10359 = vunpack.c.l.b16 %v9840
    %v10360 = vunpack.c.l.b16 %v9841
    %v10361 = vunpack.c.l.b16 %v9842
    %v10362 = vunpack.c.l.b16 %v9843
    %v10363 = vunpack.c.l.b16 %v9844
    %v10364 = vunpack.c.l.b16 %v9845
    %v10365 = vunpack.c.l.b16 %v9846
    %v10366 = vunpack.c.l.b16 %v9847
    %v10367 = vunpack.c.l.b16 %v9848
    %v10368 = vunpack.c.l.b16 %v9849
    %v10369 = vunpack.c.l.b16 %v9850
    %v10370 = vunpack.c.l.b16 %v9851
    %v10371 = vunpack.c.l.b16 %v9852
    %v10372 = vunpack.c.l.b16 %v9853
    %v10373 = vunpack.c.l.b16 %v9854
    %v10374 = vunpack.c.l.b16 %v9855
    %v10375 = vunpack.c.l.b16 %v9856
    %v10376 = vunpack.c.l.b16 %v9857
    %v10377 = vunpack.c.l.b16 %v9858
    %v10378 = vunpack.c.l.b16 %v9859
    %v10379 = vunpack.c.l.b16 %v9860
    %v10380 = vunpack.c.l.b16 %v9861
    %v10381 = vunpack.c.l.b16 %v9862
    %v10382 = vunpack.c.l.b16 %v9863
    %v10383 = vunpack.c.l.b16 %v9864
    %v10384 = vunpack.c.l.b16 %v9865
    %v10385 = vunpack.c.l.b16 %v9866
    %v10386 = vunpack.c.l.b16 %v9867
    %v10387 = vunpack.c.l.b16 %v9868
    %v10388 = vunpack.c.l.b16 %v9869
    %v10389 = vunpack.c.l.b16 %v9870
    %v10390 = vunpack.c.l.b16 %v9871
    %v10391 = vunpack.c.l.b16 %v9872
    %v10392 = vunpack.c.l.b16 %v9873
    %v10393 = vunpack.c.l.b16 %v9874
    %v10394 = vunpack.c.l.b16 %v9875
    %v10395 = vunpack.c.l.b16 %v9876
    %v10396 = vunpack.c.l.b16 %v9877
    %v10397 = vunpack.c.l.b16 %v9878
    %v10398 = vunpack.c.l.b16 %v9879
    %v10399 = vunpack.c.l.b16 %v9880
    %v10400 = vunpack.c.l.b16 %v9881
    %v10401 = vunpack.c.l.b16 %v9882
    %v10402 = vunpack.c.l.b16 %v9883
    %v10403 = vunpack.c.l.b16 %v9884
    %v10404 = vunpack.c.l.b16 %v9885
    %v10405 = vunpack.c.l.b16 %v9886
    %v10406 = vunpack.c.l.b16 %v9887
    %v10407 = vunpack.c.l.b16 %v9888
    %v10408 = vunpack.c.l.b16 %v9889
    %v10409 = vunpack.c.l.b16 %v9890
    %v10410 = vunpack.c.l.b16 %v9891
    %v10411 = vunpack.c.l.b16 %v9892
    %v10412 = vunpack.c.l.b16 %v9893
    %v10413 = vunpack.c.l.b16 %v9894
    %v10414 = vunpack.c.l.b16 %v9895
    %v10415 = vunpack.c.l.b16 %v9896
    %v10416 = vunpack.c.l.b16 %v9897
    %v10417 = vunpack.c.l.b16 %v9898
    %v10418 = vunpack.c.l.b16 %v9899
    %v10419 = vunpack.c.l.b16 %v9900
    %v10420 = vunpack.c.l.b16 %v9901
    %v10421 = vunpack.c.l.b16 %v9902
    %v10422 = vunpack.c.l.b16 %v9903
    %v10423 = vunpack.c.l.b16 %v9904
    %v10424 = vunpack.c.l.b16 %v9905
    %v10425 = vunpack.c.l.b16 %v9906
    %v10426 = vunpack.c.l.b16 %v9907
    %v10427 = vunpack.c.l.b16 %v9908
    %v10428 = vunpack.c.l.b16 %v9909
    %v10429 = vunpack.c.l.b16 %v9910
    %v10430 = vunpack.c.l.b16 %v9911
    %v10431 = vunpack.c.l.b16 %v9912
    %v10432 = vunpack.c.l.b16 %v9913
    %v10433 = vunpack.c.l.b16 %v9914
    %v10434 = vunpack.c.l.b16 %v9915
    %v10435 = vunpack.c.l.b16 %v9916
    %v10436 = vunpack.c.l.b16 %v9917
    %v10437 = vunpack.c.l.b16 %v9918
    %v10438 = vunpack.c.l.b16 %v9919
    %v10439 = vunpack.c.l.b16 %v9920
    %v10440 = vunpack.c.l.b16 %v9921
    %v10441 = vunpack.c.l.b16 %v9922
    %v10442 = vunpack.c.l.b16 %v9923
    %v10443 = vunpack.c.l.b16 %v9924
    %v10444 = vunpack.c.l.b16 %v9925
    %v10445 = vunpack.c.l.b16 %v9926
    %v10446 = vunpack.c.l.b16 %v9927
    %v10447 = vunpack.c.l.b16 %v9928
    %v10448 = vunpack.c.l.b16 %v9929
    %v10449 = vunpack.c.l.b16 %v9930
    %v10450 = vunpack.c.l.b16 %v9931
    %v10451 = vunpack.c.l.b16 %v9932
    %v10452 = vunpack.c.l.b16 %v9933
    %v10453 = vunpack.c.l.b16 %v9934
    %v10454 = vunpack.c.l.b16 %v9935
    %v10455 = vunpack.c.l.b16 %v9936
    %v10456 = vunpack.c.l.b16 %v9937
    %v10457 = vunpack.c.l.b16 %v9938
    %v10458 = vunpack.c.l.b16 %v9939
    %v10459 = vunpack.c.l.b16 %v9940
    %v10460 = vunpack.c.l.b16 %v9941
    %v10461 = vunpack.c.l.b16 %v9942
    %v10462 = vunpack.c.l.b16 %v9943
    %v10463 = vunpack.c.l.b16 %v9944
    %v10464 = vunpack.c.l.b16 %v9945
    %v10465 = vunpack.c.l.b16 %v9946
    %v10466 = vunpack.c.l.b16 %v9947
    %v10467 = vunpack.c.l.b16 %v9948
    %v10468 = vunpack.c.l.b16 %v9949
    %v10469 = vunpack.c.l.b16 %v9950
    %v10470 = vunpack.c.l.b16 %v9951
    %v10471 = vunpack.c.l.b16 %v9952
    %v10472 = vunpack.c.l.b16 %v9953
    %v10473 = vunpack.c.l.b16 %v9954
    %v10474 = vunpack.c.l.b16 %v9955
    %v10475 = vunpack.c.l.b16 %v9956
    %v10476 = vunpack.c.l.b16 %v9957
    %v10477 = vunpack.c.l.b16 %v9958
    %v10478 = vunpack.c.l.b16 %v9959
    %v10479 = vunpack.c.l.b16 %v9960
    %v10480 = vunpack.c.l.b16 %v9961
    %v10481 = vunpack.c.l.b16 %v9962
    %v10482 = vunpack.c.l.b16 %v9963
    %v10483 = vunpack.c.l.b16 %v9964
    %v10484 = vunpack.c.l.b16 %v9965
    %v10485 = vunpack.c.l.b16 %v9966
    %v10486 = vunpack.c.l.b16 %v9967
    %v10487 = vunpack.c.l.b16 %v9968
    %v10488 = vunpack.c.l.b16 %v9969
    %v10489 = vunpack.c.l.b16 %v9970
    %v10490 = vunpack.c.l.b16 %v9971
    %v10491 = vunpack.c.l.b16 %v9972
    %v10492 = vunpack.c.l.b16 %v9973
    %v10493 = vunpack.c.l.b16 %v9974
    %v10494 = vunpack.c.l.b16 %v9975
    %v10495 = vunpack.c.l.b16 %v9976
    %v10496 = vunpack.c.l.b16 %v9977
    %v10497 = vunpack.c.l.b16 %v9978
    %v10498 = vunpack.c.l.b16 %v9979
    %v10499 = vunpack.c.l.b16 %v9980
    %v10500 = vunpack.c.l.b16 %v9981
    %v10501 = vunpack.c.l.b16 %v9982
    %v10502 = vunpack.c.l.b16 %v9983
    %v10503 = vunpack.c.l.b16 %v9984
    %v10504 = vunpack.c.l.b16 %v9985
    %v10505 = vunpack.c.l.b16 %v9986
    %v10506 = vunpack.c.l.b16 %v9987
    %v10507 = vunpack.c.l.b16 %v9988
    %v10508 = vunpack.c.l.b16 %v9989
    %v10509 = vunpack.c.l.b16 %v9990
    %v10510 = vunpack.c.l.b16 %v9991
    %v10511 = vunpack.c.l.b16 %v9992
    %v10512 = vunpack.c.l.b16 %v9993
    %v10513 = vunpack.c.l.b16 %v9994
    %v10514 = vunpack.c.l.b16 %v9995
    %v10515 = vunpack.c.l.b16 %v9996
    %v10516 = vunpack.c.l.b16 %v9997
    %v10517 = vunpack.c.l.b16 %v9998
    %v10518 = vunpack.c.l.b16 %v9999
    %v10519 = vunpack.c.l.b16 %v10000
    %v10520 = vunpack.c.l.b16 %v10001
    %v10521 = vunpack.c.l.b16 %v10002
    %v10522 = vunpack.c.l.b16 %v10003
    %v10523 = vunpack.c.l.b16 %v10004
    %v10524 = vunpack.c.l.b16 %v10005
    %v10525 = vunpack.c.l.b16 %v10006
    %v10526 = vunpack.c.l.b16 %v10007
    %v10527 = vunpack.c.l.b16 %v10008
    %v10528 = vunpack.c.l.b16 %v10009
    %v10529 = vunpack.c.l.b16 %v10010
    %v10530 = vunpack.c.l.b16 %v10011
    %v10531 = vunpack.c.l.b16 %v10012
    %v10532 = vunpack.c.l.b16 %v10013
    %v10533 = vunpack.c.l.b16 %v10014
    %v10534 = vunpack.c.l.b16 %v10015
    %v10535 = vunpack.c.l.b16 %v10016
    %v10536 = vunpack.c.l.b16 %v10017
    %v10537 = vunpack.c.l.b16 %v10018
    %v10538 = vunpack.c.l.b16 %v10019
    %v10539 = vunpack.c.l.b16 %v10020
    %v10540 = vunpack.c.l.b16 %v10021
    %v10541 = vpack.c.b16 %v10286, %v10285
    %v10542 = vpack.c.b16 %v10288, %v10287
    %v10543 = vpack.c.b16 %v10290, %v10289
    %v10544 = vpack.c.b16 %v10292, %v10291
    %v10545 = vpack.c.b16 %v10294, %v10293
    %v10546 = vpack.c.b16 %v10296, %v10295
    %v10547 = vpack.c.b16 %v10298, %v10297
    %v10548 = vpack.c.b16 %v10300, %v10299
    %v10549 = vpack.c.b16 %v10302, %v10301
    %v10550 = vpack.c.b16 %v10304, %v10303
    %v10551 = vpack.c.b16 %v10306, %v10305
    %v10552 = vpack.c.b16 %v10308, %v10307
    %v10553 = vpack.c.b16 %v10310, %v10309
    %v10554 = vpack.c.b16 %v10312, %v10311
    %v10555 = vpack.c.b16 %v10314, %v10313
    %v10556 = vpack.c.b16 %v10316, %v10315
    %v10557 = vpack.c.b16 %v10318, %v10317
    %v10558 = vpack.c.b16 %v10320, %v10319
    %v10559 = vpack.c.b16 %v10322, %v10321
    %v10560 = vpack.c.b16 %v10324, %v10323
    %v10561 = vpack.c.b16 %v10326, %v10325
    %v10562 = vpack.c.b16 %v10328, %v10327
    %v10563 = vpack.c.b16 %v10330, %v10329
    %v10564 = vpack.c.b16 %v10332, %v10331
    %v10565 = vpack.c.b16 %v10334, %v10333
    %v10566 = vpack.c.b16 %v10336, %v10335
    %v10567 = vpack.c.b16 %v10338, %v10337
    %v10568 = vpack.c.b16 %v10340, %v10339
    %v10569 = vpack.c.b16 %v10342, %v10341
    %v10570 = vpack.c.b16 %v10344, %v10343
    %v10571 = vpack.c.b16 %v10346, %v10345
    %v10572 = vpack.c.b16 %v10348, %v10347
    %v10573 = vpack.c.b16 %v10350, %v10349
    %v10574 = vpack.c.b16 %v10352, %v10351
    %v10575 = vpack.c.b16 %v10354, %v10353
    %v10576 = vpack.c.b16 %v10356, %v10355
    %v10577 = vpack.c.b16 %v10358, %v10357
    %v10578 = vpack.c.b16 %v10360, %v10359
    %v10579 = vpack.c.b16 %v10362, %v10361
    %v10580 = vpack.c.b16 %v10364, %v10363
    %v10581 = vpack.c.b16 %v10366, %v10365
    %v10582 = vpack.c.b16 %v10368, %v10367
    %v10583 = vpack.c.b16 %v10370, %v10369
    %v10584 = vpack.c.b16 %v10372, %v10371
    %v10585 = vpack.c.b16 %v10374, %v10373
    %v10586 = vpack.c.b16 %v10376, %v10375
    %v10587 = vpack.c.b16 %v10378, %v10377
    %v10588 = vpack.c.b16 %v10380, %v10379
    %v10589 = vpack.c.b16 %v10382, %v10381
    %v10590 = vpack.c.b16 %v10384, %v10383
    %v10591 = vpack.c.b16 %v10386, %v10385
    %v10592 = vpack.c.b16 %v10388, %v10387
    %v10593 = vpack.c.b16 %v10390, %v10389
    %v10594 = vpack.c.b16 %v10392, %v10391
    %v10595 = vpack.c.b16 %v10394, %v10393
    %v10596 = vpack.c.b16 %v10396, %v10395
    %v10597 = vpack.c.b16 %v10398, %v10397
    %v10598 = vpack.c.b16 %v10400, %v10399
    %v10599 = vpack.c.b16 %v10402, %v10401
    %v10600 = vpack.c.b16 %v10404, %v10403
    %v10601 = vpack.c.b16 %v10406, %v10405
    %v10602 = vpack.c.b16 %v10408, %v10407
    %v10603 = vpack.c.b16 %v10410, %v10409
    %v10604 = vpack.c.b16 %v10412, %v10411
    %v10605 = vpack.c.b16 %v10414, %v10413
    %v10606 = vpack.c.b16 %v10416, %v10415
    %v10607 = vpack.c.b16 %v10418, %v10417
    %v10608 = vpack.c.b16 %v10420, %v10419
    %v10609 = vpack.c.b16 %v10422, %v10421
    %v10610 = vpack.c.b16 %v10424, %v10423
    %v10611 = vpack.c.b16 %v10426, %v10425
    %v10612 = vpack.c.b16 %v10428, %v10427
    %v10613 = vpack.c.b16 %v10430, %v10429
    %v10614 = vpack.c.b16 %v10432, %v10431
    %v10615 = vpack.c.b16 %v10434, %v10433
    %v10616 = vpack.c.b16 %v10436, %v10435
    %v10617 = vpack.c.b16 %v10438, %v10437
    %v10618 = vpack.c.b16 %v10440, %v10439
    %v10619 = vpack.c.b16 %v10442, %v10441
    %v10620 = vpack.c.b16 %v10444, %v10443
    %v10621 = vpack.c.b16 %v10446, %v10445
    %v10622 = vpack.c.b16 %v10448, %v10447
    %v10623 = vpack.c.b16 %v10450, %v10449
    %v10624 = vpack.c.b16 %v10452, %v10451
    %v10625 = vpack.c.b16 %v10454, %v10453
    %v10626 = vpack.c.b16 %v10456, %v10455
    %v10627 = vpack.c.b16 %v10458, %v10457
    %v10628 = vpack.c.b16 %v10460, %v10459
    %v10629 = vpack.c.b16 %v10462, %v10461
    %v10630 = vpack.c.b16 %v10464, %v10463
    %v10631 = vpack.c.b16 %v10466, %v10465
    %v10632 = vpack.c.b16 %v10468, %v10467
    %v10633 = vpack.c.b16 %v10470, %v10469
    %v10634 = vpack.c.b16 %v10472, %v10471
    %v10635 = vpack.c.b16 %v10474, %v10473
    %v10636 = vpack.c.b16 %v10476, %v10475
    %v10637 = vpack.c.b16 %v10478, %v10477
    %v10638 = vpack.c.b16 %v10480, %v10479
    %v10639 = vpack.c.b16 %v10482, %v10481
    %v10640 = vpack.c.b16 %v10484, %v10483
    %v10641 = vpack.c.b16 %v10486, %v10485
    %v10642 = vpack.c.b16 %v10488, %v10487
    %v10643 = vpack.c.b16 %v10490, %v10489
    %v10644 = vpack.c.b16 %v10492, %v10491
    %v10645 = vpack.c.b16 %v10494, %v10493
    %v10646 = vpack.c.b16 %v10496, %v10495
    %v10647 = vpack.c.b16 %v10498, %v10497
    %v10648 = vpack.c.b16 %v10500, %v10499
    %v10649 = vpack.c.b16 %v10502, %v10501
    %v10650 = vpack.c.b16 %v10504, %v10503
    %v10651 = vpack.c.b16 %v10506, %v10505
    %v10652 = vpack.c.b16 %v10508, %v10507
    %v10653 = vpack.c.b16 %v10510, %v10509
    %v10654 = vpack.c.b16 %v10512, %v10511
    %v10655 = vpack.c.b16 %v10514, %v10513
    %v10656 = vpack.c.b16 %v10516, %v10515
    %v10657 = vpack.c.b16 %v10518, %v10517
    %v10658 = vpack.c.b16 %v10520, %v10519
    %v10659 = vpack.c.b16 %v10522, %v10521
    %v10660 = vpack.c.b16 %v10524, %v10523
    %v10661 = vpack.c.b16 %v10526, %v10525
    %v10662 = vpack.c.b16 %v10528, %v10527
    %v10663 = vpack.c.b16 %v10530, %v10529
    %v10664 = vpack.c.b16 %v10532, %v10531
    %v10665 = vpack.c.b16 %v10534, %v10533
    %v10666 = vpack.c.b16 %v10536, %v10535
    %v10667 = vpack.c.b16 %v10538, %v10537
    %v10668 = vpack.c.b16 %v10540, %v10539
    %10797 = vmatprep.subr.bf16.mxu0 0
    %10798 = vmatpush1.bf16.msra.mxu0 %v10541
    %10799 = vmatprep.subr.bf16.mxu0 0
    %10800 = vmatpush1.bf16.msra.mxu0 %v10542
    %10801 = vmatprep.subr.bf16.mxu0 0
    %10802 = vmatpush1.bf16.msra.mxu0 %v10543
    %10803 = vmatprep.subr.bf16.mxu0 0
    %10804 = vmatpush1.bf16.msra.mxu0 %v10544
    %10805 = vmatprep.subr.bf16.mxu0 0
    %10806 = vmatpush1.bf16.msra.mxu0 %v10545
    %10807 = vmatprep.subr.bf16.mxu0 0
    %10808 = vmatpush1.bf16.msra.mxu0 %v10546
    %10809 = vmatprep.subr.bf16.mxu0 0
    %10810 = vmatpush1.bf16.msra.mxu0 %v10547
    %10811 = vmatprep.subr.bf16.mxu0 0
    %10812 = vmatpush1.bf16.msra.mxu0 %v10548
    %10813 = vmatprep.subr.bf16.mxu0 0
    %10814 = vmatpush1.bf16.msra.mxu0 %v10549
    %10815 = vmatprep.subr.bf16.mxu0 0
    %10816 = vmatpush1.bf16.msra.mxu0 %v10550
    %10817 = vmatprep.subr.bf16.mxu0 0
    %10818 = vmatpush1.bf16.msra.mxu0 %v10551
    %10819 = vmatprep.subr.bf16.mxu0 0
    %10820 = vmatpush1.bf16.msra.mxu0 %v10552
    %10821 = vmatprep.subr.bf16.mxu0 0
    %10822 = vmatpush1.bf16.msra.mxu0 %v10553
    %10823 = vmatprep.subr.bf16.mxu0 0
    %10824 = vmatpush1.bf16.msra.mxu0 %v10554
    %10825 = vmatprep.subr.bf16.mxu0 0
    %10826 = vmatpush1.bf16.msra.mxu0 %v10555
    %10827 = vmatprep.subr.bf16.mxu0 0
    %10828 = vmatpush1.bf16.msra.mxu0 %v10556
    %10829 = vmatprep.mubr.bf16.mxu0 %v9751
    %10830 = vmatmul.mubr.bf16.gmra.mrb[0].mxu0 %v9750
    %v10831 = vpop.f32.mrb[0].mxu0
    %v10832 = vadd.f32 %v10027, %v10831
    %v10833 = vpop.f32.mrb[0].mxu0
    %v10834 = vpop.f32.mrb[0].mxu0
    %v10835 = vpop.f32.mrb[0].mxu0
    %10836 = vdwg.mxu0
    %10837 = vmatprep.subr.bf16.mxu0 0
    %10838 = vmatpush1.bf16.msra.mxu0 %v10557
    %10839 = vmatprep.subr.bf16.mxu0 0
    %10840 = vmatpush1.bf16.msra.mxu0 %v10558
    %10841 = vmatprep.subr.bf16.mxu0 0
    %10842 = vmatpush1.bf16.msra.mxu0 %v10559
    %10843 = vmatprep.subr.bf16.mxu0 0
    %10844 = vmatpush1.bf16.msra.mxu0 %v10560
    %10845 = vmatprep.subr.bf16.mxu0 0
    %10846 = vmatpush1.bf16.msra.mxu0 %v10561
    %10847 = vmatprep.subr.bf16.mxu0 0
    %10848 = vmatpush1.bf16.msra.mxu0 %v10562
    %10849 = vmatprep.subr.bf16.mxu0 0
    %10850 = vmatpush1.bf16.msra.mxu0 %v10563
    %10851 = vmatprep.subr.bf16.mxu0 0
    %10852 = vmatpush1.bf16.msra.mxu0 %v10564
    %10853 = vmatprep.subr.bf16.mxu0 0
    %10854 = vmatpush1.bf16.msra.mxu0 %v10565
    %10855 = vmatprep.subr.bf16.mxu0 0
    %10856 = vmatpush1.bf16.msra.mxu0 %v10566
    %10857 = vmatprep.subr.bf16.mxu0 0
    %10858 = vmatpush1.bf16.msra.mxu0 %v10567
    %10859 = vmatprep.subr.bf16.mxu0 0
    %10860 = vmatpush1.bf16.msra.mxu0 %v10568
    %10861 = vmatprep.subr.bf16.mxu0 0
    %10862 = vmatpush1.bf16.msra.mxu0 %v10569
    %10863 = vmatprep.subr.bf16.mxu0 0
    %10864 = vmatpush1.bf16.msra.mxu0 %v10570
    %10865 = vmatprep.subr.bf16.mxu0 0
    %10866 = vmatpush1.bf16.msra.mxu0 %v10571
    %10867 = vmatprep.subr.bf16.mxu0 0
    %10868 = vmatpush1.bf16.msra.mxu0 %v10572
    %10869 = vmatprep.mubr.bf16.mxu0 %v9753
    %10870 = vmatmul.mubr.bf16.gmra.mrb[0].mxu0 %v9752
    %v10871 = vpop.f32.mrb[0].mxu0
    %v10872 = vadd.f32 %v10832, %v10871
    %v10873 = vpop.f32.mrb[0].mxu0
    %v10874 = vpop.f32.mrb[0].mxu0
    %v10875 = vpop.f32.mrb[0].mxu0
    %10876 = vdwg.mxu0
    %10877 = vmatprep.subr.bf16.mxu0 0
    %10878 = vmatpush1.bf16.msra.mxu0 %v10573
    %10879 = vmatprep.subr.bf16.mxu0 0
    %10880 = vmatpush1.bf16.msra.mxu0 %v10574
    %10881 = vmatprep.subr.bf16.mxu0 0
    %10882 = vmatpush1.bf16.msra.mxu0 %v10575
    %10883 = vmatprep.subr.bf16.mxu0 0
    %10884 = vmatpush1.bf16.msra.mxu0 %v10576
    %10885 = vmatprep.subr.bf16.mxu0 0
    %10886 = vmatpush1.bf16.msra.mxu0 %v10577
    %10887 = vmatprep.subr.bf16.mxu0 0
    %10888 = vmatpush1.bf16.msra.mxu0 %v10578
    %10889 = vmatprep.subr.bf16.mxu0 0
    %10890 = vmatpush1.bf16.msra.mxu0 %v10579
    %10891 = vmatprep.subr.bf16.mxu0 0
    %10892 = vmatpush1.bf16.msra.mxu0 %v10580
    %10893 = vmatprep.subr.bf16.mxu0 0
    %10894 = vmatpush1.bf16.msra.mxu0 %v10581
    %10895 = vmatprep.subr.bf16.mxu0 0
    %10896 = vmatpush1.bf16.msra.mxu0 %v10582
    %10897 = vmatprep.subr.bf16.mxu0 0
    %10898 = vmatpush1.bf16.msra.mxu0 %v10583
    %10899 = vmatprep.subr.bf16.mxu0 0
    %10900 = vmatpush1.bf16.msra.mxu0 %v10584
    %10901 = vmatprep.subr.bf16.mxu0 0
    %10902 = vmatpush1.bf16.msra.mxu0 %v10585
    %10903 = vmatprep.subr.bf16.mxu0 0
    %10904 = vmatpush1.bf16.msra.mxu0 %v10586
    %10905 = vmatprep.subr.bf16.mxu0 0
    %10906 = vmatpush1.bf16.msra.mxu0 %v10587
    %10907 = vmatprep.subr.bf16.mxu0 0
    %10908 = vmatpush1.bf16.msra.mxu0 %v10588
    %10909 = vmatprep.mubr.bf16.mxu0 %v9755
    %10910 = vmatmul.mubr.bf16.gmra.mrb[0].mxu0 %v9754
    %v10911 = vpop.f32.mrb[0].mxu0
    %v10912 = vadd.f32 %v10872, %v10911
    %v10913 = vpop.f32.mrb[0].mxu0
    %v10914 = vpop.f32.mrb[0].mxu0
    %v10915 = vpop.f32.mrb[0].mxu0
    %10916 = vdwg.mxu0
    %10917 = vmatprep.subr.bf16.mxu0 0
    %10918 = vmatpush1.bf16.msra.mxu0 %v10589
    %10919 = vmatprep.subr.bf16.mxu0 0
    %10920 = vmatpush1.bf16.msra.mxu0 %v10590
    %10921 = vmatprep.subr.bf16.mxu0 0
    %10922 = vmatpush1.bf16.msra.mxu0 %v10591
    %10923 = vmatprep.subr.bf16.mxu0 0
    %10924 = vmatpush1.bf16.msra.mxu0 %v10592
    %10925 = vmatprep.subr.bf16.mxu0 0
    %10926 = vmatpush1.bf16.msra.mxu0 %v10593
    %10927 = vmatprep.subr.bf16.mxu0 0
    %10928 = vmatpush1.bf16.msra.mxu0 %v10594
    %10929 = vmatprep.subr.bf16.mxu0 0
    %10930 = vmatpush1.bf16.msra.mxu0 %v10595
    %10931 = vmatprep.subr.bf16.mxu0 0
    %10932 = vmatpush1.bf16.msra.mxu0 %v10596
    %10933 = vmatprep.subr.bf16.mxu0 0
    %10934 = vmatpush1.bf16.msra.mxu0 %v10597
    %10935 = vmatprep.subr.bf16.mxu0 0
    %10936 = vmatpush1.bf16.msra.mxu0 %v10598
    %10937 = vmatprep.subr.bf16.mxu0 0
    %10938 = vmatpush1.bf16.msra.mxu0 %v10599
    %10939 = vmatprep.subr.bf16.mxu0 0
    %10940 = vmatpush1.bf16.msra.mxu0 %v10600
    %10941 = vmatprep.subr.bf16.mxu0 0
    %10942 = vmatpush1.bf16.msra.mxu0 %v10601
    %10943 = vmatprep.subr.bf16.mxu0 0
    %10944 = vmatpush1.bf16.msra.mxu0 %v10602
    %10945 = vmatprep.subr.bf16.mxu0 0
    %10946 = vmatpush1.bf16.msra.mxu0 %v10603
    %10947 = vmatprep.subr.bf16.mxu0 0
    %10948 = vmatpush1.bf16.msra.mxu0 %v10604
    %10949 = vmatprep.mubr.bf16.mxu0 %v9757
    %10950 = vmatmul.mubr.bf16.gmra.mrb[0].mxu0 %v9756
    %v10951 = vpop.f32.mrb[0].mxu0
    %v10952 = vadd.f32 %v10912, %v10951
    %v10953 = vpop.f32.mrb[0].mxu0
    %v10954 = vpop.f32.mrb[0].mxu0
    %v10955 = vpop.f32.mrb[0].mxu0
    %10956 = vdwg.mxu0
    %10957 = vmatprep.subr.bf16.mxu0 0
    %10958 = vmatpush1.bf16.msra.mxu0 %v10605
    %10959 = vmatprep.subr.bf16.mxu0 0
    %10960 = vmatpush1.bf16.msra.mxu0 %v10606
    %10961 = vmatprep.subr.bf16.mxu0 0
    %10962 = vmatpush1.bf16.msra.mxu0 %v10607
    %10963 = vmatprep.subr.bf16.mxu0 0
    %10964 = vmatpush1.bf16.msra.mxu0 %v10608
    %10965 = vmatprep.subr.bf16.mxu0 0
    %10966 = vmatpush1.bf16.msra.mxu0 %v10609
    %10967 = vmatprep.subr.bf16.mxu0 0
    %10968 = vmatpush1.bf16.msra.mxu0 %v10610
    %10969 = vmatprep.subr.bf16.mxu0 0
    %10970 = vmatpush1.bf16.msra.mxu0 %v10611
    %10971 = vmatprep.subr.bf16.mxu0 0
    %10972 = vmatpush1.bf16.msra.mxu0 %v10612
    %10973 = vmatprep.subr.bf16.mxu0 0
    %10974 = vmatpush1.bf16.msra.mxu0 %v10613
    %10975 = vmatprep.subr.bf16.mxu0 0
    %10976 = vmatpush1.bf16.msra.mxu0 %v10614
    %10977 = vmatprep.subr.bf16.mxu0 0
    %10978 = vmatpush1.bf16.msra.mxu0 %v10615
    %10979 = vmatprep.subr.bf16.mxu0 0
    %10980 = vmatpush1.bf16.msra.mxu0 %v10616
    %10981 = vmatprep.subr.bf16.mxu0 0
    %10982 = vmatpush1.bf16.msra.mxu0 %v10617
    %10983 = vmatprep.subr.bf16.mxu0 0
    %10984 = vmatpush1.bf16.msra.mxu0 %v10618
    %10985 = vmatprep.subr.bf16.mxu0 0
    %10986 = vmatpush1.bf16.msra.mxu0 %v10619
    %10987 = vmatprep.subr.bf16.mxu0 0
    %10988 = vmatpush1.bf16.msra.mxu0 %v10620
    %10989 = vmatprep.mubr.bf16.mxu0 %v9759
    %10990 = vmatmul.mubr.bf16.gmra.mrb[0].mxu0 %v9758
    %v10991 = vpop.f32.mrb[0].mxu0
    %v10992 = vadd.f32 %v10952, %v10991
    %v10993 = vpop.f32.mrb[0].mxu0
    %v10994 = vpop.f32.mrb[0].mxu0
    %v10995 = vpop.f32.mrb[0].mxu0
    %10996 = vdwg.mxu0
    %10997 = vmatprep.subr.bf16.mxu0 0
    %10998 = vmatpush1.bf16.msra.mxu0 %v10621
    %10999 = vmatprep.subr.bf16.mxu0 0
    %11000 = vmatpush1.bf16.msra.mxu0 %v10622
    %11001 = vmatprep.subr.bf16.mxu0 0
    %11002 = vmatpush1.bf16.msra.mxu0 %v10623
    %11003 = vmatprep.subr.bf16.mxu0 0
    %11004 = vmatpush1.bf16.msra.mxu0 %v10624
    %11005 = vmatprep.subr.bf16.mxu0 0
    %11006 = vmatpush1.bf16.msra.mxu0 %v10625
    %11007 = vmatprep.subr.bf16.mxu0 0
    %11008 = vmatpush1.bf16.msra.mxu0 %v10626
    %11009 = vmatprep.subr.bf16.mxu0 0
    %11010 = vmatpush1.bf16.msra.mxu0 %v10627
    %11011 = vmatprep.subr.bf16.mxu0 0
    %11012 = vmatpush1.bf16.msra.mxu0 %v10628
    %11013 = vmatprep.subr.bf16.mxu0 0
    %11014 = vmatpush1.bf16.msra.mxu0 %v10629
    %11015 = vmatprep.subr.bf16.mxu0 0
    %11016 = vmatpush1.bf16.msra.mxu0 %v10630
    %11017 = vmatprep.subr.bf16.mxu0 0
    %11018 = vmatpush1.bf16.msra.mxu0 %v10631
    %11019 = vmatprep.subr.bf16.mxu0 0
    %11020 = vmatpush1.bf16.msra.mxu0 %v10632
    %11021 = vmatprep.subr.bf16.mxu0 0
    %11022 = vmatpush1.bf16.msra.mxu0 %v10633
    %11023 = vmatprep.subr.bf16.mxu0 0
    %11024 = vmatpush1.bf16.msra.mxu0 %v10634
    %11025 = vmatprep.subr.bf16.mxu0 0
    %11026 = vmatpush1.bf16.msra.mxu0 %v10635
    %11027 = vmatprep.subr.bf16.mxu0 0
    %11028 = vmatpush1.bf16.msra.mxu0 %v10636
    %11029 = vmatprep.mubr.bf16.mxu0 %v9761
    %11030 = vmatmul.mubr.bf16.gmra.mrb[0].mxu0 %v9760
    %v11031 = vpop.f32.mrb[0].mxu0
    %v11032 = vadd.f32 %v10992, %v11031
    %v11033 = vpop.f32.mrb[0].mxu0
    %v11034 = vpop.f32.mrb[0].mxu0
    %v11035 = vpop.f32.mrb[0].mxu0
    %11036 = vdwg.mxu0
    %11037 = vmatprep.subr.bf16.mxu0 0
    %11038 = vmatpush1.bf16.msra.mxu0 %v10637
    %11039 = vmatprep.subr.bf16.mxu0 0
    %11040 = vmatpush1.bf16.msra.mxu0 %v10638
    %11041 = vmatprep.subr.bf16.mxu0 0
    %11042 = vmatpush1.bf16.msra.mxu0 %v10639
    %11043 = vmatprep.subr.bf16.mxu0 0
    %11044 = vmatpush1.bf16.msra.mxu0 %v10640
    %11045 = vmatprep.subr.bf16.mxu0 0
    %11046 = vmatpush1.bf16.msra.mxu0 %v10641
    %11047 = vmatprep.subr.bf16.mxu0 0
    %11048 = vmatpush1.bf16.msra.mxu0 %v10642
    %11049 = vmatprep.subr.bf16.mxu0 0
    %11050 = vmatpush1.bf16.msra.mxu0 %v10643
    %11051 = vmatprep.subr.bf16.mxu0 0
    %11052 = vmatpush1.bf16.msra.mxu0 %v10644
    %11053 = vmatprep.subr.bf16.mxu0 0
    %11054 = vmatpush1.bf16.msra.mxu0 %v10645
    %11055 = vmatprep.subr.bf16.mxu0 0
    %11056 = vmatpush1.bf16.msra.mxu0 %v10646
    %11057 = vmatprep.subr.bf16.mxu0 0
    %11058 = vmatpush1.bf16.msra.mxu0 %v10647
    %11059 = vmatprep.subr.bf16.mxu0 0
    %11060 = vmatpush1.bf16.msra.mxu0 %v10648
    %11061 = vmatprep.subr.bf16.mxu0 0
    %11062 = vmatpush1.bf16.msra.mxu0 %v10649
    %11063 = vmatprep.subr.bf16.mxu0 0
    %11064 = vmatpush1.bf16.msra.mxu0 %v10650
    %11065 = vmatprep.subr.bf16.mxu0 0
    %11066 = vmatpush1.bf16.msra.mxu0 %v10651
    %11067 = vmatprep.subr.bf16.mxu0 0
    %11068 = vmatpush1.bf16.msra.mxu0 %v10652
    %11069 = vmatprep.mubr.bf16.mxu0 %v9763
    %11070 = vmatmul.mubr.bf16.gmra.mrb[0].mxu0 %v9762
    %v11071 = vpop.f32.mrb[0].mxu0
    %v11072 = vadd.f32 %v11032, %v11071
    %v11073 = vpop.f32.mrb[0].mxu0
    %v11074 = vpop.f32.mrb[0].mxu0
    %v11075 = vpop.f32.mrb[0].mxu0
    %11076 = vdwg.mxu0
    %11077 = vmatprep.subr.bf16.mxu0 0
    %11078 = vmatpush1.bf16.msra.mxu0 %v10653
    %11079 = vmatprep.subr.bf16.mxu0 0
    %11080 = vmatpush1.bf16.msra.mxu0 %v10654
    %11081 = vmatprep.subr.bf16.mxu0 0
    %11082 = vmatpush1.bf16.msra.mxu0 %v10655
    %11083 = vmatprep.subr.bf16.mxu0 0
    %11084 = vmatpush1.bf16.msra.mxu0 %v10656
    %11085 = vmatprep.subr.bf16.mxu0 0
    %11086 = vmatpush1.bf16.msra.mxu0 %v10657
    %11087 = vmatprep.subr.bf16.mxu0 0
    %11088 = vmatpush1.bf16.msra.mxu0 %v10658
    %11089 = vmatprep.subr.bf16.mxu0 0
    %11090 = vmatpush1.bf16.msra.mxu0 %v10659
    %11091 = vmatprep.subr.bf16.mxu0 0
    %11092 = vmatpush1.bf16.msra.mxu0 %v10660
    %11093 = vmatprep.subr.bf16.mxu0 0
    %11094 = vmatpush1.bf16.msra.mxu0 %v10661
    %11095 = vmatprep.subr.bf16.mxu0 0
    %11096 = vmatpush1.bf16.msra.mxu0 %v10662
    %11097 = vmatprep.subr.bf16.mxu0 0
    %11098 = vmatpush1.bf16.msra.mxu0 %v10663
    %11099 = vmatprep.subr.bf16.mxu0 0
    %11100 = vmatpush1.bf16.msra.mxu0 %v10664
    %11101 = vmatprep.subr.bf16.mxu0 0
    %11102 = vmatpush1.bf16.msra.mxu0 %v10665
    %11103 = vmatprep.subr.bf16.mxu0 0
    %11104 = vmatpush1.bf16.msra.mxu0 %v10666
    %11105 = vmatprep.subr.bf16.mxu0 0
    %11106 = vmatpush1.bf16.msra.mxu0 %v10667
    %11107 = vmatprep.subr.bf16.mxu0 0
    %11108 = vmatpush1.bf16.msra.mxu0 %v10668
    %11109 = vmatprep.mubr.bf16.mxu0 %v9765
    %11110 = vmatmul.mubr.bf16.gmra.mrb[0].mxu0 %v9764
    %v11111 = vpop.f32.mrb[0].mxu0
    %v11112 = vadd.f32 %v11072, %v11111
    %v11113 = vpop.f32.mrb[0].mxu0
    %v11114 = vpop.f32.mrb[0].mxu0
    %v11115 = vpop.f32.mrb[0].mxu0
    %11116 = vdwg.mxu0
    %11117 = vst [vmem:[#allocation5] sm:$0xff] %v11112
    // Predicated region
    $region22: #{tpu_custom_call.1} parent=1 // pred_check
      _
    $region23: #{tpu_custom_call.1} parent=1 // pred_check_branch
      %11119 = sbr.rel (0) target = $region25
    $region24: #{tpu_custom_call.1} parent=1 // pred_region
      %s11121 = ssub.s32 128, 128
      %11122 = vsyncadd [#allocation6], %s11121
      %s11124 = sshll.u32 [#allocation5], 4
      %s11125 = int_to_ptr.vmem [resolvable:$true] %s11124
      %11127 = dma.vmem_to_hbm [thread:$0]  %s11125, 128, %s5, [#allocation6]
    $region25: #{tpu_custom_call.1} parent=1 // pred_fallthru
      _
    // Predicated region
    $region26: #{tpu_custom_call.1} parent=1 // pred_check
      _
    $region27: #{tpu_custom_call.1} parent=1 // pred_check_branch
      %11129 = sbr.rel (0) target = $region29
    $region28: #{tpu_custom_call.1} parent=1 // pred_region
      %11130 = dma.done [#allocation6], 128
    $region29: #{tpu_custom_call.1} parent=1 // pred_fallthru
      _
    %11131 = vsyncpa [#allocation6], 1

</llo_original>
